<compile_context>
chip_gen: v6e
topology: v6e:2x2x1
jax: 0.10.0
libtpu: 0.0.40
codegen_flags: <defaults>
</compile_context>

<pallas_src>
from functools import partial

import jax
import jax.numpy as jnp
from jax.experimental import pallas as pl
from jax.experimental.pallas import tpu as pltpu


def _patch_embed_kernel(x4_ref, w1_ref, b1_ref, w2_ref, b2_ref, w3_ref, b3_ref,
                        o_ref, a1p_ref, a2p_ref, *, ho, wo):
    """Fused PatchEmbedding for one image.

    x4_ref : (16*(ho+1), wo+1, cin)  mod-4 space-to-depth input, plane-major, front halo
                                     (plane q = 4*(row%4) + (col%4); data at [1+m,1+p]).
    w1_ref : (9, cin, c1)            conv1 weights (BN scale folded), index 3*kh+kw.
    b1_ref : (1, c1)                 conv1 folded BN bias.
    w2_ref : (9, c1, c2), b2_ref: (1, c2)   conv2 (BN folded).
    w3_ref : (9, c2, cout), b3_ref: (1, cout)  conv3 + bias.
    o_ref  : (ho*wo, cout)           output tokens for this image (byte-dense, no pad).
    a1p_ref: (4*(ho+1), wo+8, c1)    conv1 output, parity-plane-major, zero halo at
                                     plane-row 0 and col 7, interior at cols [8:8+wo).
    a2p_ref: (ho+2, wo+9, c2)        conv2 output, zero halo rows {0, ho+1} and cols
                                     {7, wo+8}, interior rows [1:1+ho), cols [8:8+wo).
    """
    n = ho * wo
    hp1 = ho + 1
    cin = x4_ref.shape[-1]
    c1 = w1_ref.shape[-1]
    c2 = w2_ref.shape[-1]
    cout = w3_ref.shape[-1]
    f32 = jnp.float32

    # ---- zero ONLY the halo slices (tiny), every step: scratch is per-core and a
    # pl.when(program_id==0) init would miss the second TensorCore under "parallel".
    for g in range(4):
        a1p_ref[g * hp1:g * hp1 + 1, :, :] = jnp.zeros((1, wo + 8, c1), f32)
    a1p_ref[:, 7:8, :] = jnp.zeros((4 * hp1, 1, c1), f32)
    a2p_ref[0:1, :, :] = jnp.zeros((1, wo + 9, c2), f32)
    a2p_ref[ho + 1:ho + 2, :, :] = jnp.zeros((1, wo + 9, c2), f32)
    a2p_ref[:, 7:8, :] = jnp.zeros((ho + 2, 1, c2), f32)
    a2p_ref[:, wo + 8:wo + 9, :] = jnp.zeros((ho + 2, 1, c2), f32)

    # ---- conv1 (3x3 / stride 2) + BN(folded) + ReLU, one conv1-output parity plane at a
    # time.  Taps are dense slices of the s2d input; per-tap dots accumulate in f32.
    for pr in range(2):
        for pc in range(2):
            g = 2 * pr + pc
            acc = jnp.zeros((n, c1), f32)
            for kh in range(3):
                dr = 2 * pr + kh - 1
                qr, r0 = dr % 4, (0 if dr < 0 else 1)
                for kw in range(3):
                    dc = 2 * pc + kw - 1
                    qc, c0 = dc % 4, (0 if dc < 0 else 1)
                    base = (4 * qr + qc) * hp1
                    tap = x4_ref[base + r0:base + r0 + ho, c0:c0 + wo, :].reshape(n, cin)
                    acc = acc + jnp.dot(tap, w1_ref[3 * kh + kw],
                                        preferred_element_type=f32)
            y1 = jnp.maximum(acc + b1_ref[...], 0.0)
            # whole-channel, sublane-aligned (col offset 8) interior write of plane g
            a1p_ref[g * hp1 + 1:g * hp1 + 1 + ho, 8:8 + wo, :] = y1.reshape(ho, wo, c1)

    # ---- conv2 (3x3 / stride 2) + BN(folded) + ReLU: stride-2 taps are dense slices of
    # the parity-plane buffer.
    acc = jnp.zeros((n, c2), f32)
    for kh in range(3):
        pr = 0 if kh == 1 else 1
        r0 = 0 if kh == 0 else 1
        for kw in range(3):
            pc = 0 if kw == 1 else 1
            c0 = 7 if kw == 0 else 8
            base = (2 * pr + pc) * hp1
            tap = a1p_ref[base + r0:base + r0 + ho, c0:c0 + wo, :].reshape(n, c1)
            acc = acc + jnp.dot(tap, w2_ref[3 * kh + kw], preferred_element_type=f32)
    y2 = jnp.maximum(acc + b2_ref[...], 0.0)
    a2p_ref[1:1 + ho, 8:8 + wo, :] = y2.reshape(ho, wo, c2)

    # ---- conv3 (3x3 / stride 1) + bias ----------------------------------------------
    acc = jnp.zeros((n, cout), f32)
    for kh in range(3):
        for kw in range(3):
            tap = a2p_ref[kh:kh + ho, 7 + kw:7 + kw + wo, :].reshape(n, c2)
            acc = acc + jnp.dot(tap, w3_ref[3 * kh + kw], preferred_element_type=f32)
    y3 = acc + b3_ref[...]

    # byte-dense store: exactly (n, cout), no zero padding, no wrapper-side slice.
    o_ref[...] = y3.astype(o_ref.dtype)


def init_basic_layer_params(key, in_chans=3, token_dims=32):
    """Synthetic params for PatchEmbedding(inter=token_dims//2, out=token_dims).

    Includes BatchNorm affine params AND running stats (eval-mode semantics).
    """
    inter = token_dims // 2
    ks = jax.random.split(key, 12)
    p = {}
    p["w1"] = 0.2 * jax.random.normal(ks[0], (3, 3, in_chans, inter), jnp.float32)
    p["g1"] = 1.0 + 0.1 * jax.random.normal(ks[1], (inter,), jnp.float32)
    p["b1"] = 0.1 * jax.random.normal(ks[2], (inter,), jnp.float32)
    p["m1"] = 0.1 * jax.random.normal(ks[3], (inter,), jnp.float32)
    p["v1"] = 1.0 + 0.2 * jax.random.uniform(ks[4], (inter,), jnp.float32)
    p["w2"] = 0.2 * jax.random.normal(ks[5], (3, 3, inter, token_dims), jnp.float32)
    p["g2"] = 1.0 + 0.1 * jax.random.normal(ks[6], (token_dims,), jnp.float32)
    p["b2"] = 0.1 * jax.random.normal(ks[7], (token_dims,), jnp.float32)
    p["m2"] = 0.1 * jax.random.normal(ks[8], (token_dims,), jnp.float32)
    p["v2"] = 1.0 + 0.2 * jax.random.uniform(ks[9], (token_dims,), jnp.float32)
    p["w3"] = 0.2 * jax.random.normal(ks[10], (3, 3, token_dims, token_dims), jnp.float32)
    p["b3"] = 0.1 * jax.random.normal(ks[11], (token_dims,), jnp.float32)
    return p


def basic_layer_forward(x_nchw, size, p, eps=1e-5):
    """BasicLayer.forward with RC_tokens_type='stem' (PatchEmbedding reduction cell).

    Returns (tokens (B, (H//4)*(W//4), token_dims), (H//4, W//4)).
    """
    del size  # PatchEmbedding recomputes (h, w) from the conv output shape
    b, cin, h, w = x_nchw.shape
    assert h % 4 == 0 and w % 4 == 0, "stem patch embedding expects H, W divisible by 4"
    ho, wo = h // 4, w // 4
    n = ho * wo

    c1 = p["w1"].shape[-1]
    c2 = p["w2"].shape[-1]
    cout = p["w3"].shape[-1]

    # Parameter prep (trace-time, tiny): fold eval-mode BatchNorm into the conv weights.
    #   scale = gamma / sqrt(var + eps), bias = beta - mean * scale
    s1 = p["g1"] / jnp.sqrt(p["v1"] + eps)
    s2 = p["g2"] / jnp.sqrt(p["v2"] + eps)
    w1f = (p["w1"] * s1).reshape(9, cin, c1)
    b1f = (p["b1"] - p["m1"] * s1).reshape(1, c1)
    w2f = (p["w2"] * s2).reshape(9, c1, c2)
    b2f = (p["b2"] - p["m2"] * s2).reshape(1, c2)
    w3f = p["w3"].reshape(9, c2, cout)
    b3f = p["b3"].reshape(1, cout)

    # Non-duplicating mod-4 space-to-depth of the input (single transpose pass straight
    # from NCHW), plane-major with a one-pixel zero front halo; flattened to rank 3 so
    # every in-kernel tap is a contiguous-row, whole-lane slice.
    x4 = x_nchw.reshape(b, cin, ho, 4, wo, 4).transpose(0, 3, 5, 2, 4, 1)   # (b,4,4,ho,wo,cin)
    x4 = x4.reshape(b, 16, ho, wo, cin)
    x4 = jnp.pad(x4, ((0, 0), (0, 0), (1, 0), (1, 0), (0, 0)))              # front halo
    x4 = x4.reshape(b, 16 * (ho + 1), wo + 1, cin)

    kernel = partial(_patch_embed_kernel, ho=ho, wo=wo)
    out = pl.pallas_call(
        kernel,
        out_shape=jax.ShapeDtypeStruct((b, n, cout), jnp.float32),
        grid=(b,),
        in_specs=[
            pl.BlockSpec((None, 16 * (ho + 1), wo + 1, cin), lambda i: (i, 0, 0, 0)),
            pl.BlockSpec((9, cin, c1), lambda i: (0, 0, 0)),
            pl.BlockSpec((1, c1), lambda i: (0, 0)),
            pl.BlockSpec((9, c1, c2), lambda i: (0, 0, 0)),
            pl.BlockSpec((1, c2), lambda i: (0, 0)),
            pl.BlockSpec((9, c2, cout), lambda i: (0, 0, 0)),
            pl.BlockSpec((1, cout), lambda i: (0, 0)),
        ],
        out_specs=pl.BlockSpec((None, n, cout), lambda i: (i, 0, 0)),
        scratch_shapes=[
            pltpu.VMEM((4 * (ho + 1), wo + 8, c1), jnp.float32),  # conv1 out (parity, halo)
            pltpu.VMEM((ho + 2, wo + 9, c2), jnp.float32),        # conv2 out (halo)
        ],
        compiler_params=pltpu.CompilerParams(
            dimension_semantics=("parallel",),   # batch items are independent (v7x: 2 TCs)
        ),
    )(x4, w1f, b1f, w2f, b2f, w3f, b3f)

    # TODO(synk): NormalCell (self.NC transformer blocks) was not provided in the
    # reference source; only the reduction-cell (stem) path of BasicLayer.forward is
    # implemented here.
    return out, (ho, wo)


def _reference_forward(x_nchw, p, eps=1e-5):
    """Pure-JAX reference (lax.conv + explicit eval-mode BatchNorm), for verification."""
    x = jnp.transpose(x_nchw, (0, 2, 3, 1))

    def conv(x, w, stride):
        return jax.lax.conv_general_dilated(
            x, w, window_strides=(stride, stride), padding=((1, 1), (1, 1)),
            dimension_numbers=("NHWC", "HWIO", "NHWC"))

    def bn(y, g, b, m, v):
        return (y - m) / jnp.sqrt(v + eps) * g + b

    y = jnp.maximum(bn(conv(x, p["w1"], 2), p["g1"], p["b1"], p["m1"], p["v1"]), 0.0)
    y = jnp.maximum(bn(conv(y, p["w2"], 2), p["g2"], p["b2"], p["m2"], p["v2"]), 0.0)
    y = conv(y, p["w3"], 1) + p["b3"]
    b, h, w, c = y.shape
    return y.reshape(b, h * w, c)


if __name__ == "__main__":
    key = jax.random.PRNGKey(0)
    B, C, H, W = 2, 3, 16, 16        # PatchEmbedding's conv1 expects 3 input channels
    token_dims = 32

    kx, kp = jax.random.split(key)
    x = jax.random.normal(kx, (B, C, H, W), jnp.float32)
    params = init_basic_layer_params(kp, in_chans=C, token_dims=token_dims)

    out, (h, w) = basic_layer_forward(x, (H, W), params)
    out = jax.block_until_ready(out)

    ref = _reference_forward(x, params)
    assert out.shape == (B, (H // 4) * (W // 4), token_dims), out.shape
    assert (h, w) == (H // 4, W // 4), (h, w)
    err = float(jnp.max(jnp.abs(out - ref)))
    assert jnp.allclose(out, ref, atol=5e-4, rtol=5e-4), err
    print("KERNEL_OK")
</pallas_src>

<mosaic_0001>
module attributes {stable_mosaic.version = 11 : i64} {
  func.func @_patch_embed_kernel(%arg0: i32, %arg1: memref<1x80x5x3xf32, #tpu.memory_space<vmem>>, %arg2: memref<9x3x16xf32, #tpu.memory_space<vmem>>, %arg3: memref<1x16xf32, #tpu.memory_space<vmem>>, %arg4: memref<9x16x32xf32, #tpu.memory_space<vmem>>, %arg5: memref<1x32xf32, #tpu.memory_space<vmem>>, %arg6: memref<9x32x32xf32, #tpu.memory_space<vmem>>, %arg7: memref<1x32xf32, #tpu.memory_space<vmem>>, %arg8: memref<1x16x32xf32, #tpu.memory_space<vmem>>, %arg9: memref<20x12x16xf32, #tpu.memory_space<vmem>>, %arg10: memref<6x13x32xf32, #tpu.memory_space<vmem>>) attributes {dimension_semantics = [#tpu.dimension_semantics<parallel>], iteration_bounds = array<i64: 2>, scalar_prefetch = 0 : i64, scratch_operands = 2 : i64, tpu.core_type = #tpu.core_type<tc>, window_params = [{transform_indices = @transform_0, window_bounds = array<i64: 1, 80, 5, 3>}, {pipeline_mode = #tpu.pipeline_mode<synchronous>, transform_indices = @transform_1, window_bounds = array<i64: 9, 3, 16>}, {pipeline_mode = #tpu.pipeline_mode<synchronous>, transform_indices = @transform_2, window_bounds = array<i64: 1, 16>}, {pipeline_mode = #tpu.pipeline_mode<synchronous>, transform_indices = @transform_3, window_bounds = array<i64: 9, 16, 32>}, {pipeline_mode = #tpu.pipeline_mode<synchronous>, transform_indices = @transform_4, window_bounds = array<i64: 1, 32>}, {pipeline_mode = #tpu.pipeline_mode<synchronous>, transform_indices = @transform_5, window_bounds = array<i64: 9, 32, 32>}, {pipeline_mode = #tpu.pipeline_mode<synchronous>, transform_indices = @transform_6, window_bounds = array<i64: 1, 32>}, {transform_indices = @transform_7, window_bounds = array<i64: 1, 16, 32>}]} {
    %cst = arith.constant 0.000000e+00 : f32
    %0 = vector.broadcast %cst : f32 to vector<1x12x16xf32>
    %c0 = arith.constant 0 : index
    %c0_0 = arith.constant 0 : index
    %c0_1 = arith.constant 0 : index
    %1 = vector.load %arg9[%c0, %c0_0, %c0_1] : memref<20x12x16xf32, #tpu.memory_space<vmem>>, vector<1x12x16xf32>
    tpu.vector_store %arg9[%c0, %c0_0, %c0_1], %0 {strides = array<i32>} : memref<20x12x16xf32, #tpu.memory_space<vmem>>, vector<1x12x16xf32>,
    %cst_2 = arith.constant 0.000000e+00 : f32
    %2 = vector.broadcast %cst_2 : f32 to vector<1x12x16xf32>
    %c5 = arith.constant 5 : index
    %c0_3 = arith.constant 0 : index
    %c0_4 = arith.constant 0 : index
    %3 = vector.load %arg9[%c5, %c0_3, %c0_4] : memref<20x12x16xf32, #tpu.memory_space<vmem>>, vector<1x12x16xf32>
    tpu.vector_store %arg9[%c5, %c0_3, %c0_4], %2 {strides = array<i32>} : memref<20x12x16xf32, #tpu.memory_space<vmem>>, vector<1x12x16xf32>,
    %cst_5 = arith.constant 0.000000e+00 : f32
    %4 = vector.broadcast %cst_5 : f32 to vector<1x12x16xf32>
    %c10 = arith.constant 10 : index
    %c0_6 = arith.constant 0 : index
    %c0_7 = arith.constant 0 : index
    %5 = vector.load %arg9[%c10, %c0_6, %c0_7] : memref<20x12x16xf32, #tpu.memory_space<vmem>>, vector<1x12x16xf32>
    tpu.vector_store %arg9[%c10, %c0_6, %c0_7], %4 {strides = array<i32>} : memref<20x12x16xf32, #tpu.memory_space<vmem>>, vector<1x12x16xf32>,
    %cst_8 = arith.constant 0.000000e+00 : f32
    %6 = vector.broadcast %cst_8 : f32 to vector<1x12x16xf32>
    %c15 = arith.constant 15 : index
    %c0_9 = arith.constant 0 : index
    %c0_10 = arith.constant 0 : index
    %7 = vector.load %arg9[%c15, %c0_9, %c0_10] : memref<20x12x16xf32, #tpu.memory_space<vmem>>, vector<1x12x16xf32>
    tpu.vector_store %arg9[%c15, %c0_9, %c0_10], %6 {strides = array<i32>} : memref<20x12x16xf32, #tpu.memory_space<vmem>>, vector<1x12x16xf32>,
    %cst_11 = arith.constant 0.000000e+00 : f32
    %8 = vector.broadcast %cst_11 : f32 to vector<20x1x16xf32>
    %c0_12 = arith.constant 0 : index
    %c7 = arith.constant 7 : index
    %c0_13 = arith.constant 0 : index
    %9 = vector.load %arg9[%c0_12, %c7, %c0_13] : memref<20x12x16xf32, #tpu.memory_space<vmem>>, vector<20x1x16xf32>
    tpu.vector_store %arg9[%c0_12, %c7, %c0_13], %8 {strides = array<i32>} : memref<20x12x16xf32, #tpu.memory_space<vmem>>, vector<20x1x16xf32>,
    %cst_14 = arith.constant 0.000000e+00 : f32
    %10 = vector.broadcast %cst_14 : f32 to vector<1x13x32xf32>
    %c0_15 = arith.constant 0 : index
    %c0_16 = arith.constant 0 : index
    %c0_17 = arith.constant 0 : index
    %11 = vector.load %arg10[%c0_15, %c0_16, %c0_17] : memref<6x13x32xf32, #tpu.memory_space<vmem>>, vector<1x13x32xf32>
    tpu.vector_store %arg10[%c0_15, %c0_16, %c0_17], %10 {strides = array<i32>} : memref<6x13x32xf32, #tpu.memory_space<vmem>>, vector<1x13x32xf32>,
    %cst_18 = arith.constant 0.000000e+00 : f32
    %12 = vector.broadcast %cst_18 : f32 to vector<1x13x32xf32>
    %c5_19 = arith.constant 5 : index
    %c0_20 = arith.constant 0 : index
    %c0_21 = arith.constant 0 : index
    %13 = vector.load %arg10[%c5_19, %c0_20, %c0_21] : memref<6x13x32xf32, #tpu.memory_space<vmem>>, vector<1x13x32xf32>
    tpu.vector_store %arg10[%c5_19, %c0_20, %c0_21], %12 {strides = array<i32>} : memref<6x13x32xf32, #tpu.memory_space<vmem>>, vector<1x13x32xf32>,
    %cst_22 = arith.constant 0.000000e+00 : f32
    %14 = vector.broadcast %cst_22 : f32 to vector<6x1x32xf32>
    %c0_23 = arith.constant 0 : index
    %c7_24 = arith.constant 7 : index
    %c0_25 = arith.constant 0 : index
    %15 = vector.load %arg10[%c0_23, %c7_24, %c0_25] : memref<6x13x32xf32, #tpu.memory_space<vmem>>, vector<6x1x32xf32>
    tpu.vector_store %arg10[%c0_23, %c7_24, %c0_25], %14 {strides = array<i32>} : memref<6x13x32xf32, #tpu.memory_space<vmem>>, vector<6x1x32xf32>,
    %cst_26 = arith.constant 0.000000e+00 : f32
    %16 = vector.broadcast %cst_26 : f32 to vector<6x1x32xf32>
    %c0_27 = arith.constant 0 : index
    %c12 = arith.constant 12 : index
    %c0_28 = arith.constant 0 : index
    %17 = vector.load %arg10[%c0_27, %c12, %c0_28] : memref<6x13x32xf32, #tpu.memory_space<vmem>>, vector<6x1x32xf32>
    tpu.vector_store %arg10[%c0_27, %c12, %c0_28], %16 {strides = array<i32>} : memref<6x13x32xf32, #tpu.memory_space<vmem>>, vector<6x1x32xf32>,
    %cst_29 = arith.constant 0.000000e+00 : f32
    %18 = vector.broadcast %cst_29 : f32 to vector<16x16xf32>
    %c0_30 = arith.constant 0 : index
    %c75 = arith.constant 75 : index
    %c0_31 = arith.constant 0 : index
    %c0_32 = arith.constant 0 : index
    %19 = vector.load %arg1[%c0_30, %c75, %c0_31, %c0_32] : memref<1x80x5x3xf32, #tpu.memory_space<vmem>>, vector<1x4x4x3xf32>
    %20 = vector.shape_cast %19 : vector<1x4x4x3xf32> to vector<4x4x3xf32>
    %21 = vector.shape_cast %20 : vector<4x4x3xf32> to vector<16x3xf32>
    %c0_33 = arith.constant 0 : index
    %c0_34 = arith.constant 0 : index
    %c0_35 = arith.constant 0 : index
    %22 = vector.load %arg2[%c0_33, %c0_34, %c0_35] : memref<9x3x16xf32, #tpu.memory_space<vmem>>, vector<1x3x16xf32>
    %23 = vector.shape_cast %22 : vector<1x3x16xf32> to vector<3x16xf32>
    %cst_36 = arith.constant dense<0.000000e+00> : vector<16x16xf32>
    %24 = tpu.matmul %21, %23, %cst_36 {dimension_numbers = #tpu.dot_dimension_numbers<[1], [0], [0], [1], [0, 0, 1, 1], [], []>} : vector<16x3xf32>, vector<3x16xf32>, vector<16x16xf32> -> vector<16x16xf32>
    %25 = arith.addf %18, %24 : vector<16x16xf32>
    %c0_37 = arith.constant 0 : index
    %c60 = arith.constant 60 : index
    %c1 = arith.constant 1 : index
    %c0_38 = arith.constant 0 : index
    %26 = vector.load %arg1[%c0_37, %c60, %c1, %c0_38] : memref<1x80x5x3xf32, #tpu.memory_space<vmem>>, vector<1x4x4x3xf32>
    %27 = vector.shape_cast %26 : vector<1x4x4x3xf32> to vector<4x4x3xf32>
    %28 = vector.shape_cast %27 : vector<4x4x3xf32> to vector<16x3xf32>
    %c1_39 = arith.constant 1 : index
    %c0_40 = arith.constant 0 : index
    %c0_41 = arith.constant 0 : index
    %29 = vector.load %arg2[%c1_39, %c0_40, %c0_41] : memref<9x3x16xf32, #tpu.memory_space<vmem>>, vector<1x3x16xf32>
    %30 = vector.shape_cast %29 : vector<1x3x16xf32> to vector<3x16xf32>
    %cst_42 = arith.constant dense<0.000000e+00> : vector<16x16xf32>
    %31 = tpu.matmul %28, %30, %cst_42 {dimension_numbers = #tpu.dot_dimension_numbers<[1], [0], [0], [1], [0, 0, 1, 1], [], []>} : vector<16x3xf32>, vector<3x16xf32>, vector<16x16xf32> -> vector<16x16xf32>
    %32 = arith.addf %25, %31 : vector<16x16xf32>
    %c0_43 = arith.constant 0 : index
    %c65 = arith.constant 65 : index
    %c1_44 = arith.constant 1 : index
    %c0_45 = arith.constant 0 : index
    %33 = vector.load %arg1[%c0_43, %c65, %c1_44, %c0_45] : memref<1x80x5x3xf32, #tpu.memory_space<vmem>>, vector<1x4x4x3xf32>
    %34 = vector.shape_cast %33 : vector<1x4x4x3xf32> to vector<4x4x3xf32>
    %35 = vector.shape_cast %34 : vector<4x4x3xf32> to vector<16x3xf32>
    %c2 = arith.constant 2 : index
    %c0_46 = arith.constant 0 : index
    %c0_47 = arith.constant 0 : index
    %36 = vector.load %arg2[%c2, %c0_46, %c0_47] : memref<9x3x16xf32, #tpu.memory_space<vmem>>, vector<1x3x16xf32>
    %37 = vector.shape_cast %36 : vector<1x3x16xf32> to vector<3x16xf32>
    %cst_48 = arith.constant dense<0.000000e+00> : vector<16x16xf32>
    %38 = tpu.matmul %35, %37, %cst_48 {dimension_numbers = #tpu.dot_dimension_numbers<[1], [0], [0], [1], [0, 0, 1, 1], [], []>} : vector<16x3xf32>, vector<3x16xf32>, vector<16x16xf32> -> vector<16x16xf32>
    %39 = arith.addf %32, %38 : vector<16x16xf32>
    %c0_49 = arith.constant 0 : index
    %c16 = arith.constant 16 : index
    %c0_50 = arith.constant 0 : index
    %c0_51 = arith.constant 0 : index
    %40 = vector.load %arg1[%c0_49, %c16, %c0_50, %c0_51] : memref<1x80x5x3xf32, #tpu.memory_space<vmem>>, vector<1x4x4x3xf32>
    %41 = vector.shape_cast %40 : vector<1x4x4x3xf32> to vector<4x4x3xf32>
    %42 = vector.shape_cast %41 : vector<4x4x3xf32> to vector<16x3xf32>
    %c3 = arith.constant 3 : index
    %c0_52 = arith.constant 0 : index
    %c0_53 = arith.constant 0 : index
    %43 = vector.load %arg2[%c3, %c0_52, %c0_53] : memref<9x3x16xf32, #tpu.memory_space<vmem>>, vector<1x3x16xf32>
    %44 = vector.shape_cast %43 : vector<1x3x16xf32> to vector<3x16xf32>
    %cst_54 = arith.constant dense<0.000000e+00> : vector<16x16xf32>
    %45 = tpu.matmul %42, %44, %cst_54 {dimension_numbers = #tpu.dot_dimension_numbers<[1], [0], [0], [1], [0, 0, 1, 1], [], []>} : vector<16x3xf32>, vector<3x16xf32>, vector<16x16xf32> -> vector<16x16xf32>
    %46 = arith.addf %39, %45 : vector<16x16xf32>
    %c0_55 = arith.constant 0 : index
    %c1_56 = arith.constant 1 : index
    %c1_57 = arith.constant 1 : index
    %c0_58 = arith.constant 0 : index
    %47 = vector.load %arg1[%c0_55, %c1_56, %c1_57, %c0_58] : memref<1x80x5x3xf32, #tpu.memory_space<vmem>>, vector<1x4x4x3xf32>
    %48 = vector.shape_cast %47 : vector<1x4x4x3xf32> to vector<4x4x3xf32>
    %49 = vector.shape_cast %48 : vector<4x4x3xf32> to vector<16x3xf32>
    %c4 = arith.constant 4 : index
    %c0_59 = arith.constant 0 : index
    %c0_60 = arith.constant 0 : index
    %50 = vector.load %arg2[%c4, %c0_59, %c0_60] : memref<9x3x16xf32, #tpu.memory_space<vmem>>, vector<1x3x16xf32>
    %51 = vector.shape_cast %50 : vector<1x3x16xf32> to vector<3x16xf32>
    %cst_61 = arith.constant dense<0.000000e+00> : vector<16x16xf32>
    %52 = tpu.matmul %49, %51, %cst_61 {dimension_numbers = #tpu.dot_dimension_numbers<[1], [0], [0], [1], [0, 0, 1, 1], [], []>} : vector<16x3xf32>, vector<3x16xf32>, vector<16x16xf32> -> vector<16x16xf32>
    %53 = arith.addf %46, %52 : vector<16x16xf32>
    %c0_62 = arith.constant 0 : index
    %c6 = arith.constant 6 : index
    %c1_63 = arith.constant 1 : index
    %c0_64 = arith.constant 0 : index
    %54 = vector.load %arg1[%c0_62, %c6, %c1_63, %c0_64] : memref<1x80x5x3xf32, #tpu.memory_space<vmem>>, vector<1x4x4x3xf32>
    %55 = vector.shape_cast %54 : vector<1x4x4x3xf32> to vector<4x4x3xf32>
    %56 = vector.shape_cast %55 : vector<4x4x3xf32> to vector<16x3xf32>
    %c5_65 = arith.constant 5 : index
    %c0_66 = arith.constant 0 : index
    %c0_67 = arith.constant 0 : index
    %57 = vector.load %arg2[%c5_65, %c0_66, %c0_67] : memref<9x3x16xf32, #tpu.memory_space<vmem>>, vector<1x3x16xf32>
    %58 = vector.shape_cast %57 : vector<1x3x16xf32> to vector<3x16xf32>
    %cst_68 = arith.constant dense<0.000000e+00> : vector<16x16xf32>
    %59 = tpu.matmul %56, %58, %cst_68 {dimension_numbers = #tpu.dot_dimension_numbers<[1], [0], [0], [1], [0, 0, 1, 1], [], []>} : vector<16x3xf32>, vector<3x16xf32>, vector<16x16xf32> -> vector<16x16xf32>
    %60 = arith.addf %53, %59 : vector<16x16xf32>
    %c0_69 = arith.constant 0 : index
    %c36 = arith.constant 36 : index
    %c0_70 = arith.constant 0 : index
    %c0_71 = arith.constant 0 : index
    %61 = vector.load %arg1[%c0_69, %c36, %c0_70, %c0_71] : memref<1x80x5x3xf32, #tpu.memory_space<vmem>>, vector<1x4x4x3xf32>
    %62 = vector.shape_cast %61 : vector<1x4x4x3xf32> to vector<4x4x3xf32>
    %63 = vector.shape_cast %62 : vector<4x4x3xf32> to vector<16x3xf32>
    %c6_72 = arith.constant 6 : index
    %c0_73 = arith.constant 0 : index
    %c0_74 = arith.constant 0 : index
    %64 = vector.load %arg2[%c6_72, %c0_73, %c0_74] : memref<9x3x16xf32, #tpu.memory_space<vmem>>, vector<1x3x16xf32>
    %65 = vector.shape_cast %64 : vector<1x3x16xf32> to vector<3x16xf32>
    %cst_75 = arith.constant dense<0.000000e+00> : vector<16x16xf32>
    %66 = tpu.matmul %63, %65, %cst_75 {dimension_numbers = #tpu.dot_dimension_numbers<[1], [0], [0], [1], [0, 0, 1, 1], [], []>} : vector<16x3xf32>, vector<3x16xf32>, vector<16x16xf32> -> vector<16x16xf32>
    %67 = arith.addf %60, %66 : vector<16x16xf32>
    %c0_76 = arith.constant 0 : index
    %c21 = arith.constant 21 : index
    %c1_77 = arith.constant 1 : index
    %c0_78 = arith.constant 0 : index
    %68 = vector.load %arg1[%c0_76, %c21, %c1_77, %c0_78] : memref<1x80x5x3xf32, #tpu.memory_space<vmem>>, vector<1x4x4x3xf32>
    %69 = vector.shape_cast %68 : vector<1x4x4x3xf32> to vector<4x4x3xf32>
    %70 = vector.shape_cast %69 : vector<4x4x3xf32> to vector<16x3xf32>
    %c7_79 = arith.constant 7 : index
    %c0_80 = arith.constant 0 : index
    %c0_81 = arith.constant 0 : index
    %71 = vector.load %arg2[%c7_79, %c0_80, %c0_81] : memref<9x3x16xf32, #tpu.memory_space<vmem>>, vector<1x3x16xf32>
    %72 = vector.shape_cast %71 : vector<1x3x16xf32> to vector<3x16xf32>
    %cst_82 = arith.constant dense<0.000000e+00> : vector<16x16xf32>
    %73 = tpu.matmul %70, %72, %cst_82 {dimension_numbers = #tpu.dot_dimension_numbers<[1], [0], [0], [1], [0, 0, 1, 1], [], []>} : vector<16x3xf32>, vector<3x16xf32>, vector<16x16xf32> -> vector<16x16xf32>
    %74 = arith.addf %67, %73 : vector<16x16xf32>
    %c0_83 = arith.constant 0 : index
    %c26 = arith.constant 26 : index
    %c1_84 = arith.constant 1 : index
    %c0_85 = arith.constant 0 : index
    %75 = vector.load %arg1[%c0_83, %c26, %c1_84, %c0_85] : memref<1x80x5x3xf32, #tpu.memory_space<vmem>>, vector<1x4x4x3xf32>
    %76 = vector.shape_cast %75 : vector<1x4x4x3xf32> to vector<4x4x3xf32>
    %77 = vector.shape_cast %76 : vector<4x4x3xf32> to vector<16x3xf32>
    %c8 = arith.constant 8 : index
    %c0_86 = arith.constant 0 : index
    %c0_87 = arith.constant 0 : index
    %78 = vector.load %arg2[%c8, %c0_86, %c0_87] : memref<9x3x16xf32, #tpu.memory_space<vmem>>, vector<1x3x16xf32>
    %79 = vector.shape_cast %78 : vector<1x3x16xf32> to vector<3x16xf32>
    %cst_88 = arith.constant dense<0.000000e+00> : vector<16x16xf32>
    %80 = tpu.matmul %77, %79, %cst_88 {dimension_numbers = #tpu.dot_dimension_numbers<[1], [0], [0], [1], [0, 0, 1, 1], [], []>} : vector<16x3xf32>, vector<3x16xf32>, vector<16x16xf32> -> vector<16x16xf32>
    %81 = arith.addf %74, %80 : vector<16x16xf32>
    %c0_89 = arith.constant 0 : index
    %c0_90 = arith.constant 0 : index
    %82 = vector.load %arg3[%c0_89, %c0_90] : memref<1x16xf32, #tpu.memory_space<vmem>>, vector<1x16xf32>
    %83 = vector.broadcast %82 : vector<1x16xf32> to vector<16x16xf32>
    %84 = arith.addf %81, %83 : vector<16x16xf32>
    %cst_91 = arith.constant 0.000000e+00 : f32
    %85 = vector.broadcast %cst_91 : f32 to vector<16x16xf32>
    %86 = arith.maximumf %84, %85 : vector<16x16xf32>
    %87 = vector.shape_cast %86 : vector<16x16xf32> to vector<4x4x16xf32>
    %c1_92 = arith.constant 1 : index
    %c8_93 = arith.constant 8 : index
    %c0_94 = arith.constant 0 : index
    %88 = vector.load %arg9[%c1_92, %c8_93, %c0_94] : memref<20x12x16xf32, #tpu.memory_space<vmem>>, vector<4x4x16xf32>
    tpu.vector_store %arg9[%c1_92, %c8_93, %c0_94], %87 {strides = array<i32>} : memref<20x12x16xf32, #tpu.memory_space<vmem>>, vector<4x4x16xf32>,
    %cst_95 = arith.constant 0.000000e+00 : f32
    %89 = vector.broadcast %cst_95 : f32 to vector<16x16xf32>
    %c0_96 = arith.constant 0 : index
    %c65_97 = arith.constant 65 : index
    %c1_98 = arith.constant 1 : index
    %c0_99 = arith.constant 0 : index
    %90 = vector.load %arg1[%c0_96, %c65_97, %c1_98, %c0_99] : memref<1x80x5x3xf32, #tpu.memory_space<vmem>>, vector<1x4x4x3xf32>
    %91 = vector.shape_cast %90 : vector<1x4x4x3xf32> to vector<4x4x3xf32>
    %92 = vector.shape_cast %91 : vector<4x4x3xf32> to vector<16x3xf32>
    %c0_100 = arith.constant 0 : index
    %c0_101 = arith.constant 0 : index
    %c0_102 = arith.constant 0 : index
    %93 = vector.load %arg2[%c0_100, %c0_101, %c0_102] : memref<9x3x16xf32, #tpu.memory_space<vmem>>, vector<1x3x16xf32>
    %94 = vector.shape_cast %93 : vector<1x3x16xf32> to vector<3x16xf32>
    %cst_103 = arith.constant dense<0.000000e+00> : vector<16x16xf32>
    %95 = tpu.matmul %92, %94, %cst_103 {dimension_numbers = #tpu.dot_dimension_numbers<[1], [0], [0], [1], [0, 0, 1, 1], [], []>} : vector<16x3xf32>, vector<3x16xf32>, vector<16x16xf32> -> vector<16x16xf32>
    %96 = arith.addf %89, %95 : vector<16x16xf32>
    %c0_104 = arith.constant 0 : index
    %c70 = arith.constant 70 : index
    %c1_105 = arith.constant 1 : index
    %c0_106 = arith.constant 0 : index
    %97 = vector.load %arg1[%c0_104, %c70, %c1_105, %c0_106] : memref<1x80x5x3xf32, #tpu.memory_space<vmem>>, vector<1x4x4x3xf32>
    %98 = vector.shape_cast %97 : vector<1x4x4x3xf32> to vector<4x4x3xf32>
    %99 = vector.shape_cast %98 : vector<4x4x3xf32> to vector<16x3xf32>
    %c1_107 = arith.constant 1 : index
    %c0_108 = arith.constant 0 : index
    %c0_109 = arith.constant 0 : index
    %100 = vector.load %arg2[%c1_107, %c0_108, %c0_109] : memref<9x3x16xf32, #tpu.memory_space<vmem>>, vector<1x3x16xf32>
    %101 = vector.shape_cast %100 : vector<1x3x16xf32> to vector<3x16xf32>
    %cst_110 = arith.constant dense<0.000000e+00> : vector<16x16xf32>
    %102 = tpu.matmul %99, %101, %cst_110 {dimension_numbers = #tpu.dot_dimension_numbers<[1], [0], [0], [1], [0, 0, 1, 1], [], []>} : vector<16x3xf32>, vector<3x16xf32>, vector<16x16xf32> -> vector<16x16xf32>
    %103 = arith.addf %96, %102 : vector<16x16xf32>
    %c0_111 = arith.constant 0 : index
    %c75_112 = arith.constant 75 : index
    %c1_113 = arith.constant 1 : index
    %c0_114 = arith.constant 0 : index
    %104 = vector.load %arg1[%c0_111, %c75_112, %c1_113, %c0_114] : memref<1x80x5x3xf32, #tpu.memory_space<vmem>>, vector<1x4x4x3xf32>
    %105 = vector.shape_cast %104 : vector<1x4x4x3xf32> to vector<4x4x3xf32>
    %106 = vector.shape_cast %105 : vector<4x4x3xf32> to vector<16x3xf32>
    %c2_115 = arith.constant 2 : index
    %c0_116 = arith.constant 0 : index
    %c0_117 = arith.constant 0 : index
    %107 = vector.load %arg2[%c2_115, %c0_116, %c0_117] : memref<9x3x16xf32, #tpu.memory_space<vmem>>, vector<1x3x16xf32>
    %108 = vector.shape_cast %107 : vector<1x3x16xf32> to vector<3x16xf32>
    %cst_118 = arith.constant dense<0.000000e+00> : vector<16x16xf32>
    %109 = tpu.matmul %106, %108, %cst_118 {dimension_numbers = #tpu.dot_dimension_numbers<[1], [0], [0], [1], [0, 0, 1, 1], [], []>} : vector<16x3xf32>, vector<3x16xf32>, vector<16x16xf32> -> vector<16x16xf32>
    %110 = arith.addf %103, %109 : vector<16x16xf32>
    %c0_119 = arith.constant 0 : index
    %c6_120 = arith.constant 6 : index
    %c1_121 = arith.constant 1 : index
    %c0_122 = arith.constant 0 : index
    %111 = vector.load %arg1[%c0_119, %c6_120, %c1_121, %c0_122] : memref<1x80x5x3xf32, #tpu.memory_space<vmem>>, vector<1x4x4x3xf32>
    %112 = vector.shape_cast %111 : vector<1x4x4x3xf32> to vector<4x4x3xf32>
    %113 = vector.shape_cast %112 : vector<4x4x3xf32> to vector<16x3xf32>
    %c3_123 = arith.constant 3 : index
    %c0_124 = arith.constant 0 : index
    %c0_125 = arith.constant 0 : index
    %114 = vector.load %arg2[%c3_123, %c0_124, %c0_125] : memref<9x3x16xf32, #tpu.memory_space<vmem>>, vector<1x3x16xf32>
    %115 = vector.shape_cast %114 : vector<1x3x16xf32> to vector<3x16xf32>
    %cst_126 = arith.constant dense<0.000000e+00> : vector<16x16xf32>
    %116 = tpu.matmul %113, %115, %cst_126 {dimension_numbers = #tpu.dot_dimension_numbers<[1], [0], [0], [1], [0, 0, 1, 1], [], []>} : vector<16x3xf32>, vector<3x16xf32>, vector<16x16xf32> -> vector<16x16xf32>
    %117 = arith.addf %110, %116 : vector<16x16xf32>
    %c0_127 = arith.constant 0 : index
    %c11 = arith.constant 11 : index
    %c1_128 = arith.constant 1 : index
    %c0_129 = arith.constant 0 : index
    %118 = vector.load %arg1[%c0_127, %c11, %c1_128, %c0_129] : memref<1x80x5x3xf32, #tpu.memory_space<vmem>>, vector<1x4x4x3xf32>
    %119 = vector.shape_cast %118 : vector<1x4x4x3xf32> to vector<4x4x3xf32>
    %120 = vector.shape_cast %119 : vector<4x4x3xf32> to vector<16x3xf32>
    %c4_130 = arith.constant 4 : index
    %c0_131 = arith.constant 0 : index
    %c0_132 = arith.constant 0 : index
    %121 = vector.load %arg2[%c4_130, %c0_131, %c0_132] : memref<9x3x16xf32, #tpu.memory_space<vmem>>, vector<1x3x16xf32>
    %122 = vector.shape_cast %121 : vector<1x3x16xf32> to vector<3x16xf32>
    %cst_133 = arith.constant dense<0.000000e+00> : vector<16x16xf32>
    %123 = tpu.matmul %120, %122, %cst_133 {dimension_numbers = #tpu.dot_dimension_numbers<[1], [0], [0], [1], [0, 0, 1, 1], [], []>} : vector<16x3xf32>, vector<3x16xf32>, vector<16x16xf32> -> vector<16x16xf32>
    %124 = arith.addf %117, %123 : vector<16x16xf32>
    %c0_134 = arith.constant 0 : index
    %c16_135 = arith.constant 16 : index
    %c1_136 = arith.constant 1 : index
    %c0_137 = arith.constant 0 : index
    %125 = vector.load %arg1[%c0_134, %c16_135, %c1_136, %c0_137] : memref<1x80x5x3xf32, #tpu.memory_space<vmem>>, vector<1x4x4x3xf32>
    %126 = vector.shape_cast %125 : vector<1x4x4x3xf32> to vector<4x4x3xf32>
    %127 = vector.shape_cast %126 : vector<4x4x3xf32> to vector<16x3xf32>
    %c5_138 = arith.constant 5 : index
    %c0_139 = arith.constant 0 : index
    %c0_140 = arith.constant 0 : index
    %128 = vector.load %arg2[%c5_138, %c0_139, %c0_140] : memref<9x3x16xf32, #tpu.memory_space<vmem>>, vector<1x3x16xf32>
    %129 = vector.shape_cast %128 : vector<1x3x16xf32> to vector<3x16xf32>
    %cst_141 = arith.constant dense<0.000000e+00> : vector<16x16xf32>
    %130 = tpu.matmul %127, %129, %cst_141 {dimension_numbers = #tpu.dot_dimension_numbers<[1], [0], [0], [1], [0, 0, 1, 1], [], []>} : vector<16x3xf32>, vector<3x16xf32>, vector<16x16xf32> -> vector<16x16xf32>
    %131 = arith.addf %124, %130 : vector<16x16xf32>
    %c0_142 = arith.constant 0 : index
    %c26_143 = arith.constant 26 : index
    %c1_144 = arith.constant 1 : index
    %c0_145 = arith.constant 0 : index
    %132 = vector.load %arg1[%c0_142, %c26_143, %c1_144, %c0_145] : memref<1x80x5x3xf32, #tpu.memory_space<vmem>>, vector<1x4x4x3xf32>
    %133 = vector.shape_cast %132 : vector<1x4x4x3xf32> to vector<4x4x3xf32>
    %134 = vector.shape_cast %133 : vector<4x4x3xf32> to vector<16x3xf32>
    %c6_146 = arith.constant 6 : index
    %c0_147 = arith.constant 0 : index
    %c0_148 = arith.constant 0 : index
    %135 = vector.load %arg2[%c6_146, %c0_147, %c0_148] : memref<9x3x16xf32, #tpu.memory_space<vmem>>, vector<1x3x16xf32>
    %136 = vector.shape_cast %135 : vector<1x3x16xf32> to vector<3x16xf32>
    %cst_149 = arith.constant dense<0.000000e+00> : vector<16x16xf32>
    %137 = tpu.matmul %134, %136, %cst_149 {dimension_numbers = #tpu.dot_dimension_numbers<[1], [0], [0], [1], [0, 0, 1, 1], [], []>} : vector<16x3xf32>, vector<3x16xf32>, vector<16x16xf32> -> vector<16x16xf32>
    %138 = arith.addf %131, %137 : vector<16x16xf32>
    %c0_150 = arith.constant 0 : index
    %c31 = arith.constant 31 : index
    %c1_151 = arith.constant 1 : index
    %c0_152 = arith.constant 0 : index
    %139 = vector.load %arg1[%c0_150, %c31, %c1_151, %c0_152] : memref<1x80x5x3xf32, #tpu.memory_space<vmem>>, vector<1x4x4x3xf32>
    %140 = vector.shape_cast %139 : vector<1x4x4x3xf32> to vector<4x4x3xf32>
    %141 = vector.shape_cast %140 : vector<4x4x3xf32> to vector<16x3xf32>
    %c7_153 = arith.constant 7 : index
    %c0_154 = arith.constant 0 : index
    %c0_155 = arith.constant 0 : index
    %142 = vector.load %arg2[%c7_153, %c0_154, %c0_155] : memref<9x3x16xf32, #tpu.memory_space<vmem>>, vector<1x3x16xf32>
    %143 = vector.shape_cast %142 : vector<1x3x16xf32> to vector<3x16xf32>
    %cst_156 = arith.constant dense<0.000000e+00> : vector<16x16xf32>
    %144 = tpu.matmul %141, %143, %cst_156 {dimension_numbers = #tpu.dot_dimension_numbers<[1], [0], [0], [1], [0, 0, 1, 1], [], []>} : vector<16x3xf32>, vector<3x16xf32>, vector<16x16xf32> -> vector<16x16xf32>
    %145 = arith.addf %138, %144 : vector<16x16xf32>
    %c0_157 = arith.constant 0 : index
    %c36_158 = arith.constant 36 : index
    %c1_159 = arith.constant 1 : index
    %c0_160 = arith.constant 0 : index
    %146 = vector.load %arg1[%c0_157, %c36_158, %c1_159, %c0_160] : memref<1x80x5x3xf32, #tpu.memory_space<vmem>>, vector<1x4x4x3xf32>
    %147 = vector.shape_cast %146 : vector<1x4x4x3xf32> to vector<4x4x3xf32>
    %148 = vector.shape_cast %147 : vector<4x4x3xf32> to vector<16x3xf32>
    %c8_161 = arith.constant 8 : index
    %c0_162 = arith.constant 0 : index
    %c0_163 = arith.constant 0 : index
    %149 = vector.load %arg2[%c8_161, %c0_162, %c0_163] : memref<9x3x16xf32, #tpu.memory_space<vmem>>, vector<1x3x16xf32>
    %150 = vector.shape_cast %149 : vector<1x3x16xf32> to vector<3x16xf32>
    %cst_164 = arith.constant dense<0.000000e+00> : vector<16x16xf32>
    %151 = tpu.matmul %148, %150, %cst_164 {dimension_numbers = #tpu.dot_dimension_numbers<[1], [0], [0], [1], [0, 0, 1, 1], [], []>} : vector<16x3xf32>, vector<3x16xf32>, vector<16x16xf32> -> vector<16x16xf32>
    %152 = arith.addf %145, %151 : vector<16x16xf32>
    %c0_165 = arith.constant 0 : index
    %c0_166 = arith.constant 0 : index
    %153 = vector.load %arg3[%c0_165, %c0_166] : memref<1x16xf32, #tpu.memory_space<vmem>>, vector<1x16xf32>
    %154 = vector.broadcast %153 : vector<1x16xf32> to vector<16x16xf32>
    %155 = arith.addf %152, %154 : vector<16x16xf32>
    %cst_167 = arith.constant 0.000000e+00 : f32
    %156 = vector.broadcast %cst_167 : f32 to vector<16x16xf32>
    %157 = arith.maximumf %155, %156 : vector<16x16xf32>
    %158 = vector.shape_cast %157 : vector<16x16xf32> to vector<4x4x16xf32>
    %c6_168 = arith.constant 6 : index
    %c8_169 = arith.constant 8 : index
    %c0_170 = arith.constant 0 : index
    %159 = vector.load %arg9[%c6_168, %c8_169, %c0_170] : memref<20x12x16xf32, #tpu.memory_space<vmem>>, vector<4x4x16xf32>
    tpu.vector_store %arg9[%c6_168, %c8_169, %c0_170], %158 {strides = array<i32>} : memref<20x12x16xf32, #tpu.memory_space<vmem>>, vector<4x4x16xf32>,
    %cst_171 = arith.constant 0.000000e+00 : f32
    %160 = vector.broadcast %cst_171 : f32 to vector<16x16xf32>
    %c0_172 = arith.constant 0 : index
    %c36_173 = arith.constant 36 : index
    %c0_174 = arith.constant 0 : index
    %c0_175 = arith.constant 0 : index
    %161 = vector.load %arg1[%c0_172, %c36_173, %c0_174, %c0_175] : memref<1x80x5x3xf32, #tpu.memory_space<vmem>>, vector<1x4x4x3xf32>
    %162 = vector.shape_cast %161 : vector<1x4x4x3xf32> to vector<4x4x3xf32>
    %163 = vector.shape_cast %162 : vector<4x4x3xf32> to vector<16x3xf32>
    %c0_176 = arith.constant 0 : index
    %c0_177 = arith.constant 0 : index
    %c0_178 = arith.constant 0 : index
    %164 = vector.load %arg2[%c0_176, %c0_177, %c0_178] : memref<9x3x16xf32, #tpu.memory_space<vmem>>, vector<1x3x16xf32>
    %165 = vector.shape_cast %164 : vector<1x3x16xf32> to vector<3x16xf32>
    %cst_179 = arith.constant dense<0.000000e+00> : vector<16x16xf32>
    %166 = tpu.matmul %163, %165, %cst_179 {dimension_numbers = #tpu.dot_dimension_numbers<[1], [0], [0], [1], [0, 0, 1, 1], [], []>} : vector<16x3xf32>, vector<3x16xf32>, vector<16x16xf32> -> vector<16x16xf32>
    %167 = arith.addf %160, %166 : vector<16x16xf32>
    %c0_180 = arith.constant 0 : index
    %c21_181 = arith.constant 21 : index
    %c1_182 = arith.constant 1 : index
    %c0_183 = arith.constant 0 : index
    %168 = vector.load %arg1[%c0_180, %c21_181, %c1_182, %c0_183] : memref<1x80x5x3xf32, #tpu.memory_space<vmem>>, vector<1x4x4x3xf32>
    %169 = vector.shape_cast %168 : vector<1x4x4x3xf32> to vector<4x4x3xf32>
    %170 = vector.shape_cast %169 : vector<4x4x3xf32> to vector<16x3xf32>
    %c1_184 = arith.constant 1 : index
    %c0_185 = arith.constant 0 : index
    %c0_186 = arith.constant 0 : index
    %171 = vector.load %arg2[%c1_184, %c0_185, %c0_186] : memref<9x3x16xf32, #tpu.memory_space<vmem>>, vector<1x3x16xf32>
    %172 = vector.shape_cast %171 : vector<1x3x16xf32> to vector<3x16xf32>
    %cst_187 = arith.constant dense<0.000000e+00> : vector<16x16xf32>
    %173 = tpu.matmul %170, %172, %cst_187 {dimension_numbers = #tpu.dot_dimension_numbers<[1], [0], [0], [1], [0, 0, 1, 1], [], []>} : vector<16x3xf32>, vector<3x16xf32>, vector<16x16xf32> -> vector<16x16xf32>
    %174 = arith.addf %167, %173 : vector<16x16xf32>
    %c0_188 = arith.constant 0 : index
    %c26_189 = arith.constant 26 : index
    %c1_190 = arith.constant 1 : index
    %c0_191 = arith.constant 0 : index
    %175 = vector.load %arg1[%c0_188, %c26_189, %c1_190, %c0_191] : memref<1x80x5x3xf32, #tpu.memory_space<vmem>>, vector<1x4x4x3xf32>
    %176 = vector.shape_cast %175 : vector<1x4x4x3xf32> to vector<4x4x3xf32>
    %177 = vector.shape_cast %176 : vector<4x4x3xf32> to vector<16x3xf32>
    %c2_192 = arith.constant 2 : index
    %c0_193 = arith.constant 0 : index
    %c0_194 = arith.constant 0 : index
    %178 = vector.load %arg2[%c2_192, %c0_193, %c0_194] : memref<9x3x16xf32, #tpu.memory_space<vmem>>, vector<1x3x16xf32>
    %179 = vector.shape_cast %178 : vector<1x3x16xf32> to vector<3x16xf32>
    %cst_195 = arith.constant dense<0.000000e+00> : vector<16x16xf32>
    %180 = tpu.matmul %177, %179, %cst_195 {dimension_numbers = #tpu.dot_dimension_numbers<[1], [0], [0], [1], [0, 0, 1, 1], [], []>} : vector<16x3xf32>, vector<3x16xf32>, vector<16x16xf32> -> vector<16x16xf32>
    %181 = arith.addf %174, %180 : vector<16x16xf32>
    %c0_196 = arith.constant 0 : index
    %c56 = arith.constant 56 : index
    %c0_197 = arith.constant 0 : index
    %c0_198 = arith.constant 0 : index
    %182 = vector.load %arg1[%c0_196, %c56, %c0_197, %c0_198] : memref<1x80x5x3xf32, #tpu.memory_space<vmem>>, vector<1x4x4x3xf32>
    %183 = vector.shape_cast %182 : vector<1x4x4x3xf32> to vector<4x4x3xf32>
    %184 = vector.shape_cast %183 : vector<4x4x3xf32> to vector<16x3xf32>
    %c3_199 = arith.constant 3 : index
    %c0_200 = arith.constant 0 : index
    %c0_201 = arith.constant 0 : index
    %185 = vector.load %arg2[%c3_199, %c0_200, %c0_201] : memref<9x3x16xf32, #tpu.memory_space<vmem>>, vector<1x3x16xf32>
    %186 = vector.shape_cast %185 : vector<1x3x16xf32> to vector<3x16xf32>
    %cst_202 = arith.constant dense<0.000000e+00> : vector<16x16xf32>
    %187 = tpu.matmul %184, %186, %cst_202 {dimension_numbers = #tpu.dot_dimension_numbers<[1], [0], [0], [1], [0, 0, 1, 1], [], []>} : vector<16x3xf32>, vector<3x16xf32>, vector<16x16xf32> -> vector<16x16xf32>
    %188 = arith.addf %181, %187 : vector<16x16xf32>
    %c0_203 = arith.constant 0 : index
    %c41 = arith.constant 41 : index
    %c1_204 = arith.constant 1 : index
    %c0_205 = arith.constant 0 : index
    %189 = vector.load %arg1[%c0_203, %c41, %c1_204, %c0_205] : memref<1x80x5x3xf32, #tpu.memory_space<vmem>>, vector<1x4x4x3xf32>
    %190 = vector.shape_cast %189 : vector<1x4x4x3xf32> to vector<4x4x3xf32>
    %191 = vector.shape_cast %190 : vector<4x4x3xf32> to vector<16x3xf32>
    %c4_206 = arith.constant 4 : index
    %c0_207 = arith.constant 0 : index
    %c0_208 = arith.constant 0 : index
    %192 = vector.load %arg2[%c4_206, %c0_207, %c0_208] : memref<9x3x16xf32, #tpu.memory_space<vmem>>, vector<1x3x16xf32>
    %193 = vector.shape_cast %192 : vector<1x3x16xf32> to vector<3x16xf32>
    %cst_209 = arith.constant dense<0.000000e+00> : vector<16x16xf32>
    %194 = tpu.matmul %191, %193, %cst_209 {dimension_numbers = #tpu.dot_dimension_numbers<[1], [0], [0], [1], [0, 0, 1, 1], [], []>} : vector<16x3xf32>, vector<3x16xf32>, vector<16x16xf32> -> vector<16x16xf32>
    %195 = arith.addf %188, %194 : vector<16x16xf32>
    %c0_210 = arith.constant 0 : index
    %c46 = arith.constant 46 : index
    %c1_211 = arith.constant 1 : index
    %c0_212 = arith.constant 0 : index
    %196 = vector.load %arg1[%c0_210, %c46, %c1_211, %c0_212] : memref<1x80x5x3xf32, #tpu.memory_space<vmem>>, vector<1x4x4x3xf32>
    %197 = vector.shape_cast %196 : vector<1x4x4x3xf32> to vector<4x4x3xf32>
    %198 = vector.shape_cast %197 : vector<4x4x3xf32> to vector<16x3xf32>
    %c5_213 = arith.constant 5 : index
    %c0_214 = arith.constant 0 : index
    %c0_215 = arith.constant 0 : index
    %199 = vector.load %arg2[%c5_213, %c0_214, %c0_215] : memref<9x3x16xf32, #tpu.memory_space<vmem>>, vector<1x3x16xf32>
    %200 = vector.shape_cast %199 : vector<1x3x16xf32> to vector<3x16xf32>
    %cst_216 = arith.constant dense<0.000000e+00> : vector<16x16xf32>
    %201 = tpu.matmul %198, %200, %cst_216 {dimension_numbers = #tpu.dot_dimension_numbers<[1], [0], [0], [1], [0, 0, 1, 1], [], []>} : vector<16x3xf32>, vector<3x16xf32>, vector<16x16xf32> -> vector<16x16xf32>
    %202 = arith.addf %195, %201 : vector<16x16xf32>
    %c0_217 = arith.constant 0 : index
    %c76 = arith.constant 76 : index
    %c0_218 = arith.constant 0 : index
    %c0_219 = arith.constant 0 : index
    %203 = vector.load %arg1[%c0_217, %c76, %c0_218, %c0_219] : memref<1x80x5x3xf32, #tpu.memory_space<vmem>>, vector<1x4x4x3xf32>
    %204 = vector.shape_cast %203 : vector<1x4x4x3xf32> to vector<4x4x3xf32>
    %205 = vector.shape_cast %204 : vector<4x4x3xf32> to vector<16x3xf32>
    %c6_220 = arith.constant 6 : index
    %c0_221 = arith.constant 0 : index
    %c0_222 = arith.constant 0 : index
    %206 = vector.load %arg2[%c6_220, %c0_221, %c0_222] : memref<9x3x16xf32, #tpu.memory_space<vmem>>, vector<1x3x16xf32>
    %207 = vector.shape_cast %206 : vector<1x3x16xf32> to vector<3x16xf32>
    %cst_223 = arith.constant dense<0.000000e+00> : vector<16x16xf32>
    %208 = tpu.matmul %205, %207, %cst_223 {dimension_numbers = #tpu.dot_dimension_numbers<[1], [0], [0], [1], [0, 0, 1, 1], [], []>} : vector<16x3xf32>, vector<3x16xf32>, vector<16x16xf32> -> vector<16x16xf32>
    %209 = arith.addf %202, %208 : vector<16x16xf32>
    %c0_224 = arith.constant 0 : index
    %c61 = arith.constant 61 : index
    %c1_225 = arith.constant 1 : index
    %c0_226 = arith.constant 0 : index
    %210 = vector.load %arg1[%c0_224, %c61, %c1_225, %c0_226] : memref<1x80x5x3xf32, #tpu.memory_space<vmem>>, vector<1x4x4x3xf32>
    %211 = vector.shape_cast %210 : vector<1x4x4x3xf32> to vector<4x4x3xf32>
    %212 = vector.shape_cast %211 : vector<4x4x3xf32> to vector<16x3xf32>
    %c7_227 = arith.constant 7 : index
    %c0_228 = arith.constant 0 : index
    %c0_229 = arith.constant 0 : index
    %213 = vector.load %arg2[%c7_227, %c0_228, %c0_229] : memref<9x3x16xf32, #tpu.memory_space<vmem>>, vector<1x3x16xf32>
    %214 = vector.shape_cast %213 : vector<1x3x16xf32> to vector<3x16xf32>
    %cst_230 = arith.constant dense<0.000000e+00> : vector<16x16xf32>
    %215 = tpu.matmul %212, %214, %cst_230 {dimension_numbers = #tpu.dot_dimension_numbers<[1], [0], [0], [1], [0, 0, 1, 1], [], []>} : vector<16x3xf32>, vector<3x16xf32>, vector<16x16xf32> -> vector<16x16xf32>
    %216 = arith.addf %209, %215 : vector<16x16xf32>
    %c0_231 = arith.constant 0 : index
    %c66 = arith.constant 66 : index
    %c1_232 = arith.constant 1 : index
    %c0_233 = arith.constant 0 : index
    %217 = vector.load %arg1[%c0_231, %c66, %c1_232, %c0_233] : memref<1x80x5x3xf32, #tpu.memory_space<vmem>>, vector<1x4x4x3xf32>
    %218 = vector.shape_cast %217 : vector<1x4x4x3xf32> to vector<4x4x3xf32>
    %219 = vector.shape_cast %218 : vector<4x4x3xf32> to vector<16x3xf32>
    %c8_234 = arith.constant 8 : index
    %c0_235 = arith.constant 0 : index
    %c0_236 = arith.constant 0 : index
    %220 = vector.load %arg2[%c8_234, %c0_235, %c0_236] : memref<9x3x16xf32, #tpu.memory_space<vmem>>, vector<1x3x16xf32>
    %221 = vector.shape_cast %220 : vector<1x3x16xf32> to vector<3x16xf32>
    %cst_237 = arith.constant dense<0.000000e+00> : vector<16x16xf32>
    %222 = tpu.matmul %219, %221, %cst_237 {dimension_numbers = #tpu.dot_dimension_numbers<[1], [0], [0], [1], [0, 0, 1, 1], [], []>} : vector<16x3xf32>, vector<3x16xf32>, vector<16x16xf32> -> vector<16x16xf32>
    %223 = arith.addf %216, %222 : vector<16x16xf32>
    %c0_238 = arith.constant 0 : index
    %c0_239 = arith.constant 0 : index
    %224 = vector.load %arg3[%c0_238, %c0_239] : memref<1x16xf32, #tpu.memory_space<vmem>>, vector<1x16xf32>
    %225 = vector.broadcast %224 : vector<1x16xf32> to vector<16x16xf32>
    %226 = arith.addf %223, %225 : vector<16x16xf32>
    %cst_240 = arith.constant 0.000000e+00 : f32
    %227 = vector.broadcast %cst_240 : f32 to vector<16x16xf32>
    %228 = arith.maximumf %226, %227 : vector<16x16xf32>
    %229 = vector.shape_cast %228 : vector<16x16xf32> to vector<4x4x16xf32>
    %c11_241 = arith.constant 11 : index
    %c8_242 = arith.constant 8 : index
    %c0_243 = arith.constant 0 : index
    %230 = vector.load %arg9[%c11_241, %c8_242, %c0_243] : memref<20x12x16xf32, #tpu.memory_space<vmem>>, vector<4x4x16xf32>
    tpu.vector_store %arg9[%c11_241, %c8_242, %c0_243], %229 {strides = array<i32>} : memref<20x12x16xf32, #tpu.memory_space<vmem>>, vector<4x4x16xf32>,
    %cst_244 = arith.constant 0.000000e+00 : f32
    %231 = vector.broadcast %cst_244 : f32 to vector<16x16xf32>
    %c0_245 = arith.constant 0 : index
    %c26_246 = arith.constant 26 : index
    %c1_247 = arith.constant 1 : index
    %c0_248 = arith.constant 0 : index
    %232 = vector.load %arg1[%c0_245, %c26_246, %c1_247, %c0_248] : memref<1x80x5x3xf32, #tpu.memory_space<vmem>>, vector<1x4x4x3xf32>
    %233 = vector.shape_cast %232 : vector<1x4x4x3xf32> to vector<4x4x3xf32>
    %234 = vector.shape_cast %233 : vector<4x4x3xf32> to vector<16x3xf32>
    %c0_249 = arith.constant 0 : index
    %c0_250 = arith.constant 0 : index
    %c0_251 = arith.constant 0 : index
    %235 = vector.load %arg2[%c0_249, %c0_250, %c0_251] : memref<9x3x16xf32, #tpu.memory_space<vmem>>, vector<1x3x16xf32>
    %236 = vector.shape_cast %235 : vector<1x3x16xf32> to vector<3x16xf32>
    %cst_252 = arith.constant dense<0.000000e+00> : vector<16x16xf32>
    %237 = tpu.matmul %234, %236, %cst_252 {dimension_numbers = #tpu.dot_dimension_numbers<[1], [0], [0], [1], [0, 0, 1, 1], [], []>} : vector<16x3xf32>, vector<3x16xf32>, vector<16x16xf32> -> vector<16x16xf32>
    %238 = arith.addf %231, %237 : vector<16x16xf32>
    %c0_253 = arith.constant 0 : index
    %c31_254 = arith.constant 31 : index
    %c1_255 = arith.constant 1 : index
    %c0_256 = arith.constant 0 : index
    %239 = vector.load %arg1[%c0_253, %c31_254, %c1_255, %c0_256] : memref<1x80x5x3xf32, #tpu.memory_space<vmem>>, vector<1x4x4x3xf32>
    %240 = vector.shape_cast %239 : vector<1x4x4x3xf32> to vector<4x4x3xf32>
    %241 = vector.shape_cast %240 : vector<4x4x3xf32> to vector<16x3xf32>
    %c1_257 = arith.constant 1 : index
    %c0_258 = arith.constant 0 : index
    %c0_259 = arith.constant 0 : index
    %242 = vector.load %arg2[%c1_257, %c0_258, %c0_259] : memref<9x3x16xf32, #tpu.memory_space<vmem>>, vector<1x3x16xf32>
    %243 = vector.shape_cast %242 : vector<1x3x16xf32> to vector<3x16xf32>
    %cst_260 = arith.constant dense<0.000000e+00> : vector<16x16xf32>
    %244 = tpu.matmul %241, %243, %cst_260 {dimension_numbers = #tpu.dot_dimension_numbers<[1], [0], [0], [1], [0, 0, 1, 1], [], []>} : vector<16x3xf32>, vector<3x16xf32>, vector<16x16xf32> -> vector<16x16xf32>
    %245 = arith.addf %238, %244 : vector<16x16xf32>
    %c0_261 = arith.constant 0 : index
    %c36_262 = arith.constant 36 : index
    %c1_263 = arith.constant 1 : index
    %c0_264 = arith.constant 0 : index
    %246 = vector.load %arg1[%c0_261, %c36_262, %c1_263, %c0_264] : memref<1x80x5x3xf32, #tpu.memory_space<vmem>>, vector<1x4x4x3xf32>
    %247 = vector.shape_cast %246 : vector<1x4x4x3xf32> to vector<4x4x3xf32>
    %248 = vector.shape_cast %247 : vector<4x4x3xf32> to vector<16x3xf32>
    %c2_265 = arith.constant 2 : index
    %c0_266 = arith.constant 0 : index
    %c0_267 = arith.constant 0 : index
    %249 = vector.load %arg2[%c2_265, %c0_266, %c0_267] : memref<9x3x16xf32, #tpu.memory_space<vmem>>, vector<1x3x16xf32>
    %250 = vector.shape_cast %249 : vector<1x3x16xf32> to vector<3x16xf32>
    %cst_268 = arith.constant dense<0.000000e+00> : vector<16x16xf32>
    %251 = tpu.matmul %248, %250, %cst_268 {dimension_numbers = #tpu.dot_dimension_numbers<[1], [0], [0], [1], [0, 0, 1, 1], [], []>} : vector<16x3xf32>, vector<3x16xf32>, vector<16x16xf32> -> vector<16x16xf32>
    %252 = arith.addf %245, %251 : vector<16x16xf32>
    %c0_269 = arith.constant 0 : index
    %c46_270 = arith.constant 46 : index
    %c1_271 = arith.constant 1 : index
    %c0_272 = arith.constant 0 : index
    %253 = vector.load %arg1[%c0_269, %c46_270, %c1_271, %c0_272] : memref<1x80x5x3xf32, #tpu.memory_space<vmem>>, vector<1x4x4x3xf32>
    %254 = vector.shape_cast %253 : vector<1x4x4x3xf32> to vector<4x4x3xf32>
    %255 = vector.shape_cast %254 : vector<4x4x3xf32> to vector<16x3xf32>
    %c3_273 = arith.constant 3 : index
    %c0_274 = arith.constant 0 : index
    %c0_275 = arith.constant 0 : index
    %256 = vector.load %arg2[%c3_273, %c0_274, %c0_275] : memref<9x3x16xf32, #tpu.memory_space<vmem>>, vector<1x3x16xf32>
    %257 = vector.shape_cast %256 : vector<1x3x16xf32> to vector<3x16xf32>
    %cst_276 = arith.constant dense<0.000000e+00> : vector<16x16xf32>
    %258 = tpu.matmul %255, %257, %cst_276 {dimension_numbers = #tpu.dot_dimension_numbers<[1], [0], [0], [1], [0, 0, 1, 1], [], []>} : vector<16x3xf32>, vector<3x16xf32>, vector<16x16xf32> -> vector<16x16xf32>
    %259 = arith.addf %252, %258 : vector<16x16xf32>
    %c0_277 = arith.constant 0 : index
    %c51 = arith.constant 51 : index
    %c1_278 = arith.constant 1 : index
    %c0_279 = arith.constant 0 : index
    %260 = vector.load %arg1[%c0_277, %c51, %c1_278, %c0_279] : memref<1x80x5x3xf32, #tpu.memory_space<vmem>>, vector<1x4x4x3xf32>
    %261 = vector.shape_cast %260 : vector<1x4x4x3xf32> to vector<4x4x3xf32>
    %262 = vector.shape_cast %261 : vector<4x4x3xf32> to vector<16x3xf32>
    %c4_280 = arith.constant 4 : index
    %c0_281 = arith.constant 0 : index
    %c0_282 = arith.constant 0 : index
    %263 = vector.load %arg2[%c4_280, %c0_281, %c0_282] : memref<9x3x16xf32, #tpu.memory_space<vmem>>, vector<1x3x16xf32>
    %264 = vector.shape_cast %263 : vector<1x3x16xf32> to vector<3x16xf32>
    %cst_283 = arith.constant dense<0.000000e+00> : vector<16x16xf32>
    %265 = tpu.matmul %262, %264, %cst_283 {dimension_numbers = #tpu.dot_dimension_numbers<[1], [0], [0], [1], [0, 0, 1, 1], [], []>} : vector<16x3xf32>, vector<3x16xf32>, vector<16x16xf32> -> vector<16x16xf32>
    %266 = arith.addf %259, %265 : vector<16x16xf32>
    %c0_284 = arith.constant 0 : index
    %c56_285 = arith.constant 56 : index
    %c1_286 = arith.constant 1 : index
    %c0_287 = arith.constant 0 : index
    %267 = vector.load %arg1[%c0_284, %c56_285, %c1_286, %c0_287] : memref<1x80x5x3xf32, #tpu.memory_space<vmem>>, vector<1x4x4x3xf32>
    %268 = vector.shape_cast %267 : vector<1x4x4x3xf32> to vector<4x4x3xf32>
    %269 = vector.shape_cast %268 : vector<4x4x3xf32> to vector<16x3xf32>
    %c5_288 = arith.constant 5 : index
    %c0_289 = arith.constant 0 : index
    %c0_290 = arith.constant 0 : index
    %270 = vector.load %arg2[%c5_288, %c0_289, %c0_290] : memref<9x3x16xf32, #tpu.memory_space<vmem>>, vector<1x3x16xf32>
    %271 = vector.shape_cast %270 : vector<1x3x16xf32> to vector<3x16xf32>
    %cst_291 = arith.constant dense<0.000000e+00> : vector<16x16xf32>
    %272 = tpu.matmul %269, %271, %cst_291 {dimension_numbers = #tpu.dot_dimension_numbers<[1], [0], [0], [1], [0, 0, 1, 1], [], []>} : vector<16x3xf32>, vector<3x16xf32>, vector<16x16xf32> -> vector<16x16xf32>
    %273 = arith.addf %266, %272 : vector<16x16xf32>
    %c0_292 = arith.constant 0 : index
    %c66_293 = arith.constant 66 : index
    %c1_294 = arith.constant 1 : index
    %c0_295 = arith.constant 0 : index
    %274 = vector.load %arg1[%c0_292, %c66_293, %c1_294, %c0_295] : memref<1x80x5x3xf32, #tpu.memory_space<vmem>>, vector<1x4x4x3xf32>
    %275 = vector.shape_cast %274 : vector<1x4x4x3xf32> to vector<4x4x3xf32>
    %276 = vector.shape_cast %275 : vector<4x4x3xf32> to vector<16x3xf32>
    %c6_296 = arith.constant 6 : index
    %c0_297 = arith.constant 0 : index
    %c0_298 = arith.constant 0 : index
    %277 = vector.load %arg2[%c6_296, %c0_297, %c0_298] : memref<9x3x16xf32, #tpu.memory_space<vmem>>, vector<1x3x16xf32>
    %278 = vector.shape_cast %277 : vector<1x3x16xf32> to vector<3x16xf32>
    %cst_299 = arith.constant dense<0.000000e+00> : vector<16x16xf32>
    %279 = tpu.matmul %276, %278, %cst_299 {dimension_numbers = #tpu.dot_dimension_numbers<[1], [0], [0], [1], [0, 0, 1, 1], [], []>} : vector<16x3xf32>, vector<3x16xf32>, vector<16x16xf32> -> vector<16x16xf32>
    %280 = arith.addf %273, %279 : vector<16x16xf32>
    %c0_300 = arith.constant 0 : index
    %c71 = arith.constant 71 : index
    %c1_301 = arith.constant 1 : index
    %c0_302 = arith.constant 0 : index
    %281 = vector.load %arg1[%c0_300, %c71, %c1_301, %c0_302] : memref<1x80x5x3xf32, #tpu.memory_space<vmem>>, vector<1x4x4x3xf32>
    %282 = vector.shape_cast %281 : vector<1x4x4x3xf32> to vector<4x4x3xf32>
    %283 = vector.shape_cast %282 : vector<4x4x3xf32> to vector<16x3xf32>
    %c7_303 = arith.constant 7 : index
    %c0_304 = arith.constant 0 : index
    %c0_305 = arith.constant 0 : index
    %284 = vector.load %arg2[%c7_303, %c0_304, %c0_305] : memref<9x3x16xf32, #tpu.memory_space<vmem>>, vector<1x3x16xf32>
    %285 = vector.shape_cast %284 : vector<1x3x16xf32> to vector<3x16xf32>
    %cst_306 = arith.constant dense<0.000000e+00> : vector<16x16xf32>
    %286 = tpu.matmul %283, %285, %cst_306 {dimension_numbers = #tpu.dot_dimension_numbers<[1], [0], [0], [1], [0, 0, 1, 1], [], []>} : vector<16x3xf32>, vector<3x16xf32>, vector<16x16xf32> -> vector<16x16xf32>
    %287 = arith.addf %280, %286 : vector<16x16xf32>
    %c0_307 = arith.constant 0 : index
    %c76_308 = arith.constant 76 : index
    %c1_309 = arith.constant 1 : index
    %c0_310 = arith.constant 0 : index
    %288 = vector.load %arg1[%c0_307, %c76_308, %c1_309, %c0_310] : memref<1x80x5x3xf32, #tpu.memory_space<vmem>>, vector<1x4x4x3xf32>
    %289 = vector.shape_cast %288 : vector<1x4x4x3xf32> to vector<4x4x3xf32>
    %290 = vector.shape_cast %289 : vector<4x4x3xf32> to vector<16x3xf32>
    %c8_311 = arith.constant 8 : index
    %c0_312 = arith.constant 0 : index
    %c0_313 = arith.constant 0 : index
    %291 = vector.load %arg2[%c8_311, %c0_312, %c0_313] : memref<9x3x16xf32, #tpu.memory_space<vmem>>, vector<1x3x16xf32>
    %292 = vector.shape_cast %291 : vector<1x3x16xf32> to vector<3x16xf32>
    %cst_314 = arith.constant dense<0.000000e+00> : vector<16x16xf32>
    %293 = tpu.matmul %290, %292, %cst_314 {dimension_numbers = #tpu.dot_dimension_numbers<[1], [0], [0], [1], [0, 0, 1, 1], [], []>} : vector<16x3xf32>, vector<3x16xf32>, vector<16x16xf32> -> vector<16x16xf32>
    %294 = arith.addf %287, %293 : vector<16x16xf32>
    %c0_315 = arith.constant 0 : index
    %c0_316 = arith.constant 0 : index
    %295 = vector.load %arg3[%c0_315, %c0_316] : memref<1x16xf32, #tpu.memory_space<vmem>>, vector<1x16xf32>
    %296 = vector.broadcast %295 : vector<1x16xf32> to vector<16x16xf32>
    %297 = arith.addf %294, %296 : vector<16x16xf32>
    %cst_317 = arith.constant 0.000000e+00 : f32
    %298 = vector.broadcast %cst_317 : f32 to vector<16x16xf32>
    %299 = arith.maximumf %297, %298 : vector<16x16xf32>
    %300 = vector.shape_cast %299 : vector<16x16xf32> to vector<4x4x16xf32>
    %c16_318 = arith.constant 16 : index
    %c8_319 = arith.constant 8 : index
    %c0_320 = arith.constant 0 : index
    %301 = vector.load %arg9[%c16_318, %c8_319, %c0_320] : memref<20x12x16xf32, #tpu.memory_space<vmem>>, vector<4x4x16xf32>
    tpu.vector_store %arg9[%c16_318, %c8_319, %c0_320], %300 {strides = array<i32>} : memref<20x12x16xf32, #tpu.memory_space<vmem>>, vector<4x4x16xf32>,
    %cst_321 = arith.constant 0.000000e+00 : f32
    %302 = vector.broadcast %cst_321 : f32 to vector<16x32xf32>
    %c15_322 = arith.constant 15 : index
    %c7_323 = arith.constant 7 : index
    %c0_324 = arith.constant 0 : index
    %303 = vector.load %arg9[%c15_322, %c7_323, %c0_324] : memref<20x12x16xf32, #tpu.memory_space<vmem>>, vector<4x4x16xf32>
    %304 = vector.shape_cast %303 : vector<4x4x16xf32> to vector<16x16xf32>
    %c0_325 = arith.constant 0 : index
    %c0_326 = arith.constant 0 : index
    %c0_327 = arith.constant 0 : index
    %305 = vector.load %arg4[%c0_325, %c0_326, %c0_327] : memref<9x16x32xf32, #tpu.memory_space<vmem>>, vector<1x16x32xf32>
    %306 = vector.shape_cast %305 : vector<1x16x32xf32> to vector<16x32xf32>
    %cst_328 = arith.constant dense<0.000000e+00> : vector<16x32xf32>
    %307 = tpu.matmul %304, %306, %cst_328 {dimension_numbers = #tpu.dot_dimension_numbers<[1], [0], [0], [1], [0, 0, 1, 1], [], []>} : vector<16x16xf32>, vector<16x32xf32>, vector<16x32xf32> -> vector<16x32xf32>
    %308 = arith.addf %302, %307 : vector<16x32xf32>
    %c10_329 = arith.constant 10 : index
    %c8_330 = arith.constant 8 : index
    %c0_331 = arith.constant 0 : index
    %309 = vector.load %arg9[%c10_329, %c8_330, %c0_331] : memref<20x12x16xf32, #tpu.memory_space<vmem>>, vector<4x4x16xf32>
    %310 = vector.shape_cast %309 : vector<4x4x16xf32> to vector<16x16xf32>
    %c1_332 = arith.constant 1 : index
    %c0_333 = arith.constant 0 : index
    %c0_334 = arith.constant 0 : index
    %311 = vector.load %arg4[%c1_332, %c0_333, %c0_334] : memref<9x16x32xf32, #tpu.memory_space<vmem>>, vector<1x16x32xf32>
    %312 = vector.shape_cast %311 : vector<1x16x32xf32> to vector<16x32xf32>
    %cst_335 = arith.constant dense<0.000000e+00> : vector<16x32xf32>
    %313 = tpu.matmul %310, %312, %cst_335 {dimension_numbers = #tpu.dot_dimension_numbers<[1], [0], [0], [1], [0, 0, 1, 1], [], []>} : vector<16x16xf32>, vector<16x32xf32>, vector<16x32xf32> -> vector<16x32xf32>
    %314 = arith.addf %308, %313 : vector<16x32xf32>
    %c15_336 = arith.constant 15 : index
    %c8_337 = arith.constant 8 : index
    %c0_338 = arith.constant 0 : index
    %315 = vector.load %arg9[%c15_336, %c8_337, %c0_338] : memref<20x12x16xf32, #tpu.memory_space<vmem>>, vector<4x4x16xf32>
    %316 = vector.shape_cast %315 : vector<4x4x16xf32> to vector<16x16xf32>
    %c2_339 = arith.constant 2 : index
    %c0_340 = arith.constant 0 : index
    %c0_341 = arith.constant 0 : index
    %317 = vector.load %arg4[%c2_339, %c0_340, %c0_341] : memref<9x16x32xf32, #tpu.memory_space<vmem>>, vector<1x16x32xf32>
    %318 = vector.shape_cast %317 : vector<1x16x32xf32> to vector<16x32xf32>
    %cst_342 = arith.constant dense<0.000000e+00> : vector<16x32xf32>
    %319 = tpu.matmul %316, %318, %cst_342 {dimension_numbers = #tpu.dot_dimension_numbers<[1], [0], [0], [1], [0, 0, 1, 1], [], []>} : vector<16x16xf32>, vector<16x32xf32>, vector<16x32xf32> -> vector<16x32xf32>
    %320 = arith.addf %314, %319 : vector<16x32xf32>
    %c6_343 = arith.constant 6 : index
    %c7_344 = arith.constant 7 : index
    %c0_345 = arith.constant 0 : index
    %321 = vector.load %arg9[%c6_343, %c7_344, %c0_345] : memref<20x12x16xf32, #tpu.memory_space<vmem>>, vector<4x4x16xf32>
    %322 = vector.shape_cast %321 : vector<4x4x16xf32> to vector<16x16xf32>
    %c3_346 = arith.constant 3 : index
    %c0_347 = arith.constant 0 : index
    %c0_348 = arith.constant 0 : index
    %323 = vector.load %arg4[%c3_346, %c0_347, %c0_348] : memref<9x16x32xf32, #tpu.memory_space<vmem>>, vector<1x16x32xf32>
    %324 = vector.shape_cast %323 : vector<1x16x32xf32> to vector<16x32xf32>
    %cst_349 = arith.constant dense<0.000000e+00> : vector<16x32xf32>
    %325 = tpu.matmul %322, %324, %cst_349 {dimension_numbers = #tpu.dot_dimension_numbers<[1], [0], [0], [1], [0, 0, 1, 1], [], []>} : vector<16x16xf32>, vector<16x32xf32>, vector<16x32xf32> -> vector<16x32xf32>
    %326 = arith.addf %320, %325 : vector<16x32xf32>
    %c1_350 = arith.constant 1 : index
    %c8_351 = arith.constant 8 : index
    %c0_352 = arith.constant 0 : index
    %327 = vector.load %arg9[%c1_350, %c8_351, %c0_352] : memref<20x12x16xf32, #tpu.memory_space<vmem>>, vector<4x4x16xf32>
    %328 = vector.shape_cast %327 : vector<4x4x16xf32> to vector<16x16xf32>
    %c4_353 = arith.constant 4 : index
    %c0_354 = arith.constant 0 : index
    %c0_355 = arith.constant 0 : index
    %329 = vector.load %arg4[%c4_353, %c0_354, %c0_355] : memref<9x16x32xf32, #tpu.memory_space<vmem>>, vector<1x16x32xf32>
    %330 = vector.shape_cast %329 : vector<1x16x32xf32> to vector<16x32xf32>
    %cst_356 = arith.constant dense<0.000000e+00> : vector<16x32xf32>
    %331 = tpu.matmul %328, %330, %cst_356 {dimension_numbers = #tpu.dot_dimension_numbers<[1], [0], [0], [1], [0, 0, 1, 1], [], []>} : vector<16x16xf32>, vector<16x32xf32>, vector<16x32xf32> -> vector<16x32xf32>
    %332 = arith.addf %326, %331 : vector<16x32xf32>
    %c6_357 = arith.constant 6 : index
    %c8_358 = arith.constant 8 : index
    %c0_359 = arith.constant 0 : index
    %333 = vector.load %arg9[%c6_357, %c8_358, %c0_359] : memref<20x12x16xf32, #tpu.memory_space<vmem>>, vector<4x4x16xf32>
    %334 = vector.shape_cast %333 : vector<4x4x16xf32> to vector<16x16xf32>
    %c5_360 = arith.constant 5 : index
    %c0_361 = arith.constant 0 : index
    %c0_362 = arith.constant 0 : index
    %335 = vector.load %arg4[%c5_360, %c0_361, %c0_362] : memref<9x16x32xf32, #tpu.memory_space<vmem>>, vector<1x16x32xf32>
    %336 = vector.shape_cast %335 : vector<1x16x32xf32> to vector<16x32xf32>
    %cst_363 = arith.constant dense<0.000000e+00> : vector<16x32xf32>
    %337 = tpu.matmul %334, %336, %cst_363 {dimension_numbers = #tpu.dot_dimension_numbers<[1], [0], [0], [1], [0, 0, 1, 1], [], []>} : vector<16x16xf32>, vector<16x32xf32>, vector<16x32xf32> -> vector<16x32xf32>
    %338 = arith.addf %332, %337 : vector<16x32xf32>
    %c16_364 = arith.constant 16 : index
    %c7_365 = arith.constant 7 : index
    %c0_366 = arith.constant 0 : index
    %339 = vector.load %arg9[%c16_364, %c7_365, %c0_366] : memref<20x12x16xf32, #tpu.memory_space<vmem>>, vector<4x4x16xf32>
    %340 = vector.shape_cast %339 : vector<4x4x16xf32> to vector<16x16xf32>
    %c6_367 = arith.constant 6 : index
    %c0_368 = arith.constant 0 : index
    %c0_369 = arith.constant 0 : index
    %341 = vector.load %arg4[%c6_367, %c0_368, %c0_369] : memref<9x16x32xf32, #tpu.memory_space<vmem>>, vector<1x16x32xf32>
    %342 = vector.shape_cast %341 : vector<1x16x32xf32> to vector<16x32xf32>
    %cst_370 = arith.constant dense<0.000000e+00> : vector<16x32xf32>
    %343 = tpu.matmul %340, %342, %cst_370 {dimension_numbers = #tpu.dot_dimension_numbers<[1], [0], [0], [1], [0, 0, 1, 1], [], []>} : vector<16x16xf32>, vector<16x32xf32>, vector<16x32xf32> -> vector<16x32xf32>
    %344 = arith.addf %338, %343 : vector<16x32xf32>
    %c11_371 = arith.constant 11 : index
    %c8_372 = arith.constant 8 : index
    %c0_373 = arith.constant 0 : index
    %345 = vector.load %arg9[%c11_371, %c8_372, %c0_373] : memref<20x12x16xf32, #tpu.memory_space<vmem>>, vector<4x4x16xf32>
    %346 = vector.shape_cast %345 : vector<4x4x16xf32> to vector<16x16xf32>
    %c7_374 = arith.constant 7 : index
    %c0_375 = arith.constant 0 : index
    %c0_376 = arith.constant 0 : index
    %347 = vector.load %arg4[%c7_374, %c0_375, %c0_376] : memref<9x16x32xf32, #tpu.memory_space<vmem>>, vector<1x16x32xf32>
    %348 = vector.shape_cast %347 : vector<1x16x32xf32> to vector<16x32xf32>
    %cst_377 = arith.constant dense<0.000000e+00> : vector<16x32xf32>
    %349 = tpu.matmul %346, %348, %cst_377 {dimension_numbers = #tpu.dot_dimension_numbers<[1], [0], [0], [1], [0, 0, 1, 1], [], []>} : vector<16x16xf32>, vector<16x32xf32>, vector<16x32xf32> -> vector<16x32xf32>
    %350 = arith.addf %344, %349 : vector<16x32xf32>
    %c16_378 = arith.constant 16 : index
    %c8_379 = arith.constant 8 : index
    %c0_380 = arith.constant 0 : index
    %351 = vector.load %arg9[%c16_378, %c8_379, %c0_380] : memref<20x12x16xf32, #tpu.memory_space<vmem>>, vector<4x4x16xf32>
    %352 = vector.shape_cast %351 : vector<4x4x16xf32> to vector<16x16xf32>
    %c8_381 = arith.constant 8 : index
    %c0_382 = arith.constant 0 : index
    %c0_383 = arith.constant 0 : index
    %353 = vector.load %arg4[%c8_381, %c0_382, %c0_383] : memref<9x16x32xf32, #tpu.memory_space<vmem>>, vector<1x16x32xf32>
    %354 = vector.shape_cast %353 : vector<1x16x32xf32> to vector<16x32xf32>
    %cst_384 = arith.constant dense<0.000000e+00> : vector<16x32xf32>
    %355 = tpu.matmul %352, %354, %cst_384 {dimension_numbers = #tpu.dot_dimension_numbers<[1], [0], [0], [1], [0, 0, 1, 1], [], []>} : vector<16x16xf32>, vector<16x32xf32>, vector<16x32xf32> -> vector<16x32xf32>
    %356 = arith.addf %350, %355 : vector<16x32xf32>
    %c0_385 = arith.constant 0 : index
    %c0_386 = arith.constant 0 : index
    %357 = vector.load %arg5[%c0_385, %c0_386] : memref<1x32xf32, #tpu.memory_space<vmem>>, vector<1x32xf32>
    %358 = vector.broadcast %357 : vector<1x32xf32> to vector<16x32xf32>
    %359 = arith.addf %356, %358 : vector<16x32xf32>
    %cst_387 = arith.constant 0.000000e+00 : f32
    %360 = vector.broadcast %cst_387 : f32 to vector<16x32xf32>
    %361 = arith.maximumf %359, %360 : vector<16x32xf32>
    %362 = vector.shape_cast %361 : vector<16x32xf32> to vector<4x4x32xf32>
    %c1_388 = arith.constant 1 : index
    %c8_389 = arith.constant 8 : index
    %c0_390 = arith.constant 0 : index
    %363 = vector.load %arg10[%c1_388, %c8_389, %c0_390] : memref<6x13x32xf32, #tpu.memory_space<vmem>>, vector<4x4x32xf32>
    tpu.vector_store %arg10[%c1_388, %c8_389, %c0_390], %362 {strides = array<i32>} : memref<6x13x32xf32, #tpu.memory_space<vmem>>, vector<4x4x32xf32>,
    %cst_391 = arith.constant 0.000000e+00 : f32
    %364 = vector.broadcast %cst_391 : f32 to vector<16x32xf32>
    %c0_392 = arith.constant 0 : index
    %c7_393 = arith.constant 7 : index
    %c0_394 = arith.constant 0 : index
    %365 = vector.load %arg10[%c0_392, %c7_393, %c0_394] : memref<6x13x32xf32, #tpu.memory_space<vmem>>, vector<4x4x32xf32>
    %366 = vector.shape_cast %365 : vector<4x4x32xf32> to vector<16x32xf32>
    %c0_395 = arith.constant 0 : index
    %c0_396 = arith.constant 0 : index
    %c0_397 = arith.constant 0 : index
    %367 = vector.load %arg6[%c0_395, %c0_396, %c0_397] : memref<9x32x32xf32, #tpu.memory_space<vmem>>, vector<1x32x32xf32>
    %368 = vector.shape_cast %367 : vector<1x32x32xf32> to vector<32x32xf32>
    %cst_398 = arith.constant dense<0.000000e+00> : vector<16x32xf32>
    %369 = tpu.matmul %366, %368, %cst_398 {dimension_numbers = #tpu.dot_dimension_numbers<[1], [0], [0], [1], [0, 0, 1, 1], [], []>} : vector<16x32xf32>, vector<32x32xf32>, vector<16x32xf32> -> vector<16x32xf32>
    %370 = arith.addf %364, %369 : vector<16x32xf32>
    %c0_399 = arith.constant 0 : index
    %c8_400 = arith.constant 8 : index
    %c0_401 = arith.constant 0 : index
    %371 = vector.load %arg10[%c0_399, %c8_400, %c0_401] : memref<6x13x32xf32, #tpu.memory_space<vmem>>, vector<4x4x32xf32>
    %372 = vector.shape_cast %371 : vector<4x4x32xf32> to vector<16x32xf32>
    %c1_402 = arith.constant 1 : index
    %c0_403 = arith.constant 0 : index
    %c0_404 = arith.constant 0 : index
    %373 = vector.load %arg6[%c1_402, %c0_403, %c0_404] : memref<9x32x32xf32, #tpu.memory_space<vmem>>, vector<1x32x32xf32>
    %374 = vector.shape_cast %373 : vector<1x32x32xf32> to vector<32x32xf32>
    %cst_405 = arith.constant dense<0.000000e+00> : vector<16x32xf32>
    %375 = tpu.matmul %372, %374, %cst_405 {dimension_numbers = #tpu.dot_dimension_numbers<[1], [0], [0], [1], [0, 0, 1, 1], [], []>} : vector<16x32xf32>, vector<32x32xf32>, vector<16x32xf32> -> vector<16x32xf32>
    %376 = arith.addf %370, %375 : vector<16x32xf32>
    %c0_406 = arith.constant 0 : index
    %c9 = arith.constant 9 : index
    %c0_407 = arith.constant 0 : index
    %377 = vector.load %arg10[%c0_406, %c9, %c0_407] : memref<6x13x32xf32, #tpu.memory_space<vmem>>, vector<4x4x32xf32>
    %378 = vector.shape_cast %377 : vector<4x4x32xf32> to vector<16x32xf32>
    %c2_408 = arith.constant 2 : index
    %c0_409 = arith.constant 0 : index
    %c0_410 = arith.constant 0 : index
    %379 = vector.load %arg6[%c2_408, %c0_409, %c0_410] : memref<9x32x32xf32, #tpu.memory_space<vmem>>, vector<1x32x32xf32>
    %380 = vector.shape_cast %379 : vector<1x32x32xf32> to vector<32x32xf32>
    %cst_411 = arith.constant dense<0.000000e+00> : vector<16x32xf32>
    %381 = tpu.matmul %378, %380, %cst_411 {dimension_numbers = #tpu.dot_dimension_numbers<[1], [0], [0], [1], [0, 0, 1, 1], [], []>} : vector<16x32xf32>, vector<32x32xf32>, vector<16x32xf32> -> vector<16x32xf32>
    %382 = arith.addf %376, %381 : vector<16x32xf32>
    %c1_412 = arith.constant 1 : index
    %c7_413 = arith.constant 7 : index
    %c0_414 = arith.constant 0 : index
    %383 = vector.load %arg10[%c1_412, %c7_413, %c0_414] : memref<6x13x32xf32, #tpu.memory_space<vmem>>, vector<4x4x32xf32>
    %384 = vector.shape_cast %383 : vector<4x4x32xf32> to vector<16x32xf32>
    %c3_415 = arith.constant 3 : index
    %c0_416 = arith.constant 0 : index
    %c0_417 = arith.constant 0 : index
    %385 = vector.load %arg6[%c3_415, %c0_416, %c0_417] : memref<9x32x32xf32, #tpu.memory_space<vmem>>, vector<1x32x32xf32>
    %386 = vector.shape_cast %385 : vector<1x32x32xf32> to vector<32x32xf32>
    %cst_418 = arith.constant dense<0.000000e+00> : vector<16x32xf32>
    %387 = tpu.matmul %384, %386, %cst_418 {dimension_numbers = #tpu.dot_dimension_numbers<[1], [0], [0], [1], [0, 0, 1, 1], [], []>} : vector<16x32xf32>, vector<32x32xf32>, vector<16x32xf32> -> vector<16x32xf32>
    %388 = arith.addf %382, %387 : vector<16x32xf32>
    %c1_419 = arith.constant 1 : index
    %c8_420 = arith.constant 8 : index
    %c0_421 = arith.constant 0 : index
    %389 = vector.load %arg10[%c1_419, %c8_420, %c0_421] : memref<6x13x32xf32, #tpu.memory_space<vmem>>, vector<4x4x32xf32>
    %390 = vector.shape_cast %389 : vector<4x4x32xf32> to vector<16x32xf32>
    %c4_422 = arith.constant 4 : index
    %c0_423 = arith.constant 0 : index
    %c0_424 = arith.constant 0 : index
    %391 = vector.load %arg6[%c4_422, %c0_423, %c0_424] : memref<9x32x32xf32, #tpu.memory_space<vmem>>, vector<1x32x32xf32>
    %392 = vector.shape_cast %391 : vector<1x32x32xf32> to vector<32x32xf32>
    %cst_425 = arith.constant dense<0.000000e+00> : vector<16x32xf32>
    %393 = tpu.matmul %390, %392, %cst_425 {dimension_numbers = #tpu.dot_dimension_numbers<[1], [0], [0], [1], [0, 0, 1, 1], [], []>} : vector<16x32xf32>, vector<32x32xf32>, vector<16x32xf32> -> vector<16x32xf32>
    %394 = arith.addf %388, %393 : vector<16x32xf32>
    %c1_426 = arith.constant 1 : index
    %c9_427 = arith.constant 9 : index
    %c0_428 = arith.constant 0 : index
    %395 = vector.load %arg10[%c1_426, %c9_427, %c0_428] : memref<6x13x32xf32, #tpu.memory_space<vmem>>, vector<4x4x32xf32>
    %396 = vector.shape_cast %395 : vector<4x4x32xf32> to vector<16x32xf32>
    %c5_429 = arith.constant 5 : index
    %c0_430 = arith.constant 0 : index
    %c0_431 = arith.constant 0 : index
    %397 = vector.load %arg6[%c5_429, %c0_430, %c0_431] : memref<9x32x32xf32, #tpu.memory_space<vmem>>, vector<1x32x32xf32>
    %398 = vector.shape_cast %397 : vector<1x32x32xf32> to vector<32x32xf32>
    %cst_432 = arith.constant dense<0.000000e+00> : vector<16x32xf32>
    %399 = tpu.matmul %396, %398, %cst_432 {dimension_numbers = #tpu.dot_dimension_numbers<[1], [0], [0], [1], [0, 0, 1, 1], [], []>} : vector<16x32xf32>, vector<32x32xf32>, vector<16x32xf32> -> vector<16x32xf32>
    %400 = arith.addf %394, %399 : vector<16x32xf32>
    %c2_433 = arith.constant 2 : index
    %c7_434 = arith.constant 7 : index
    %c0_435 = arith.constant 0 : index
    %401 = vector.load %arg10[%c2_433, %c7_434, %c0_435] : memref<6x13x32xf32, #tpu.memory_space<vmem>>, vector<4x4x32xf32>
    %402 = vector.shape_cast %401 : vector<4x4x32xf32> to vector<16x32xf32>
    %c6_436 = arith.constant 6 : index
    %c0_437 = arith.constant 0 : index
    %c0_438 = arith.constant 0 : index
    %403 = vector.load %arg6[%c6_436, %c0_437, %c0_438] : memref<9x32x32xf32, #tpu.memory_space<vmem>>, vector<1x32x32xf32>
    %404 = vector.shape_cast %403 : vector<1x32x32xf32> to vector<32x32xf32>
    %cst_439 = arith.constant dense<0.000000e+00> : vector<16x32xf32>
    %405 = tpu.matmul %402, %404, %cst_439 {dimension_numbers = #tpu.dot_dimension_numbers<[1], [0], [0], [1], [0, 0, 1, 1], [], []>} : vector<16x32xf32>, vector<32x32xf32>, vector<16x32xf32> -> vector<16x32xf32>
    %406 = arith.addf %400, %405 : vector<16x32xf32>
    %c2_440 = arith.constant 2 : index
    %c8_441 = arith.constant 8 : index
    %c0_442 = arith.constant 0 : index
    %407 = vector.load %arg10[%c2_440, %c8_441, %c0_442] : memref<6x13x32xf32, #tpu.memory_space<vmem>>, vector<4x4x32xf32>
    %408 = vector.shape_cast %407 : vector<4x4x32xf32> to vector<16x32xf32>
    %c7_443 = arith.constant 7 : index
    %c0_444 = arith.constant 0 : index
    %c0_445 = arith.constant 0 : index
    %409 = vector.load %arg6[%c7_443, %c0_444, %c0_445] : memref<9x32x32xf32, #tpu.memory_space<vmem>>, vector<1x32x32xf32>
    %410 = vector.shape_cast %409 : vector<1x32x32xf32> to vector<32x32xf32>
    %cst_446 = arith.constant dense<0.000000e+00> : vector<16x32xf32>
    %411 = tpu.matmul %408, %410, %cst_446 {dimension_numbers = #tpu.dot_dimension_numbers<[1], [0], [0], [1], [0, 0, 1, 1], [], []>} : vector<16x32xf32>, vector<32x32xf32>, vector<16x32xf32> -> vector<16x32xf32>
    %412 = arith.addf %406, %411 : vector<16x32xf32>
    %c2_447 = arith.constant 2 : index
    %c9_448 = arith.constant 9 : index
    %c0_449 = arith.constant 0 : index
    %413 = vector.load %arg10[%c2_447, %c9_448, %c0_449] : memref<6x13x32xf32, #tpu.memory_space<vmem>>, vector<4x4x32xf32>
    %414 = vector.shape_cast %413 : vector<4x4x32xf32> to vector<16x32xf32>
    %c8_450 = arith.constant 8 : index
    %c0_451 = arith.constant 0 : index
    %c0_452 = arith.constant 0 : index
    %415 = vector.load %arg6[%c8_450, %c0_451, %c0_452] : memref<9x32x32xf32, #tpu.memory_space<vmem>>, vector<1x32x32xf32>
    %416 = vector.shape_cast %415 : vector<1x32x32xf32> to vector<32x32xf32>
    %cst_453 = arith.constant dense<0.000000e+00> : vector<16x32xf32>
    %417 = tpu.matmul %414, %416, %cst_453 {dimension_numbers = #tpu.dot_dimension_numbers<[1], [0], [0], [1], [0, 0, 1, 1], [], []>} : vector<16x32xf32>, vector<32x32xf32>, vector<16x32xf32> -> vector<16x32xf32>
    %418 = arith.addf %412, %417 : vector<16x32xf32>
    %c0_454 = arith.constant 0 : index
    %c0_455 = arith.constant 0 : index
    %419 = vector.load %arg7[%c0_454, %c0_455] : memref<1x32xf32, #tpu.memory_space<vmem>>, vector<1x32xf32>
    %420 = vector.broadcast %419 : vector<1x32xf32> to vector<16x32xf32>
    %421 = arith.addf %418, %420 : vector<16x32xf32>
    %c0_456 = arith.constant 0 : index
    %c0_457 = arith.constant 0 : index
    %c0_458 = arith.constant 0 : index
    %422 = vector.load %arg8[%c0_456, %c0_457, %c0_458] : memref<1x16x32xf32, #tpu.memory_space<vmem>>, vector<1x16x32xf32>
    %423 = vector.shape_cast %422 : vector<1x16x32xf32> to vector<16x32xf32>
    %424 = vector.shape_cast %421 : vector<16x32xf32> to vector<1x16x32xf32>
    tpu.vector_store %arg8[%c0_456, %c0_457, %c0_458], %424 {strides = array<i32>} : memref<1x16x32xf32, #tpu.memory_space<vmem>>, vector<1x16x32xf32>,
    return
  }
  func.func @transform_0(%arg0: i32) -> (i32, i32, i32, i32) {
    %c0_i32 = arith.constant 0 : i32
    %c0_i32_0 = arith.constant 0 : i32
    %c0_i32_1 = arith.constant 0 : i32
    %c0_i32_2 = arith.constant 0 : i32
    return %arg0, %c0_i32, %c0_i32_0, %c0_i32_1 : i32, i32, i32, i32
  }
  func.func @transform_1(%arg0: i32) -> (i32, i32, i32) {
    %c0_i32 = arith.constant 0 : i32
    %c0_i32_0 = arith.constant 0 : i32
    %c0_i32_1 = arith.constant 0 : i32
    %c0_i32_2 = arith.constant 0 : i32
    return %c0_i32, %c0_i32_0, %c0_i32_1 : i32, i32, i32
  }
  func.func @transform_2(%arg0: i32) -> (i32, i32) {
    %c0_i32 = arith.constant 0 : i32
    %c0_i32_0 = arith.constant 0 : i32
    %c0_i32_1 = arith.constant 0 : i32
    return %c0_i32, %c0_i32_0 : i32, i32
  }
  func.func @transform_3(%arg0: i32) -> (i32, i32, i32) {
    %c0_i32 = arith.constant 0 : i32
    %c0_i32_0 = arith.constant 0 : i32
    %c0_i32_1 = arith.constant 0 : i32
    %c0_i32_2 = arith.constant 0 : i32
    return %c0_i32, %c0_i32_0, %c0_i32_1 : i32, i32, i32
  }
  func.func @transform_4(%arg0: i32) -> (i32, i32) {
    %c0_i32 = arith.constant 0 : i32
    %c0_i32_0 = arith.constant 0 : i32
    %c0_i32_1 = arith.constant 0 : i32
    return %c0_i32, %c0_i32_0 : i32, i32
  }
  func.func @transform_5(%arg0: i32) -> (i32, i32, i32) {
    %c0_i32 = arith.constant 0 : i32
    %c0_i32_0 = arith.constant 0 : i32
    %c0_i32_1 = arith.constant 0 : i32
    %c0_i32_2 = arith.constant 0 : i32
    return %c0_i32, %c0_i32_0, %c0_i32_1 : i32, i32, i32
  }
  func.func @transform_6(%arg0: i32) -> (i32, i32) {
    %c0_i32 = arith.constant 0 : i32
    %c0_i32_0 = arith.constant 0 : i32
    %c0_i32_1 = arith.constant 0 : i32
    return %c0_i32, %c0_i32_0 : i32, i32
  }
  func.func @transform_7(%arg0: i32) -> (i32, i32, i32) {
    %c0_i32 = arith.constant 0 : i32
    %c0_i32_0 = arith.constant 0 : i32
    %c0_i32_1 = arith.constant 0 : i32
    return %arg0, %c0_i32, %c0_i32_0 : i32, i32, i32
  }
}

</mosaic_0001>

<llo_original>
// kernel: tpu_custom_call.1
$region0: #{tpu_custom_call.1}
  #allocation0 [shape = 'u32[]', space=smem, size = 0x4, offset = 0x4, fixed_abs, tag = 'smem constant byte address 0x4 - core index']
  #allocation1 [shape = 'u32[144,128]{1,0:T(1,128)}', space=vmem, size = 0x12000, scoped, tag = 'internal scratch']
  #allocation2 [shape = 'f32[20,12,16]{2,1,0:T(8,128)}', space=vmem, size = 0x28000, scoped, tag = 'scratch operand']
  #allocation3 [shape = 'f32[6,13,32]{2,1,0:T(8,128)}', space=vmem, size = 0xc000, scoped, tag = 'scratch operand']
  %s0 = inlined_call_operand.vmem [shape: f32[2,80,5,3], index: 0, kind: input, shape index: {}]
  %s1 = inlined_call_operand.vmem [shape: f32[9,3,16], index: 1, kind: input, shape index: {}]
  %s2 = inlined_call_operand.vmem [shape: f32[1,16], index: 2, kind: input, shape index: {}]
  %s3 = inlined_call_operand.vmem [shape: f32[9,16,32], index: 3, kind: input, shape index: {}]
  %s4 = inlined_call_operand.vmem [shape: f32[1,32], index: 4, kind: input, shape index: {}]
  %s5 = inlined_call_operand.vmem [shape: f32[9,32,32], index: 5, kind: input, shape index: {}]
  %s6 = inlined_call_operand.vmem [shape: f32[1,32], index: 6, kind: input, shape index: {}]
  %s7 = inlined_call_operand.hbm [shape: f32[2,16,32], index: 7, kind: output, shape index: {}]
  %s8 = sld [smem:[#allocation0]]
  $region61: #{tpu_custom_call.1} parent=0
    _
  %s10 = ssub.s32 1, %s8
  %s11 = scalar_select 0, %s10, %s8
  $region1: #{tpu_custom_call.1} parent=0
    #allocation4 [shape = 'u8[16384]{0}', space=vmem, size = 0x4000, scoped, tag = 'output window, operand 0']
    #allocation5 [shape = 's32[2]{0}', space=sflag, size = 0x8, scoped, tag = 'scoped memory for tpu_custom_call.1']
    %12 = vsyncpa [#allocation5], 0
    %s13 = scalar_lea.sflag [#allocation5], 1
    %14 = vsyncpa %s13, 0
    loop: start=0, step=1, limit=4
    $region2: #{tpu_custom_call.1} parent=1 // loop_pre_header
      _
    $region3: #{tpu_custom_call.1} parent=1 // loop_header
      %s16 = sphi 0, %s20
      %p17 = scmp.ge.s32.totalorder %s16, 4
      %s26 = sphi 0, %s28
      %s29 = sphi 0, %s26
      %s30 = sphi 0, %s29
      %s46 = sphi 0, %s30
      %s50 = sphi 0, %s50
      %s52 = sphi 0, %s50
      %s53 = sphi 0, %s52
      %s67 = sphi 0, %s53
      %s71 = sphi 0, %s71
      %s73 = sphi 0, %s71
      %s74 = sphi 0, %s73
      %s88 = sphi 0, %s74
      %s92 = sphi 0, %s92
      %s94 = sphi 0, %s92
      %s95 = sphi 0, %s94
      %s109 = sphi 0, %s95
      %s113 = sphi 0, %s113
      %s115 = sphi 0, %s113
      %s116 = sphi 0, %s115
      %s130 = sphi 0, %s116
      %s134 = sphi 0, %s134
      %s136 = sphi 0, %s134
      %s137 = sphi 0, %s136
      %s151 = sphi 0, %s137
      %s155 = sphi 0, %s155
      %s157 = sphi 0, %s155
      %s158 = sphi 0, %s157
      %s172 = sphi 0, %s158
      %s178 = sphi 0, %s180
      %s181 = sphi 0, %s178
      %s182 = sphi 0, %s181
      %s198 = sphi 0, %s182
    $region4: #{tpu_custom_call.1} parent=1 // loop_header_branch
      %19 = sbr.rel (%p17) target = $region8
    $region5: #{tpu_custom_call.1} parent=1 // loop_body
      %s21 = ssub.s32 %s16, 1
      %s22 = ssub.s32 %s16, 2
      %s23 = sadd.s32 %s16, 1
      %s24 = ssub.s32 %s16, %s23
      %p25 = scmp.eq.s32.totalorder %s24, 0
      %s27 = sadd.s32 %s26, 1
      %s28 = scalar_select %p25, %s26, %s27
      %p31 = pneg %p25
      %p32 = scmp.eq.s32.totalorder %s16, 1
      %p33 = por %p31, %p32
      %p34 = scmp.ne.s32.totalorder %s26, %s29
      %p35 = scmp.eq.s32.totalorder %s16, 0
      %p36 = por %p34, %p35
      %p37 = scmp.ne.s32.totalorder %s26, %s29
      %p38 = scmp.eq.s32.totalorder %s21, 1
      %p39 = por %p37, %p38
      %p40 = scmp.ne.s32.totalorder %s29, %s30
      %p41 = scmp.eq.s32.totalorder %s21, 0
      %p42 = por %p40, %p41
      %p43 = scmp.ne.s32.totalorder %s29, %s30
      %p44 = scmp.eq.s32.totalorder %s22, 1
      %p45 = por %p43, %p44
      %p47 = scmp.ne.s32.totalorder %s30, %s46
      %p48 = scmp.eq.s32.totalorder %s22, 0
      %p49 = por %p47, %p48
      %s51 = sadd.s32 %s50, 1
      %p54 = scmp.eq.s32.totalorder %s16, 1
      %p55 = scmp.ne.s32.totalorder %s50, %s52
      %p56 = scmp.eq.s32.totalorder %s16, 0
      %p57 = por %p55, %p56
      %p58 = scmp.ne.s32.totalorder %s50, %s52
      %p59 = scmp.eq.s32.totalorder %s21, 1
      %p60 = por %p58, %p59
      %p61 = scmp.ne.s32.totalorder %s52, %s53
      %p62 = scmp.eq.s32.totalorder %s21, 0
      %p63 = por %p61, %p62
      %p64 = scmp.ne.s32.totalorder %s52, %s53
      %p65 = scmp.eq.s32.totalorder %s22, 1
      %p66 = por %p64, %p65
      %p68 = scmp.ne.s32.totalorder %s53, %s67
      %p69 = scmp.eq.s32.totalorder %s22, 0
      %p70 = por %p68, %p69
      %s72 = sadd.s32 %s71, 1
      %p75 = scmp.eq.s32.totalorder %s16, 1
      %p76 = scmp.ne.s32.totalorder %s71, %s73
      %p77 = scmp.eq.s32.totalorder %s16, 0
      %p78 = por %p76, %p77
      %p79 = scmp.ne.s32.totalorder %s71, %s73
      %p80 = scmp.eq.s32.totalorder %s21, 1
      %p81 = por %p79, %p80
      %p82 = scmp.ne.s32.totalorder %s73, %s74
      %p83 = scmp.eq.s32.totalorder %s21, 0
      %p84 = por %p82, %p83
      %p85 = scmp.ne.s32.totalorder %s73, %s74
      %p86 = scmp.eq.s32.totalorder %s22, 1
      %p87 = por %p85, %p86
      %p89 = scmp.ne.s32.totalorder %s74, %s88
      %p90 = scmp.eq.s32.totalorder %s22, 0
      %p91 = por %p89, %p90
      %s93 = sadd.s32 %s92, 1
      %p96 = scmp.eq.s32.totalorder %s16, 1
      %p97 = scmp.ne.s32.totalorder %s92, %s94
      %p98 = scmp.eq.s32.totalorder %s16, 0
      %p99 = por %p97, %p98
      %p100 = scmp.ne.s32.totalorder %s92, %s94
      %p101 = scmp.eq.s32.totalorder %s21, 1
      %p102 = por %p100, %p101
      %p103 = scmp.ne.s32.totalorder %s94, %s95
      %p104 = scmp.eq.s32.totalorder %s21, 0
      %p105 = por %p103, %p104
      %p106 = scmp.ne.s32.totalorder %s94, %s95
      %p107 = scmp.eq.s32.totalorder %s22, 1
      %p108 = por %p106, %p107
      %p110 = scmp.ne.s32.totalorder %s95, %s109
      %p111 = scmp.eq.s32.totalorder %s22, 0
      %p112 = por %p110, %p111
      %s114 = sadd.s32 %s113, 1
      %p117 = scmp.eq.s32.totalorder %s16, 1
      %p118 = scmp.ne.s32.totalorder %s113, %s115
      %p119 = scmp.eq.s32.totalorder %s16, 0
      %p120 = por %p118, %p119
      %p121 = scmp.ne.s32.totalorder %s113, %s115
      %p122 = scmp.eq.s32.totalorder %s21, 1
      %p123 = por %p121, %p122
      %p124 = scmp.ne.s32.totalorder %s115, %s116
      %p125 = scmp.eq.s32.totalorder %s21, 0
      %p126 = por %p124, %p125
      %p127 = scmp.ne.s32.totalorder %s115, %s116
      %p128 = scmp.eq.s32.totalorder %s22, 1
      %p129 = por %p127, %p128
      %p131 = scmp.ne.s32.totalorder %s116, %s130
      %p132 = scmp.eq.s32.totalorder %s22, 0
      %p133 = por %p131, %p132
      %s135 = sadd.s32 %s134, 1
      %p138 = scmp.eq.s32.totalorder %s16, 1
      %p139 = scmp.ne.s32.totalorder %s134, %s136
      %p140 = scmp.eq.s32.totalorder %s16, 0
      %p141 = por %p139, %p140
      %p142 = scmp.ne.s32.totalorder %s134, %s136
      %p143 = scmp.eq.s32.totalorder %s21, 1
      %p144 = por %p142, %p143
      %p145 = scmp.ne.s32.totalorder %s136, %s137
      %p146 = scmp.eq.s32.totalorder %s21, 0
      %p147 = por %p145, %p146
      %p148 = scmp.ne.s32.totalorder %s136, %s137
      %p149 = scmp.eq.s32.totalorder %s22, 1
      %p150 = por %p148, %p149
      %p152 = scmp.ne.s32.totalorder %s137, %s151
      %p153 = scmp.eq.s32.totalorder %s22, 0
      %p154 = por %p152, %p153
      %s156 = sadd.s32 %s155, 1
      %p159 = scmp.eq.s32.totalorder %s16, 1
      %p160 = scmp.ne.s32.totalorder %s155, %s157
      %p161 = scmp.eq.s32.totalorder %s16, 0
      %p162 = por %p160, %p161
      %p163 = scmp.ne.s32.totalorder %s155, %s157
      %p164 = scmp.eq.s32.totalorder %s21, 1
      %p165 = por %p163, %p164
      %p166 = scmp.ne.s32.totalorder %s157, %s158
      %p167 = scmp.eq.s32.totalorder %s21, 0
      %p168 = por %p166, %p167
      %p169 = scmp.ne.s32.totalorder %s157, %s158
      %p170 = scmp.eq.s32.totalorder %s22, 1
      %p171 = por %p169, %p170
      %p173 = scmp.ne.s32.totalorder %s158, %s172
      %p174 = scmp.eq.s32.totalorder %s22, 0
      %p175 = por %p173, %p174
      %s176 = ssub.s32 %s16, %s23
      %p177 = scmp.eq.s32.totalorder %s176, 0
      %s179 = sadd.s32 %s178, 1
      %s180 = scalar_select %p177, %s178, %s179
      %p183 = pneg %p177
      %p184 = scmp.eq.s32.totalorder %s16, 1
      %p185 = por %p183, %p184
      %p186 = scmp.ne.s32.totalorder %s178, %s181
      %p187 = scmp.eq.s32.totalorder %s16, 0
      %p188 = por %p186, %p187
      %p189 = scmp.ne.s32.totalorder %s178, %s181
      %p190 = scmp.eq.s32.totalorder %s21, 1
      %p191 = por %p189, %p190
      %p192 = scmp.ne.s32.totalorder %s181, %s182
      %p193 = scmp.eq.s32.totalorder %s21, 0
      %p194 = por %p192, %p193
      %p195 = scmp.ne.s32.totalorder %s181, %s182
      %p196 = scmp.eq.s32.totalorder %s22, 1
      %p197 = por %p195, %p196
      %p199 = scmp.ne.s32.totalorder %s182, %s198
      %p200 = scmp.eq.s32.totalorder %s22, 0
      %p201 = por %p199, %p200
      %p202 = scmp.le.s32.totalorder 1, %s16
      %p203 = scmp.lt.s32.totalorder %s16, 3
      %p204 = pnand %p202, %p203
      %p205 = pneg %p204
      // Predicated region
      $region9: #{tpu_custom_call.1} parent=5 // pred_check
        _
      $region10: #{tpu_custom_call.1} parent=5 // pred_check_branch
        %207 = sbr.rel (%p204) target = $region12
      $region11: #{tpu_custom_call.1} parent=5 // pred_region
        %s208 = ssub.s32 %s16, 1
        // Predicated region
        $region13: #{tpu_custom_call.1} parent=11 // pred_check
          %p209 = pneg %p63
        $region14: #{tpu_custom_call.1} parent=11 // pred_check_branch
          %211 = sbr.rel (%p209) target = $region16
        $region15: #{tpu_custom_call.1} parent=11 // pred_region
          _
        $region16: #{tpu_custom_call.1} parent=11 // pred_fallthru
          _
        // Predicated region
        $region17: #{tpu_custom_call.1} parent=11 // pred_check
          %p212 = pneg %p84
        $region18: #{tpu_custom_call.1} parent=11 // pred_check_branch
          %214 = sbr.rel (%p212) target = $region20
        $region19: #{tpu_custom_call.1} parent=11 // pred_region
          _
        $region20: #{tpu_custom_call.1} parent=11 // pred_fallthru
          _
        // Predicated region
        $region21: #{tpu_custom_call.1} parent=11 // pred_check
          %p215 = pneg %p105
        $region22: #{tpu_custom_call.1} parent=11 // pred_check_branch
          %217 = sbr.rel (%p215) target = $region24
        $region23: #{tpu_custom_call.1} parent=11 // pred_region
          _
        $region24: #{tpu_custom_call.1} parent=11 // pred_fallthru
          _
        // Predicated region
        $region25: #{tpu_custom_call.1} parent=11 // pred_check
          %p218 = pneg %p126
        $region26: #{tpu_custom_call.1} parent=11 // pred_check_branch
          %220 = sbr.rel (%p218) target = $region28
        $region27: #{tpu_custom_call.1} parent=11 // pred_region
          _
        $region28: #{tpu_custom_call.1} parent=11 // pred_fallthru
          _
        // Predicated region
        $region29: #{tpu_custom_call.1} parent=11 // pred_check
          %p221 = pneg %p147
        $region30: #{tpu_custom_call.1} parent=11 // pred_check_branch
          %223 = sbr.rel (%p221) target = $region32
        $region31: #{tpu_custom_call.1} parent=11 // pred_region
          _
        $region32: #{tpu_custom_call.1} parent=11 // pred_fallthru
          _
        // Predicated region
        $region33: #{tpu_custom_call.1} parent=11 // pred_check
          %p224 = pneg %p168
        $region34: #{tpu_custom_call.1} parent=11 // pred_check_branch
          %226 = sbr.rel (%p224) target = $region36
        $region35: #{tpu_custom_call.1} parent=11 // pred_region
          _
        $region36: #{tpu_custom_call.1} parent=11 // pred_fallthru
          _
      $region12: #{tpu_custom_call.1} parent=5 // pred_fallthru
        _
      %p227 = scmp.lt.s32.totalorder %s16, 2
      // Predicated region
      $region37: #{tpu_custom_call.1} parent=5 // pred_check
        %p228 = pneg %p227
      $region38: #{tpu_custom_call.1} parent=5 // pred_check_branch
        %230 = sbr.rel (%p228) target = $region40
      $region39: #{tpu_custom_call.1} parent=5 // pred_region
        // Predicated region
        $region41: #{tpu_custom_call.1} parent=39 // pred_check
          %p231 = pneg %p36
        $region42: #{tpu_custom_call.1} parent=39 // pred_check_branch
          %233 = sbr.rel (%p231) target = $region44
        $region43: #{tpu_custom_call.1} parent=39 // pred_region
          %p234 = scmp.lt.s32.totalorder %s16, 1
          %s235 = scalar_select %p234, %s16, 1
          %s236 = smul.addr %s235, 80
          %s237 = smul.addr %s236, 8
          %s238 = scalar_lea.vmem %s0, %s237
        $region44: #{tpu_custom_call.1} parent=39 // pred_fallthru
          _
      $region40: #{tpu_custom_call.1} parent=5 // pred_fallthru
        _
      %p239 = scmp.le.s32.totalorder 1, %s16
      %p240 = scmp.lt.s32.totalorder %s16, 3
      %p241 = pnand %p239, %p240
      %p242 = pneg %p241
      // Predicated region
      $region45: #{tpu_custom_call.1} parent=5 // pred_check
        _
      $region46: #{tpu_custom_call.1} parent=5 // pred_check_branch
        %244 = sbr.rel (%p241) target = $region48
      $region47: #{tpu_custom_call.1} parent=5 // pred_region
        %s245 = ssub.s32 %s16, 1
        %p246 = scmp.lt.s32.totalorder %s21, 1
        %s247 = scalar_select %p246, %s21, 1
        %s248 = smul.addr %s247, 80
        %s249 = smul.addr %s248, 8
        %s250 = scalar_lea.vmem %s0, %s249
        %p251 = pneg %p42
        %p252 = pneg %p39
        %p253 = pneg %p63
        %p254 = pneg %p60
        %p255 = pneg %p84
        %p256 = pneg %p81
        %p257 = pneg %p105
        %p258 = pneg %p102
        %p259 = pneg %p126
        %p260 = pneg %p123
        %p261 = pneg %p147
        %p262 = pneg %p144
        %p263 = pneg %p168
        %p264 = pneg %p165
        %p265 = pneg %p194
        %p266 = pneg %p191
        %s267 = sand.u32 %s181, 1
        %s268 = scalar_lea.sflag [#allocation5], %s267
        %s269 = sand.u32 %s181, 1
        %s270 = smul.addr %s269, 16
        %s271 = scalar_lea.vmem [#allocation4], %s270
        %p272 = scmp.lt.s32.totalorder %s21, 1
        %s273 = scalar_select %p272, %s21, 1
        %s274 = smul.addr %s273, 80
        %s275 = smul.addr %s274, 8
        %s276 = scalar_lea.vmem %s0, %s275
        %vm277 = vcmask 130048
        %278 = vst.msk [vmem:[#allocation2] sm:$0xff] %vm277, 0.0
        %vm279 = vcmask 125952
        %280 = vst.msk [vmem:[#allocation2 + $0x8] sm:$0xf] %vm279, 0.0
        %s281 = scalar_lea.vmem [#allocation2], 80
        %282 = vst.msk [vmem:[%s281] sm:$0xff] %vm277, 0.0
        %283 = vst.msk [vmem:[%s281 + $0x8] sm:$0xf] %vm279, 0.0
        %s284 = scalar_lea.vmem [#allocation2], 160
        %285 = vst.msk [vmem:[%s284] sm:$0xff] %vm277, 0.0
        %286 = vst.msk [vmem:[%s284 + $0x8] sm:$0xf] %vm279, 0.0
        %s287 = scalar_lea.vmem [#allocation2], 240
        %288 = vst.msk [vmem:[%s287] sm:$0xff] %vm277, 0.0
        %289 = vst.msk [vmem:[%s287 + $0x8] sm:$0xf] %vm279, 0.0
        %vm290 = vcmask 122880
        %291 = vst.msk [vmem:[#allocation2 + $0x7] sm:$0x1] %vm290, 0.0
        %292 = vst.msk [vmem:[#allocation2 + $0x17] sm:$0x1] %vm290, 0.0
        %293 = vst.msk [vmem:[#allocation2 + $0x27] sm:$0x1] %vm290, 0.0
        %294 = vst.msk [vmem:[#allocation2 + $0x37] sm:$0x1] %vm290, 0.0
        %295 = vst.msk [vmem:[#allocation2 + $0x47] sm:$0x1] %vm290, 0.0
        %296 = vst.msk [vmem:[#allocation2 + $0x57] sm:$0x1] %vm290, 0.0
        %297 = vst.msk [vmem:[#allocation2 + $0x67] sm:$0x1] %vm290, 0.0
        %298 = vst.msk [vmem:[#allocation2 + $0x77] sm:$0x1] %vm290, 0.0
        %299 = vst.msk [vmem:[#allocation2 + $0x87] sm:$0x1] %vm290, 0.0
        %300 = vst.msk [vmem:[#allocation2 + $0x97] sm:$0x1] %vm290, 0.0
        %301 = vst.msk [vmem:[#allocation2 + $0xa7] sm:$0x1] %vm290, 0.0
        %302 = vst.msk [vmem:[#allocation2 + $0xb7] sm:$0x1] %vm290, 0.0
        %303 = vst.msk [vmem:[#allocation2 + $0xc7] sm:$0x1] %vm290, 0.0
        %304 = vst.msk [vmem:[#allocation2 + $0xd7] sm:$0x1] %vm290, 0.0
        %305 = vst.msk [vmem:[#allocation2 + $0xe7] sm:$0x1] %vm290, 0.0
        %306 = vst.msk [vmem:[#allocation2 + $0xf7] sm:$0x1] %vm290, 0.0
        %307 = vst.msk [vmem:[#allocation2 + $0x107] sm:$0x1] %vm290, 0.0
        %308 = vst.msk [vmem:[#allocation2 + $0x117] sm:$0x1] %vm290, 0.0
        %309 = vst.msk [vmem:[#allocation2 + $0x127] sm:$0x1] %vm290, 0.0
        %310 = vst.msk [vmem:[#allocation2 + $0x137] sm:$0x1] %vm290, 0.0
        %vm311 = vcmask 261120
        %312 = vst.msk [vmem:[#allocation3] sm:$0xff] %vm311, 0.0
        %vm313 = vcmask 258048
        %314 = vst.msk [vmem:[#allocation3 + $0x8] sm:$0x1f] %vm313, 0.0
        %s315 = scalar_lea.vmem [#allocation3], 80
        %316 = vst.msk [vmem:[%s315] sm:$0xff] %vm311, 0.0
        %317 = vst.msk [vmem:[%s315 + $0x8] sm:$0x1f] %vm313, 0.0
        %vm318 = vcmask 253952
        %319 = vst.msk [vmem:[#allocation3 + $0x7] sm:$0x1] %vm318, 0.0
        %320 = vst.msk [vmem:[#allocation3 + $0x17] sm:$0x1] %vm318, 0.0
        %321 = vst.msk [vmem:[#allocation3 + $0x27] sm:$0x1] %vm318, 0.0
        %322 = vst.msk [vmem:[#allocation3 + $0x37] sm:$0x1] %vm318, 0.0
        %323 = vst.msk [vmem:[#allocation3 + $0x47] sm:$0x1] %vm318, 0.0
        %324 = vst.msk [vmem:[#allocation3 + $0x57] sm:$0x1] %vm318, 0.0
        %325 = vst.msk [vmem:[#allocation3 + $0xc] sm:$0x1] %vm318, 0.0
        %326 = vst.msk [vmem:[#allocation3 + $0x1c] sm:$0x1] %vm318, 0.0
        %327 = vst.msk [vmem:[#allocation3 + $0x2c] sm:$0x1] %vm318, 0.0
        %328 = vst.msk [vmem:[#allocation3 + $0x3c] sm:$0x1] %vm318, 0.0
        %329 = vst.msk [vmem:[#allocation3 + $0x4c] sm:$0x1] %vm318, 0.0
        %330 = vst.msk [vmem:[#allocation3 + $0x5c] sm:$0x1] %vm318, 0.0
        %s331 = scalar_lea.vmem %s276, 600
        %v332 = vld [vmem:[%s331] sm:$0xf]
        %v333 = vld [vmem:[%s331 + $0x8] sm:$0xf]
        %v334 = vld [vmem:[%s331 + $0x10] sm:$0xf]
        %v335 = vld [vmem:[%s331 + $0x18] sm:$0xf]
        %v336 = vld [vmem:[%s1] sm:$0x7]
        %s337 = scalar_lea.vmem %s276, 480
        %v338 = vld [vmem:[%s337 + $0x1] sm:$0xf]
        %v339 = vld [vmem:[%s337 + $0x9] sm:$0xf]
        %v340 = vld [vmem:[%s337 + $0x11] sm:$0xf]
        %v341 = vld [vmem:[%s337 + $0x19] sm:$0xf]
        %s342 = scalar_lea.vmem %s1, 4
        %v343 = vld [vmem:[%s342] sm:$0x7]
        %v348 = vcombine.low %v338, %v339
        %v349 = vcombine.low %v340, %v341
        %vm350 = vcmask 23552
        %v351 = vsel %vm350, %v348, 0
        %v353 = vsel %vm350, %v349, 0
        %vm355 = vcmask 1042432
        %v357 = vsel %vm355, %v343, 0
        %359 = vmatprep.subr.mxu0 0.0
        %360 = vmatpush1.msra.mxu0 0.0
        %361 = vmatprep.subr.mxu0 0.0
        %362 = vmatpush1.msra.mxu0 0.0
        %363 = vmatprep.subr.mxu0 0.0
        %364 = vmatpush1.msra.mxu0 0.0
        %365 = vmatprep.subr.mxu0 0.0
        %366 = vmatpush1.msra.mxu0 0.0
        %367 = vmatprep.subr.mxu0 0.0
        %368 = vmatpush1.msra.mxu0 0.0
        %369 = vmatprep.subr.mxu0 0.0
        %370 = vmatpush1.msra.mxu0 0.0
        %371 = vmatprep.subr.mxu0 0.0
        %372 = vmatpush1.msra.mxu0 0.0
        %373 = vmatprep.subr.mxu0 0.0
        %374 = vmatpush1.msra.mxu0 0.0
        %375 = vmatprep.subr.mxu0 0.0
        %376 = vmatpush1.msra.mxu0 0.0
        %377 = vmatprep.subr.mxu0 0.0
        %378 = vmatpush1.msra.mxu0 0.0
        %379 = vmatprep.subr.mxu0 0.0
        %380 = vmatpush1.msra.mxu0 0.0
        %381 = vmatprep.subr.mxu0 0.0
        %382 = vmatpush1.msra.mxu0 0.0
        %383 = vmatprep.subr.mxu0 0.0
        %384 = vmatpush1.msra.mxu0 0.0
        %385 = vmatprep.subr.mxu0 0.0
        %386 = vmatpush1.msra.mxu0 0.0
        %387 = vmatprep.subr.mxu0 0.0
        %388 = vmatpush1.msra.mxu0 0.0
        %389 = vmatprep.subr.mxu0 0.0
        %390 = vmatpush1.msra.mxu0 %v357
        %391 = vmatprep.subr.mxu0 0.0
        %392 = vmatpush2.msra.mxu0 0.0
        %393 = vmatprep.subr.mxu0 0.0
        %394 = vmatpush2.msra.mxu0 0.0
        %395 = vmatprep.subr.mxu0 0.0
        %396 = vmatpush2.msra.mxu0 0.0
        %397 = vmatprep.subr.mxu0 0.0
        %398 = vmatpush2.msra.mxu0 0.0
        %399 = vmatprep.subr.mxu0 0.0
        %400 = vmatpush2.msra.mxu0 0.0
        %401 = vmatprep.subr.mxu0 0.0
        %402 = vmatpush2.msra.mxu0 0.0
        %403 = vmatprep.subr.mxu0 0.0
        %404 = vmatpush2.msra.mxu0 0.0
        %405 = vmatprep.subr.mxu0 0.0
        %406 = vmatpush2.msra.mxu0 0.0
        %407 = vmatprep.subr.mxu0 0.0
        %408 = vmatpush2.msra.mxu0 0.0
        %409 = vmatprep.subr.mxu0 0.0
        %410 = vmatpush2.msra.mxu0 0.0
        %411 = vmatprep.subr.mxu0 0.0
        %412 = vmatpush2.msra.mxu0 0.0
        %413 = vmatprep.subr.mxu0 0.0
        %414 = vmatpush2.msra.mxu0 0.0
        %415 = vmatprep.subr.mxu0 0.0
        %416 = vmatpush2.msra.mxu0 0.0
        %417 = vmatprep.subr.mxu0 0.0
        %418 = vmatpush2.msra.mxu0 0.0
        %419 = vmatprep.subr.mxu0 0.0
        %420 = vmatpush2.msra.mxu0 0.0
        %421 = vmatprep.subr.mxu0 0.0
        %422 = vmatpush2.msra.mxu0 0.0
        %423 = vmatprep.mubr.f32.mxu0 0.0
        %424 = vmatmul.mubr.f32.gmra.mxu0 %v351
        %v425 = vpop.f32.mrf.mxu0
        %v426 = vadd.f32 0.0, %v425
        %v427 = vpop.f32.mrf.mxu0
        %428 = vmatprep.mubr.f32.mxu0 0.0
        %429 = vmatmul.mubr.f32.gmra.mxu0 %v353
        %v430 = vpop.f32.mrf.mxu0
        %v431 = vadd.f32 0.0, %v430
        %v432 = vpop.f32.mrf.mxu0
        %433 = vdwg.mxu0
        %v438 = vcombine.low %v332, %v333
        %v439 = vcombine.low %v334, %v335
        %v440 = vsel %vm350, %v438, 0
        %v442 = vsel %vm350, %v439, 0
        %v445 = vsel %vm355, %v336, 0
        %447 = vmatprep.subr.mxu0 0.0
        %448 = vmatpush1.msra.mxu0 0.0
        %449 = vmatprep.subr.mxu0 0.0
        %450 = vmatpush1.msra.mxu0 0.0
        %451 = vmatprep.subr.mxu0 0.0
        %452 = vmatpush1.msra.mxu0 0.0
        %453 = vmatprep.subr.mxu0 0.0
        %454 = vmatpush1.msra.mxu0 0.0
        %455 = vmatprep.subr.mxu0 0.0
        %456 = vmatpush1.msra.mxu0 0.0
        %457 = vmatprep.subr.mxu0 0.0
        %458 = vmatpush1.msra.mxu0 0.0
        %459 = vmatprep.subr.mxu0 0.0
        %460 = vmatpush1.msra.mxu0 0.0
        %461 = vmatprep.subr.mxu0 0.0
        %462 = vmatpush1.msra.mxu0 0.0
        %463 = vmatprep.subr.mxu0 0.0
        %464 = vmatpush1.msra.mxu0 0.0
        %465 = vmatprep.subr.mxu0 0.0
        %466 = vmatpush1.msra.mxu0 0.0
        %467 = vmatprep.subr.mxu0 0.0
        %468 = vmatpush1.msra.mxu0 0.0
        %469 = vmatprep.subr.mxu0 0.0
        %470 = vmatpush1.msra.mxu0 0.0
        %471 = vmatprep.subr.mxu0 0.0
        %472 = vmatpush1.msra.mxu0 0.0
        %473 = vmatprep.subr.mxu0 0.0
        %474 = vmatpush1.msra.mxu0 0.0
        %475 = vmatprep.subr.mxu0 0.0
        %476 = vmatpush1.msra.mxu0 0.0
        %477 = vmatprep.subr.mxu0 0.0
        %478 = vmatpush1.msra.mxu0 %v445
        %479 = vmatprep.subr.mxu0 0.0
        %480 = vmatpush2.msra.mxu0 0.0
        %481 = vmatprep.subr.mxu0 0.0
        %482 = vmatpush2.msra.mxu0 0.0
        %483 = vmatprep.subr.mxu0 0.0
        %484 = vmatpush2.msra.mxu0 0.0
        %485 = vmatprep.subr.mxu0 0.0
        %486 = vmatpush2.msra.mxu0 0.0
        %487 = vmatprep.subr.mxu0 0.0
        %488 = vmatpush2.msra.mxu0 0.0
        %489 = vmatprep.subr.mxu0 0.0
        %490 = vmatpush2.msra.mxu0 0.0
        %491 = vmatprep.subr.mxu0 0.0
        %492 = vmatpush2.msra.mxu0 0.0
        %493 = vmatprep.subr.mxu0 0.0
        %494 = vmatpush2.msra.mxu0 0.0
        %495 = vmatprep.subr.mxu0 0.0
        %496 = vmatpush2.msra.mxu0 0.0
        %497 = vmatprep.subr.mxu0 0.0
        %498 = vmatpush2.msra.mxu0 0.0
        %499 = vmatprep.subr.mxu0 0.0
        %500 = vmatpush2.msra.mxu0 0.0
        %501 = vmatprep.subr.mxu0 0.0
        %502 = vmatpush2.msra.mxu0 0.0
        %503 = vmatprep.subr.mxu0 0.0
        %504 = vmatpush2.msra.mxu0 0.0
        %505 = vmatprep.subr.mxu0 0.0
        %506 = vmatpush2.msra.mxu0 0.0
        %507 = vmatprep.subr.mxu0 0.0
        %508 = vmatpush2.msra.mxu0 0.0
        %509 = vmatprep.subr.mxu0 0.0
        %510 = vmatpush2.msra.mxu0 0.0
        %511 = vmatprep.mubr.f32.mxu0 0.0
        %512 = vmatmul.mubr.f32.gmra.mxu0 %v440
        %v513 = vpop.f32.mrf.mxu0
        %v514 = vadd.f32 %v426, %v513
        %v515 = vpop.f32.mrf.mxu0
        %516 = vmatprep.mubr.f32.mxu0 0.0
        %517 = vmatmul.mubr.f32.gmra.mxu0 %v442
        %v518 = vpop.f32.mrf.mxu0
        %v519 = vadd.f32 %v431, %v518
        %v520 = vpop.f32.mrf.mxu0
        %521 = vdwg.mxu0
        %s522 = scalar_lea.vmem %s276, 520
        %v523 = vld [vmem:[%s522 + $0x1] sm:$0xf]
        %v524 = vld [vmem:[%s522 + $0x9] sm:$0xf]
        %v525 = vld [vmem:[%s522 + $0x11] sm:$0xf]
        %v526 = vld [vmem:[%s522 + $0x19] sm:$0xf]
        %s527 = scalar_lea.vmem %s1, 8
        %v528 = vld [vmem:[%s527] sm:$0x7]
        %v533 = vcombine.low %v523, %v524
        %v534 = vcombine.low %v525, %v526
        %v535 = vsel %vm350, %v533, 0
        %v537 = vsel %vm350, %v534, 0
        %v540 = vsel %vm355, %v528, 0
        %542 = vmatprep.subr.mxu0 0.0
        %543 = vmatpush1.msra.mxu0 0.0
        %544 = vmatprep.subr.mxu0 0.0
        %545 = vmatpush1.msra.mxu0 0.0
        %546 = vmatprep.subr.mxu0 0.0
        %547 = vmatpush1.msra.mxu0 0.0
        %548 = vmatprep.subr.mxu0 0.0
        %549 = vmatpush1.msra.mxu0 0.0
        %550 = vmatprep.subr.mxu0 0.0
        %551 = vmatpush1.msra.mxu0 0.0
        %552 = vmatprep.subr.mxu0 0.0
        %553 = vmatpush1.msra.mxu0 0.0
        %554 = vmatprep.subr.mxu0 0.0
        %555 = vmatpush1.msra.mxu0 0.0
        %556 = vmatprep.subr.mxu0 0.0
        %557 = vmatpush1.msra.mxu0 0.0
        %558 = vmatprep.subr.mxu0 0.0
        %559 = vmatpush1.msra.mxu0 0.0
        %560 = vmatprep.subr.mxu0 0.0
        %561 = vmatpush1.msra.mxu0 0.0
        %562 = vmatprep.subr.mxu0 0.0
        %563 = vmatpush1.msra.mxu0 0.0
        %564 = vmatprep.subr.mxu0 0.0
        %565 = vmatpush1.msra.mxu0 0.0
        %566 = vmatprep.subr.mxu0 0.0
        %567 = vmatpush1.msra.mxu0 0.0
        %568 = vmatprep.subr.mxu0 0.0
        %569 = vmatpush1.msra.mxu0 0.0
        %570 = vmatprep.subr.mxu0 0.0
        %571 = vmatpush1.msra.mxu0 0.0
        %572 = vmatprep.subr.mxu0 0.0
        %573 = vmatpush1.msra.mxu0 %v540
        %574 = vmatprep.subr.mxu0 0.0
        %575 = vmatpush2.msra.mxu0 0.0
        %576 = vmatprep.subr.mxu0 0.0
        %577 = vmatpush2.msra.mxu0 0.0
        %578 = vmatprep.subr.mxu0 0.0
        %579 = vmatpush2.msra.mxu0 0.0
        %580 = vmatprep.subr.mxu0 0.0
        %581 = vmatpush2.msra.mxu0 0.0
        %582 = vmatprep.subr.mxu0 0.0
        %583 = vmatpush2.msra.mxu0 0.0
        %584 = vmatprep.subr.mxu0 0.0
        %585 = vmatpush2.msra.mxu0 0.0
        %586 = vmatprep.subr.mxu0 0.0
        %587 = vmatpush2.msra.mxu0 0.0
        %588 = vmatprep.subr.mxu0 0.0
        %589 = vmatpush2.msra.mxu0 0.0
        %590 = vmatprep.subr.mxu0 0.0
        %591 = vmatpush2.msra.mxu0 0.0
        %592 = vmatprep.subr.mxu0 0.0
        %593 = vmatpush2.msra.mxu0 0.0
        %594 = vmatprep.subr.mxu0 0.0
        %595 = vmatpush2.msra.mxu0 0.0
        %596 = vmatprep.subr.mxu0 0.0
        %597 = vmatpush2.msra.mxu0 0.0
        %598 = vmatprep.subr.mxu0 0.0
        %599 = vmatpush2.msra.mxu0 0.0
        %600 = vmatprep.subr.mxu0 0.0
        %601 = vmatpush2.msra.mxu0 0.0
        %602 = vmatprep.subr.mxu0 0.0
        %603 = vmatpush2.msra.mxu0 0.0
        %604 = vmatprep.subr.mxu0 0.0
        %605 = vmatpush2.msra.mxu0 0.0
        %606 = vmatprep.mubr.f32.mxu0 0.0
        %607 = vmatmul.mubr.f32.gmra.mxu0 %v535
        %v608 = vpop.f32.mrf.mxu0
        %v609 = vadd.f32 0.0, %v608
        %v610 = vpop.f32.mrf.mxu0
        %611 = vmatprep.mubr.f32.mxu0 0.0
        %612 = vmatmul.mubr.f32.gmra.mxu0 %v537
        %v613 = vpop.f32.mrf.mxu0
        %v614 = vadd.f32 0.0, %v613
        %v615 = vpop.f32.mrf.mxu0
        %616 = vdwg.mxu0
        %v617 = vadd.f32 %v514, %v609
        %v618 = vadd.f32 %v519, %v614
        %s619 = scalar_lea.vmem %s276, 128
        %v620 = vld [vmem:[%s619] sm:$0xf]
        %v621 = vld [vmem:[%s619 + $0x8] sm:$0xf]
        %v622 = vld [vmem:[%s619 + $0x10] sm:$0xf]
        %v623 = vld [vmem:[%s619 + $0x18] sm:$0xf]
        %s624 = scalar_lea.vmem %s1, 12
        %v625 = vld [vmem:[%s624] sm:$0x7]
        %v630 = vcombine.low %v620, %v621
        %v631 = vcombine.low %v622, %v623
        %v632 = vsel %vm350, %v630, 0
        %v634 = vsel %vm350, %v631, 0
        %v637 = vsel %vm355, %v625, 0
        %639 = vmatprep.subr.mxu0 0.0
        %640 = vmatpush1.msra.mxu0 0.0
        %641 = vmatprep.subr.mxu0 0.0
        %642 = vmatpush1.msra.mxu0 0.0
        %643 = vmatprep.subr.mxu0 0.0
        %644 = vmatpush1.msra.mxu0 0.0
        %645 = vmatprep.subr.mxu0 0.0
        %646 = vmatpush1.msra.mxu0 0.0
        %647 = vmatprep.subr.mxu0 0.0
        %648 = vmatpush1.msra.mxu0 0.0
        %649 = vmatprep.subr.mxu0 0.0
        %650 = vmatpush1.msra.mxu0 0.0
        %651 = vmatprep.subr.mxu0 0.0
        %652 = vmatpush1.msra.mxu0 0.0
        %653 = vmatprep.subr.mxu0 0.0
        %654 = vmatpush1.msra.mxu0 0.0
        %655 = vmatprep.subr.mxu0 0.0
        %656 = vmatpush1.msra.mxu0 0.0
        %657 = vmatprep.subr.mxu0 0.0
        %658 = vmatpush1.msra.mxu0 0.0
        %659 = vmatprep.subr.mxu0 0.0
        %660 = vmatpush1.msra.mxu0 0.0
        %661 = vmatprep.subr.mxu0 0.0
        %662 = vmatpush1.msra.mxu0 0.0
        %663 = vmatprep.subr.mxu0 0.0
        %664 = vmatpush1.msra.mxu0 0.0
        %665 = vmatprep.subr.mxu0 0.0
        %666 = vmatpush1.msra.mxu0 0.0
        %667 = vmatprep.subr.mxu0 0.0
        %668 = vmatpush1.msra.mxu0 0.0
        %669 = vmatprep.subr.mxu0 0.0
        %670 = vmatpush1.msra.mxu0 %v637
        %671 = vmatprep.subr.mxu0 0.0
        %672 = vmatpush2.msra.mxu0 0.0
        %673 = vmatprep.subr.mxu0 0.0
        %674 = vmatpush2.msra.mxu0 0.0
        %675 = vmatprep.subr.mxu0 0.0
        %676 = vmatpush2.msra.mxu0 0.0
        %677 = vmatprep.subr.mxu0 0.0
        %678 = vmatpush2.msra.mxu0 0.0
        %679 = vmatprep.subr.mxu0 0.0
        %680 = vmatpush2.msra.mxu0 0.0
        %681 = vmatprep.subr.mxu0 0.0
        %682 = vmatpush2.msra.mxu0 0.0
        %683 = vmatprep.subr.mxu0 0.0
        %684 = vmatpush2.msra.mxu0 0.0
        %685 = vmatprep.subr.mxu0 0.0
        %686 = vmatpush2.msra.mxu0 0.0
        %687 = vmatprep.subr.mxu0 0.0
        %688 = vmatpush2.msra.mxu0 0.0
        %689 = vmatprep.subr.mxu0 0.0
        %690 = vmatpush2.msra.mxu0 0.0
        %691 = vmatprep.subr.mxu0 0.0
        %692 = vmatpush2.msra.mxu0 0.0
        %693 = vmatprep.subr.mxu0 0.0
        %694 = vmatpush2.msra.mxu0 0.0
        %695 = vmatprep.subr.mxu0 0.0
        %696 = vmatpush2.msra.mxu0 0.0
        %697 = vmatprep.subr.mxu0 0.0
        %698 = vmatpush2.msra.mxu0 0.0
        %699 = vmatprep.subr.mxu0 0.0
        %700 = vmatpush2.msra.mxu0 0.0
        %701 = vmatprep.subr.mxu0 0.0
        %702 = vmatpush2.msra.mxu0 0.0
        %703 = vmatprep.mubr.f32.mxu0 0.0
        %704 = vmatmul.mubr.f32.gmra.mxu0 %v632
        %v705 = vpop.f32.mrf.mxu0
        %v706 = vadd.f32 0.0, %v705
        %v707 = vpop.f32.mrf.mxu0
        %708 = vmatprep.mubr.f32.mxu0 0.0
        %709 = vmatmul.mubr.f32.gmra.mxu0 %v634
        %v710 = vpop.f32.mrf.mxu0
        %v711 = vadd.f32 0.0, %v710
        %v712 = vpop.f32.mrf.mxu0
        %713 = vdwg.mxu0
        %v714 = vadd.f32 %v617, %v706
        %v715 = vadd.f32 %v618, %v711
        %s716 = scalar_lea.vmem %s276, 8
        %v717 = vld [vmem:[%s716 + $0x1] sm:$0xf]
        %v718 = vld [vmem:[%s716 + $0x9] sm:$0xf]
        %v719 = vld [vmem:[%s716 + $0x11] sm:$0xf]
        %v720 = vld [vmem:[%s716 + $0x19] sm:$0xf]
        %s721 = scalar_lea.vmem %s1, 16
        %v722 = vld [vmem:[%s721] sm:$0x7]
        %v727 = vcombine.low %v717, %v718
        %v728 = vcombine.low %v719, %v720
        %v729 = vsel %vm350, %v727, 0
        %v731 = vsel %vm350, %v728, 0
        %v734 = vsel %vm355, %v722, 0
        %736 = vmatprep.subr.mxu0 0.0
        %737 = vmatpush1.msra.mxu0 0.0
        %738 = vmatprep.subr.mxu0 0.0
        %739 = vmatpush1.msra.mxu0 0.0
        %740 = vmatprep.subr.mxu0 0.0
        %741 = vmatpush1.msra.mxu0 0.0
        %742 = vmatprep.subr.mxu0 0.0
        %743 = vmatpush1.msra.mxu0 0.0
        %744 = vmatprep.subr.mxu0 0.0
        %745 = vmatpush1.msra.mxu0 0.0
        %746 = vmatprep.subr.mxu0 0.0
        %747 = vmatpush1.msra.mxu0 0.0
        %748 = vmatprep.subr.mxu0 0.0
        %749 = vmatpush1.msra.mxu0 0.0
        %750 = vmatprep.subr.mxu0 0.0
        %751 = vmatpush1.msra.mxu0 0.0
        %752 = vmatprep.subr.mxu0 0.0
        %753 = vmatpush1.msra.mxu0 0.0
        %754 = vmatprep.subr.mxu0 0.0
        %755 = vmatpush1.msra.mxu0 0.0
        %756 = vmatprep.subr.mxu0 0.0
        %757 = vmatpush1.msra.mxu0 0.0
        %758 = vmatprep.subr.mxu0 0.0
        %759 = vmatpush1.msra.mxu0 0.0
        %760 = vmatprep.subr.mxu0 0.0
        %761 = vmatpush1.msra.mxu0 0.0
        %762 = vmatprep.subr.mxu0 0.0
        %763 = vmatpush1.msra.mxu0 0.0
        %764 = vmatprep.subr.mxu0 0.0
        %765 = vmatpush1.msra.mxu0 0.0
        %766 = vmatprep.subr.mxu0 0.0
        %767 = vmatpush1.msra.mxu0 %v734
        %768 = vmatprep.subr.mxu0 0.0
        %769 = vmatpush2.msra.mxu0 0.0
        %770 = vmatprep.subr.mxu0 0.0
        %771 = vmatpush2.msra.mxu0 0.0
        %772 = vmatprep.subr.mxu0 0.0
        %773 = vmatpush2.msra.mxu0 0.0
        %774 = vmatprep.subr.mxu0 0.0
        %775 = vmatpush2.msra.mxu0 0.0
        %776 = vmatprep.subr.mxu0 0.0
        %777 = vmatpush2.msra.mxu0 0.0
        %778 = vmatprep.subr.mxu0 0.0
        %779 = vmatpush2.msra.mxu0 0.0
        %780 = vmatprep.subr.mxu0 0.0
        %781 = vmatpush2.msra.mxu0 0.0
        %782 = vmatprep.subr.mxu0 0.0
        %783 = vmatpush2.msra.mxu0 0.0
        %784 = vmatprep.subr.mxu0 0.0
        %785 = vmatpush2.msra.mxu0 0.0
        %786 = vmatprep.subr.mxu0 0.0
        %787 = vmatpush2.msra.mxu0 0.0
        %788 = vmatprep.subr.mxu0 0.0
        %789 = vmatpush2.msra.mxu0 0.0
        %790 = vmatprep.subr.mxu0 0.0
        %791 = vmatpush2.msra.mxu0 0.0
        %792 = vmatprep.subr.mxu0 0.0
        %793 = vmatpush2.msra.mxu0 0.0
        %794 = vmatprep.subr.mxu0 0.0
        %795 = vmatpush2.msra.mxu0 0.0
        %796 = vmatprep.subr.mxu0 0.0
        %797 = vmatpush2.msra.mxu0 0.0
        %798 = vmatprep.subr.mxu0 0.0
        %799 = vmatpush2.msra.mxu0 0.0
        %800 = vmatprep.mubr.f32.mxu0 0.0
        %801 = vmatmul.mubr.f32.gmra.mxu0 %v729
        %v802 = vpop.f32.mrf.mxu0
        %v803 = vadd.f32 0.0, %v802
        %v804 = vpop.f32.mrf.mxu0
        %805 = vmatprep.mubr.f32.mxu0 0.0
        %806 = vmatmul.mubr.f32.gmra.mxu0 %v731
        %v807 = vpop.f32.mrf.mxu0
        %v808 = vadd.f32 0.0, %v807
        %v809 = vpop.f32.mrf.mxu0
        %810 = vdwg.mxu0
        %v811 = vadd.f32 %v714, %v803
        %v812 = vadd.f32 %v715, %v808
        %s813 = scalar_lea.vmem %s276, 48
        %v814 = vld [vmem:[%s813 + $0x1] sm:$0xf]
        %v815 = vld [vmem:[%s813 + $0x9] sm:$0xf]
        %v816 = vld [vmem:[%s813 + $0x11] sm:$0xf]
        %v817 = vld [vmem:[%s813 + $0x19] sm:$0xf]
        %s818 = scalar_lea.vmem %s1, 20
        %v819 = vld [vmem:[%s818] sm:$0x7]
        %v824 = vcombine.low %v814, %v815
        %v825 = vcombine.low %v816, %v817
        %v826 = vsel %vm350, %v824, 0
        %v828 = vsel %vm350, %v825, 0
        %v831 = vsel %vm355, %v819, 0
        %833 = vmatprep.subr.mxu0 0.0
        %834 = vmatpush1.msra.mxu0 0.0
        %835 = vmatprep.subr.mxu0 0.0
        %836 = vmatpush1.msra.mxu0 0.0
        %837 = vmatprep.subr.mxu0 0.0
        %838 = vmatpush1.msra.mxu0 0.0
        %839 = vmatprep.subr.mxu0 0.0
        %840 = vmatpush1.msra.mxu0 0.0
        %841 = vmatprep.subr.mxu0 0.0
        %842 = vmatpush1.msra.mxu0 0.0
        %843 = vmatprep.subr.mxu0 0.0
        %844 = vmatpush1.msra.mxu0 0.0
        %845 = vmatprep.subr.mxu0 0.0
        %846 = vmatpush1.msra.mxu0 0.0
        %847 = vmatprep.subr.mxu0 0.0
        %848 = vmatpush1.msra.mxu0 0.0
        %849 = vmatprep.subr.mxu0 0.0
        %850 = vmatpush1.msra.mxu0 0.0
        %851 = vmatprep.subr.mxu0 0.0
        %852 = vmatpush1.msra.mxu0 0.0
        %853 = vmatprep.subr.mxu0 0.0
        %854 = vmatpush1.msra.mxu0 0.0
        %855 = vmatprep.subr.mxu0 0.0
        %856 = vmatpush1.msra.mxu0 0.0
        %857 = vmatprep.subr.mxu0 0.0
        %858 = vmatpush1.msra.mxu0 0.0
        %859 = vmatprep.subr.mxu0 0.0
        %860 = vmatpush1.msra.mxu0 0.0
        %861 = vmatprep.subr.mxu0 0.0
        %862 = vmatpush1.msra.mxu0 0.0
        %863 = vmatprep.subr.mxu0 0.0
        %864 = vmatpush1.msra.mxu0 %v831
        %865 = vmatprep.subr.mxu0 0.0
        %866 = vmatpush2.msra.mxu0 0.0
        %867 = vmatprep.subr.mxu0 0.0
        %868 = vmatpush2.msra.mxu0 0.0
        %869 = vmatprep.subr.mxu0 0.0
        %870 = vmatpush2.msra.mxu0 0.0
        %871 = vmatprep.subr.mxu0 0.0
        %872 = vmatpush2.msra.mxu0 0.0
        %873 = vmatprep.subr.mxu0 0.0
        %874 = vmatpush2.msra.mxu0 0.0
        %875 = vmatprep.subr.mxu0 0.0
        %876 = vmatpush2.msra.mxu0 0.0
        %877 = vmatprep.subr.mxu0 0.0
        %878 = vmatpush2.msra.mxu0 0.0
        %879 = vmatprep.subr.mxu0 0.0
        %880 = vmatpush2.msra.mxu0 0.0
        %881 = vmatprep.subr.mxu0 0.0
        %882 = vmatpush2.msra.mxu0 0.0
        %883 = vmatprep.subr.mxu0 0.0
        %884 = vmatpush2.msra.mxu0 0.0
        %885 = vmatprep.subr.mxu0 0.0
        %886 = vmatpush2.msra.mxu0 0.0
        %887 = vmatprep.subr.mxu0 0.0
        %888 = vmatpush2.msra.mxu0 0.0
        %889 = vmatprep.subr.mxu0 0.0
        %890 = vmatpush2.msra.mxu0 0.0
        %891 = vmatprep.subr.mxu0 0.0
        %892 = vmatpush2.msra.mxu0 0.0
        %893 = vmatprep.subr.mxu0 0.0
        %894 = vmatpush2.msra.mxu0 0.0
        %895 = vmatprep.subr.mxu0 0.0
        %896 = vmatpush2.msra.mxu0 0.0
        %897 = vmatprep.mubr.f32.mxu0 0.0
        %898 = vmatmul.mubr.f32.gmra.mxu0 %v826
        %v899 = vpop.f32.mrf.mxu0
        %v900 = vadd.f32 0.0, %v899
        %v901 = vpop.f32.mrf.mxu0
        %902 = vmatprep.mubr.f32.mxu0 0.0
        %903 = vmatmul.mubr.f32.gmra.mxu0 %v828
        %v904 = vpop.f32.mrf.mxu0
        %v905 = vadd.f32 0.0, %v904
        %v906 = vpop.f32.mrf.mxu0
        %907 = vdwg.mxu0
        %v908 = vadd.f32 %v811, %v900
        %v909 = vadd.f32 %v812, %v905
        %s910 = scalar_lea.vmem %s276, 288
        %v911 = vld [vmem:[%s910] sm:$0xf]
        %v912 = vld [vmem:[%s910 + $0x8] sm:$0xf]
        %v913 = vld [vmem:[%s910 + $0x10] sm:$0xf]
        %v914 = vld [vmem:[%s910 + $0x18] sm:$0xf]
        %s915 = scalar_lea.vmem %s1, 24
        %v916 = vld [vmem:[%s915] sm:$0x7]
        %v921 = vcombine.low %v911, %v912
        %v922 = vcombine.low %v913, %v914
        %v923 = vsel %vm350, %v921, 0
        %v925 = vsel %vm350, %v922, 0
        %v928 = vsel %vm355, %v916, 0
        %930 = vmatprep.subr.mxu0 0.0
        %931 = vmatpush1.msra.mxu0 0.0
        %932 = vmatprep.subr.mxu0 0.0
        %933 = vmatpush1.msra.mxu0 0.0
        %934 = vmatprep.subr.mxu0 0.0
        %935 = vmatpush1.msra.mxu0 0.0
        %936 = vmatprep.subr.mxu0 0.0
        %937 = vmatpush1.msra.mxu0 0.0
        %938 = vmatprep.subr.mxu0 0.0
        %939 = vmatpush1.msra.mxu0 0.0
        %940 = vmatprep.subr.mxu0 0.0
        %941 = vmatpush1.msra.mxu0 0.0
        %942 = vmatprep.subr.mxu0 0.0
        %943 = vmatpush1.msra.mxu0 0.0
        %944 = vmatprep.subr.mxu0 0.0
        %945 = vmatpush1.msra.mxu0 0.0
        %946 = vmatprep.subr.mxu0 0.0
        %947 = vmatpush1.msra.mxu0 0.0
        %948 = vmatprep.subr.mxu0 0.0
        %949 = vmatpush1.msra.mxu0 0.0
        %950 = vmatprep.subr.mxu0 0.0
        %951 = vmatpush1.msra.mxu0 0.0
        %952 = vmatprep.subr.mxu0 0.0
        %953 = vmatpush1.msra.mxu0 0.0
        %954 = vmatprep.subr.mxu0 0.0
        %955 = vmatpush1.msra.mxu0 0.0
        %956 = vmatprep.subr.mxu0 0.0
        %957 = vmatpush1.msra.mxu0 0.0
        %958 = vmatprep.subr.mxu0 0.0
        %959 = vmatpush1.msra.mxu0 0.0
        %960 = vmatprep.subr.mxu0 0.0
        %961 = vmatpush1.msra.mxu0 %v928
        %962 = vmatprep.subr.mxu0 0.0
        %963 = vmatpush2.msra.mxu0 0.0
        %964 = vmatprep.subr.mxu0 0.0
        %965 = vmatpush2.msra.mxu0 0.0
        %966 = vmatprep.subr.mxu0 0.0
        %967 = vmatpush2.msra.mxu0 0.0
        %968 = vmatprep.subr.mxu0 0.0
        %969 = vmatpush2.msra.mxu0 0.0
        %970 = vmatprep.subr.mxu0 0.0
        %971 = vmatpush2.msra.mxu0 0.0
        %972 = vmatprep.subr.mxu0 0.0
        %973 = vmatpush2.msra.mxu0 0.0
        %974 = vmatprep.subr.mxu0 0.0
        %975 = vmatpush2.msra.mxu0 0.0
        %976 = vmatprep.subr.mxu0 0.0
        %977 = vmatpush2.msra.mxu0 0.0
        %978 = vmatprep.subr.mxu0 0.0
        %979 = vmatpush2.msra.mxu0 0.0
        %980 = vmatprep.subr.mxu0 0.0
        %981 = vmatpush2.msra.mxu0 0.0
        %982 = vmatprep.subr.mxu0 0.0
        %983 = vmatpush2.msra.mxu0 0.0
        %984 = vmatprep.subr.mxu0 0.0
        %985 = vmatpush2.msra.mxu0 0.0
        %986 = vmatprep.subr.mxu0 0.0
        %987 = vmatpush2.msra.mxu0 0.0
        %988 = vmatprep.subr.mxu0 0.0
        %989 = vmatpush2.msra.mxu0 0.0
        %990 = vmatprep.subr.mxu0 0.0
        %991 = vmatpush2.msra.mxu0 0.0
        %992 = vmatprep.subr.mxu0 0.0
        %993 = vmatpush2.msra.mxu0 0.0
        %994 = vmatprep.mubr.f32.mxu0 0.0
        %995 = vmatmul.mubr.f32.gmra.mxu0 %v923
        %v996 = vpop.f32.mrf.mxu0
        %v997 = vadd.f32 0.0, %v996
        %v998 = vpop.f32.mrf.mxu0
        %999 = vmatprep.mubr.f32.mxu0 0.0
        %1000 = vmatmul.mubr.f32.gmra.mxu0 %v925
        %v1001 = vpop.f32.mrf.mxu0
        %v1002 = vadd.f32 0.0, %v1001
        %v1003 = vpop.f32.mrf.mxu0
        %1004 = vdwg.mxu0
        %v1005 = vadd.f32 %v908, %v997
        %v1006 = vadd.f32 %v909, %v1002
        %s1007 = scalar_lea.vmem %s276, 168
        %v1008 = vld [vmem:[%s1007 + $0x1] sm:$0xf]
        %v1009 = vld [vmem:[%s1007 + $0x9] sm:$0xf]
        %v1010 = vld [vmem:[%s1007 + $0x11] sm:$0xf]
        %v1011 = vld [vmem:[%s1007 + $0x19] sm:$0xf]
        %s1012 = scalar_lea.vmem %s1, 28
        %v1013 = vld [vmem:[%s1012] sm:$0x7]
        %v1018 = vcombine.low %v1008, %v1009
        %v1019 = vcombine.low %v1010, %v1011
        %v1020 = vsel %vm350, %v1018, 0
        %v1022 = vsel %vm350, %v1019, 0
        %v1025 = vsel %vm355, %v1013, 0
        %1027 = vmatprep.subr.mxu0 0.0
        %1028 = vmatpush1.msra.mxu0 0.0
        %1029 = vmatprep.subr.mxu0 0.0
        %1030 = vmatpush1.msra.mxu0 0.0
        %1031 = vmatprep.subr.mxu0 0.0
        %1032 = vmatpush1.msra.mxu0 0.0
        %1033 = vmatprep.subr.mxu0 0.0
        %1034 = vmatpush1.msra.mxu0 0.0
        %1035 = vmatprep.subr.mxu0 0.0
        %1036 = vmatpush1.msra.mxu0 0.0
        %1037 = vmatprep.subr.mxu0 0.0
        %1038 = vmatpush1.msra.mxu0 0.0
        %1039 = vmatprep.subr.mxu0 0.0
        %1040 = vmatpush1.msra.mxu0 0.0
        %1041 = vmatprep.subr.mxu0 0.0
        %1042 = vmatpush1.msra.mxu0 0.0
        %1043 = vmatprep.subr.mxu0 0.0
        %1044 = vmatpush1.msra.mxu0 0.0
        %1045 = vmatprep.subr.mxu0 0.0
        %1046 = vmatpush1.msra.mxu0 0.0
        %1047 = vmatprep.subr.mxu0 0.0
        %1048 = vmatpush1.msra.mxu0 0.0
        %1049 = vmatprep.subr.mxu0 0.0
        %1050 = vmatpush1.msra.mxu0 0.0
        %1051 = vmatprep.subr.mxu0 0.0
        %1052 = vmatpush1.msra.mxu0 0.0
        %1053 = vmatprep.subr.mxu0 0.0
        %1054 = vmatpush1.msra.mxu0 0.0
        %1055 = vmatprep.subr.mxu0 0.0
        %1056 = vmatpush1.msra.mxu0 0.0
        %1057 = vmatprep.subr.mxu0 0.0
        %1058 = vmatpush1.msra.mxu0 %v1025
        %1059 = vmatprep.subr.mxu0 0.0
        %1060 = vmatpush2.msra.mxu0 0.0
        %1061 = vmatprep.subr.mxu0 0.0
        %1062 = vmatpush2.msra.mxu0 0.0
        %1063 = vmatprep.subr.mxu0 0.0
        %1064 = vmatpush2.msra.mxu0 0.0
        %1065 = vmatprep.subr.mxu0 0.0
        %1066 = vmatpush2.msra.mxu0 0.0
        %1067 = vmatprep.subr.mxu0 0.0
        %1068 = vmatpush2.msra.mxu0 0.0
        %1069 = vmatprep.subr.mxu0 0.0
        %1070 = vmatpush2.msra.mxu0 0.0
        %1071 = vmatprep.subr.mxu0 0.0
        %1072 = vmatpush2.msra.mxu0 0.0
        %1073 = vmatprep.subr.mxu0 0.0
        %1074 = vmatpush2.msra.mxu0 0.0
        %1075 = vmatprep.subr.mxu0 0.0
        %1076 = vmatpush2.msra.mxu0 0.0
        %1077 = vmatprep.subr.mxu0 0.0
        %1078 = vmatpush2.msra.mxu0 0.0
        %1079 = vmatprep.subr.mxu0 0.0
        %1080 = vmatpush2.msra.mxu0 0.0
        %1081 = vmatprep.subr.mxu0 0.0
        %1082 = vmatpush2.msra.mxu0 0.0
        %1083 = vmatprep.subr.mxu0 0.0
        %1084 = vmatpush2.msra.mxu0 0.0
        %1085 = vmatprep.subr.mxu0 0.0
        %1086 = vmatpush2.msra.mxu0 0.0
        %1087 = vmatprep.subr.mxu0 0.0
        %1088 = vmatpush2.msra.mxu0 0.0
        %1089 = vmatprep.subr.mxu0 0.0
        %1090 = vmatpush2.msra.mxu0 0.0
        %1091 = vmatprep.mubr.f32.mxu0 0.0
        %1092 = vmatmul.mubr.f32.gmra.mxu0 %v1020
        %v1093 = vpop.f32.mrf.mxu0
        %v1094 = vadd.f32 0.0, %v1093
        %v1095 = vpop.f32.mrf.mxu0
        %1096 = vmatprep.mubr.f32.mxu0 0.0
        %1097 = vmatmul.mubr.f32.gmra.mxu0 %v1022
        %v1098 = vpop.f32.mrf.mxu0
        %v1099 = vadd.f32 0.0, %v1098
        %v1100 = vpop.f32.mrf.mxu0
        %1101 = vdwg.mxu0
        %v1102 = vadd.f32 %v1005, %v1094
        %v1103 = vadd.f32 %v1006, %v1099
        %s1104 = scalar_lea.vmem %s276, 208
        %v1105 = vld [vmem:[%s1104 + $0x1] sm:$0xf]
        %v1106 = vld [vmem:[%s1104 + $0x9] sm:$0xf]
        %v1107 = vld [vmem:[%s1104 + $0x11] sm:$0xf]
        %v1108 = vld [vmem:[%s1104 + $0x19] sm:$0xf]
        %s1109 = scalar_lea.vmem %s1, 32
        %v1110 = vld [vmem:[%s1109] sm:$0x7]
        %v1115 = vcombine.low %v1105, %v1106
        %v1116 = vcombine.low %v1107, %v1108
        %v1117 = vsel %vm350, %v1115, 0
        %v1119 = vsel %vm350, %v1116, 0
        %v1122 = vsel %vm355, %v1110, 0
        %1124 = vmatprep.subr.mxu0 0.0
        %1125 = vmatpush1.msra.mxu0 0.0
        %1126 = vmatprep.subr.mxu0 0.0
        %1127 = vmatpush1.msra.mxu0 0.0
        %1128 = vmatprep.subr.mxu0 0.0
        %1129 = vmatpush1.msra.mxu0 0.0
        %1130 = vmatprep.subr.mxu0 0.0
        %1131 = vmatpush1.msra.mxu0 0.0
        %1132 = vmatprep.subr.mxu0 0.0
        %1133 = vmatpush1.msra.mxu0 0.0
        %1134 = vmatprep.subr.mxu0 0.0
        %1135 = vmatpush1.msra.mxu0 0.0
        %1136 = vmatprep.subr.mxu0 0.0
        %1137 = vmatpush1.msra.mxu0 0.0
        %1138 = vmatprep.subr.mxu0 0.0
        %1139 = vmatpush1.msra.mxu0 0.0
        %1140 = vmatprep.subr.mxu0 0.0
        %1141 = vmatpush1.msra.mxu0 0.0
        %1142 = vmatprep.subr.mxu0 0.0
        %1143 = vmatpush1.msra.mxu0 0.0
        %1144 = vmatprep.subr.mxu0 0.0
        %1145 = vmatpush1.msra.mxu0 0.0
        %1146 = vmatprep.subr.mxu0 0.0
        %1147 = vmatpush1.msra.mxu0 0.0
        %1148 = vmatprep.subr.mxu0 0.0
        %1149 = vmatpush1.msra.mxu0 0.0
        %1150 = vmatprep.subr.mxu0 0.0
        %1151 = vmatpush1.msra.mxu0 0.0
        %1152 = vmatprep.subr.mxu0 0.0
        %1153 = vmatpush1.msra.mxu0 0.0
        %1154 = vmatprep.subr.mxu0 0.0
        %1155 = vmatpush1.msra.mxu0 %v1122
        %1156 = vmatprep.subr.mxu0 0.0
        %1157 = vmatpush2.msra.mxu0 0.0
        %1158 = vmatprep.subr.mxu0 0.0
        %1159 = vmatpush2.msra.mxu0 0.0
        %1160 = vmatprep.subr.mxu0 0.0
        %1161 = vmatpush2.msra.mxu0 0.0
        %1162 = vmatprep.subr.mxu0 0.0
        %1163 = vmatpush2.msra.mxu0 0.0
        %1164 = vmatprep.subr.mxu0 0.0
        %1165 = vmatpush2.msra.mxu0 0.0
        %1166 = vmatprep.subr.mxu0 0.0
        %1167 = vmatpush2.msra.mxu0 0.0
        %1168 = vmatprep.subr.mxu0 0.0
        %1169 = vmatpush2.msra.mxu0 0.0
        %1170 = vmatprep.subr.mxu0 0.0
        %1171 = vmatpush2.msra.mxu0 0.0
        %1172 = vmatprep.subr.mxu0 0.0
        %1173 = vmatpush2.msra.mxu0 0.0
        %1174 = vmatprep.subr.mxu0 0.0
        %1175 = vmatpush2.msra.mxu0 0.0
        %1176 = vmatprep.subr.mxu0 0.0
        %1177 = vmatpush2.msra.mxu0 0.0
        %1178 = vmatprep.subr.mxu0 0.0
        %1179 = vmatpush2.msra.mxu0 0.0
        %1180 = vmatprep.subr.mxu0 0.0
        %1181 = vmatpush2.msra.mxu0 0.0
        %1182 = vmatprep.subr.mxu0 0.0
        %1183 = vmatpush2.msra.mxu0 0.0
        %1184 = vmatprep.subr.mxu0 0.0
        %1185 = vmatpush2.msra.mxu0 0.0
        %1186 = vmatprep.subr.mxu0 0.0
        %1187 = vmatpush2.msra.mxu0 0.0
        %1188 = vmatprep.mubr.f32.mxu0 0.0
        %1189 = vmatmul.mubr.f32.gmra.mxu0 %v1117
        %v1190 = vpop.f32.mrf.mxu0
        %v1191 = vadd.f32 0.0, %v1190
        %v1192 = vpop.f32.mrf.mxu0
        %1193 = vmatprep.mubr.f32.mxu0 0.0
        %1194 = vmatmul.mubr.f32.gmra.mxu0 %v1119
        %v1195 = vpop.f32.mrf.mxu0
        %v1196 = vadd.f32 0.0, %v1195
        %v1197 = vpop.f32.mrf.mxu0
        %1198 = vdwg.mxu0
        %v1199 = vadd.f32 %v1102, %v1191
        %v1200 = vadd.f32 %v1103, %v1196
        %v1201 = vld [vmem:[%s2] sm:$0x1]
        %v1203 = vlaneseq
        %v1204 = vshrl.u32 %v1203, 7
        %v1205 = vsub.s32 0, %v1204
        %v1206 = vrot.slane %v1201, %v1205
        %v1208 = vadd.f32 %v1199, %v1206
        %v1209 = vadd.f32 %v1200, %v1206
        %v1210 = vmax.f32 %v1208, 0.0
        %v1211 = vmax.f32 %v1209, 0.0
        %v1214 = vcombine.high %v1210, %v1210
        %v1215 = vcombine.high %v1211, %v1211
        %s1218 = scalar_lea.vmem [#allocation2], 16
        %1219 = vst.msk [vmem:[%s1218 + $0x8] sm:$0xf] %vm279, %v1210
        %1220 = vst.msk [vmem:[%s1218 + $0x18] sm:$0xf] %vm279, %v1214
        %1221 = vst.msk [vmem:[%s1218 + $0x28] sm:$0xf] %vm279, %v1211
        %1222 = vst.msk [vmem:[%s1218 + $0x38] sm:$0xf] %vm279, %v1215
        %v1223 = vld [vmem:[%s522 + $0x1] sm:$0xf]
        %v1224 = vld [vmem:[%s522 + $0x9] sm:$0xf]
        %v1225 = vld [vmem:[%s522 + $0x11] sm:$0xf]
        %v1226 = vld [vmem:[%s522 + $0x19] sm:$0xf]
        %v1227 = vld [vmem:[%s1] sm:$0x7]
        %s1228 = scalar_lea.vmem %s276, 560
        %v1229 = vld [vmem:[%s1228 + $0x1] sm:$0xf]
        %v1230 = vld [vmem:[%s1228 + $0x9] sm:$0xf]
        %v1231 = vld [vmem:[%s1228 + $0x11] sm:$0xf]
        %v1232 = vld [vmem:[%s1228 + $0x19] sm:$0xf]
        %v1233 = vld [vmem:[%s342] sm:$0x7]
        %v1238 = vcombine.low %v1229, %v1230
        %v1239 = vcombine.low %v1231, %v1232
        %v1240 = vsel %vm350, %v1238, 0
        %v1242 = vsel %vm350, %v1239, 0
        %v1245 = vsel %vm355, %v1233, 0
        %1247 = vmatprep.subr.mxu0 0.0
        %1248 = vmatpush1.msra.mxu0 0.0
        %1249 = vmatprep.subr.mxu0 0.0
        %1250 = vmatpush1.msra.mxu0 0.0
        %1251 = vmatprep.subr.mxu0 0.0
        %1252 = vmatpush1.msra.mxu0 0.0
        %1253 = vmatprep.subr.mxu0 0.0
        %1254 = vmatpush1.msra.mxu0 0.0
        %1255 = vmatprep.subr.mxu0 0.0
        %1256 = vmatpush1.msra.mxu0 0.0
        %1257 = vmatprep.subr.mxu0 0.0
        %1258 = vmatpush1.msra.mxu0 0.0
        %1259 = vmatprep.subr.mxu0 0.0
        %1260 = vmatpush1.msra.mxu0 0.0
        %1261 = vmatprep.subr.mxu0 0.0
        %1262 = vmatpush1.msra.mxu0 0.0
        %1263 = vmatprep.subr.mxu0 0.0
        %1264 = vmatpush1.msra.mxu0 0.0
        %1265 = vmatprep.subr.mxu0 0.0
        %1266 = vmatpush1.msra.mxu0 0.0
        %1267 = vmatprep.subr.mxu0 0.0
        %1268 = vmatpush1.msra.mxu0 0.0
        %1269 = vmatprep.subr.mxu0 0.0
        %1270 = vmatpush1.msra.mxu0 0.0
        %1271 = vmatprep.subr.mxu0 0.0
        %1272 = vmatpush1.msra.mxu0 0.0
        %1273 = vmatprep.subr.mxu0 0.0
        %1274 = vmatpush1.msra.mxu0 0.0
        %1275 = vmatprep.subr.mxu0 0.0
        %1276 = vmatpush1.msra.mxu0 0.0
        %1277 = vmatprep.subr.mxu0 0.0
        %1278 = vmatpush1.msra.mxu0 %v1245
        %1279 = vmatprep.subr.mxu0 0.0
        %1280 = vmatpush2.msra.mxu0 0.0
        %1281 = vmatprep.subr.mxu0 0.0
        %1282 = vmatpush2.msra.mxu0 0.0
        %1283 = vmatprep.subr.mxu0 0.0
        %1284 = vmatpush2.msra.mxu0 0.0
        %1285 = vmatprep.subr.mxu0 0.0
        %1286 = vmatpush2.msra.mxu0 0.0
        %1287 = vmatprep.subr.mxu0 0.0
        %1288 = vmatpush2.msra.mxu0 0.0
        %1289 = vmatprep.subr.mxu0 0.0
        %1290 = vmatpush2.msra.mxu0 0.0
        %1291 = vmatprep.subr.mxu0 0.0
        %1292 = vmatpush2.msra.mxu0 0.0
        %1293 = vmatprep.subr.mxu0 0.0
        %1294 = vmatpush2.msra.mxu0 0.0
        %1295 = vmatprep.subr.mxu0 0.0
        %1296 = vmatpush2.msra.mxu0 0.0
        %1297 = vmatprep.subr.mxu0 0.0
        %1298 = vmatpush2.msra.mxu0 0.0
        %1299 = vmatprep.subr.mxu0 0.0
        %1300 = vmatpush2.msra.mxu0 0.0
        %1301 = vmatprep.subr.mxu0 0.0
        %1302 = vmatpush2.msra.mxu0 0.0
        %1303 = vmatprep.subr.mxu0 0.0
        %1304 = vmatpush2.msra.mxu0 0.0
        %1305 = vmatprep.subr.mxu0 0.0
        %1306 = vmatpush2.msra.mxu0 0.0
        %1307 = vmatprep.subr.mxu0 0.0
        %1308 = vmatpush2.msra.mxu0 0.0
        %1309 = vmatprep.subr.mxu0 0.0
        %1310 = vmatpush2.msra.mxu0 0.0
        %1311 = vmatprep.mubr.f32.mxu0 0.0
        %1312 = vmatmul.mubr.f32.gmra.mxu0 %v1240
        %v1313 = vpop.f32.mrf.mxu0
        %v1314 = vadd.f32 0.0, %v1313
        %v1315 = vpop.f32.mrf.mxu0
        %1316 = vmatprep.mubr.f32.mxu0 0.0
        %1317 = vmatmul.mubr.f32.gmra.mxu0 %v1242
        %v1318 = vpop.f32.mrf.mxu0
        %v1319 = vadd.f32 0.0, %v1318
        %v1320 = vpop.f32.mrf.mxu0
        %1321 = vdwg.mxu0
        %v1326 = vcombine.low %v1223, %v1224
        %v1327 = vcombine.low %v1225, %v1226
        %v1328 = vsel %vm350, %v1326, 0
        %v1330 = vsel %vm350, %v1327, 0
        %v1333 = vsel %vm355, %v1227, 0
        %1335 = vmatprep.subr.mxu0 0.0
        %1336 = vmatpush1.msra.mxu0 0.0
        %1337 = vmatprep.subr.mxu0 0.0
        %1338 = vmatpush1.msra.mxu0 0.0
        %1339 = vmatprep.subr.mxu0 0.0
        %1340 = vmatpush1.msra.mxu0 0.0
        %1341 = vmatprep.subr.mxu0 0.0
        %1342 = vmatpush1.msra.mxu0 0.0
        %1343 = vmatprep.subr.mxu0 0.0
        %1344 = vmatpush1.msra.mxu0 0.0
        %1345 = vmatprep.subr.mxu0 0.0
        %1346 = vmatpush1.msra.mxu0 0.0
        %1347 = vmatprep.subr.mxu0 0.0
        %1348 = vmatpush1.msra.mxu0 0.0
        %1349 = vmatprep.subr.mxu0 0.0
        %1350 = vmatpush1.msra.mxu0 0.0
        %1351 = vmatprep.subr.mxu0 0.0
        %1352 = vmatpush1.msra.mxu0 0.0
        %1353 = vmatprep.subr.mxu0 0.0
        %1354 = vmatpush1.msra.mxu0 0.0
        %1355 = vmatprep.subr.mxu0 0.0
        %1356 = vmatpush1.msra.mxu0 0.0
        %1357 = vmatprep.subr.mxu0 0.0
        %1358 = vmatpush1.msra.mxu0 0.0
        %1359 = vmatprep.subr.mxu0 0.0
        %1360 = vmatpush1.msra.mxu0 0.0
        %1361 = vmatprep.subr.mxu0 0.0
        %1362 = vmatpush1.msra.mxu0 0.0
        %1363 = vmatprep.subr.mxu0 0.0
        %1364 = vmatpush1.msra.mxu0 0.0
        %1365 = vmatprep.subr.mxu0 0.0
        %1366 = vmatpush1.msra.mxu0 %v1333
        %1367 = vmatprep.subr.mxu0 0.0
        %1368 = vmatpush2.msra.mxu0 0.0
        %1369 = vmatprep.subr.mxu0 0.0
        %1370 = vmatpush2.msra.mxu0 0.0
        %1371 = vmatprep.subr.mxu0 0.0
        %1372 = vmatpush2.msra.mxu0 0.0
        %1373 = vmatprep.subr.mxu0 0.0
        %1374 = vmatpush2.msra.mxu0 0.0
        %1375 = vmatprep.subr.mxu0 0.0
        %1376 = vmatpush2.msra.mxu0 0.0
        %1377 = vmatprep.subr.mxu0 0.0
        %1378 = vmatpush2.msra.mxu0 0.0
        %1379 = vmatprep.subr.mxu0 0.0
        %1380 = vmatpush2.msra.mxu0 0.0
        %1381 = vmatprep.subr.mxu0 0.0
        %1382 = vmatpush2.msra.mxu0 0.0
        %1383 = vmatprep.subr.mxu0 0.0
        %1384 = vmatpush2.msra.mxu0 0.0
        %1385 = vmatprep.subr.mxu0 0.0
        %1386 = vmatpush2.msra.mxu0 0.0
        %1387 = vmatprep.subr.mxu0 0.0
        %1388 = vmatpush2.msra.mxu0 0.0
        %1389 = vmatprep.subr.mxu0 0.0
        %1390 = vmatpush2.msra.mxu0 0.0
        %1391 = vmatprep.subr.mxu0 0.0
        %1392 = vmatpush2.msra.mxu0 0.0
        %1393 = vmatprep.subr.mxu0 0.0
        %1394 = vmatpush2.msra.mxu0 0.0
        %1395 = vmatprep.subr.mxu0 0.0
        %1396 = vmatpush2.msra.mxu0 0.0
        %1397 = vmatprep.subr.mxu0 0.0
        %1398 = vmatpush2.msra.mxu0 0.0
        %1399 = vmatprep.mubr.f32.mxu0 0.0
        %1400 = vmatmul.mubr.f32.gmra.mxu0 %v1328
        %v1401 = vpop.f32.mrf.mxu0
        %v1402 = vadd.f32 %v1314, %v1401
        %v1403 = vpop.f32.mrf.mxu0
        %1404 = vmatprep.mubr.f32.mxu0 0.0
        %1405 = vmatmul.mubr.f32.gmra.mxu0 %v1330
        %v1406 = vpop.f32.mrf.mxu0
        %v1407 = vadd.f32 %v1319, %v1406
        %v1408 = vpop.f32.mrf.mxu0
        %1409 = vdwg.mxu0
        %v1410 = vld [vmem:[%s331 + $0x1] sm:$0xf]
        %v1411 = vld [vmem:[%s331 + $0x9] sm:$0xf]
        %v1412 = vld [vmem:[%s331 + $0x11] sm:$0xf]
        %v1413 = vld [vmem:[%s331 + $0x19] sm:$0xf]
        %v1414 = vld [vmem:[%s527] sm:$0x7]
        %v1419 = vcombine.low %v1410, %v1411
        %v1420 = vcombine.low %v1412, %v1413
        %v1421 = vsel %vm350, %v1419, 0
        %v1423 = vsel %vm350, %v1420, 0
        %v1426 = vsel %vm355, %v1414, 0
        %1428 = vmatprep.subr.mxu0 0.0
        %1429 = vmatpush1.msra.mxu0 0.0
        %1430 = vmatprep.subr.mxu0 0.0
        %1431 = vmatpush1.msra.mxu0 0.0
        %1432 = vmatprep.subr.mxu0 0.0
        %1433 = vmatpush1.msra.mxu0 0.0
        %1434 = vmatprep.subr.mxu0 0.0
        %1435 = vmatpush1.msra.mxu0 0.0
        %1436 = vmatprep.subr.mxu0 0.0
        %1437 = vmatpush1.msra.mxu0 0.0
        %1438 = vmatprep.subr.mxu0 0.0
        %1439 = vmatpush1.msra.mxu0 0.0
        %1440 = vmatprep.subr.mxu0 0.0
        %1441 = vmatpush1.msra.mxu0 0.0
        %1442 = vmatprep.subr.mxu0 0.0
        %1443 = vmatpush1.msra.mxu0 0.0
        %1444 = vmatprep.subr.mxu0 0.0
        %1445 = vmatpush1.msra.mxu0 0.0
        %1446 = vmatprep.subr.mxu0 0.0
        %1447 = vmatpush1.msra.mxu0 0.0
        %1448 = vmatprep.subr.mxu0 0.0
        %1449 = vmatpush1.msra.mxu0 0.0
        %1450 = vmatprep.subr.mxu0 0.0
        %1451 = vmatpush1.msra.mxu0 0.0
        %1452 = vmatprep.subr.mxu0 0.0
        %1453 = vmatpush1.msra.mxu0 0.0
        %1454 = vmatprep.subr.mxu0 0.0
        %1455 = vmatpush1.msra.mxu0 0.0
        %1456 = vmatprep.subr.mxu0 0.0
        %1457 = vmatpush1.msra.mxu0 0.0
        %1458 = vmatprep.subr.mxu0 0.0
        %1459 = vmatpush1.msra.mxu0 %v1426
        %1460 = vmatprep.subr.mxu0 0.0
        %1461 = vmatpush2.msra.mxu0 0.0
        %1462 = vmatprep.subr.mxu0 0.0
        %1463 = vmatpush2.msra.mxu0 0.0
        %1464 = vmatprep.subr.mxu0 0.0
        %1465 = vmatpush2.msra.mxu0 0.0
        %1466 = vmatprep.subr.mxu0 0.0
        %1467 = vmatpush2.msra.mxu0 0.0
        %1468 = vmatprep.subr.mxu0 0.0
        %1469 = vmatpush2.msra.mxu0 0.0
        %1470 = vmatprep.subr.mxu0 0.0
        %1471 = vmatpush2.msra.mxu0 0.0
        %1472 = vmatprep.subr.mxu0 0.0
        %1473 = vmatpush2.msra.mxu0 0.0
        %1474 = vmatprep.subr.mxu0 0.0
        %1475 = vmatpush2.msra.mxu0 0.0
        %1476 = vmatprep.subr.mxu0 0.0
        %1477 = vmatpush2.msra.mxu0 0.0
        %1478 = vmatprep.subr.mxu0 0.0
        %1479 = vmatpush2.msra.mxu0 0.0
        %1480 = vmatprep.subr.mxu0 0.0
        %1481 = vmatpush2.msra.mxu0 0.0
        %1482 = vmatprep.subr.mxu0 0.0
        %1483 = vmatpush2.msra.mxu0 0.0
        %1484 = vmatprep.subr.mxu0 0.0
        %1485 = vmatpush2.msra.mxu0 0.0
        %1486 = vmatprep.subr.mxu0 0.0
        %1487 = vmatpush2.msra.mxu0 0.0
        %1488 = vmatprep.subr.mxu0 0.0
        %1489 = vmatpush2.msra.mxu0 0.0
        %1490 = vmatprep.subr.mxu0 0.0
        %1491 = vmatpush2.msra.mxu0 0.0
        %1492 = vmatprep.mubr.f32.mxu0 0.0
        %1493 = vmatmul.mubr.f32.gmra.mxu0 %v1421
        %v1494 = vpop.f32.mrf.mxu0
        %v1495 = vadd.f32 0.0, %v1494
        %v1496 = vpop.f32.mrf.mxu0
        %1497 = vmatprep.mubr.f32.mxu0 0.0
        %1498 = vmatmul.mubr.f32.gmra.mxu0 %v1423
        %v1499 = vpop.f32.mrf.mxu0
        %v1500 = vadd.f32 0.0, %v1499
        %v1501 = vpop.f32.mrf.mxu0
        %1502 = vdwg.mxu0
        %v1503 = vadd.f32 %v1402, %v1495
        %v1504 = vadd.f32 %v1407, %v1500
        %v1505 = vld [vmem:[%s813 + $0x1] sm:$0xf]
        %v1506 = vld [vmem:[%s813 + $0x9] sm:$0xf]
        %v1507 = vld [vmem:[%s813 + $0x11] sm:$0xf]
        %v1508 = vld [vmem:[%s813 + $0x19] sm:$0xf]
        %v1509 = vld [vmem:[%s624] sm:$0x7]
        %v1514 = vcombine.low %v1505, %v1506
        %v1515 = vcombine.low %v1507, %v1508
        %v1516 = vsel %vm350, %v1514, 0
        %v1518 = vsel %vm350, %v1515, 0
        %v1521 = vsel %vm355, %v1509, 0
        %1523 = vmatprep.subr.mxu0 0.0
        %1524 = vmatpush1.msra.mxu0 0.0
        %1525 = vmatprep.subr.mxu0 0.0
        %1526 = vmatpush1.msra.mxu0 0.0
        %1527 = vmatprep.subr.mxu0 0.0
        %1528 = vmatpush1.msra.mxu0 0.0
        %1529 = vmatprep.subr.mxu0 0.0
        %1530 = vmatpush1.msra.mxu0 0.0
        %1531 = vmatprep.subr.mxu0 0.0
        %1532 = vmatpush1.msra.mxu0 0.0
        %1533 = vmatprep.subr.mxu0 0.0
        %1534 = vmatpush1.msra.mxu0 0.0
        %1535 = vmatprep.subr.mxu0 0.0
        %1536 = vmatpush1.msra.mxu0 0.0
        %1537 = vmatprep.subr.mxu0 0.0
        %1538 = vmatpush1.msra.mxu0 0.0
        %1539 = vmatprep.subr.mxu0 0.0
        %1540 = vmatpush1.msra.mxu0 0.0
        %1541 = vmatprep.subr.mxu0 0.0
        %1542 = vmatpush1.msra.mxu0 0.0
        %1543 = vmatprep.subr.mxu0 0.0
        %1544 = vmatpush1.msra.mxu0 0.0
        %1545 = vmatprep.subr.mxu0 0.0
        %1546 = vmatpush1.msra.mxu0 0.0
        %1547 = vmatprep.subr.mxu0 0.0
        %1548 = vmatpush1.msra.mxu0 0.0
        %1549 = vmatprep.subr.mxu0 0.0
        %1550 = vmatpush1.msra.mxu0 0.0
        %1551 = vmatprep.subr.mxu0 0.0
        %1552 = vmatpush1.msra.mxu0 0.0
        %1553 = vmatprep.subr.mxu0 0.0
        %1554 = vmatpush1.msra.mxu0 %v1521
        %1555 = vmatprep.subr.mxu0 0.0
        %1556 = vmatpush2.msra.mxu0 0.0
        %1557 = vmatprep.subr.mxu0 0.0
        %1558 = vmatpush2.msra.mxu0 0.0
        %1559 = vmatprep.subr.mxu0 0.0
        %1560 = vmatpush2.msra.mxu0 0.0
        %1561 = vmatprep.subr.mxu0 0.0
        %1562 = vmatpush2.msra.mxu0 0.0
        %1563 = vmatprep.subr.mxu0 0.0
        %1564 = vmatpush2.msra.mxu0 0.0
        %1565 = vmatprep.subr.mxu0 0.0
        %1566 = vmatpush2.msra.mxu0 0.0
        %1567 = vmatprep.subr.mxu0 0.0
        %1568 = vmatpush2.msra.mxu0 0.0
        %1569 = vmatprep.subr.mxu0 0.0
        %1570 = vmatpush2.msra.mxu0 0.0
        %1571 = vmatprep.subr.mxu0 0.0
        %1572 = vmatpush2.msra.mxu0 0.0
        %1573 = vmatprep.subr.mxu0 0.0
        %1574 = vmatpush2.msra.mxu0 0.0
        %1575 = vmatprep.subr.mxu0 0.0
        %1576 = vmatpush2.msra.mxu0 0.0
        %1577 = vmatprep.subr.mxu0 0.0
        %1578 = vmatpush2.msra.mxu0 0.0
        %1579 = vmatprep.subr.mxu0 0.0
        %1580 = vmatpush2.msra.mxu0 0.0
        %1581 = vmatprep.subr.mxu0 0.0
        %1582 = vmatpush2.msra.mxu0 0.0
        %1583 = vmatprep.subr.mxu0 0.0
        %1584 = vmatpush2.msra.mxu0 0.0
        %1585 = vmatprep.subr.mxu0 0.0
        %1586 = vmatpush2.msra.mxu0 0.0
        %1587 = vmatprep.mubr.f32.mxu0 0.0
        %1588 = vmatmul.mubr.f32.gmra.mxu0 %v1516
        %v1589 = vpop.f32.mrf.mxu0
        %v1590 = vadd.f32 0.0, %v1589
        %v1591 = vpop.f32.mrf.mxu0
        %1592 = vmatprep.mubr.f32.mxu0 0.0
        %1593 = vmatmul.mubr.f32.gmra.mxu0 %v1518
        %v1594 = vpop.f32.mrf.mxu0
        %v1595 = vadd.f32 0.0, %v1594
        %v1596 = vpop.f32.mrf.mxu0
        %1597 = vdwg.mxu0
        %v1598 = vadd.f32 %v1503, %v1590
        %v1599 = vadd.f32 %v1504, %v1595
        %s1600 = scalar_lea.vmem %s276, 88
        %v1601 = vld [vmem:[%s1600 + $0x1] sm:$0xf]
        %v1602 = vld [vmem:[%s1600 + $0x9] sm:$0xf]
        %v1603 = vld [vmem:[%s1600 + $0x11] sm:$0xf]
        %v1604 = vld [vmem:[%s1600 + $0x19] sm:$0xf]
        %v1605 = vld [vmem:[%s721] sm:$0x7]
        %v1610 = vcombine.low %v1601, %v1602
        %v1611 = vcombine.low %v1603, %v1604
        %v1612 = vsel %vm350, %v1610, 0
        %v1614 = vsel %vm350, %v1611, 0
        %v1617 = vsel %vm355, %v1605, 0
        %1619 = vmatprep.subr.mxu0 0.0
        %1620 = vmatpush1.msra.mxu0 0.0
        %1621 = vmatprep.subr.mxu0 0.0
        %1622 = vmatpush1.msra.mxu0 0.0
        %1623 = vmatprep.subr.mxu0 0.0
        %1624 = vmatpush1.msra.mxu0 0.0
        %1625 = vmatprep.subr.mxu0 0.0
        %1626 = vmatpush1.msra.mxu0 0.0
        %1627 = vmatprep.subr.mxu0 0.0
        %1628 = vmatpush1.msra.mxu0 0.0
        %1629 = vmatprep.subr.mxu0 0.0
        %1630 = vmatpush1.msra.mxu0 0.0
        %1631 = vmatprep.subr.mxu0 0.0
        %1632 = vmatpush1.msra.mxu0 0.0
        %1633 = vmatprep.subr.mxu0 0.0
        %1634 = vmatpush1.msra.mxu0 0.0
        %1635 = vmatprep.subr.mxu0 0.0
        %1636 = vmatpush1.msra.mxu0 0.0
        %1637 = vmatprep.subr.mxu0 0.0
        %1638 = vmatpush1.msra.mxu0 0.0
        %1639 = vmatprep.subr.mxu0 0.0
        %1640 = vmatpush1.msra.mxu0 0.0
        %1641 = vmatprep.subr.mxu0 0.0
        %1642 = vmatpush1.msra.mxu0 0.0
        %1643 = vmatprep.subr.mxu0 0.0
        %1644 = vmatpush1.msra.mxu0 0.0
        %1645 = vmatprep.subr.mxu0 0.0
        %1646 = vmatpush1.msra.mxu0 0.0
        %1647 = vmatprep.subr.mxu0 0.0
        %1648 = vmatpush1.msra.mxu0 0.0
        %1649 = vmatprep.subr.mxu0 0.0
        %1650 = vmatpush1.msra.mxu0 %v1617
        %1651 = vmatprep.subr.mxu0 0.0
        %1652 = vmatpush2.msra.mxu0 0.0
        %1653 = vmatprep.subr.mxu0 0.0
        %1654 = vmatpush2.msra.mxu0 0.0
        %1655 = vmatprep.subr.mxu0 0.0
        %1656 = vmatpush2.msra.mxu0 0.0
        %1657 = vmatprep.subr.mxu0 0.0
        %1658 = vmatpush2.msra.mxu0 0.0
        %1659 = vmatprep.subr.mxu0 0.0
        %1660 = vmatpush2.msra.mxu0 0.0
        %1661 = vmatprep.subr.mxu0 0.0
        %1662 = vmatpush2.msra.mxu0 0.0
        %1663 = vmatprep.subr.mxu0 0.0
        %1664 = vmatpush2.msra.mxu0 0.0
        %1665 = vmatprep.subr.mxu0 0.0
        %1666 = vmatpush2.msra.mxu0 0.0
        %1667 = vmatprep.subr.mxu0 0.0
        %1668 = vmatpush2.msra.mxu0 0.0
        %1669 = vmatprep.subr.mxu0 0.0
        %1670 = vmatpush2.msra.mxu0 0.0
        %1671 = vmatprep.subr.mxu0 0.0
        %1672 = vmatpush2.msra.mxu0 0.0
        %1673 = vmatprep.subr.mxu0 0.0
        %1674 = vmatpush2.msra.mxu0 0.0
        %1675 = vmatprep.subr.mxu0 0.0
        %1676 = vmatpush2.msra.mxu0 0.0
        %1677 = vmatprep.subr.mxu0 0.0
        %1678 = vmatpush2.msra.mxu0 0.0
        %1679 = vmatprep.subr.mxu0 0.0
        %1680 = vmatpush2.msra.mxu0 0.0
        %1681 = vmatprep.subr.mxu0 0.0
        %1682 = vmatpush2.msra.mxu0 0.0
        %1683 = vmatprep.mubr.f32.mxu0 0.0
        %1684 = vmatmul.mubr.f32.gmra.mxu0 %v1612
        %v1685 = vpop.f32.mrf.mxu0
        %v1686 = vadd.f32 0.0, %v1685
        %v1687 = vpop.f32.mrf.mxu0
        %1688 = vmatprep.mubr.f32.mxu0 0.0
        %1689 = vmatmul.mubr.f32.gmra.mxu0 %v1614
        %v1690 = vpop.f32.mrf.mxu0
        %v1691 = vadd.f32 0.0, %v1690
        %v1692 = vpop.f32.mrf.mxu0
        %1693 = vdwg.mxu0
        %v1694 = vadd.f32 %v1598, %v1686
        %v1695 = vadd.f32 %v1599, %v1691
        %v1696 = vld [vmem:[%s619 + $0x1] sm:$0xf]
        %v1697 = vld [vmem:[%s619 + $0x9] sm:$0xf]
        %v1698 = vld [vmem:[%s619 + $0x11] sm:$0xf]
        %v1699 = vld [vmem:[%s619 + $0x19] sm:$0xf]
        %v1700 = vld [vmem:[%s818] sm:$0x7]
        %v1705 = vcombine.low %v1696, %v1697
        %v1706 = vcombine.low %v1698, %v1699
        %v1707 = vsel %vm350, %v1705, 0
        %v1709 = vsel %vm350, %v1706, 0
        %v1712 = vsel %vm355, %v1700, 0
        %1714 = vmatprep.subr.mxu0 0.0
        %1715 = vmatpush1.msra.mxu0 0.0
        %1716 = vmatprep.subr.mxu0 0.0
        %1717 = vmatpush1.msra.mxu0 0.0
        %1718 = vmatprep.subr.mxu0 0.0
        %1719 = vmatpush1.msra.mxu0 0.0
        %1720 = vmatprep.subr.mxu0 0.0
        %1721 = vmatpush1.msra.mxu0 0.0
        %1722 = vmatprep.subr.mxu0 0.0
        %1723 = vmatpush1.msra.mxu0 0.0
        %1724 = vmatprep.subr.mxu0 0.0
        %1725 = vmatpush1.msra.mxu0 0.0
        %1726 = vmatprep.subr.mxu0 0.0
        %1727 = vmatpush1.msra.mxu0 0.0
        %1728 = vmatprep.subr.mxu0 0.0
        %1729 = vmatpush1.msra.mxu0 0.0
        %1730 = vmatprep.subr.mxu0 0.0
        %1731 = vmatpush1.msra.mxu0 0.0
        %1732 = vmatprep.subr.mxu0 0.0
        %1733 = vmatpush1.msra.mxu0 0.0
        %1734 = vmatprep.subr.mxu0 0.0
        %1735 = vmatpush1.msra.mxu0 0.0
        %1736 = vmatprep.subr.mxu0 0.0
        %1737 = vmatpush1.msra.mxu0 0.0
        %1738 = vmatprep.subr.mxu0 0.0
        %1739 = vmatpush1.msra.mxu0 0.0
        %1740 = vmatprep.subr.mxu0 0.0
        %1741 = vmatpush1.msra.mxu0 0.0
        %1742 = vmatprep.subr.mxu0 0.0
        %1743 = vmatpush1.msra.mxu0 0.0
        %1744 = vmatprep.subr.mxu0 0.0
        %1745 = vmatpush1.msra.mxu0 %v1712
        %1746 = vmatprep.subr.mxu0 0.0
        %1747 = vmatpush2.msra.mxu0 0.0
        %1748 = vmatprep.subr.mxu0 0.0
        %1749 = vmatpush2.msra.mxu0 0.0
        %1750 = vmatprep.subr.mxu0 0.0
        %1751 = vmatpush2.msra.mxu0 0.0
        %1752 = vmatprep.subr.mxu0 0.0
        %1753 = vmatpush2.msra.mxu0 0.0
        %1754 = vmatprep.subr.mxu0 0.0
        %1755 = vmatpush2.msra.mxu0 0.0
        %1756 = vmatprep.subr.mxu0 0.0
        %1757 = vmatpush2.msra.mxu0 0.0
        %1758 = vmatprep.subr.mxu0 0.0
        %1759 = vmatpush2.msra.mxu0 0.0
        %1760 = vmatprep.subr.mxu0 0.0
        %1761 = vmatpush2.msra.mxu0 0.0
        %1762 = vmatprep.subr.mxu0 0.0
        %1763 = vmatpush2.msra.mxu0 0.0
        %1764 = vmatprep.subr.mxu0 0.0
        %1765 = vmatpush2.msra.mxu0 0.0
        %1766 = vmatprep.subr.mxu0 0.0
        %1767 = vmatpush2.msra.mxu0 0.0
        %1768 = vmatprep.subr.mxu0 0.0
        %1769 = vmatpush2.msra.mxu0 0.0
        %1770 = vmatprep.subr.mxu0 0.0
        %1771 = vmatpush2.msra.mxu0 0.0
        %1772 = vmatprep.subr.mxu0 0.0
        %1773 = vmatpush2.msra.mxu0 0.0
        %1774 = vmatprep.subr.mxu0 0.0
        %1775 = vmatpush2.msra.mxu0 0.0
        %1776 = vmatprep.subr.mxu0 0.0
        %1777 = vmatpush2.msra.mxu0 0.0
        %1778 = vmatprep.mubr.f32.mxu0 0.0
        %1779 = vmatmul.mubr.f32.gmra.mxu0 %v1707
        %v1780 = vpop.f32.mrf.mxu0
        %v1781 = vadd.f32 0.0, %v1780
        %v1782 = vpop.f32.mrf.mxu0
        %1783 = vmatprep.mubr.f32.mxu0 0.0
        %1784 = vmatmul.mubr.f32.gmra.mxu0 %v1709
        %v1785 = vpop.f32.mrf.mxu0
        %v1786 = vadd.f32 0.0, %v1785
        %v1787 = vpop.f32.mrf.mxu0
        %1788 = vdwg.mxu0
        %v1789 = vadd.f32 %v1694, %v1781
        %v1790 = vadd.f32 %v1695, %v1786
        %v1791 = vld [vmem:[%s1104 + $0x1] sm:$0xf]
        %v1792 = vld [vmem:[%s1104 + $0x9] sm:$0xf]
        %v1793 = vld [vmem:[%s1104 + $0x11] sm:$0xf]
        %v1794 = vld [vmem:[%s1104 + $0x19] sm:$0xf]
        %v1795 = vld [vmem:[%s915] sm:$0x7]
        %v1800 = vcombine.low %v1791, %v1792
        %v1801 = vcombine.low %v1793, %v1794
        %v1802 = vsel %vm350, %v1800, 0
        %v1804 = vsel %vm350, %v1801, 0
        %v1807 = vsel %vm355, %v1795, 0
        %1809 = vmatprep.subr.mxu0 0.0
        %1810 = vmatpush1.msra.mxu0 0.0
        %1811 = vmatprep.subr.mxu0 0.0
        %1812 = vmatpush1.msra.mxu0 0.0
        %1813 = vmatprep.subr.mxu0 0.0
        %1814 = vmatpush1.msra.mxu0 0.0
        %1815 = vmatprep.subr.mxu0 0.0
        %1816 = vmatpush1.msra.mxu0 0.0
        %1817 = vmatprep.subr.mxu0 0.0
        %1818 = vmatpush1.msra.mxu0 0.0
        %1819 = vmatprep.subr.mxu0 0.0
        %1820 = vmatpush1.msra.mxu0 0.0
        %1821 = vmatprep.subr.mxu0 0.0
        %1822 = vmatpush1.msra.mxu0 0.0
        %1823 = vmatprep.subr.mxu0 0.0
        %1824 = vmatpush1.msra.mxu0 0.0
        %1825 = vmatprep.subr.mxu0 0.0
        %1826 = vmatpush1.msra.mxu0 0.0
        %1827 = vmatprep.subr.mxu0 0.0
        %1828 = vmatpush1.msra.mxu0 0.0
        %1829 = vmatprep.subr.mxu0 0.0
        %1830 = vmatpush1.msra.mxu0 0.0
        %1831 = vmatprep.subr.mxu0 0.0
        %1832 = vmatpush1.msra.mxu0 0.0
        %1833 = vmatprep.subr.mxu0 0.0
        %1834 = vmatpush1.msra.mxu0 0.0
        %1835 = vmatprep.subr.mxu0 0.0
        %1836 = vmatpush1.msra.mxu0 0.0
        %1837 = vmatprep.subr.mxu0 0.0
        %1838 = vmatpush1.msra.mxu0 0.0
        %1839 = vmatprep.subr.mxu0 0.0
        %1840 = vmatpush1.msra.mxu0 %v1807
        %1841 = vmatprep.subr.mxu0 0.0
        %1842 = vmatpush2.msra.mxu0 0.0
        %1843 = vmatprep.subr.mxu0 0.0
        %1844 = vmatpush2.msra.mxu0 0.0
        %1845 = vmatprep.subr.mxu0 0.0
        %1846 = vmatpush2.msra.mxu0 0.0
        %1847 = vmatprep.subr.mxu0 0.0
        %1848 = vmatpush2.msra.mxu0 0.0
        %1849 = vmatprep.subr.mxu0 0.0
        %1850 = vmatpush2.msra.mxu0 0.0
        %1851 = vmatprep.subr.mxu0 0.0
        %1852 = vmatpush2.msra.mxu0 0.0
        %1853 = vmatprep.subr.mxu0 0.0
        %1854 = vmatpush2.msra.mxu0 0.0
        %1855 = vmatprep.subr.mxu0 0.0
        %1856 = vmatpush2.msra.mxu0 0.0
        %1857 = vmatprep.subr.mxu0 0.0
        %1858 = vmatpush2.msra.mxu0 0.0
        %1859 = vmatprep.subr.mxu0 0.0
        %1860 = vmatpush2.msra.mxu0 0.0
        %1861 = vmatprep.subr.mxu0 0.0
        %1862 = vmatpush2.msra.mxu0 0.0
        %1863 = vmatprep.subr.mxu0 0.0
        %1864 = vmatpush2.msra.mxu0 0.0
        %1865 = vmatprep.subr.mxu0 0.0
        %1866 = vmatpush2.msra.mxu0 0.0
        %1867 = vmatprep.subr.mxu0 0.0
        %1868 = vmatpush2.msra.mxu0 0.0
        %1869 = vmatprep.subr.mxu0 0.0
        %1870 = vmatpush2.msra.mxu0 0.0
        %1871 = vmatprep.subr.mxu0 0.0
        %1872 = vmatpush2.msra.mxu0 0.0
        %1873 = vmatprep.mubr.f32.mxu0 0.0
        %1874 = vmatmul.mubr.f32.gmra.mxu0 %v1802
        %v1875 = vpop.f32.mrf.mxu0
        %v1876 = vadd.f32 0.0, %v1875
        %v1877 = vpop.f32.mrf.mxu0
        %1878 = vmatprep.mubr.f32.mxu0 0.0
        %1879 = vmatmul.mubr.f32.gmra.mxu0 %v1804
        %v1880 = vpop.f32.mrf.mxu0
        %v1881 = vadd.f32 0.0, %v1880
        %v1882 = vpop.f32.mrf.mxu0
        %1883 = vdwg.mxu0
        %v1884 = vadd.f32 %v1789, %v1876
        %v1885 = vadd.f32 %v1790, %v1881
        %s1886 = scalar_lea.vmem %s276, 248
        %v1887 = vld [vmem:[%s1886 + $0x1] sm:$0xf]
        %v1888 = vld [vmem:[%s1886 + $0x9] sm:$0xf]
        %v1889 = vld [vmem:[%s1886 + $0x11] sm:$0xf]
        %v1890 = vld [vmem:[%s1886 + $0x19] sm:$0xf]
        %v1891 = vld [vmem:[%s1012] sm:$0x7]
        %v1896 = vcombine.low %v1887, %v1888
        %v1897 = vcombine.low %v1889, %v1890
        %v1898 = vsel %vm350, %v1896, 0
        %v1900 = vsel %vm350, %v1897, 0
        %v1903 = vsel %vm355, %v1891, 0
        %1905 = vmatprep.subr.mxu0 0.0
        %1906 = vmatpush1.msra.mxu0 0.0
        %1907 = vmatprep.subr.mxu0 0.0
        %1908 = vmatpush1.msra.mxu0 0.0
        %1909 = vmatprep.subr.mxu0 0.0
        %1910 = vmatpush1.msra.mxu0 0.0
        %1911 = vmatprep.subr.mxu0 0.0
        %1912 = vmatpush1.msra.mxu0 0.0
        %1913 = vmatprep.subr.mxu0 0.0
        %1914 = vmatpush1.msra.mxu0 0.0
        %1915 = vmatprep.subr.mxu0 0.0
        %1916 = vmatpush1.msra.mxu0 0.0
        %1917 = vmatprep.subr.mxu0 0.0
        %1918 = vmatpush1.msra.mxu0 0.0
        %1919 = vmatprep.subr.mxu0 0.0
        %1920 = vmatpush1.msra.mxu0 0.0
        %1921 = vmatprep.subr.mxu0 0.0
        %1922 = vmatpush1.msra.mxu0 0.0
        %1923 = vmatprep.subr.mxu0 0.0
        %1924 = vmatpush1.msra.mxu0 0.0
        %1925 = vmatprep.subr.mxu0 0.0
        %1926 = vmatpush1.msra.mxu0 0.0
        %1927 = vmatprep.subr.mxu0 0.0
        %1928 = vmatpush1.msra.mxu0 0.0
        %1929 = vmatprep.subr.mxu0 0.0
        %1930 = vmatpush1.msra.mxu0 0.0
        %1931 = vmatprep.subr.mxu0 0.0
        %1932 = vmatpush1.msra.mxu0 0.0
        %1933 = vmatprep.subr.mxu0 0.0
        %1934 = vmatpush1.msra.mxu0 0.0
        %1935 = vmatprep.subr.mxu0 0.0
        %1936 = vmatpush1.msra.mxu0 %v1903
        %1937 = vmatprep.subr.mxu0 0.0
        %1938 = vmatpush2.msra.mxu0 0.0
        %1939 = vmatprep.subr.mxu0 0.0
        %1940 = vmatpush2.msra.mxu0 0.0
        %1941 = vmatprep.subr.mxu0 0.0
        %1942 = vmatpush2.msra.mxu0 0.0
        %1943 = vmatprep.subr.mxu0 0.0
        %1944 = vmatpush2.msra.mxu0 0.0
        %1945 = vmatprep.subr.mxu0 0.0
        %1946 = vmatpush2.msra.mxu0 0.0
        %1947 = vmatprep.subr.mxu0 0.0
        %1948 = vmatpush2.msra.mxu0 0.0
        %1949 = vmatprep.subr.mxu0 0.0
        %1950 = vmatpush2.msra.mxu0 0.0
        %1951 = vmatprep.subr.mxu0 0.0
        %1952 = vmatpush2.msra.mxu0 0.0
        %1953 = vmatprep.subr.mxu0 0.0
        %1954 = vmatpush2.msra.mxu0 0.0
        %1955 = vmatprep.subr.mxu0 0.0
        %1956 = vmatpush2.msra.mxu0 0.0
        %1957 = vmatprep.subr.mxu0 0.0
        %1958 = vmatpush2.msra.mxu0 0.0
        %1959 = vmatprep.subr.mxu0 0.0
        %1960 = vmatpush2.msra.mxu0 0.0
        %1961 = vmatprep.subr.mxu0 0.0
        %1962 = vmatpush2.msra.mxu0 0.0
        %1963 = vmatprep.subr.mxu0 0.0
        %1964 = vmatpush2.msra.mxu0 0.0
        %1965 = vmatprep.subr.mxu0 0.0
        %1966 = vmatpush2.msra.mxu0 0.0
        %1967 = vmatprep.subr.mxu0 0.0
        %1968 = vmatpush2.msra.mxu0 0.0
        %1969 = vmatprep.mubr.f32.mxu0 0.0
        %1970 = vmatmul.mubr.f32.gmra.mxu0 %v1898
        %v1971 = vpop.f32.mrf.mxu0
        %v1972 = vadd.f32 0.0, %v1971
        %v1973 = vpop.f32.mrf.mxu0
        %1974 = vmatprep.mubr.f32.mxu0 0.0
        %1975 = vmatmul.mubr.f32.gmra.mxu0 %v1900
        %v1976 = vpop.f32.mrf.mxu0
        %v1977 = vadd.f32 0.0, %v1976
        %v1978 = vpop.f32.mrf.mxu0
        %1979 = vdwg.mxu0
        %v1980 = vadd.f32 %v1884, %v1972
        %v1981 = vadd.f32 %v1885, %v1977
        %v1982 = vld [vmem:[%s910 + $0x1] sm:$0xf]
        %v1983 = vld [vmem:[%s910 + $0x9] sm:$0xf]
        %v1984 = vld [vmem:[%s910 + $0x11] sm:$0xf]
        %v1985 = vld [vmem:[%s910 + $0x19] sm:$0xf]
        %v1986 = vld [vmem:[%s1109] sm:$0x7]
        %v1991 = vcombine.low %v1982, %v1983
        %v1992 = vcombine.low %v1984, %v1985
        %v1993 = vsel %vm350, %v1991, 0
        %v1995 = vsel %vm350, %v1992, 0
        %v1998 = vsel %vm355, %v1986, 0
        %2000 = vmatprep.subr.mxu0 0.0
        %2001 = vmatpush1.msra.mxu0 0.0
        %2002 = vmatprep.subr.mxu0 0.0
        %2003 = vmatpush1.msra.mxu0 0.0
        %2004 = vmatprep.subr.mxu0 0.0
        %2005 = vmatpush1.msra.mxu0 0.0
        %2006 = vmatprep.subr.mxu0 0.0
        %2007 = vmatpush1.msra.mxu0 0.0
        %2008 = vmatprep.subr.mxu0 0.0
        %2009 = vmatpush1.msra.mxu0 0.0
        %2010 = vmatprep.subr.mxu0 0.0
        %2011 = vmatpush1.msra.mxu0 0.0
        %2012 = vmatprep.subr.mxu0 0.0
        %2013 = vmatpush1.msra.mxu0 0.0
        %2014 = vmatprep.subr.mxu0 0.0
        %2015 = vmatpush1.msra.mxu0 0.0
        %2016 = vmatprep.subr.mxu0 0.0
        %2017 = vmatpush1.msra.mxu0 0.0
        %2018 = vmatprep.subr.mxu0 0.0
        %2019 = vmatpush1.msra.mxu0 0.0
        %2020 = vmatprep.subr.mxu0 0.0
        %2021 = vmatpush1.msra.mxu0 0.0
        %2022 = vmatprep.subr.mxu0 0.0
        %2023 = vmatpush1.msra.mxu0 0.0
        %2024 = vmatprep.subr.mxu0 0.0
        %2025 = vmatpush1.msra.mxu0 0.0
        %2026 = vmatprep.subr.mxu0 0.0
        %2027 = vmatpush1.msra.mxu0 0.0
        %2028 = vmatprep.subr.mxu0 0.0
        %2029 = vmatpush1.msra.mxu0 0.0
        %2030 = vmatprep.subr.mxu0 0.0
        %2031 = vmatpush1.msra.mxu0 %v1998
        %2032 = vmatprep.subr.mxu0 0.0
        %2033 = vmatpush2.msra.mxu0 0.0
        %2034 = vmatprep.subr.mxu0 0.0
        %2035 = vmatpush2.msra.mxu0 0.0
        %2036 = vmatprep.subr.mxu0 0.0
        %2037 = vmatpush2.msra.mxu0 0.0
        %2038 = vmatprep.subr.mxu0 0.0
        %2039 = vmatpush2.msra.mxu0 0.0
        %2040 = vmatprep.subr.mxu0 0.0
        %2041 = vmatpush2.msra.mxu0 0.0
        %2042 = vmatprep.subr.mxu0 0.0
        %2043 = vmatpush2.msra.mxu0 0.0
        %2044 = vmatprep.subr.mxu0 0.0
        %2045 = vmatpush2.msra.mxu0 0.0
        %2046 = vmatprep.subr.mxu0 0.0
        %2047 = vmatpush2.msra.mxu0 0.0
        %2048 = vmatprep.subr.mxu0 0.0
        %2049 = vmatpush2.msra.mxu0 0.0
        %2050 = vmatprep.subr.mxu0 0.0
        %2051 = vmatpush2.msra.mxu0 0.0
        %2052 = vmatprep.subr.mxu0 0.0
        %2053 = vmatpush2.msra.mxu0 0.0
        %2054 = vmatprep.subr.mxu0 0.0
        %2055 = vmatpush2.msra.mxu0 0.0
        %2056 = vmatprep.subr.mxu0 0.0
        %2057 = vmatpush2.msra.mxu0 0.0
        %2058 = vmatprep.subr.mxu0 0.0
        %2059 = vmatpush2.msra.mxu0 0.0
        %2060 = vmatprep.subr.mxu0 0.0
        %2061 = vmatpush2.msra.mxu0 0.0
        %2062 = vmatprep.subr.mxu0 0.0
        %2063 = vmatpush2.msra.mxu0 0.0
        %2064 = vmatprep.mubr.f32.mxu0 0.0
        %2065 = vmatmul.mubr.f32.gmra.mxu0 %v1993
        %v2066 = vpop.f32.mrf.mxu0
        %v2067 = vadd.f32 0.0, %v2066
        %v2068 = vpop.f32.mrf.mxu0
        %2069 = vmatprep.mubr.f32.mxu0 0.0
        %2070 = vmatmul.mubr.f32.gmra.mxu0 %v1995
        %v2071 = vpop.f32.mrf.mxu0
        %v2072 = vadd.f32 0.0, %v2071
        %v2073 = vpop.f32.mrf.mxu0
        %2074 = vdwg.mxu0
        %v2075 = vadd.f32 %v1980, %v2067
        %v2076 = vadd.f32 %v1981, %v2072
        %v2077 = vld [vmem:[%s2] sm:$0x1]
        %v2079 = vlaneseq
        %v2080 = vshrl.u32 %v2079, 7
        %v2081 = vsub.s32 0, %v2080
        %v2082 = vrot.slane %v2077, %v2081
        %v2084 = vadd.f32 %v2075, %v2082
        %v2085 = vadd.f32 %v2076, %v2082
        %v2086 = vmax.f32 %v2084, 0.0
        %v2087 = vmax.f32 %v2085, 0.0
        %v2090 = vcombine.high %v2086, %v2086
        %v2091 = vcombine.high %v2087, %v2087
        %s2094 = scalar_lea.vmem [#allocation2], 96
        %2095 = vst.msk [vmem:[%s2094 + $0x8] sm:$0xf] %vm279, %v2086
        %2096 = vst.msk [vmem:[%s2094 + $0x18] sm:$0xf] %vm279, %v2090
        %2097 = vst.msk [vmem:[%s2094 + $0x28] sm:$0xf] %vm279, %v2087
        %2098 = vst.msk [vmem:[%s2094 + $0x38] sm:$0xf] %vm279, %v2091
        %v2099 = vld [vmem:[%s910] sm:$0xf]
        %v2100 = vld [vmem:[%s910 + $0x8] sm:$0xf]
        %v2101 = vld [vmem:[%s910 + $0x10] sm:$0xf]
        %v2102 = vld [vmem:[%s910 + $0x18] sm:$0xf]
        %v2103 = vld [vmem:[%s1] sm:$0x7]
        %v2104 = vld [vmem:[%s1007 + $0x1] sm:$0xf]
        %v2105 = vld [vmem:[%s1007 + $0x9] sm:$0xf]
        %v2106 = vld [vmem:[%s1007 + $0x11] sm:$0xf]
        %v2107 = vld [vmem:[%s1007 + $0x19] sm:$0xf]
        %v2108 = vld [vmem:[%s342] sm:$0x7]
        %v2113 = vcombine.low %v2104, %v2105
        %v2114 = vcombine.low %v2106, %v2107
        %v2115 = vsel %vm350, %v2113, 0
        %v2117 = vsel %vm350, %v2114, 0
        %v2120 = vsel %vm355, %v2108, 0
        %2122 = vmatprep.subr.mxu0 0.0
        %2123 = vmatpush1.msra.mxu0 0.0
        %2124 = vmatprep.subr.mxu0 0.0
        %2125 = vmatpush1.msra.mxu0 0.0
        %2126 = vmatprep.subr.mxu0 0.0
        %2127 = vmatpush1.msra.mxu0 0.0
        %2128 = vmatprep.subr.mxu0 0.0
        %2129 = vmatpush1.msra.mxu0 0.0
        %2130 = vmatprep.subr.mxu0 0.0
        %2131 = vmatpush1.msra.mxu0 0.0
        %2132 = vmatprep.subr.mxu0 0.0
        %2133 = vmatpush1.msra.mxu0 0.0
        %2134 = vmatprep.subr.mxu0 0.0
        %2135 = vmatpush1.msra.mxu0 0.0
        %2136 = vmatprep.subr.mxu0 0.0
        %2137 = vmatpush1.msra.mxu0 0.0
        %2138 = vmatprep.subr.mxu0 0.0
        %2139 = vmatpush1.msra.mxu0 0.0
        %2140 = vmatprep.subr.mxu0 0.0
        %2141 = vmatpush1.msra.mxu0 0.0
        %2142 = vmatprep.subr.mxu0 0.0
        %2143 = vmatpush1.msra.mxu0 0.0
        %2144 = vmatprep.subr.mxu0 0.0
        %2145 = vmatpush1.msra.mxu0 0.0
        %2146 = vmatprep.subr.mxu0 0.0
        %2147 = vmatpush1.msra.mxu0 0.0
        %2148 = vmatprep.subr.mxu0 0.0
        %2149 = vmatpush1.msra.mxu0 0.0
        %2150 = vmatprep.subr.mxu0 0.0
        %2151 = vmatpush1.msra.mxu0 0.0
        %2152 = vmatprep.subr.mxu0 0.0
        %2153 = vmatpush1.msra.mxu0 %v2120
        %2154 = vmatprep.subr.mxu0 0.0
        %2155 = vmatpush2.msra.mxu0 0.0
        %2156 = vmatprep.subr.mxu0 0.0
        %2157 = vmatpush2.msra.mxu0 0.0
        %2158 = vmatprep.subr.mxu0 0.0
        %2159 = vmatpush2.msra.mxu0 0.0
        %2160 = vmatprep.subr.mxu0 0.0
        %2161 = vmatpush2.msra.mxu0 0.0
        %2162 = vmatprep.subr.mxu0 0.0
        %2163 = vmatpush2.msra.mxu0 0.0
        %2164 = vmatprep.subr.mxu0 0.0
        %2165 = vmatpush2.msra.mxu0 0.0
        %2166 = vmatprep.subr.mxu0 0.0
        %2167 = vmatpush2.msra.mxu0 0.0
        %2168 = vmatprep.subr.mxu0 0.0
        %2169 = vmatpush2.msra.mxu0 0.0
        %2170 = vmatprep.subr.mxu0 0.0
        %2171 = vmatpush2.msra.mxu0 0.0
        %2172 = vmatprep.subr.mxu0 0.0
        %2173 = vmatpush2.msra.mxu0 0.0
        %2174 = vmatprep.subr.mxu0 0.0
        %2175 = vmatpush2.msra.mxu0 0.0
        %2176 = vmatprep.subr.mxu0 0.0
        %2177 = vmatpush2.msra.mxu0 0.0
        %2178 = vmatprep.subr.mxu0 0.0
        %2179 = vmatpush2.msra.mxu0 0.0
        %2180 = vmatprep.subr.mxu0 0.0
        %2181 = vmatpush2.msra.mxu0 0.0
        %2182 = vmatprep.subr.mxu0 0.0
        %2183 = vmatpush2.msra.mxu0 0.0
        %2184 = vmatprep.subr.mxu0 0.0
        %2185 = vmatpush2.msra.mxu0 0.0
        %2186 = vmatprep.mubr.f32.mxu0 0.0
        %2187 = vmatmul.mubr.f32.gmra.mxu0 %v2115
        %v2188 = vpop.f32.mrf.mxu0
        %v2189 = vadd.f32 0.0, %v2188
        %v2190 = vpop.f32.mrf.mxu0
        %2191 = vmatprep.mubr.f32.mxu0 0.0
        %2192 = vmatmul.mubr.f32.gmra.mxu0 %v2117
        %v2193 = vpop.f32.mrf.mxu0
        %v2194 = vadd.f32 0.0, %v2193
        %v2195 = vpop.f32.mrf.mxu0
        %2196 = vdwg.mxu0
        %v2201 = vcombine.low %v2099, %v2100
        %v2202 = vcombine.low %v2101, %v2102
        %v2203 = vsel %vm350, %v2201, 0
        %v2205 = vsel %vm350, %v2202, 0
        %v2208 = vsel %vm355, %v2103, 0
        %2210 = vmatprep.subr.mxu0 0.0
        %2211 = vmatpush1.msra.mxu0 0.0
        %2212 = vmatprep.subr.mxu0 0.0
        %2213 = vmatpush1.msra.mxu0 0.0
        %2214 = vmatprep.subr.mxu0 0.0
        %2215 = vmatpush1.msra.mxu0 0.0
        %2216 = vmatprep.subr.mxu0 0.0
        %2217 = vmatpush1.msra.mxu0 0.0
        %2218 = vmatprep.subr.mxu0 0.0
        %2219 = vmatpush1.msra.mxu0 0.0
        %2220 = vmatprep.subr.mxu0 0.0
        %2221 = vmatpush1.msra.mxu0 0.0
        %2222 = vmatprep.subr.mxu0 0.0
        %2223 = vmatpush1.msra.mxu0 0.0
        %2224 = vmatprep.subr.mxu0 0.0
        %2225 = vmatpush1.msra.mxu0 0.0
        %2226 = vmatprep.subr.mxu0 0.0
        %2227 = vmatpush1.msra.mxu0 0.0
        %2228 = vmatprep.subr.mxu0 0.0
        %2229 = vmatpush1.msra.mxu0 0.0
        %2230 = vmatprep.subr.mxu0 0.0
        %2231 = vmatpush1.msra.mxu0 0.0
        %2232 = vmatprep.subr.mxu0 0.0
        %2233 = vmatpush1.msra.mxu0 0.0
        %2234 = vmatprep.subr.mxu0 0.0
        %2235 = vmatpush1.msra.mxu0 0.0
        %2236 = vmatprep.subr.mxu0 0.0
        %2237 = vmatpush1.msra.mxu0 0.0
        %2238 = vmatprep.subr.mxu0 0.0
        %2239 = vmatpush1.msra.mxu0 0.0
        %2240 = vmatprep.subr.mxu0 0.0
        %2241 = vmatpush1.msra.mxu0 %v2208
        %2242 = vmatprep.subr.mxu0 0.0
        %2243 = vmatpush2.msra.mxu0 0.0
        %2244 = vmatprep.subr.mxu0 0.0
        %2245 = vmatpush2.msra.mxu0 0.0
        %2246 = vmatprep.subr.mxu0 0.0
        %2247 = vmatpush2.msra.mxu0 0.0
        %2248 = vmatprep.subr.mxu0 0.0
        %2249 = vmatpush2.msra.mxu0 0.0
        %2250 = vmatprep.subr.mxu0 0.0
        %2251 = vmatpush2.msra.mxu0 0.0
        %2252 = vmatprep.subr.mxu0 0.0
        %2253 = vmatpush2.msra.mxu0 0.0
        %2254 = vmatprep.subr.mxu0 0.0
        %2255 = vmatpush2.msra.mxu0 0.0
        %2256 = vmatprep.subr.mxu0 0.0
        %2257 = vmatpush2.msra.mxu0 0.0
        %2258 = vmatprep.subr.mxu0 0.0
        %2259 = vmatpush2.msra.mxu0 0.0
        %2260 = vmatprep.subr.mxu0 0.0
        %2261 = vmatpush2.msra.mxu0 0.0
        %2262 = vmatprep.subr.mxu0 0.0
        %2263 = vmatpush2.msra.mxu0 0.0
        %2264 = vmatprep.subr.mxu0 0.0
        %2265 = vmatpush2.msra.mxu0 0.0
        %2266 = vmatprep.subr.mxu0 0.0
        %2267 = vmatpush2.msra.mxu0 0.0
        %2268 = vmatprep.subr.mxu0 0.0
        %2269 = vmatpush2.msra.mxu0 0.0
        %2270 = vmatprep.subr.mxu0 0.0
        %2271 = vmatpush2.msra.mxu0 0.0
        %2272 = vmatprep.subr.mxu0 0.0
        %2273 = vmatpush2.msra.mxu0 0.0
        %2274 = vmatprep.mubr.f32.mxu0 0.0
        %2275 = vmatmul.mubr.f32.gmra.mxu0 %v2203
        %v2276 = vpop.f32.mrf.mxu0
        %v2277 = vadd.f32 %v2189, %v2276
        %v2278 = vpop.f32.mrf.mxu0
        %2279 = vmatprep.mubr.f32.mxu0 0.0
        %2280 = vmatmul.mubr.f32.gmra.mxu0 %v2205
        %v2281 = vpop.f32.mrf.mxu0
        %v2282 = vadd.f32 %v2194, %v2281
        %v2283 = vpop.f32.mrf.mxu0
        %2284 = vdwg.mxu0
        %v2285 = vld [vmem:[%s1104 + $0x1] sm:$0xf]
        %v2286 = vld [vmem:[%s1104 + $0x9] sm:$0xf]
        %v2287 = vld [vmem:[%s1104 + $0x11] sm:$0xf]
        %v2288 = vld [vmem:[%s1104 + $0x19] sm:$0xf]
        %v2289 = vld [vmem:[%s527] sm:$0x7]
        %v2294 = vcombine.low %v2285, %v2286
        %v2295 = vcombine.low %v2287, %v2288
        %v2296 = vsel %vm350, %v2294, 0
        %v2298 = vsel %vm350, %v2295, 0
        %v2301 = vsel %vm355, %v2289, 0
        %2303 = vmatprep.subr.mxu0 0.0
        %2304 = vmatpush1.msra.mxu0 0.0
        %2305 = vmatprep.subr.mxu0 0.0
        %2306 = vmatpush1.msra.mxu0 0.0
        %2307 = vmatprep.subr.mxu0 0.0
        %2308 = vmatpush1.msra.mxu0 0.0
        %2309 = vmatprep.subr.mxu0 0.0
        %2310 = vmatpush1.msra.mxu0 0.0
        %2311 = vmatprep.subr.mxu0 0.0
        %2312 = vmatpush1.msra.mxu0 0.0
        %2313 = vmatprep.subr.mxu0 0.0
        %2314 = vmatpush1.msra.mxu0 0.0
        %2315 = vmatprep.subr.mxu0 0.0
        %2316 = vmatpush1.msra.mxu0 0.0
        %2317 = vmatprep.subr.mxu0 0.0
        %2318 = vmatpush1.msra.mxu0 0.0
        %2319 = vmatprep.subr.mxu0 0.0
        %2320 = vmatpush1.msra.mxu0 0.0
        %2321 = vmatprep.subr.mxu0 0.0
        %2322 = vmatpush1.msra.mxu0 0.0
        %2323 = vmatprep.subr.mxu0 0.0
        %2324 = vmatpush1.msra.mxu0 0.0
        %2325 = vmatprep.subr.mxu0 0.0
        %2326 = vmatpush1.msra.mxu0 0.0
        %2327 = vmatprep.subr.mxu0 0.0
        %2328 = vmatpush1.msra.mxu0 0.0
        %2329 = vmatprep.subr.mxu0 0.0
        %2330 = vmatpush1.msra.mxu0 0.0
        %2331 = vmatprep.subr.mxu0 0.0
        %2332 = vmatpush1.msra.mxu0 0.0
        %2333 = vmatprep.subr.mxu0 0.0
        %2334 = vmatpush1.msra.mxu0 %v2301
        %2335 = vmatprep.subr.mxu0 0.0
        %2336 = vmatpush2.msra.mxu0 0.0
        %2337 = vmatprep.subr.mxu0 0.0
        %2338 = vmatpush2.msra.mxu0 0.0
        %2339 = vmatprep.subr.mxu0 0.0
        %2340 = vmatpush2.msra.mxu0 0.0
        %2341 = vmatprep.subr.mxu0 0.0
        %2342 = vmatpush2.msra.mxu0 0.0
        %2343 = vmatprep.subr.mxu0 0.0
        %2344 = vmatpush2.msra.mxu0 0.0
        %2345 = vmatprep.subr.mxu0 0.0
        %2346 = vmatpush2.msra.mxu0 0.0
        %2347 = vmatprep.subr.mxu0 0.0
        %2348 = vmatpush2.msra.mxu0 0.0
        %2349 = vmatprep.subr.mxu0 0.0
        %2350 = vmatpush2.msra.mxu0 0.0
        %2351 = vmatprep.subr.mxu0 0.0
        %2352 = vmatpush2.msra.mxu0 0.0
        %2353 = vmatprep.subr.mxu0 0.0
        %2354 = vmatpush2.msra.mxu0 0.0
        %2355 = vmatprep.subr.mxu0 0.0
        %2356 = vmatpush2.msra.mxu0 0.0
        %2357 = vmatprep.subr.mxu0 0.0
        %2358 = vmatpush2.msra.mxu0 0.0
        %2359 = vmatprep.subr.mxu0 0.0
        %2360 = vmatpush2.msra.mxu0 0.0
        %2361 = vmatprep.subr.mxu0 0.0
        %2362 = vmatpush2.msra.mxu0 0.0
        %2363 = vmatprep.subr.mxu0 0.0
        %2364 = vmatpush2.msra.mxu0 0.0
        %2365 = vmatprep.subr.mxu0 0.0
        %2366 = vmatpush2.msra.mxu0 0.0
        %2367 = vmatprep.mubr.f32.mxu0 0.0
        %2368 = vmatmul.mubr.f32.gmra.mxu0 %v2296
        %v2369 = vpop.f32.mrf.mxu0
        %v2370 = vadd.f32 0.0, %v2369
        %v2371 = vpop.f32.mrf.mxu0
        %2372 = vmatprep.mubr.f32.mxu0 0.0
        %2373 = vmatmul.mubr.f32.gmra.mxu0 %v2298
        %v2374 = vpop.f32.mrf.mxu0
        %v2375 = vadd.f32 0.0, %v2374
        %v2376 = vpop.f32.mrf.mxu0
        %2377 = vdwg.mxu0
        %v2378 = vadd.f32 %v2277, %v2370
        %v2379 = vadd.f32 %v2282, %v2375
        %s2380 = scalar_lea.vmem %s276, 448
        %v2381 = vld [vmem:[%s2380] sm:$0xf]
        %v2382 = vld [vmem:[%s2380 + $0x8] sm:$0xf]
        %v2383 = vld [vmem:[%s2380 + $0x10] sm:$0xf]
        %v2384 = vld [vmem:[%s2380 + $0x18] sm:$0xf]
        %v2385 = vld [vmem:[%s624] sm:$0x7]
        %v2390 = vcombine.low %v2381, %v2382
        %v2391 = vcombine.low %v2383, %v2384
        %v2392 = vsel %vm350, %v2390, 0
        %v2394 = vsel %vm350, %v2391, 0
        %v2397 = vsel %vm355, %v2385, 0
        %2399 = vmatprep.subr.mxu0 0.0
        %2400 = vmatpush1.msra.mxu0 0.0
        %2401 = vmatprep.subr.mxu0 0.0
        %2402 = vmatpush1.msra.mxu0 0.0
        %2403 = vmatprep.subr.mxu0 0.0
        %2404 = vmatpush1.msra.mxu0 0.0
        %2405 = vmatprep.subr.mxu0 0.0
        %2406 = vmatpush1.msra.mxu0 0.0
        %2407 = vmatprep.subr.mxu0 0.0
        %2408 = vmatpush1.msra.mxu0 0.0
        %2409 = vmatprep.subr.mxu0 0.0
        %2410 = vmatpush1.msra.mxu0 0.0
        %2411 = vmatprep.subr.mxu0 0.0
        %2412 = vmatpush1.msra.mxu0 0.0
        %2413 = vmatprep.subr.mxu0 0.0
        %2414 = vmatpush1.msra.mxu0 0.0
        %2415 = vmatprep.subr.mxu0 0.0
        %2416 = vmatpush1.msra.mxu0 0.0
        %2417 = vmatprep.subr.mxu0 0.0
        %2418 = vmatpush1.msra.mxu0 0.0
        %2419 = vmatprep.subr.mxu0 0.0
        %2420 = vmatpush1.msra.mxu0 0.0
        %2421 = vmatprep.subr.mxu0 0.0
        %2422 = vmatpush1.msra.mxu0 0.0
        %2423 = vmatprep.subr.mxu0 0.0
        %2424 = vmatpush1.msra.mxu0 0.0
        %2425 = vmatprep.subr.mxu0 0.0
        %2426 = vmatpush1.msra.mxu0 0.0
        %2427 = vmatprep.subr.mxu0 0.0
        %2428 = vmatpush1.msra.mxu0 0.0
        %2429 = vmatprep.subr.mxu0 0.0
        %2430 = vmatpush1.msra.mxu0 %v2397
        %2431 = vmatprep.subr.mxu0 0.0
        %2432 = vmatpush2.msra.mxu0 0.0
        %2433 = vmatprep.subr.mxu0 0.0
        %2434 = vmatpush2.msra.mxu0 0.0
        %2435 = vmatprep.subr.mxu0 0.0
        %2436 = vmatpush2.msra.mxu0 0.0
        %2437 = vmatprep.subr.mxu0 0.0
        %2438 = vmatpush2.msra.mxu0 0.0
        %2439 = vmatprep.subr.mxu0 0.0
        %2440 = vmatpush2.msra.mxu0 0.0
        %2441 = vmatprep.subr.mxu0 0.0
        %2442 = vmatpush2.msra.mxu0 0.0
        %2443 = vmatprep.subr.mxu0 0.0
        %2444 = vmatpush2.msra.mxu0 0.0
        %2445 = vmatprep.subr.mxu0 0.0
        %2446 = vmatpush2.msra.mxu0 0.0
        %2447 = vmatprep.subr.mxu0 0.0
        %2448 = vmatpush2.msra.mxu0 0.0
        %2449 = vmatprep.subr.mxu0 0.0
        %2450 = vmatpush2.msra.mxu0 0.0
        %2451 = vmatprep.subr.mxu0 0.0
        %2452 = vmatpush2.msra.mxu0 0.0
        %2453 = vmatprep.subr.mxu0 0.0
        %2454 = vmatpush2.msra.mxu0 0.0
        %2455 = vmatprep.subr.mxu0 0.0
        %2456 = vmatpush2.msra.mxu0 0.0
        %2457 = vmatprep.subr.mxu0 0.0
        %2458 = vmatpush2.msra.mxu0 0.0
        %2459 = vmatprep.subr.mxu0 0.0
        %2460 = vmatpush2.msra.mxu0 0.0
        %2461 = vmatprep.subr.mxu0 0.0
        %2462 = vmatpush2.msra.mxu0 0.0
        %2463 = vmatprep.mubr.f32.mxu0 0.0
        %2464 = vmatmul.mubr.f32.gmra.mxu0 %v2392
        %v2465 = vpop.f32.mrf.mxu0
        %v2466 = vadd.f32 0.0, %v2465
        %v2467 = vpop.f32.mrf.mxu0
        %2468 = vmatprep.mubr.f32.mxu0 0.0
        %2469 = vmatmul.mubr.f32.gmra.mxu0 %v2394
        %v2470 = vpop.f32.mrf.mxu0
        %v2471 = vadd.f32 0.0, %v2470
        %v2472 = vpop.f32.mrf.mxu0
        %2473 = vdwg.mxu0
        %v2474 = vadd.f32 %v2378, %v2466
        %v2475 = vadd.f32 %v2379, %v2471
        %s2476 = scalar_lea.vmem %s276, 328
        %v2477 = vld [vmem:[%s2476 + $0x1] sm:$0xf]
        %v2478 = vld [vmem:[%s2476 + $0x9] sm:$0xf]
        %v2479 = vld [vmem:[%s2476 + $0x11] sm:$0xf]
        %v2480 = vld [vmem:[%s2476 + $0x19] sm:$0xf]
        %v2481 = vld [vmem:[%s721] sm:$0x7]
        %v2486 = vcombine.low %v2477, %v2478
        %v2487 = vcombine.low %v2479, %v2480
        %v2488 = vsel %vm350, %v2486, 0
        %v2490 = vsel %vm350, %v2487, 0
        %v2493 = vsel %vm355, %v2481, 0
        %2495 = vmatprep.subr.mxu0 0.0
        %2496 = vmatpush1.msra.mxu0 0.0
        %2497 = vmatprep.subr.mxu0 0.0
        %2498 = vmatpush1.msra.mxu0 0.0
        %2499 = vmatprep.subr.mxu0 0.0
        %2500 = vmatpush1.msra.mxu0 0.0
        %2501 = vmatprep.subr.mxu0 0.0
        %2502 = vmatpush1.msra.mxu0 0.0
        %2503 = vmatprep.subr.mxu0 0.0
        %2504 = vmatpush1.msra.mxu0 0.0
        %2505 = vmatprep.subr.mxu0 0.0
        %2506 = vmatpush1.msra.mxu0 0.0
        %2507 = vmatprep.subr.mxu0 0.0
        %2508 = vmatpush1.msra.mxu0 0.0
        %2509 = vmatprep.subr.mxu0 0.0
        %2510 = vmatpush1.msra.mxu0 0.0
        %2511 = vmatprep.subr.mxu0 0.0
        %2512 = vmatpush1.msra.mxu0 0.0
        %2513 = vmatprep.subr.mxu0 0.0
        %2514 = vmatpush1.msra.mxu0 0.0
        %2515 = vmatprep.subr.mxu0 0.0
        %2516 = vmatpush1.msra.mxu0 0.0
        %2517 = vmatprep.subr.mxu0 0.0
        %2518 = vmatpush1.msra.mxu0 0.0
        %2519 = vmatprep.subr.mxu0 0.0
        %2520 = vmatpush1.msra.mxu0 0.0
        %2521 = vmatprep.subr.mxu0 0.0
        %2522 = vmatpush1.msra.mxu0 0.0
        %2523 = vmatprep.subr.mxu0 0.0
        %2524 = vmatpush1.msra.mxu0 0.0
        %2525 = vmatprep.subr.mxu0 0.0
        %2526 = vmatpush1.msra.mxu0 %v2493
        %2527 = vmatprep.subr.mxu0 0.0
        %2528 = vmatpush2.msra.mxu0 0.0
        %2529 = vmatprep.subr.mxu0 0.0
        %2530 = vmatpush2.msra.mxu0 0.0
        %2531 = vmatprep.subr.mxu0 0.0
        %2532 = vmatpush2.msra.mxu0 0.0
        %2533 = vmatprep.subr.mxu0 0.0
        %2534 = vmatpush2.msra.mxu0 0.0
        %2535 = vmatprep.subr.mxu0 0.0
        %2536 = vmatpush2.msra.mxu0 0.0
        %2537 = vmatprep.subr.mxu0 0.0
        %2538 = vmatpush2.msra.mxu0 0.0
        %2539 = vmatprep.subr.mxu0 0.0
        %2540 = vmatpush2.msra.mxu0 0.0
        %2541 = vmatprep.subr.mxu0 0.0
        %2542 = vmatpush2.msra.mxu0 0.0
        %2543 = vmatprep.subr.mxu0 0.0
        %2544 = vmatpush2.msra.mxu0 0.0
        %2545 = vmatprep.subr.mxu0 0.0
        %2546 = vmatpush2.msra.mxu0 0.0
        %2547 = vmatprep.subr.mxu0 0.0
        %2548 = vmatpush2.msra.mxu0 0.0
        %2549 = vmatprep.subr.mxu0 0.0
        %2550 = vmatpush2.msra.mxu0 0.0
        %2551 = vmatprep.subr.mxu0 0.0
        %2552 = vmatpush2.msra.mxu0 0.0
        %2553 = vmatprep.subr.mxu0 0.0
        %2554 = vmatpush2.msra.mxu0 0.0
        %2555 = vmatprep.subr.mxu0 0.0
        %2556 = vmatpush2.msra.mxu0 0.0
        %2557 = vmatprep.subr.mxu0 0.0
        %2558 = vmatpush2.msra.mxu0 0.0
        %2559 = vmatprep.mubr.f32.mxu0 0.0
        %2560 = vmatmul.mubr.f32.gmra.mxu0 %v2488
        %v2561 = vpop.f32.mrf.mxu0
        %v2562 = vadd.f32 0.0, %v2561
        %v2563 = vpop.f32.mrf.mxu0
        %2564 = vmatprep.mubr.f32.mxu0 0.0
        %2565 = vmatmul.mubr.f32.gmra.mxu0 %v2490
        %v2566 = vpop.f32.mrf.mxu0
        %v2567 = vadd.f32 0.0, %v2566
        %v2568 = vpop.f32.mrf.mxu0
        %2569 = vdwg.mxu0
        %v2570 = vadd.f32 %v2474, %v2562
        %v2571 = vadd.f32 %v2475, %v2567
        %s2572 = scalar_lea.vmem %s276, 368
        %v2573 = vld [vmem:[%s2572 + $0x1] sm:$0xf]
        %v2574 = vld [vmem:[%s2572 + $0x9] sm:$0xf]
        %v2575 = vld [vmem:[%s2572 + $0x11] sm:$0xf]
        %v2576 = vld [vmem:[%s2572 + $0x19] sm:$0xf]
        %v2577 = vld [vmem:[%s818] sm:$0x7]
        %v2582 = vcombine.low %v2573, %v2574
        %v2583 = vcombine.low %v2575, %v2576
        %v2584 = vsel %vm350, %v2582, 0
        %v2586 = vsel %vm350, %v2583, 0
        %v2589 = vsel %vm355, %v2577, 0
        %2591 = vmatprep.subr.mxu0 0.0
        %2592 = vmatpush1.msra.mxu0 0.0
        %2593 = vmatprep.subr.mxu0 0.0
        %2594 = vmatpush1.msra.mxu0 0.0
        %2595 = vmatprep.subr.mxu0 0.0
        %2596 = vmatpush1.msra.mxu0 0.0
        %2597 = vmatprep.subr.mxu0 0.0
        %2598 = vmatpush1.msra.mxu0 0.0
        %2599 = vmatprep.subr.mxu0 0.0
        %2600 = vmatpush1.msra.mxu0 0.0
        %2601 = vmatprep.subr.mxu0 0.0
        %2602 = vmatpush1.msra.mxu0 0.0
        %2603 = vmatprep.subr.mxu0 0.0
        %2604 = vmatpush1.msra.mxu0 0.0
        %2605 = vmatprep.subr.mxu0 0.0
        %2606 = vmatpush1.msra.mxu0 0.0
        %2607 = vmatprep.subr.mxu0 0.0
        %2608 = vmatpush1.msra.mxu0 0.0
        %2609 = vmatprep.subr.mxu0 0.0
        %2610 = vmatpush1.msra.mxu0 0.0
        %2611 = vmatprep.subr.mxu0 0.0
        %2612 = vmatpush1.msra.mxu0 0.0
        %2613 = vmatprep.subr.mxu0 0.0
        %2614 = vmatpush1.msra.mxu0 0.0
        %2615 = vmatprep.subr.mxu0 0.0
        %2616 = vmatpush1.msra.mxu0 0.0
        %2617 = vmatprep.subr.mxu0 0.0
        %2618 = vmatpush1.msra.mxu0 0.0
        %2619 = vmatprep.subr.mxu0 0.0
        %2620 = vmatpush1.msra.mxu0 0.0
        %2621 = vmatprep.subr.mxu0 0.0
        %2622 = vmatpush1.msra.mxu0 %v2589
        %2623 = vmatprep.subr.mxu0 0.0
        %2624 = vmatpush2.msra.mxu0 0.0
        %2625 = vmatprep.subr.mxu0 0.0
        %2626 = vmatpush2.msra.mxu0 0.0
        %2627 = vmatprep.subr.mxu0 0.0
        %2628 = vmatpush2.msra.mxu0 0.0
        %2629 = vmatprep.subr.mxu0 0.0
        %2630 = vmatpush2.msra.mxu0 0.0
        %2631 = vmatprep.subr.mxu0 0.0
        %2632 = vmatpush2.msra.mxu0 0.0
        %2633 = vmatprep.subr.mxu0 0.0
        %2634 = vmatpush2.msra.mxu0 0.0
        %2635 = vmatprep.subr.mxu0 0.0
        %2636 = vmatpush2.msra.mxu0 0.0
        %2637 = vmatprep.subr.mxu0 0.0
        %2638 = vmatpush2.msra.mxu0 0.0
        %2639 = vmatprep.subr.mxu0 0.0
        %2640 = vmatpush2.msra.mxu0 0.0
        %2641 = vmatprep.subr.mxu0 0.0
        %2642 = vmatpush2.msra.mxu0 0.0
        %2643 = vmatprep.subr.mxu0 0.0
        %2644 = vmatpush2.msra.mxu0 0.0
        %2645 = vmatprep.subr.mxu0 0.0
        %2646 = vmatpush2.msra.mxu0 0.0
        %2647 = vmatprep.subr.mxu0 0.0
        %2648 = vmatpush2.msra.mxu0 0.0
        %2649 = vmatprep.subr.mxu0 0.0
        %2650 = vmatpush2.msra.mxu0 0.0
        %2651 = vmatprep.subr.mxu0 0.0
        %2652 = vmatpush2.msra.mxu0 0.0
        %2653 = vmatprep.subr.mxu0 0.0
        %2654 = vmatpush2.msra.mxu0 0.0
        %2655 = vmatprep.mubr.f32.mxu0 0.0
        %2656 = vmatmul.mubr.f32.gmra.mxu0 %v2584
        %v2657 = vpop.f32.mrf.mxu0
        %v2658 = vadd.f32 0.0, %v2657
        %v2659 = vpop.f32.mrf.mxu0
        %2660 = vmatprep.mubr.f32.mxu0 0.0
        %2661 = vmatmul.mubr.f32.gmra.mxu0 %v2586
        %v2662 = vpop.f32.mrf.mxu0
        %v2663 = vadd.f32 0.0, %v2662
        %v2664 = vpop.f32.mrf.mxu0
        %2665 = vdwg.mxu0
        %v2666 = vadd.f32 %v2570, %v2658
        %v2667 = vadd.f32 %v2571, %v2663
        %s2668 = scalar_lea.vmem %s276, 608
        %v2669 = vld [vmem:[%s2668] sm:$0xf]
        %v2670 = vld [vmem:[%s2668 + $0x8] sm:$0xf]
        %v2671 = vld [vmem:[%s2668 + $0x10] sm:$0xf]
        %v2672 = vld [vmem:[%s2668 + $0x18] sm:$0xf]
        %v2673 = vld [vmem:[%s915] sm:$0x7]
        %v2678 = vcombine.low %v2669, %v2670
        %v2679 = vcombine.low %v2671, %v2672
        %v2680 = vsel %vm350, %v2678, 0
        %v2682 = vsel %vm350, %v2679, 0
        %v2685 = vsel %vm355, %v2673, 0
        %2687 = vmatprep.subr.mxu0 0.0
        %2688 = vmatpush1.msra.mxu0 0.0
        %2689 = vmatprep.subr.mxu0 0.0
        %2690 = vmatpush1.msra.mxu0 0.0
        %2691 = vmatprep.subr.mxu0 0.0
        %2692 = vmatpush1.msra.mxu0 0.0
        %2693 = vmatprep.subr.mxu0 0.0
        %2694 = vmatpush1.msra.mxu0 0.0
        %2695 = vmatprep.subr.mxu0 0.0
        %2696 = vmatpush1.msra.mxu0 0.0
        %2697 = vmatprep.subr.mxu0 0.0
        %2698 = vmatpush1.msra.mxu0 0.0
        %2699 = vmatprep.subr.mxu0 0.0
        %2700 = vmatpush1.msra.mxu0 0.0
        %2701 = vmatprep.subr.mxu0 0.0
        %2702 = vmatpush1.msra.mxu0 0.0
        %2703 = vmatprep.subr.mxu0 0.0
        %2704 = vmatpush1.msra.mxu0 0.0
        %2705 = vmatprep.subr.mxu0 0.0
        %2706 = vmatpush1.msra.mxu0 0.0
        %2707 = vmatprep.subr.mxu0 0.0
        %2708 = vmatpush1.msra.mxu0 0.0
        %2709 = vmatprep.subr.mxu0 0.0
        %2710 = vmatpush1.msra.mxu0 0.0
        %2711 = vmatprep.subr.mxu0 0.0
        %2712 = vmatpush1.msra.mxu0 0.0
        %2713 = vmatprep.subr.mxu0 0.0
        %2714 = vmatpush1.msra.mxu0 0.0
        %2715 = vmatprep.subr.mxu0 0.0
        %2716 = vmatpush1.msra.mxu0 0.0
        %2717 = vmatprep.subr.mxu0 0.0
        %2718 = vmatpush1.msra.mxu0 %v2685
        %2719 = vmatprep.subr.mxu0 0.0
        %2720 = vmatpush2.msra.mxu0 0.0
        %2721 = vmatprep.subr.mxu0 0.0
        %2722 = vmatpush2.msra.mxu0 0.0
        %2723 = vmatprep.subr.mxu0 0.0
        %2724 = vmatpush2.msra.mxu0 0.0
        %2725 = vmatprep.subr.mxu0 0.0
        %2726 = vmatpush2.msra.mxu0 0.0
        %2727 = vmatprep.subr.mxu0 0.0
        %2728 = vmatpush2.msra.mxu0 0.0
        %2729 = vmatprep.subr.mxu0 0.0
        %2730 = vmatpush2.msra.mxu0 0.0
        %2731 = vmatprep.subr.mxu0 0.0
        %2732 = vmatpush2.msra.mxu0 0.0
        %2733 = vmatprep.subr.mxu0 0.0
        %2734 = vmatpush2.msra.mxu0 0.0
        %2735 = vmatprep.subr.mxu0 0.0
        %2736 = vmatpush2.msra.mxu0 0.0
        %2737 = vmatprep.subr.mxu0 0.0
        %2738 = vmatpush2.msra.mxu0 0.0
        %2739 = vmatprep.subr.mxu0 0.0
        %2740 = vmatpush2.msra.mxu0 0.0
        %2741 = vmatprep.subr.mxu0 0.0
        %2742 = vmatpush2.msra.mxu0 0.0
        %2743 = vmatprep.subr.mxu0 0.0
        %2744 = vmatpush2.msra.mxu0 0.0
        %2745 = vmatprep.subr.mxu0 0.0
        %2746 = vmatpush2.msra.mxu0 0.0
        %2747 = vmatprep.subr.mxu0 0.0
        %2748 = vmatpush2.msra.mxu0 0.0
        %2749 = vmatprep.subr.mxu0 0.0
        %2750 = vmatpush2.msra.mxu0 0.0
        %2751 = vmatprep.mubr.f32.mxu0 0.0
        %2752 = vmatmul.mubr.f32.gmra.mxu0 %v2680
        %v2753 = vpop.f32.mrf.mxu0
        %v2754 = vadd.f32 0.0, %v2753
        %v2755 = vpop.f32.mrf.mxu0
        %2756 = vmatprep.mubr.f32.mxu0 0.0
        %2757 = vmatmul.mubr.f32.gmra.mxu0 %v2682
        %v2758 = vpop.f32.mrf.mxu0
        %v2759 = vadd.f32 0.0, %v2758
        %v2760 = vpop.f32.mrf.mxu0
        %2761 = vdwg.mxu0
        %v2762 = vadd.f32 %v2666, %v2754
        %v2763 = vadd.f32 %v2667, %v2759
        %s2764 = scalar_lea.vmem %s276, 488
        %v2765 = vld [vmem:[%s2764 + $0x1] sm:$0xf]
        %v2766 = vld [vmem:[%s2764 + $0x9] sm:$0xf]
        %v2767 = vld [vmem:[%s2764 + $0x11] sm:$0xf]
        %v2768 = vld [vmem:[%s2764 + $0x19] sm:$0xf]
        %v2769 = vld [vmem:[%s1012] sm:$0x7]
        %v2774 = vcombine.low %v2765, %v2766
        %v2775 = vcombine.low %v2767, %v2768
        %v2776 = vsel %vm350, %v2774, 0
        %v2778 = vsel %vm350, %v2775, 0
        %v2781 = vsel %vm355, %v2769, 0
        %2783 = vmatprep.subr.mxu0 0.0
        %2784 = vmatpush1.msra.mxu0 0.0
        %2785 = vmatprep.subr.mxu0 0.0
        %2786 = vmatpush1.msra.mxu0 0.0
        %2787 = vmatprep.subr.mxu0 0.0
        %2788 = vmatpush1.msra.mxu0 0.0
        %2789 = vmatprep.subr.mxu0 0.0
        %2790 = vmatpush1.msra.mxu0 0.0
        %2791 = vmatprep.subr.mxu0 0.0
        %2792 = vmatpush1.msra.mxu0 0.0
        %2793 = vmatprep.subr.mxu0 0.0
        %2794 = vmatpush1.msra.mxu0 0.0
        %2795 = vmatprep.subr.mxu0 0.0
        %2796 = vmatpush1.msra.mxu0 0.0
        %2797 = vmatprep.subr.mxu0 0.0
        %2798 = vmatpush1.msra.mxu0 0.0
        %2799 = vmatprep.subr.mxu0 0.0
        %2800 = vmatpush1.msra.mxu0 0.0
        %2801 = vmatprep.subr.mxu0 0.0
        %2802 = vmatpush1.msra.mxu0 0.0
        %2803 = vmatprep.subr.mxu0 0.0
        %2804 = vmatpush1.msra.mxu0 0.0
        %2805 = vmatprep.subr.mxu0 0.0
        %2806 = vmatpush1.msra.mxu0 0.0
        %2807 = vmatprep.subr.mxu0 0.0
        %2808 = vmatpush1.msra.mxu0 0.0
        %2809 = vmatprep.subr.mxu0 0.0
        %2810 = vmatpush1.msra.mxu0 0.0
        %2811 = vmatprep.subr.mxu0 0.0
        %2812 = vmatpush1.msra.mxu0 0.0
        %2813 = vmatprep.subr.mxu0 0.0
        %2814 = vmatpush1.msra.mxu0 %v2781
        %2815 = vmatprep.subr.mxu0 0.0
        %2816 = vmatpush2.msra.mxu0 0.0
        %2817 = vmatprep.subr.mxu0 0.0
        %2818 = vmatpush2.msra.mxu0 0.0
        %2819 = vmatprep.subr.mxu0 0.0
        %2820 = vmatpush2.msra.mxu0 0.0
        %2821 = vmatprep.subr.mxu0 0.0
        %2822 = vmatpush2.msra.mxu0 0.0
        %2823 = vmatprep.subr.mxu0 0.0
        %2824 = vmatpush2.msra.mxu0 0.0
        %2825 = vmatprep.subr.mxu0 0.0
        %2826 = vmatpush2.msra.mxu0 0.0
        %2827 = vmatprep.subr.mxu0 0.0
        %2828 = vmatpush2.msra.mxu0 0.0
        %2829 = vmatprep.subr.mxu0 0.0
        %2830 = vmatpush2.msra.mxu0 0.0
        %2831 = vmatprep.subr.mxu0 0.0
        %2832 = vmatpush2.msra.mxu0 0.0
        %2833 = vmatprep.subr.mxu0 0.0
        %2834 = vmatpush2.msra.mxu0 0.0
        %2835 = vmatprep.subr.mxu0 0.0
        %2836 = vmatpush2.msra.mxu0 0.0
        %2837 = vmatprep.subr.mxu0 0.0
        %2838 = vmatpush2.msra.mxu0 0.0
        %2839 = vmatprep.subr.mxu0 0.0
        %2840 = vmatpush2.msra.mxu0 0.0
        %2841 = vmatprep.subr.mxu0 0.0
        %2842 = vmatpush2.msra.mxu0 0.0
        %2843 = vmatprep.subr.mxu0 0.0
        %2844 = vmatpush2.msra.mxu0 0.0
        %2845 = vmatprep.subr.mxu0 0.0
        %2846 = vmatpush2.msra.mxu0 0.0
        %2847 = vmatprep.mubr.f32.mxu0 0.0
        %2848 = vmatmul.mubr.f32.gmra.mxu0 %v2776
        %v2849 = vpop.f32.mrf.mxu0
        %v2850 = vadd.f32 0.0, %v2849
        %v2851 = vpop.f32.mrf.mxu0
        %2852 = vmatprep.mubr.f32.mxu0 0.0
        %2853 = vmatmul.mubr.f32.gmra.mxu0 %v2778
        %v2854 = vpop.f32.mrf.mxu0
        %v2855 = vadd.f32 0.0, %v2854
        %v2856 = vpop.f32.mrf.mxu0
        %2857 = vdwg.mxu0
        %v2858 = vadd.f32 %v2762, %v2850
        %v2859 = vadd.f32 %v2763, %v2855
        %s2860 = scalar_lea.vmem %s276, 528
        %v2861 = vld [vmem:[%s2860 + $0x1] sm:$0xf]
        %v2862 = vld [vmem:[%s2860 + $0x9] sm:$0xf]
        %v2863 = vld [vmem:[%s2860 + $0x11] sm:$0xf]
        %v2864 = vld [vmem:[%s2860 + $0x19] sm:$0xf]
        %v2865 = vld [vmem:[%s1109] sm:$0x7]
        %v2870 = vcombine.low %v2861, %v2862
        %v2871 = vcombine.low %v2863, %v2864
        %v2872 = vsel %vm350, %v2870, 0
        %v2874 = vsel %vm350, %v2871, 0
        %v2877 = vsel %vm355, %v2865, 0
        %2879 = vmatprep.subr.mxu0 0.0
        %2880 = vmatpush1.msra.mxu0 0.0
        %2881 = vmatprep.subr.mxu0 0.0
        %2882 = vmatpush1.msra.mxu0 0.0
        %2883 = vmatprep.subr.mxu0 0.0
        %2884 = vmatpush1.msra.mxu0 0.0
        %2885 = vmatprep.subr.mxu0 0.0
        %2886 = vmatpush1.msra.mxu0 0.0
        %2887 = vmatprep.subr.mxu0 0.0
        %2888 = vmatpush1.msra.mxu0 0.0
        %2889 = vmatprep.subr.mxu0 0.0
        %2890 = vmatpush1.msra.mxu0 0.0
        %2891 = vmatprep.subr.mxu0 0.0
        %2892 = vmatpush1.msra.mxu0 0.0
        %2893 = vmatprep.subr.mxu0 0.0
        %2894 = vmatpush1.msra.mxu0 0.0
        %2895 = vmatprep.subr.mxu0 0.0
        %2896 = vmatpush1.msra.mxu0 0.0
        %2897 = vmatprep.subr.mxu0 0.0
        %2898 = vmatpush1.msra.mxu0 0.0
        %2899 = vmatprep.subr.mxu0 0.0
        %2900 = vmatpush1.msra.mxu0 0.0
        %2901 = vmatprep.subr.mxu0 0.0
        %2902 = vmatpush1.msra.mxu0 0.0
        %2903 = vmatprep.subr.mxu0 0.0
        %2904 = vmatpush1.msra.mxu0 0.0
        %2905 = vmatprep.subr.mxu0 0.0
        %2906 = vmatpush1.msra.mxu0 0.0
        %2907 = vmatprep.subr.mxu0 0.0
        %2908 = vmatpush1.msra.mxu0 0.0
        %2909 = vmatprep.subr.mxu0 0.0
        %2910 = vmatpush1.msra.mxu0 %v2877
        %2911 = vmatprep.subr.mxu0 0.0
        %2912 = vmatpush2.msra.mxu0 0.0
        %2913 = vmatprep.subr.mxu0 0.0
        %2914 = vmatpush2.msra.mxu0 0.0
        %2915 = vmatprep.subr.mxu0 0.0
        %2916 = vmatpush2.msra.mxu0 0.0
        %2917 = vmatprep.subr.mxu0 0.0
        %2918 = vmatpush2.msra.mxu0 0.0
        %2919 = vmatprep.subr.mxu0 0.0
        %2920 = vmatpush2.msra.mxu0 0.0
        %2921 = vmatprep.subr.mxu0 0.0
        %2922 = vmatpush2.msra.mxu0 0.0
        %2923 = vmatprep.subr.mxu0 0.0
        %2924 = vmatpush2.msra.mxu0 0.0
        %2925 = vmatprep.subr.mxu0 0.0
        %2926 = vmatpush2.msra.mxu0 0.0
        %2927 = vmatprep.subr.mxu0 0.0
        %2928 = vmatpush2.msra.mxu0 0.0
        %2929 = vmatprep.subr.mxu0 0.0
        %2930 = vmatpush2.msra.mxu0 0.0
        %2931 = vmatprep.subr.mxu0 0.0
        %2932 = vmatpush2.msra.mxu0 0.0
        %2933 = vmatprep.subr.mxu0 0.0
        %2934 = vmatpush2.msra.mxu0 0.0
        %2935 = vmatprep.subr.mxu0 0.0
        %2936 = vmatpush2.msra.mxu0 0.0
        %2937 = vmatprep.subr.mxu0 0.0
        %2938 = vmatpush2.msra.mxu0 0.0
        %2939 = vmatprep.subr.mxu0 0.0
        %2940 = vmatpush2.msra.mxu0 0.0
        %2941 = vmatprep.subr.mxu0 0.0
        %2942 = vmatpush2.msra.mxu0 0.0
        %2943 = vmatprep.mubr.f32.mxu0 0.0
        %2944 = vmatmul.mubr.f32.gmra.mxu0 %v2872
        %v2945 = vpop.f32.mrf.mxu0
        %v2946 = vadd.f32 0.0, %v2945
        %v2947 = vpop.f32.mrf.mxu0
        %2948 = vmatprep.mubr.f32.mxu0 0.0
        %2949 = vmatmul.mubr.f32.gmra.mxu0 %v2874
        %v2950 = vpop.f32.mrf.mxu0
        %v2951 = vadd.f32 0.0, %v2950
        %v2952 = vpop.f32.mrf.mxu0
        %2953 = vdwg.mxu0
        %v2954 = vadd.f32 %v2858, %v2946
        %v2955 = vadd.f32 %v2859, %v2951
        %v2956 = vld [vmem:[%s2] sm:$0x1]
        %v2958 = vlaneseq
        %v2959 = vshrl.u32 %v2958, 7
        %v2960 = vsub.s32 0, %v2959
        %v2961 = vrot.slane %v2956, %v2960
        %v2963 = vadd.f32 %v2954, %v2961
        %v2964 = vadd.f32 %v2955, %v2961
        %v2965 = vmax.f32 %v2963, 0.0
        %v2966 = vmax.f32 %v2964, 0.0
        %v2969 = vcombine.high %v2965, %v2965
        %v2970 = vcombine.high %v2966, %v2966
        %s2973 = scalar_lea.vmem [#allocation2], 176
        %2974 = vst.msk [vmem:[%s2973 + $0x8] sm:$0xf] %vm279, %v2965
        %2975 = vst.msk [vmem:[%s2973 + $0x18] sm:$0xf] %vm279, %v2969
        %2976 = vst.msk [vmem:[%s2973 + $0x28] sm:$0xf] %vm279, %v2966
        %2977 = vst.msk [vmem:[%s2973 + $0x38] sm:$0xf] %vm279, %v2970
        %v2978 = vld [vmem:[%s1104 + $0x1] sm:$0xf]
        %v2979 = vld [vmem:[%s1104 + $0x9] sm:$0xf]
        %v2980 = vld [vmem:[%s1104 + $0x11] sm:$0xf]
        %v2981 = vld [vmem:[%s1104 + $0x19] sm:$0xf]
        %v2982 = vld [vmem:[%s1] sm:$0x7]
        %v2983 = vld [vmem:[%s1886 + $0x1] sm:$0xf]
        %v2984 = vld [vmem:[%s1886 + $0x9] sm:$0xf]
        %v2985 = vld [vmem:[%s1886 + $0x11] sm:$0xf]
        %v2986 = vld [vmem:[%s1886 + $0x19] sm:$0xf]
        %v2987 = vld [vmem:[%s342] sm:$0x7]
        %v2992 = vcombine.low %v2983, %v2984
        %v2993 = vcombine.low %v2985, %v2986
        %v2994 = vsel %vm350, %v2992, 0
        %v2996 = vsel %vm350, %v2993, 0
        %v2999 = vsel %vm355, %v2987, 0
        %3001 = vmatprep.subr.mxu0 0.0
        %3002 = vmatpush1.msra.mxu0 0.0
        %3003 = vmatprep.subr.mxu0 0.0
        %3004 = vmatpush1.msra.mxu0 0.0
        %3005 = vmatprep.subr.mxu0 0.0
        %3006 = vmatpush1.msra.mxu0 0.0
        %3007 = vmatprep.subr.mxu0 0.0
        %3008 = vmatpush1.msra.mxu0 0.0
        %3009 = vmatprep.subr.mxu0 0.0
        %3010 = vmatpush1.msra.mxu0 0.0
        %3011 = vmatprep.subr.mxu0 0.0
        %3012 = vmatpush1.msra.mxu0 0.0
        %3013 = vmatprep.subr.mxu0 0.0
        %3014 = vmatpush1.msra.mxu0 0.0
        %3015 = vmatprep.subr.mxu0 0.0
        %3016 = vmatpush1.msra.mxu0 0.0
        %3017 = vmatprep.subr.mxu0 0.0
        %3018 = vmatpush1.msra.mxu0 0.0
        %3019 = vmatprep.subr.mxu0 0.0
        %3020 = vmatpush1.msra.mxu0 0.0
        %3021 = vmatprep.subr.mxu0 0.0
        %3022 = vmatpush1.msra.mxu0 0.0
        %3023 = vmatprep.subr.mxu0 0.0
        %3024 = vmatpush1.msra.mxu0 0.0
        %3025 = vmatprep.subr.mxu0 0.0
        %3026 = vmatpush1.msra.mxu0 0.0
        %3027 = vmatprep.subr.mxu0 0.0
        %3028 = vmatpush1.msra.mxu0 0.0
        %3029 = vmatprep.subr.mxu0 0.0
        %3030 = vmatpush1.msra.mxu0 0.0
        %3031 = vmatprep.subr.mxu0 0.0
        %3032 = vmatpush1.msra.mxu0 %v2999
        %3033 = vmatprep.subr.mxu0 0.0
        %3034 = vmatpush2.msra.mxu0 0.0
        %3035 = vmatprep.subr.mxu0 0.0
        %3036 = vmatpush2.msra.mxu0 0.0
        %3037 = vmatprep.subr.mxu0 0.0
        %3038 = vmatpush2.msra.mxu0 0.0
        %3039 = vmatprep.subr.mxu0 0.0
        %3040 = vmatpush2.msra.mxu0 0.0
        %3041 = vmatprep.subr.mxu0 0.0
        %3042 = vmatpush2.msra.mxu0 0.0
        %3043 = vmatprep.subr.mxu0 0.0
        %3044 = vmatpush2.msra.mxu0 0.0
        %3045 = vmatprep.subr.mxu0 0.0
        %3046 = vmatpush2.msra.mxu0 0.0
        %3047 = vmatprep.subr.mxu0 0.0
        %3048 = vmatpush2.msra.mxu0 0.0
        %3049 = vmatprep.subr.mxu0 0.0
        %3050 = vmatpush2.msra.mxu0 0.0
        %3051 = vmatprep.subr.mxu0 0.0
        %3052 = vmatpush2.msra.mxu0 0.0
        %3053 = vmatprep.subr.mxu0 0.0
        %3054 = vmatpush2.msra.mxu0 0.0
        %3055 = vmatprep.subr.mxu0 0.0
        %3056 = vmatpush2.msra.mxu0 0.0
        %3057 = vmatprep.subr.mxu0 0.0
        %3058 = vmatpush2.msra.mxu0 0.0
        %3059 = vmatprep.subr.mxu0 0.0
        %3060 = vmatpush2.msra.mxu0 0.0
        %3061 = vmatprep.subr.mxu0 0.0
        %3062 = vmatpush2.msra.mxu0 0.0
        %3063 = vmatprep.subr.mxu0 0.0
        %3064 = vmatpush2.msra.mxu0 0.0
        %3065 = vmatprep.mubr.f32.mxu0 0.0
        %3066 = vmatmul.mubr.f32.gmra.mxu0 %v2994
        %v3067 = vpop.f32.mrf.mxu0
        %v3068 = vadd.f32 0.0, %v3067
        %v3069 = vpop.f32.mrf.mxu0
        %3070 = vmatprep.mubr.f32.mxu0 0.0
        %3071 = vmatmul.mubr.f32.gmra.mxu0 %v2996
        %v3072 = vpop.f32.mrf.mxu0
        %v3073 = vadd.f32 0.0, %v3072
        %v3074 = vpop.f32.mrf.mxu0
        %3075 = vdwg.mxu0
        %v3080 = vcombine.low %v2978, %v2979
        %v3081 = vcombine.low %v2980, %v2981
        %v3082 = vsel %vm350, %v3080, 0
        %v3084 = vsel %vm350, %v3081, 0
        %v3087 = vsel %vm355, %v2982, 0
        %3089 = vmatprep.subr.mxu0 0.0
        %3090 = vmatpush1.msra.mxu0 0.0
        %3091 = vmatprep.subr.mxu0 0.0
        %3092 = vmatpush1.msra.mxu0 0.0
        %3093 = vmatprep.subr.mxu0 0.0
        %3094 = vmatpush1.msra.mxu0 0.0
        %3095 = vmatprep.subr.mxu0 0.0
        %3096 = vmatpush1.msra.mxu0 0.0
        %3097 = vmatprep.subr.mxu0 0.0
        %3098 = vmatpush1.msra.mxu0 0.0
        %3099 = vmatprep.subr.mxu0 0.0
        %3100 = vmatpush1.msra.mxu0 0.0
        %3101 = vmatprep.subr.mxu0 0.0
        %3102 = vmatpush1.msra.mxu0 0.0
        %3103 = vmatprep.subr.mxu0 0.0
        %3104 = vmatpush1.msra.mxu0 0.0
        %3105 = vmatprep.subr.mxu0 0.0
        %3106 = vmatpush1.msra.mxu0 0.0
        %3107 = vmatprep.subr.mxu0 0.0
        %3108 = vmatpush1.msra.mxu0 0.0
        %3109 = vmatprep.subr.mxu0 0.0
        %3110 = vmatpush1.msra.mxu0 0.0
        %3111 = vmatprep.subr.mxu0 0.0
        %3112 = vmatpush1.msra.mxu0 0.0
        %3113 = vmatprep.subr.mxu0 0.0
        %3114 = vmatpush1.msra.mxu0 0.0
        %3115 = vmatprep.subr.mxu0 0.0
        %3116 = vmatpush1.msra.mxu0 0.0
        %3117 = vmatprep.subr.mxu0 0.0
        %3118 = vmatpush1.msra.mxu0 0.0
        %3119 = vmatprep.subr.mxu0 0.0
        %3120 = vmatpush1.msra.mxu0 %v3087
        %3121 = vmatprep.subr.mxu0 0.0
        %3122 = vmatpush2.msra.mxu0 0.0
        %3123 = vmatprep.subr.mxu0 0.0
        %3124 = vmatpush2.msra.mxu0 0.0
        %3125 = vmatprep.subr.mxu0 0.0
        %3126 = vmatpush2.msra.mxu0 0.0
        %3127 = vmatprep.subr.mxu0 0.0
        %3128 = vmatpush2.msra.mxu0 0.0
        %3129 = vmatprep.subr.mxu0 0.0
        %3130 = vmatpush2.msra.mxu0 0.0
        %3131 = vmatprep.subr.mxu0 0.0
        %3132 = vmatpush2.msra.mxu0 0.0
        %3133 = vmatprep.subr.mxu0 0.0
        %3134 = vmatpush2.msra.mxu0 0.0
        %3135 = vmatprep.subr.mxu0 0.0
        %3136 = vmatpush2.msra.mxu0 0.0
        %3137 = vmatprep.subr.mxu0 0.0
        %3138 = vmatpush2.msra.mxu0 0.0
        %3139 = vmatprep.subr.mxu0 0.0
        %3140 = vmatpush2.msra.mxu0 0.0
        %3141 = vmatprep.subr.mxu0 0.0
        %3142 = vmatpush2.msra.mxu0 0.0
        %3143 = vmatprep.subr.mxu0 0.0
        %3144 = vmatpush2.msra.mxu0 0.0
        %3145 = vmatprep.subr.mxu0 0.0
        %3146 = vmatpush2.msra.mxu0 0.0
        %3147 = vmatprep.subr.mxu0 0.0
        %3148 = vmatpush2.msra.mxu0 0.0
        %3149 = vmatprep.subr.mxu0 0.0
        %3150 = vmatpush2.msra.mxu0 0.0
        %3151 = vmatprep.subr.mxu0 0.0
        %3152 = vmatpush2.msra.mxu0 0.0
        %3153 = vmatprep.mubr.f32.mxu0 0.0
        %3154 = vmatmul.mubr.f32.gmra.mxu0 %v3082
        %v3155 = vpop.f32.mrf.mxu0
        %v3156 = vadd.f32 %v3068, %v3155
        %v3157 = vpop.f32.mrf.mxu0
        %3158 = vmatprep.mubr.f32.mxu0 0.0
        %3159 = vmatmul.mubr.f32.gmra.mxu0 %v3084
        %v3160 = vpop.f32.mrf.mxu0
        %v3161 = vadd.f32 %v3073, %v3160
        %v3162 = vpop.f32.mrf.mxu0
        %3163 = vdwg.mxu0
        %v3164 = vld [vmem:[%s910 + $0x1] sm:$0xf]
        %v3165 = vld [vmem:[%s910 + $0x9] sm:$0xf]
        %v3166 = vld [vmem:[%s910 + $0x11] sm:$0xf]
        %v3167 = vld [vmem:[%s910 + $0x19] sm:$0xf]
        %v3168 = vld [vmem:[%s527] sm:$0x7]
        %v3173 = vcombine.low %v3164, %v3165
        %v3174 = vcombine.low %v3166, %v3167
        %v3175 = vsel %vm350, %v3173, 0
        %v3177 = vsel %vm350, %v3174, 0
        %v3180 = vsel %vm355, %v3168, 0
        %3182 = vmatprep.subr.mxu0 0.0
        %3183 = vmatpush1.msra.mxu0 0.0
        %3184 = vmatprep.subr.mxu0 0.0
        %3185 = vmatpush1.msra.mxu0 0.0
        %3186 = vmatprep.subr.mxu0 0.0
        %3187 = vmatpush1.msra.mxu0 0.0
        %3188 = vmatprep.subr.mxu0 0.0
        %3189 = vmatpush1.msra.mxu0 0.0
        %3190 = vmatprep.subr.mxu0 0.0
        %3191 = vmatpush1.msra.mxu0 0.0
        %3192 = vmatprep.subr.mxu0 0.0
        %3193 = vmatpush1.msra.mxu0 0.0
        %3194 = vmatprep.subr.mxu0 0.0
        %3195 = vmatpush1.msra.mxu0 0.0
        %3196 = vmatprep.subr.mxu0 0.0
        %3197 = vmatpush1.msra.mxu0 0.0
        %3198 = vmatprep.subr.mxu0 0.0
        %3199 = vmatpush1.msra.mxu0 0.0
        %3200 = vmatprep.subr.mxu0 0.0
        %3201 = vmatpush1.msra.mxu0 0.0
        %3202 = vmatprep.subr.mxu0 0.0
        %3203 = vmatpush1.msra.mxu0 0.0
        %3204 = vmatprep.subr.mxu0 0.0
        %3205 = vmatpush1.msra.mxu0 0.0
        %3206 = vmatprep.subr.mxu0 0.0
        %3207 = vmatpush1.msra.mxu0 0.0
        %3208 = vmatprep.subr.mxu0 0.0
        %3209 = vmatpush1.msra.mxu0 0.0
        %3210 = vmatprep.subr.mxu0 0.0
        %3211 = vmatpush1.msra.mxu0 0.0
        %3212 = vmatprep.subr.mxu0 0.0
        %3213 = vmatpush1.msra.mxu0 %v3180
        %3214 = vmatprep.subr.mxu0 0.0
        %3215 = vmatpush2.msra.mxu0 0.0
        %3216 = vmatprep.subr.mxu0 0.0
        %3217 = vmatpush2.msra.mxu0 0.0
        %3218 = vmatprep.subr.mxu0 0.0
        %3219 = vmatpush2.msra.mxu0 0.0
        %3220 = vmatprep.subr.mxu0 0.0
        %3221 = vmatpush2.msra.mxu0 0.0
        %3222 = vmatprep.subr.mxu0 0.0
        %3223 = vmatpush2.msra.mxu0 0.0
        %3224 = vmatprep.subr.mxu0 0.0
        %3225 = vmatpush2.msra.mxu0 0.0
        %3226 = vmatprep.subr.mxu0 0.0
        %3227 = vmatpush2.msra.mxu0 0.0
        %3228 = vmatprep.subr.mxu0 0.0
        %3229 = vmatpush2.msra.mxu0 0.0
        %3230 = vmatprep.subr.mxu0 0.0
        %3231 = vmatpush2.msra.mxu0 0.0
        %3232 = vmatprep.subr.mxu0 0.0
        %3233 = vmatpush2.msra.mxu0 0.0
        %3234 = vmatprep.subr.mxu0 0.0
        %3235 = vmatpush2.msra.mxu0 0.0
        %3236 = vmatprep.subr.mxu0 0.0
        %3237 = vmatpush2.msra.mxu0 0.0
        %3238 = vmatprep.subr.mxu0 0.0
        %3239 = vmatpush2.msra.mxu0 0.0
        %3240 = vmatprep.subr.mxu0 0.0
        %3241 = vmatpush2.msra.mxu0 0.0
        %3242 = vmatprep.subr.mxu0 0.0
        %3243 = vmatpush2.msra.mxu0 0.0
        %3244 = vmatprep.subr.mxu0 0.0
        %3245 = vmatpush2.msra.mxu0 0.0
        %3246 = vmatprep.mubr.f32.mxu0 0.0
        %3247 = vmatmul.mubr.f32.gmra.mxu0 %v3175
        %v3248 = vpop.f32.mrf.mxu0
        %v3249 = vadd.f32 0.0, %v3248
        %v3250 = vpop.f32.mrf.mxu0
        %3251 = vmatprep.mubr.f32.mxu0 0.0
        %3252 = vmatmul.mubr.f32.gmra.mxu0 %v3177
        %v3253 = vpop.f32.mrf.mxu0
        %v3254 = vadd.f32 0.0, %v3253
        %v3255 = vpop.f32.mrf.mxu0
        %3256 = vdwg.mxu0
        %v3257 = vadd.f32 %v3156, %v3249
        %v3258 = vadd.f32 %v3161, %v3254
        %v3259 = vld [vmem:[%s2572 + $0x1] sm:$0xf]
        %v3260 = vld [vmem:[%s2572 + $0x9] sm:$0xf]
        %v3261 = vld [vmem:[%s2572 + $0x11] sm:$0xf]
        %v3262 = vld [vmem:[%s2572 + $0x19] sm:$0xf]
        %v3263 = vld [vmem:[%s624] sm:$0x7]
        %v3268 = vcombine.low %v3259, %v3260
        %v3269 = vcombine.low %v3261, %v3262
        %v3270 = vsel %vm350, %v3268, 0
        %v3272 = vsel %vm350, %v3269, 0
        %v3275 = vsel %vm355, %v3263, 0
        %3277 = vmatprep.subr.mxu0 0.0
        %3278 = vmatpush1.msra.mxu0 0.0
        %3279 = vmatprep.subr.mxu0 0.0
        %3280 = vmatpush1.msra.mxu0 0.0
        %3281 = vmatprep.subr.mxu0 0.0
        %3282 = vmatpush1.msra.mxu0 0.0
        %3283 = vmatprep.subr.mxu0 0.0
        %3284 = vmatpush1.msra.mxu0 0.0
        %3285 = vmatprep.subr.mxu0 0.0
        %3286 = vmatpush1.msra.mxu0 0.0
        %3287 = vmatprep.subr.mxu0 0.0
        %3288 = vmatpush1.msra.mxu0 0.0
        %3289 = vmatprep.subr.mxu0 0.0
        %3290 = vmatpush1.msra.mxu0 0.0
        %3291 = vmatprep.subr.mxu0 0.0
        %3292 = vmatpush1.msra.mxu0 0.0
        %3293 = vmatprep.subr.mxu0 0.0
        %3294 = vmatpush1.msra.mxu0 0.0
        %3295 = vmatprep.subr.mxu0 0.0
        %3296 = vmatpush1.msra.mxu0 0.0
        %3297 = vmatprep.subr.mxu0 0.0
        %3298 = vmatpush1.msra.mxu0 0.0
        %3299 = vmatprep.subr.mxu0 0.0
        %3300 = vmatpush1.msra.mxu0 0.0
        %3301 = vmatprep.subr.mxu0 0.0
        %3302 = vmatpush1.msra.mxu0 0.0
        %3303 = vmatprep.subr.mxu0 0.0
        %3304 = vmatpush1.msra.mxu0 0.0
        %3305 = vmatprep.subr.mxu0 0.0
        %3306 = vmatpush1.msra.mxu0 0.0
        %3307 = vmatprep.subr.mxu0 0.0
        %3308 = vmatpush1.msra.mxu0 %v3275
        %3309 = vmatprep.subr.mxu0 0.0
        %3310 = vmatpush2.msra.mxu0 0.0
        %3311 = vmatprep.subr.mxu0 0.0
        %3312 = vmatpush2.msra.mxu0 0.0
        %3313 = vmatprep.subr.mxu0 0.0
        %3314 = vmatpush2.msra.mxu0 0.0
        %3315 = vmatprep.subr.mxu0 0.0
        %3316 = vmatpush2.msra.mxu0 0.0
        %3317 = vmatprep.subr.mxu0 0.0
        %3318 = vmatpush2.msra.mxu0 0.0
        %3319 = vmatprep.subr.mxu0 0.0
        %3320 = vmatpush2.msra.mxu0 0.0
        %3321 = vmatprep.subr.mxu0 0.0
        %3322 = vmatpush2.msra.mxu0 0.0
        %3323 = vmatprep.subr.mxu0 0.0
        %3324 = vmatpush2.msra.mxu0 0.0
        %3325 = vmatprep.subr.mxu0 0.0
        %3326 = vmatpush2.msra.mxu0 0.0
        %3327 = vmatprep.subr.mxu0 0.0
        %3328 = vmatpush2.msra.mxu0 0.0
        %3329 = vmatprep.subr.mxu0 0.0
        %3330 = vmatpush2.msra.mxu0 0.0
        %3331 = vmatprep.subr.mxu0 0.0
        %3332 = vmatpush2.msra.mxu0 0.0
        %3333 = vmatprep.subr.mxu0 0.0
        %3334 = vmatpush2.msra.mxu0 0.0
        %3335 = vmatprep.subr.mxu0 0.0
        %3336 = vmatpush2.msra.mxu0 0.0
        %3337 = vmatprep.subr.mxu0 0.0
        %3338 = vmatpush2.msra.mxu0 0.0
        %3339 = vmatprep.subr.mxu0 0.0
        %3340 = vmatpush2.msra.mxu0 0.0
        %3341 = vmatprep.mubr.f32.mxu0 0.0
        %3342 = vmatmul.mubr.f32.gmra.mxu0 %v3270
        %v3343 = vpop.f32.mrf.mxu0
        %v3344 = vadd.f32 0.0, %v3343
        %v3345 = vpop.f32.mrf.mxu0
        %3346 = vmatprep.mubr.f32.mxu0 0.0
        %3347 = vmatmul.mubr.f32.gmra.mxu0 %v3272
        %v3348 = vpop.f32.mrf.mxu0
        %v3349 = vadd.f32 0.0, %v3348
        %v3350 = vpop.f32.mrf.mxu0
        %3351 = vdwg.mxu0
        %v3352 = vadd.f32 %v3257, %v3344
        %v3353 = vadd.f32 %v3258, %v3349
        %s3354 = scalar_lea.vmem %s276, 408
        %v3355 = vld [vmem:[%s3354 + $0x1] sm:$0xf]
        %v3356 = vld [vmem:[%s3354 + $0x9] sm:$0xf]
        %v3357 = vld [vmem:[%s3354 + $0x11] sm:$0xf]
        %v3358 = vld [vmem:[%s3354 + $0x19] sm:$0xf]
        %v3359 = vld [vmem:[%s721] sm:$0x7]
        %v3364 = vcombine.low %v3355, %v3356
        %v3365 = vcombine.low %v3357, %v3358
        %v3366 = vsel %vm350, %v3364, 0
        %v3368 = vsel %vm350, %v3365, 0
        %v3371 = vsel %vm355, %v3359, 0
        %3373 = vmatprep.subr.mxu0 0.0
        %3374 = vmatpush1.msra.mxu0 0.0
        %3375 = vmatprep.subr.mxu0 0.0
        %3376 = vmatpush1.msra.mxu0 0.0
        %3377 = vmatprep.subr.mxu0 0.0
        %3378 = vmatpush1.msra.mxu0 0.0
        %3379 = vmatprep.subr.mxu0 0.0
        %3380 = vmatpush1.msra.mxu0 0.0
        %3381 = vmatprep.subr.mxu0 0.0
        %3382 = vmatpush1.msra.mxu0 0.0
        %3383 = vmatprep.subr.mxu0 0.0
        %3384 = vmatpush1.msra.mxu0 0.0
        %3385 = vmatprep.subr.mxu0 0.0
        %3386 = vmatpush1.msra.mxu0 0.0
        %3387 = vmatprep.subr.mxu0 0.0
        %3388 = vmatpush1.msra.mxu0 0.0
        %3389 = vmatprep.subr.mxu0 0.0
        %3390 = vmatpush1.msra.mxu0 0.0
        %3391 = vmatprep.subr.mxu0 0.0
        %3392 = vmatpush1.msra.mxu0 0.0
        %3393 = vmatprep.subr.mxu0 0.0
        %3394 = vmatpush1.msra.mxu0 0.0
        %3395 = vmatprep.subr.mxu0 0.0
        %3396 = vmatpush1.msra.mxu0 0.0
        %3397 = vmatprep.subr.mxu0 0.0
        %3398 = vmatpush1.msra.mxu0 0.0
        %3399 = vmatprep.subr.mxu0 0.0
        %3400 = vmatpush1.msra.mxu0 0.0
        %3401 = vmatprep.subr.mxu0 0.0
        %3402 = vmatpush1.msra.mxu0 0.0
        %3403 = vmatprep.subr.mxu0 0.0
        %3404 = vmatpush1.msra.mxu0 %v3371
        %3405 = vmatprep.subr.mxu0 0.0
        %3406 = vmatpush2.msra.mxu0 0.0
        %3407 = vmatprep.subr.mxu0 0.0
        %3408 = vmatpush2.msra.mxu0 0.0
        %3409 = vmatprep.subr.mxu0 0.0
        %3410 = vmatpush2.msra.mxu0 0.0
        %3411 = vmatprep.subr.mxu0 0.0
        %3412 = vmatpush2.msra.mxu0 0.0
        %3413 = vmatprep.subr.mxu0 0.0
        %3414 = vmatpush2.msra.mxu0 0.0
        %3415 = vmatprep.subr.mxu0 0.0
        %3416 = vmatpush2.msra.mxu0 0.0
        %3417 = vmatprep.subr.mxu0 0.0
        %3418 = vmatpush2.msra.mxu0 0.0
        %3419 = vmatprep.subr.mxu0 0.0
        %3420 = vmatpush2.msra.mxu0 0.0
        %3421 = vmatprep.subr.mxu0 0.0
        %3422 = vmatpush2.msra.mxu0 0.0
        %3423 = vmatprep.subr.mxu0 0.0
        %3424 = vmatpush2.msra.mxu0 0.0
        %3425 = vmatprep.subr.mxu0 0.0
        %3426 = vmatpush2.msra.mxu0 0.0
        %3427 = vmatprep.subr.mxu0 0.0
        %3428 = vmatpush2.msra.mxu0 0.0
        %3429 = vmatprep.subr.mxu0 0.0
        %3430 = vmatpush2.msra.mxu0 0.0
        %3431 = vmatprep.subr.mxu0 0.0
        %3432 = vmatpush2.msra.mxu0 0.0
        %3433 = vmatprep.subr.mxu0 0.0
        %3434 = vmatpush2.msra.mxu0 0.0
        %3435 = vmatprep.subr.mxu0 0.0
        %3436 = vmatpush2.msra.mxu0 0.0
        %3437 = vmatprep.mubr.f32.mxu0 0.0
        %3438 = vmatmul.mubr.f32.gmra.mxu0 %v3366
        %v3439 = vpop.f32.mrf.mxu0
        %v3440 = vadd.f32 0.0, %v3439
        %v3441 = vpop.f32.mrf.mxu0
        %3442 = vmatprep.mubr.f32.mxu0 0.0
        %3443 = vmatmul.mubr.f32.gmra.mxu0 %v3368
        %v3444 = vpop.f32.mrf.mxu0
        %v3445 = vadd.f32 0.0, %v3444
        %v3446 = vpop.f32.mrf.mxu0
        %3447 = vdwg.mxu0
        %v3448 = vadd.f32 %v3352, %v3440
        %v3449 = vadd.f32 %v3353, %v3445
        %v3450 = vld [vmem:[%s2380 + $0x1] sm:$0xf]
        %v3451 = vld [vmem:[%s2380 + $0x9] sm:$0xf]
        %v3452 = vld [vmem:[%s2380 + $0x11] sm:$0xf]
        %v3453 = vld [vmem:[%s2380 + $0x19] sm:$0xf]
        %v3454 = vld [vmem:[%s818] sm:$0x7]
        %v3459 = vcombine.low %v3450, %v3451
        %v3460 = vcombine.low %v3452, %v3453
        %v3461 = vsel %vm350, %v3459, 0
        %v3463 = vsel %vm350, %v3460, 0
        %v3466 = vsel %vm355, %v3454, 0
        %3468 = vmatprep.subr.mxu0 0.0
        %3469 = vmatpush1.msra.mxu0 0.0
        %3470 = vmatprep.subr.mxu0 0.0
        %3471 = vmatpush1.msra.mxu0 0.0
        %3472 = vmatprep.subr.mxu0 0.0
        %3473 = vmatpush1.msra.mxu0 0.0
        %3474 = vmatprep.subr.mxu0 0.0
        %3475 = vmatpush1.msra.mxu0 0.0
        %3476 = vmatprep.subr.mxu0 0.0
        %3477 = vmatpush1.msra.mxu0 0.0
        %3478 = vmatprep.subr.mxu0 0.0
        %3479 = vmatpush1.msra.mxu0 0.0
        %3480 = vmatprep.subr.mxu0 0.0
        %3481 = vmatpush1.msra.mxu0 0.0
        %3482 = vmatprep.subr.mxu0 0.0
        %3483 = vmatpush1.msra.mxu0 0.0
        %3484 = vmatprep.subr.mxu0 0.0
        %3485 = vmatpush1.msra.mxu0 0.0
        %3486 = vmatprep.subr.mxu0 0.0
        %3487 = vmatpush1.msra.mxu0 0.0
        %3488 = vmatprep.subr.mxu0 0.0
        %3489 = vmatpush1.msra.mxu0 0.0
        %3490 = vmatprep.subr.mxu0 0.0
        %3491 = vmatpush1.msra.mxu0 0.0
        %3492 = vmatprep.subr.mxu0 0.0
        %3493 = vmatpush1.msra.mxu0 0.0
        %3494 = vmatprep.subr.mxu0 0.0
        %3495 = vmatpush1.msra.mxu0 0.0
        %3496 = vmatprep.subr.mxu0 0.0
        %3497 = vmatpush1.msra.mxu0 0.0
        %3498 = vmatprep.subr.mxu0 0.0
        %3499 = vmatpush1.msra.mxu0 %v3466
        %3500 = vmatprep.subr.mxu0 0.0
        %3501 = vmatpush2.msra.mxu0 0.0
        %3502 = vmatprep.subr.mxu0 0.0
        %3503 = vmatpush2.msra.mxu0 0.0
        %3504 = vmatprep.subr.mxu0 0.0
        %3505 = vmatpush2.msra.mxu0 0.0
        %3506 = vmatprep.subr.mxu0 0.0
        %3507 = vmatpush2.msra.mxu0 0.0
        %3508 = vmatprep.subr.mxu0 0.0
        %3509 = vmatpush2.msra.mxu0 0.0
        %3510 = vmatprep.subr.mxu0 0.0
        %3511 = vmatpush2.msra.mxu0 0.0
        %3512 = vmatprep.subr.mxu0 0.0
        %3513 = vmatpush2.msra.mxu0 0.0
        %3514 = vmatprep.subr.mxu0 0.0
        %3515 = vmatpush2.msra.mxu0 0.0
        %3516 = vmatprep.subr.mxu0 0.0
        %3517 = vmatpush2.msra.mxu0 0.0
        %3518 = vmatprep.subr.mxu0 0.0
        %3519 = vmatpush2.msra.mxu0 0.0
        %3520 = vmatprep.subr.mxu0 0.0
        %3521 = vmatpush2.msra.mxu0 0.0
        %3522 = vmatprep.subr.mxu0 0.0
        %3523 = vmatpush2.msra.mxu0 0.0
        %3524 = vmatprep.subr.mxu0 0.0
        %3525 = vmatpush2.msra.mxu0 0.0
        %3526 = vmatprep.subr.mxu0 0.0
        %3527 = vmatpush2.msra.mxu0 0.0
        %3528 = vmatprep.subr.mxu0 0.0
        %3529 = vmatpush2.msra.mxu0 0.0
        %3530 = vmatprep.subr.mxu0 0.0
        %3531 = vmatpush2.msra.mxu0 0.0
        %3532 = vmatprep.mubr.f32.mxu0 0.0
        %3533 = vmatmul.mubr.f32.gmra.mxu0 %v3461
        %v3534 = vpop.f32.mrf.mxu0
        %v3535 = vadd.f32 0.0, %v3534
        %v3536 = vpop.f32.mrf.mxu0
        %3537 = vmatprep.mubr.f32.mxu0 0.0
        %3538 = vmatmul.mubr.f32.gmra.mxu0 %v3463
        %v3539 = vpop.f32.mrf.mxu0
        %v3540 = vadd.f32 0.0, %v3539
        %v3541 = vpop.f32.mrf.mxu0
        %3542 = vdwg.mxu0
        %v3543 = vadd.f32 %v3448, %v3535
        %v3544 = vadd.f32 %v3449, %v3540
        %v3545 = vld [vmem:[%s2860 + $0x1] sm:$0xf]
        %v3546 = vld [vmem:[%s2860 + $0x9] sm:$0xf]
        %v3547 = vld [vmem:[%s2860 + $0x11] sm:$0xf]
        %v3548 = vld [vmem:[%s2860 + $0x19] sm:$0xf]
        %v3549 = vld [vmem:[%s915] sm:$0x7]
        %v3554 = vcombine.low %v3545, %v3546
        %v3555 = vcombine.low %v3547, %v3548
        %v3556 = vsel %vm350, %v3554, 0
        %v3558 = vsel %vm350, %v3555, 0
        %v3561 = vsel %vm355, %v3549, 0
        %3563 = vmatprep.subr.mxu0 0.0
        %3564 = vmatpush1.msra.mxu0 0.0
        %3565 = vmatprep.subr.mxu0 0.0
        %3566 = vmatpush1.msra.mxu0 0.0
        %3567 = vmatprep.subr.mxu0 0.0
        %3568 = vmatpush1.msra.mxu0 0.0
        %3569 = vmatprep.subr.mxu0 0.0
        %3570 = vmatpush1.msra.mxu0 0.0
        %3571 = vmatprep.subr.mxu0 0.0
        %3572 = vmatpush1.msra.mxu0 0.0
        %3573 = vmatprep.subr.mxu0 0.0
        %3574 = vmatpush1.msra.mxu0 0.0
        %3575 = vmatprep.subr.mxu0 0.0
        %3576 = vmatpush1.msra.mxu0 0.0
        %3577 = vmatprep.subr.mxu0 0.0
        %3578 = vmatpush1.msra.mxu0 0.0
        %3579 = vmatprep.subr.mxu0 0.0
        %3580 = vmatpush1.msra.mxu0 0.0
        %3581 = vmatprep.subr.mxu0 0.0
        %3582 = vmatpush1.msra.mxu0 0.0
        %3583 = vmatprep.subr.mxu0 0.0
        %3584 = vmatpush1.msra.mxu0 0.0
        %3585 = vmatprep.subr.mxu0 0.0
        %3586 = vmatpush1.msra.mxu0 0.0
        %3587 = vmatprep.subr.mxu0 0.0
        %3588 = vmatpush1.msra.mxu0 0.0
        %3589 = vmatprep.subr.mxu0 0.0
        %3590 = vmatpush1.msra.mxu0 0.0
        %3591 = vmatprep.subr.mxu0 0.0
        %3592 = vmatpush1.msra.mxu0 0.0
        %3593 = vmatprep.subr.mxu0 0.0
        %3594 = vmatpush1.msra.mxu0 %v3561
        %3595 = vmatprep.subr.mxu0 0.0
        %3596 = vmatpush2.msra.mxu0 0.0
        %3597 = vmatprep.subr.mxu0 0.0
        %3598 = vmatpush2.msra.mxu0 0.0
        %3599 = vmatprep.subr.mxu0 0.0
        %3600 = vmatpush2.msra.mxu0 0.0
        %3601 = vmatprep.subr.mxu0 0.0
        %3602 = vmatpush2.msra.mxu0 0.0
        %3603 = vmatprep.subr.mxu0 0.0
        %3604 = vmatpush2.msra.mxu0 0.0
        %3605 = vmatprep.subr.mxu0 0.0
        %3606 = vmatpush2.msra.mxu0 0.0
        %3607 = vmatprep.subr.mxu0 0.0
        %3608 = vmatpush2.msra.mxu0 0.0
        %3609 = vmatprep.subr.mxu0 0.0
        %3610 = vmatpush2.msra.mxu0 0.0
        %3611 = vmatprep.subr.mxu0 0.0
        %3612 = vmatpush2.msra.mxu0 0.0
        %3613 = vmatprep.subr.mxu0 0.0
        %3614 = vmatpush2.msra.mxu0 0.0
        %3615 = vmatprep.subr.mxu0 0.0
        %3616 = vmatpush2.msra.mxu0 0.0
        %3617 = vmatprep.subr.mxu0 0.0
        %3618 = vmatpush2.msra.mxu0 0.0
        %3619 = vmatprep.subr.mxu0 0.0
        %3620 = vmatpush2.msra.mxu0 0.0
        %3621 = vmatprep.subr.mxu0 0.0
        %3622 = vmatpush2.msra.mxu0 0.0
        %3623 = vmatprep.subr.mxu0 0.0
        %3624 = vmatpush2.msra.mxu0 0.0
        %3625 = vmatprep.subr.mxu0 0.0
        %3626 = vmatpush2.msra.mxu0 0.0
        %3627 = vmatprep.mubr.f32.mxu0 0.0
        %3628 = vmatmul.mubr.f32.gmra.mxu0 %v3556
        %v3629 = vpop.f32.mrf.mxu0
        %v3630 = vadd.f32 0.0, %v3629
        %v3631 = vpop.f32.mrf.mxu0
        %3632 = vmatprep.mubr.f32.mxu0 0.0
        %3633 = vmatmul.mubr.f32.gmra.mxu0 %v3558
        %v3634 = vpop.f32.mrf.mxu0
        %v3635 = vadd.f32 0.0, %v3634
        %v3636 = vpop.f32.mrf.mxu0
        %3637 = vdwg.mxu0
        %v3638 = vadd.f32 %v3543, %v3630
        %v3639 = vadd.f32 %v3544, %v3635
        %s3640 = scalar_lea.vmem %s276, 568
        %v3641 = vld [vmem:[%s3640 + $0x1] sm:$0xf]
        %v3642 = vld [vmem:[%s3640 + $0x9] sm:$0xf]
        %v3643 = vld [vmem:[%s3640 + $0x11] sm:$0xf]
        %v3644 = vld [vmem:[%s3640 + $0x19] sm:$0xf]
        %v3645 = vld [vmem:[%s1012] sm:$0x7]
        %v3650 = vcombine.low %v3641, %v3642
        %v3651 = vcombine.low %v3643, %v3644
        %v3652 = vsel %vm350, %v3650, 0
        %v3654 = vsel %vm350, %v3651, 0
        %v3657 = vsel %vm355, %v3645, 0
        %3659 = vmatprep.subr.mxu0 0.0
        %3660 = vmatpush1.msra.mxu0 0.0
        %3661 = vmatprep.subr.mxu0 0.0
        %3662 = vmatpush1.msra.mxu0 0.0
        %3663 = vmatprep.subr.mxu0 0.0
        %3664 = vmatpush1.msra.mxu0 0.0
        %3665 = vmatprep.subr.mxu0 0.0
        %3666 = vmatpush1.msra.mxu0 0.0
        %3667 = vmatprep.subr.mxu0 0.0
        %3668 = vmatpush1.msra.mxu0 0.0
        %3669 = vmatprep.subr.mxu0 0.0
        %3670 = vmatpush1.msra.mxu0 0.0
        %3671 = vmatprep.subr.mxu0 0.0
        %3672 = vmatpush1.msra.mxu0 0.0
        %3673 = vmatprep.subr.mxu0 0.0
        %3674 = vmatpush1.msra.mxu0 0.0
        %3675 = vmatprep.subr.mxu0 0.0
        %3676 = vmatpush1.msra.mxu0 0.0
        %3677 = vmatprep.subr.mxu0 0.0
        %3678 = vmatpush1.msra.mxu0 0.0
        %3679 = vmatprep.subr.mxu0 0.0
        %3680 = vmatpush1.msra.mxu0 0.0
        %3681 = vmatprep.subr.mxu0 0.0
        %3682 = vmatpush1.msra.mxu0 0.0
        %3683 = vmatprep.subr.mxu0 0.0
        %3684 = vmatpush1.msra.mxu0 0.0
        %3685 = vmatprep.subr.mxu0 0.0
        %3686 = vmatpush1.msra.mxu0 0.0
        %3687 = vmatprep.subr.mxu0 0.0
        %3688 = vmatpush1.msra.mxu0 0.0
        %3689 = vmatprep.subr.mxu0 0.0
        %3690 = vmatpush1.msra.mxu0 %v3657
        %3691 = vmatprep.subr.mxu0 0.0
        %3692 = vmatpush2.msra.mxu0 0.0
        %3693 = vmatprep.subr.mxu0 0.0
        %3694 = vmatpush2.msra.mxu0 0.0
        %3695 = vmatprep.subr.mxu0 0.0
        %3696 = vmatpush2.msra.mxu0 0.0
        %3697 = vmatprep.subr.mxu0 0.0
        %3698 = vmatpush2.msra.mxu0 0.0
        %3699 = vmatprep.subr.mxu0 0.0
        %3700 = vmatpush2.msra.mxu0 0.0
        %3701 = vmatprep.subr.mxu0 0.0
        %3702 = vmatpush2.msra.mxu0 0.0
        %3703 = vmatprep.subr.mxu0 0.0
        %3704 = vmatpush2.msra.mxu0 0.0
        %3705 = vmatprep.subr.mxu0 0.0
        %3706 = vmatpush2.msra.mxu0 0.0
        %3707 = vmatprep.subr.mxu0 0.0
        %3708 = vmatpush2.msra.mxu0 0.0
        %3709 = vmatprep.subr.mxu0 0.0
        %3710 = vmatpush2.msra.mxu0 0.0
        %3711 = vmatprep.subr.mxu0 0.0
        %3712 = vmatpush2.msra.mxu0 0.0
        %3713 = vmatprep.subr.mxu0 0.0
        %3714 = vmatpush2.msra.mxu0 0.0
        %3715 = vmatprep.subr.mxu0 0.0
        %3716 = vmatpush2.msra.mxu0 0.0
        %3717 = vmatprep.subr.mxu0 0.0
        %3718 = vmatpush2.msra.mxu0 0.0
        %3719 = vmatprep.subr.mxu0 0.0
        %3720 = vmatpush2.msra.mxu0 0.0
        %3721 = vmatprep.subr.mxu0 0.0
        %3722 = vmatpush2.msra.mxu0 0.0
        %3723 = vmatprep.mubr.f32.mxu0 0.0
        %3724 = vmatmul.mubr.f32.gmra.mxu0 %v3652
        %v3725 = vpop.f32.mrf.mxu0
        %v3726 = vadd.f32 0.0, %v3725
        %v3727 = vpop.f32.mrf.mxu0
        %3728 = vmatprep.mubr.f32.mxu0 0.0
        %3729 = vmatmul.mubr.f32.gmra.mxu0 %v3654
        %v3730 = vpop.f32.mrf.mxu0
        %v3731 = vadd.f32 0.0, %v3730
        %v3732 = vpop.f32.mrf.mxu0
        %3733 = vdwg.mxu0
        %v3734 = vadd.f32 %v3638, %v3726
        %v3735 = vadd.f32 %v3639, %v3731
        %v3736 = vld [vmem:[%s2668 + $0x1] sm:$0xf]
        %v3737 = vld [vmem:[%s2668 + $0x9] sm:$0xf]
        %v3738 = vld [vmem:[%s2668 + $0x11] sm:$0xf]
        %v3739 = vld [vmem:[%s2668 + $0x19] sm:$0xf]
        %v3740 = vld [vmem:[%s1109] sm:$0x7]
        %v3745 = vcombine.low %v3736, %v3737
        %v3746 = vcombine.low %v3738, %v3739
        %v3747 = vsel %vm350, %v3745, 0
        %v3749 = vsel %vm350, %v3746, 0
        %v3752 = vsel %vm355, %v3740, 0
        %3754 = vmatprep.subr.mxu0 0.0
        %3755 = vmatpush1.msra.mxu0 0.0
        %3756 = vmatprep.subr.mxu0 0.0
        %3757 = vmatpush1.msra.mxu0 0.0
        %3758 = vmatprep.subr.mxu0 0.0
        %3759 = vmatpush1.msra.mxu0 0.0
        %3760 = vmatprep.subr.mxu0 0.0
        %3761 = vmatpush1.msra.mxu0 0.0
        %3762 = vmatprep.subr.mxu0 0.0
        %3763 = vmatpush1.msra.mxu0 0.0
        %3764 = vmatprep.subr.mxu0 0.0
        %3765 = vmatpush1.msra.mxu0 0.0
        %3766 = vmatprep.subr.mxu0 0.0
        %3767 = vmatpush1.msra.mxu0 0.0
        %3768 = vmatprep.subr.mxu0 0.0
        %3769 = vmatpush1.msra.mxu0 0.0
        %3770 = vmatprep.subr.mxu0 0.0
        %3771 = vmatpush1.msra.mxu0 0.0
        %3772 = vmatprep.subr.mxu0 0.0
        %3773 = vmatpush1.msra.mxu0 0.0
        %3774 = vmatprep.subr.mxu0 0.0
        %3775 = vmatpush1.msra.mxu0 0.0
        %3776 = vmatprep.subr.mxu0 0.0
        %3777 = vmatpush1.msra.mxu0 0.0
        %3778 = vmatprep.subr.mxu0 0.0
        %3779 = vmatpush1.msra.mxu0 0.0
        %3780 = vmatprep.subr.mxu0 0.0
        %3781 = vmatpush1.msra.mxu0 0.0
        %3782 = vmatprep.subr.mxu0 0.0
        %3783 = vmatpush1.msra.mxu0 0.0
        %3784 = vmatprep.subr.mxu0 0.0
        %3785 = vmatpush1.msra.mxu0 %v3752
        %3786 = vmatprep.subr.mxu0 0.0
        %3787 = vmatpush2.msra.mxu0 0.0
        %3788 = vmatprep.subr.mxu0 0.0
        %3789 = vmatpush2.msra.mxu0 0.0
        %3790 = vmatprep.subr.mxu0 0.0
        %3791 = vmatpush2.msra.mxu0 0.0
        %3792 = vmatprep.subr.mxu0 0.0
        %3793 = vmatpush2.msra.mxu0 0.0
        %3794 = vmatprep.subr.mxu0 0.0
        %3795 = vmatpush2.msra.mxu0 0.0
        %3796 = vmatprep.subr.mxu0 0.0
        %3797 = vmatpush2.msra.mxu0 0.0
        %3798 = vmatprep.subr.mxu0 0.0
        %3799 = vmatpush2.msra.mxu0 0.0
        %3800 = vmatprep.subr.mxu0 0.0
        %3801 = vmatpush2.msra.mxu0 0.0
        %3802 = vmatprep.subr.mxu0 0.0
        %3803 = vmatpush2.msra.mxu0 0.0
        %3804 = vmatprep.subr.mxu0 0.0
        %3805 = vmatpush2.msra.mxu0 0.0
        %3806 = vmatprep.subr.mxu0 0.0
        %3807 = vmatpush2.msra.mxu0 0.0
        %3808 = vmatprep.subr.mxu0 0.0
        %3809 = vmatpush2.msra.mxu0 0.0
        %3810 = vmatprep.subr.mxu0 0.0
        %3811 = vmatpush2.msra.mxu0 0.0
        %3812 = vmatprep.subr.mxu0 0.0
        %3813 = vmatpush2.msra.mxu0 0.0
        %3814 = vmatprep.subr.mxu0 0.0
        %3815 = vmatpush2.msra.mxu0 0.0
        %3816 = vmatprep.subr.mxu0 0.0
        %3817 = vmatpush2.msra.mxu0 0.0
        %3818 = vmatprep.mubr.f32.mxu0 0.0
        %3819 = vmatmul.mubr.f32.gmra.mxu0 %v3747
        %v3820 = vpop.f32.mrf.mxu0
        %v3821 = vadd.f32 0.0, %v3820
        %v3822 = vpop.f32.mrf.mxu0
        %3823 = vmatprep.mubr.f32.mxu0 0.0
        %3824 = vmatmul.mubr.f32.gmra.mxu0 %v3749
        %v3825 = vpop.f32.mrf.mxu0
        %v3826 = vadd.f32 0.0, %v3825
        %v3827 = vpop.f32.mrf.mxu0
        %3828 = vdwg.mxu0
        %v3829 = vadd.f32 %v3734, %v3821
        %v3830 = vadd.f32 %v3735, %v3826
        %v3831 = vld [vmem:[%s2] sm:$0x1]
        %v3833 = vlaneseq
        %v3834 = vshrl.u32 %v3833, 7
        %v3835 = vsub.s32 0, %v3834
        %v3836 = vrot.slane %v3831, %v3835
        %v3838 = vadd.f32 %v3829, %v3836
        %v3839 = vadd.f32 %v3830, %v3836
        %v3840 = vmax.f32 %v3838, 0.0
        %v3841 = vmax.f32 %v3839, 0.0
        %v3844 = vcombine.high %v3840, %v3840
        %v3845 = vcombine.high %v3841, %v3841
        %s3848 = scalar_lea.vmem [#allocation2], 256
        %3849 = vst.msk [vmem:[%s3848 + $0x8] sm:$0xf] %vm279, %v3840
        %3850 = vst.msk [vmem:[%s3848 + $0x18] sm:$0xf] %vm279, %v3844
        %3851 = vst.msk [vmem:[%s3848 + $0x28] sm:$0xf] %vm279, %v3841
        %3852 = vst.msk [vmem:[%s3848 + $0x38] sm:$0xf] %vm279, %v3845
        %v3853 = vld [vmem:[%s287 + $0x7] sm:$0xf]
        %v3854 = vld [vmem:[%s287 + $0x17] sm:$0xf]
        %v3855 = vld [vmem:[%s287 + $0x27] sm:$0xf]
        %v3856 = vld [vmem:[%s287 + $0x37] sm:$0xf]
        %v3857 = vld [vmem:[%s3] sm:$0xff]
        %v3858 = vld [vmem:[%s3 + $0x8] sm:$0xff]
        %v3859 = vld [vmem:[%s284 + $0x8] sm:$0xf]
        %v3860 = vld [vmem:[%s284 + $0x18] sm:$0xf]
        %v3861 = vld [vmem:[%s284 + $0x28] sm:$0xf]
        %v3862 = vld [vmem:[%s284 + $0x38] sm:$0xf]
        %s3863 = scalar_lea.vmem %s3, 16
        %v3864 = vld [vmem:[%s3863] sm:$0xff]
        %v3865 = vld [vmem:[%s3863 + $0x8] sm:$0xff]
        %v3870 = vcombine.low %v3859, %v3860
        %v3871 = vcombine.low %v3861, %v3862
        %v3872 = vsel %vm277, %v3870, 0
        %v3874 = vsel %vm277, %v3871, 0
        %3876 = vmatprep.subr.mxu0 0.0
        %3877 = vmatpush1.msra.mxu0 0.0
        %3878 = vmatprep.subr.mxu0 0.0
        %3879 = vmatpush1.msra.mxu0 0.0
        %3880 = vmatprep.subr.mxu0 0.0
        %3881 = vmatpush1.msra.mxu0 0.0
        %3882 = vmatprep.subr.mxu0 0.0
        %3883 = vmatpush1.msra.mxu0 0.0
        %3884 = vmatprep.subr.mxu0 0.0
        %3885 = vmatpush1.msra.mxu0 0.0
        %3886 = vmatprep.subr.mxu0 0.0
        %3887 = vmatpush1.msra.mxu0 0.0
        %3888 = vmatprep.subr.mxu0 0.0
        %3889 = vmatpush1.msra.mxu0 0.0
        %3890 = vmatprep.subr.mxu0 0.0
        %3891 = vmatpush1.msra.mxu0 0.0
        %3892 = vmatprep.subr.mxu0 0.0
        %3893 = vmatpush1.msra.mxu0 0.0
        %3894 = vmatprep.subr.mxu0 0.0
        %3895 = vmatpush1.msra.mxu0 0.0
        %3896 = vmatprep.subr.mxu0 0.0
        %3897 = vmatpush1.msra.mxu0 0.0
        %3898 = vmatprep.subr.mxu0 0.0
        %3899 = vmatpush1.msra.mxu0 0.0
        %3900 = vmatprep.subr.mxu0 0.0
        %3901 = vmatpush1.msra.mxu0 0.0
        %3902 = vmatprep.subr.mxu0 0.0
        %3903 = vmatpush1.msra.mxu0 0.0
        %3904 = vmatprep.subr.mxu0 0.0
        %3905 = vmatpush1.msra.mxu0 %v3865
        %3906 = vmatprep.subr.mxu0 0.0
        %3907 = vmatpush1.msra.mxu0 %v3864
        %3908 = vmatprep.subr.mxu0 0.0
        %3909 = vmatpush2.msra.mxu0 0.0
        %3910 = vmatprep.subr.mxu0 0.0
        %3911 = vmatpush2.msra.mxu0 0.0
        %3912 = vmatprep.subr.mxu0 0.0
        %3913 = vmatpush2.msra.mxu0 0.0
        %3914 = vmatprep.subr.mxu0 0.0
        %3915 = vmatpush2.msra.mxu0 0.0
        %3916 = vmatprep.subr.mxu0 0.0
        %3917 = vmatpush2.msra.mxu0 0.0
        %3918 = vmatprep.subr.mxu0 0.0
        %3919 = vmatpush2.msra.mxu0 0.0
        %3920 = vmatprep.subr.mxu0 0.0
        %3921 = vmatpush2.msra.mxu0 0.0
        %3922 = vmatprep.subr.mxu0 0.0
        %3923 = vmatpush2.msra.mxu0 0.0
        %3924 = vmatprep.subr.mxu0 0.0
        %3925 = vmatpush2.msra.mxu0 0.0
        %3926 = vmatprep.subr.mxu0 0.0
        %3927 = vmatpush2.msra.mxu0 0.0
        %3928 = vmatprep.subr.mxu0 0.0
        %3929 = vmatpush2.msra.mxu0 0.0
        %3930 = vmatprep.subr.mxu0 0.0
        %3931 = vmatpush2.msra.mxu0 0.0
        %3932 = vmatprep.subr.mxu0 0.0
        %3933 = vmatpush2.msra.mxu0 0.0
        %3934 = vmatprep.subr.mxu0 0.0
        %3935 = vmatpush2.msra.mxu0 0.0
        %3936 = vmatprep.subr.mxu0 0.0
        %3937 = vmatpush2.msra.mxu0 0.0
        %3938 = vmatprep.subr.mxu0 0.0
        %3939 = vmatpush2.msra.mxu0 0.0
        %3940 = vmatprep.mubr.f32.mxu0 0.0
        %3941 = vmatmul.mubr.f32.gmra.mxu0 %v3872
        %v3942 = vpop.f32.mrf.mxu0
        %v3943 = vadd.f32 0.0, %v3942
        %v3944 = vpop.f32.mrf.mxu0
        %3945 = vmatprep.mubr.f32.mxu0 0.0
        %3946 = vmatmul.mubr.f32.gmra.mxu0 %v3874
        %v3947 = vpop.f32.mrf.mxu0
        %v3948 = vadd.f32 0.0, %v3947
        %v3949 = vpop.f32.mrf.mxu0
        %3950 = vdwg.mxu0
        %v3955 = vcombine.low %v3853, %v3854
        %v3956 = vcombine.low %v3855, %v3856
        %v3957 = vsel %vm277, %v3955, 0
        %v3959 = vsel %vm277, %v3956, 0
        %3961 = vmatprep.subr.mxu0 0.0
        %3962 = vmatpush1.msra.mxu0 0.0
        %3963 = vmatprep.subr.mxu0 0.0
        %3964 = vmatpush1.msra.mxu0 0.0
        %3965 = vmatprep.subr.mxu0 0.0
        %3966 = vmatpush1.msra.mxu0 0.0
        %3967 = vmatprep.subr.mxu0 0.0
        %3968 = vmatpush1.msra.mxu0 0.0
        %3969 = vmatprep.subr.mxu0 0.0
        %3970 = vmatpush1.msra.mxu0 0.0
        %3971 = vmatprep.subr.mxu0 0.0
        %3972 = vmatpush1.msra.mxu0 0.0
        %3973 = vmatprep.subr.mxu0 0.0
        %3974 = vmatpush1.msra.mxu0 0.0
        %3975 = vmatprep.subr.mxu0 0.0
        %3976 = vmatpush1.msra.mxu0 0.0
        %3977 = vmatprep.subr.mxu0 0.0
        %3978 = vmatpush1.msra.mxu0 0.0
        %3979 = vmatprep.subr.mxu0 0.0
        %3980 = vmatpush1.msra.mxu0 0.0
        %3981 = vmatprep.subr.mxu0 0.0
        %3982 = vmatpush1.msra.mxu0 0.0
        %3983 = vmatprep.subr.mxu0 0.0
        %3984 = vmatpush1.msra.mxu0 0.0
        %3985 = vmatprep.subr.mxu0 0.0
        %3986 = vmatpush1.msra.mxu0 0.0
        %3987 = vmatprep.subr.mxu0 0.0
        %3988 = vmatpush1.msra.mxu0 0.0
        %3989 = vmatprep.subr.mxu0 0.0
        %3990 = vmatpush1.msra.mxu0 %v3858
        %3991 = vmatprep.subr.mxu0 0.0
        %3992 = vmatpush1.msra.mxu0 %v3857
        %3993 = vmatprep.subr.mxu0 0.0
        %3994 = vmatpush2.msra.mxu0 0.0
        %3995 = vmatprep.subr.mxu0 0.0
        %3996 = vmatpush2.msra.mxu0 0.0
        %3997 = vmatprep.subr.mxu0 0.0
        %3998 = vmatpush2.msra.mxu0 0.0
        %3999 = vmatprep.subr.mxu0 0.0
        %4000 = vmatpush2.msra.mxu0 0.0
        %4001 = vmatprep.subr.mxu0 0.0
        %4002 = vmatpush2.msra.mxu0 0.0
        %4003 = vmatprep.subr.mxu0 0.0
        %4004 = vmatpush2.msra.mxu0 0.0
        %4005 = vmatprep.subr.mxu0 0.0
        %4006 = vmatpush2.msra.mxu0 0.0
        %4007 = vmatprep.subr.mxu0 0.0
        %4008 = vmatpush2.msra.mxu0 0.0
        %4009 = vmatprep.subr.mxu0 0.0
        %4010 = vmatpush2.msra.mxu0 0.0
        %4011 = vmatprep.subr.mxu0 0.0
        %4012 = vmatpush2.msra.mxu0 0.0
        %4013 = vmatprep.subr.mxu0 0.0
        %4014 = vmatpush2.msra.mxu0 0.0
        %4015 = vmatprep.subr.mxu0 0.0
        %4016 = vmatpush2.msra.mxu0 0.0
        %4017 = vmatprep.subr.mxu0 0.0
        %4018 = vmatpush2.msra.mxu0 0.0
        %4019 = vmatprep.subr.mxu0 0.0
        %4020 = vmatpush2.msra.mxu0 0.0
        %4021 = vmatprep.subr.mxu0 0.0
        %4022 = vmatpush2.msra.mxu0 0.0
        %4023 = vmatprep.subr.mxu0 0.0
        %4024 = vmatpush2.msra.mxu0 0.0
        %4025 = vmatprep.mubr.f32.mxu0 0.0
        %4026 = vmatmul.mubr.f32.gmra.mxu0 %v3957
        %v4027 = vpop.f32.mrf.mxu0
        %v4028 = vadd.f32 %v3943, %v4027
        %v4029 = vpop.f32.mrf.mxu0
        %4030 = vmatprep.mubr.f32.mxu0 0.0
        %4031 = vmatmul.mubr.f32.gmra.mxu0 %v3959
        %v4032 = vpop.f32.mrf.mxu0
        %v4033 = vadd.f32 %v3948, %v4032
        %v4034 = vpop.f32.mrf.mxu0
        %4035 = vdwg.mxu0
        %v4036 = vld [vmem:[%s287 + $0x8] sm:$0xf]
        %v4037 = vld [vmem:[%s287 + $0x18] sm:$0xf]
        %v4038 = vld [vmem:[%s287 + $0x28] sm:$0xf]
        %v4039 = vld [vmem:[%s287 + $0x38] sm:$0xf]
        %s4040 = scalar_lea.vmem %s3, 32
        %v4041 = vld [vmem:[%s4040] sm:$0xff]
        %v4042 = vld [vmem:[%s4040 + $0x8] sm:$0xff]
        %v4047 = vcombine.low %v4036, %v4037
        %v4048 = vcombine.low %v4038, %v4039
        %v4049 = vsel %vm277, %v4047, 0
        %v4051 = vsel %vm277, %v4048, 0
        %4053 = vmatprep.subr.mxu0 0.0
        %4054 = vmatpush1.msra.mxu0 0.0
        %4055 = vmatprep.subr.mxu0 0.0
        %4056 = vmatpush1.msra.mxu0 0.0
        %4057 = vmatprep.subr.mxu0 0.0
        %4058 = vmatpush1.msra.mxu0 0.0
        %4059 = vmatprep.subr.mxu0 0.0
        %4060 = vmatpush1.msra.mxu0 0.0
        %4061 = vmatprep.subr.mxu0 0.0
        %4062 = vmatpush1.msra.mxu0 0.0
        %4063 = vmatprep.subr.mxu0 0.0
        %4064 = vmatpush1.msra.mxu0 0.0
        %4065 = vmatprep.subr.mxu0 0.0
        %4066 = vmatpush1.msra.mxu0 0.0
        %4067 = vmatprep.subr.mxu0 0.0
        %4068 = vmatpush1.msra.mxu0 0.0
        %4069 = vmatprep.subr.mxu0 0.0
        %4070 = vmatpush1.msra.mxu0 0.0
        %4071 = vmatprep.subr.mxu0 0.0
        %4072 = vmatpush1.msra.mxu0 0.0
        %4073 = vmatprep.subr.mxu0 0.0
        %4074 = vmatpush1.msra.mxu0 0.0
        %4075 = vmatprep.subr.mxu0 0.0
        %4076 = vmatpush1.msra.mxu0 0.0
        %4077 = vmatprep.subr.mxu0 0.0
        %4078 = vmatpush1.msra.mxu0 0.0
        %4079 = vmatprep.subr.mxu0 0.0
        %4080 = vmatpush1.msra.mxu0 0.0
        %4081 = vmatprep.subr.mxu0 0.0
        %4082 = vmatpush1.msra.mxu0 %v4042
        %4083 = vmatprep.subr.mxu0 0.0
        %4084 = vmatpush1.msra.mxu0 %v4041
        %4085 = vmatprep.subr.mxu0 0.0
        %4086 = vmatpush2.msra.mxu0 0.0
        %4087 = vmatprep.subr.mxu0 0.0
        %4088 = vmatpush2.msra.mxu0 0.0
        %4089 = vmatprep.subr.mxu0 0.0
        %4090 = vmatpush2.msra.mxu0 0.0
        %4091 = vmatprep.subr.mxu0 0.0
        %4092 = vmatpush2.msra.mxu0 0.0
        %4093 = vmatprep.subr.mxu0 0.0
        %4094 = vmatpush2.msra.mxu0 0.0
        %4095 = vmatprep.subr.mxu0 0.0
        %4096 = vmatpush2.msra.mxu0 0.0
        %4097 = vmatprep.subr.mxu0 0.0
        %4098 = vmatpush2.msra.mxu0 0.0
        %4099 = vmatprep.subr.mxu0 0.0
        %4100 = vmatpush2.msra.mxu0 0.0
        %4101 = vmatprep.subr.mxu0 0.0
        %4102 = vmatpush2.msra.mxu0 0.0
        %4103 = vmatprep.subr.mxu0 0.0
        %4104 = vmatpush2.msra.mxu0 0.0
        %4105 = vmatprep.subr.mxu0 0.0
        %4106 = vmatpush2.msra.mxu0 0.0
        %4107 = vmatprep.subr.mxu0 0.0
        %4108 = vmatpush2.msra.mxu0 0.0
        %4109 = vmatprep.subr.mxu0 0.0
        %4110 = vmatpush2.msra.mxu0 0.0
        %4111 = vmatprep.subr.mxu0 0.0
        %4112 = vmatpush2.msra.mxu0 0.0
        %4113 = vmatprep.subr.mxu0 0.0
        %4114 = vmatpush2.msra.mxu0 0.0
        %4115 = vmatprep.subr.mxu0 0.0
        %4116 = vmatpush2.msra.mxu0 0.0
        %4117 = vmatprep.mubr.f32.mxu0 0.0
        %4118 = vmatmul.mubr.f32.gmra.mxu0 %v4049
        %v4119 = vpop.f32.mrf.mxu0
        %v4120 = vadd.f32 0.0, %v4119
        %v4121 = vpop.f32.mrf.mxu0
        %4122 = vmatprep.mubr.f32.mxu0 0.0
        %4123 = vmatmul.mubr.f32.gmra.mxu0 %v4051
        %v4124 = vpop.f32.mrf.mxu0
        %v4125 = vadd.f32 0.0, %v4124
        %v4126 = vpop.f32.mrf.mxu0
        %4127 = vdwg.mxu0
        %v4128 = vadd.f32 %v4028, %v4120
        %v4129 = vadd.f32 %v4033, %v4125
        %v4130 = vld [vmem:[%s2094 + $0x7] sm:$0xf]
        %v4131 = vld [vmem:[%s2094 + $0x17] sm:$0xf]
        %v4132 = vld [vmem:[%s2094 + $0x27] sm:$0xf]
        %v4133 = vld [vmem:[%s2094 + $0x37] sm:$0xf]
        %s4134 = scalar_lea.vmem %s3, 48
        %v4135 = vld [vmem:[%s4134] sm:$0xff]
        %v4136 = vld [vmem:[%s4134 + $0x8] sm:$0xff]
        %v4141 = vcombine.low %v4130, %v4131
        %v4142 = vcombine.low %v4132, %v4133
        %v4143 = vsel %vm277, %v4141, 0
        %v4145 = vsel %vm277, %v4142, 0
        %4147 = vmatprep.subr.mxu0 0.0
        %4148 = vmatpush1.msra.mxu0 0.0
        %4149 = vmatprep.subr.mxu0 0.0
        %4150 = vmatpush1.msra.mxu0 0.0
        %4151 = vmatprep.subr.mxu0 0.0
        %4152 = vmatpush1.msra.mxu0 0.0
        %4153 = vmatprep.subr.mxu0 0.0
        %4154 = vmatpush1.msra.mxu0 0.0
        %4155 = vmatprep.subr.mxu0 0.0
        %4156 = vmatpush1.msra.mxu0 0.0
        %4157 = vmatprep.subr.mxu0 0.0
        %4158 = vmatpush1.msra.mxu0 0.0
        %4159 = vmatprep.subr.mxu0 0.0
        %4160 = vmatpush1.msra.mxu0 0.0
        %4161 = vmatprep.subr.mxu0 0.0
        %4162 = vmatpush1.msra.mxu0 0.0
        %4163 = vmatprep.subr.mxu0 0.0
        %4164 = vmatpush1.msra.mxu0 0.0
        %4165 = vmatprep.subr.mxu0 0.0
        %4166 = vmatpush1.msra.mxu0 0.0
        %4167 = vmatprep.subr.mxu0 0.0
        %4168 = vmatpush1.msra.mxu0 0.0
        %4169 = vmatprep.subr.mxu0 0.0
        %4170 = vmatpush1.msra.mxu0 0.0
        %4171 = vmatprep.subr.mxu0 0.0
        %4172 = vmatpush1.msra.mxu0 0.0
        %4173 = vmatprep.subr.mxu0 0.0
        %4174 = vmatpush1.msra.mxu0 0.0
        %4175 = vmatprep.subr.mxu0 0.0
        %4176 = vmatpush1.msra.mxu0 %v4136
        %4177 = vmatprep.subr.mxu0 0.0
        %4178 = vmatpush1.msra.mxu0 %v4135
        %4179 = vmatprep.subr.mxu0 0.0
        %4180 = vmatpush2.msra.mxu0 0.0
        %4181 = vmatprep.subr.mxu0 0.0
        %4182 = vmatpush2.msra.mxu0 0.0
        %4183 = vmatprep.subr.mxu0 0.0
        %4184 = vmatpush2.msra.mxu0 0.0
        %4185 = vmatprep.subr.mxu0 0.0
        %4186 = vmatpush2.msra.mxu0 0.0
        %4187 = vmatprep.subr.mxu0 0.0
        %4188 = vmatpush2.msra.mxu0 0.0
        %4189 = vmatprep.subr.mxu0 0.0
        %4190 = vmatpush2.msra.mxu0 0.0
        %4191 = vmatprep.subr.mxu0 0.0
        %4192 = vmatpush2.msra.mxu0 0.0
        %4193 = vmatprep.subr.mxu0 0.0
        %4194 = vmatpush2.msra.mxu0 0.0
        %4195 = vmatprep.subr.mxu0 0.0
        %4196 = vmatpush2.msra.mxu0 0.0
        %4197 = vmatprep.subr.mxu0 0.0
        %4198 = vmatpush2.msra.mxu0 0.0
        %4199 = vmatprep.subr.mxu0 0.0
        %4200 = vmatpush2.msra.mxu0 0.0
        %4201 = vmatprep.subr.mxu0 0.0
        %4202 = vmatpush2.msra.mxu0 0.0
        %4203 = vmatprep.subr.mxu0 0.0
        %4204 = vmatpush2.msra.mxu0 0.0
        %4205 = vmatprep.subr.mxu0 0.0
        %4206 = vmatpush2.msra.mxu0 0.0
        %4207 = vmatprep.subr.mxu0 0.0
        %4208 = vmatpush2.msra.mxu0 0.0
        %4209 = vmatprep.subr.mxu0 0.0
        %4210 = vmatpush2.msra.mxu0 0.0
        %4211 = vmatprep.mubr.f32.mxu0 0.0
        %4212 = vmatmul.mubr.f32.gmra.mxu0 %v4143
        %v4213 = vpop.f32.mrf.mxu0
        %v4214 = vadd.f32 0.0, %v4213
        %v4215 = vpop.f32.mrf.mxu0
        %4216 = vmatprep.mubr.f32.mxu0 0.0
        %4217 = vmatmul.mubr.f32.gmra.mxu0 %v4145
        %v4218 = vpop.f32.mrf.mxu0
        %v4219 = vadd.f32 0.0, %v4218
        %v4220 = vpop.f32.mrf.mxu0
        %4221 = vdwg.mxu0
        %v4222 = vadd.f32 %v4128, %v4214
        %v4223 = vadd.f32 %v4129, %v4219
        %v4224 = vld [vmem:[%s1218 + $0x8] sm:$0xf]
        %v4225 = vld [vmem:[%s1218 + $0x18] sm:$0xf]
        %v4226 = vld [vmem:[%s1218 + $0x28] sm:$0xf]
        %v4227 = vld [vmem:[%s1218 + $0x38] sm:$0xf]
        %s4228 = scalar_lea.vmem %s3, 64
        %v4229 = vld [vmem:[%s4228] sm:$0xff]
        %v4230 = vld [vmem:[%s4228 + $0x8] sm:$0xff]
        %v4235 = vcombine.low %v4224, %v4225
        %v4236 = vcombine.low %v4226, %v4227
        %v4237 = vsel %vm277, %v4235, 0
        %v4239 = vsel %vm277, %v4236, 0
        %4241 = vmatprep.subr.mxu0 0.0
        %4242 = vmatpush1.msra.mxu0 0.0
        %4243 = vmatprep.subr.mxu0 0.0
        %4244 = vmatpush1.msra.mxu0 0.0
        %4245 = vmatprep.subr.mxu0 0.0
        %4246 = vmatpush1.msra.mxu0 0.0
        %4247 = vmatprep.subr.mxu0 0.0
        %4248 = vmatpush1.msra.mxu0 0.0
        %4249 = vmatprep.subr.mxu0 0.0
        %4250 = vmatpush1.msra.mxu0 0.0
        %4251 = vmatprep.subr.mxu0 0.0
        %4252 = vmatpush1.msra.mxu0 0.0
        %4253 = vmatprep.subr.mxu0 0.0
        %4254 = vmatpush1.msra.mxu0 0.0
        %4255 = vmatprep.subr.mxu0 0.0
        %4256 = vmatpush1.msra.mxu0 0.0
        %4257 = vmatprep.subr.mxu0 0.0
        %4258 = vmatpush1.msra.mxu0 0.0
        %4259 = vmatprep.subr.mxu0 0.0
        %4260 = vmatpush1.msra.mxu0 0.0
        %4261 = vmatprep.subr.mxu0 0.0
        %4262 = vmatpush1.msra.mxu0 0.0
        %4263 = vmatprep.subr.mxu0 0.0
        %4264 = vmatpush1.msra.mxu0 0.0
        %4265 = vmatprep.subr.mxu0 0.0
        %4266 = vmatpush1.msra.mxu0 0.0
        %4267 = vmatprep.subr.mxu0 0.0
        %4268 = vmatpush1.msra.mxu0 0.0
        %4269 = vmatprep.subr.mxu0 0.0
        %4270 = vmatpush1.msra.mxu0 %v4230
        %4271 = vmatprep.subr.mxu0 0.0
        %4272 = vmatpush1.msra.mxu0 %v4229
        %4273 = vmatprep.subr.mxu0 0.0
        %4274 = vmatpush2.msra.mxu0 0.0
        %4275 = vmatprep.subr.mxu0 0.0
        %4276 = vmatpush2.msra.mxu0 0.0
        %4277 = vmatprep.subr.mxu0 0.0
        %4278 = vmatpush2.msra.mxu0 0.0
        %4279 = vmatprep.subr.mxu0 0.0
        %4280 = vmatpush2.msra.mxu0 0.0
        %4281 = vmatprep.subr.mxu0 0.0
        %4282 = vmatpush2.msra.mxu0 0.0
        %4283 = vmatprep.subr.mxu0 0.0
        %4284 = vmatpush2.msra.mxu0 0.0
        %4285 = vmatprep.subr.mxu0 0.0
        %4286 = vmatpush2.msra.mxu0 0.0
        %4287 = vmatprep.subr.mxu0 0.0
        %4288 = vmatpush2.msra.mxu0 0.0
        %4289 = vmatprep.subr.mxu0 0.0
        %4290 = vmatpush2.msra.mxu0 0.0
        %4291 = vmatprep.subr.mxu0 0.0
        %4292 = vmatpush2.msra.mxu0 0.0
        %4293 = vmatprep.subr.mxu0 0.0
        %4294 = vmatpush2.msra.mxu0 0.0
        %4295 = vmatprep.subr.mxu0 0.0
        %4296 = vmatpush2.msra.mxu0 0.0
        %4297 = vmatprep.subr.mxu0 0.0
        %4298 = vmatpush2.msra.mxu0 0.0
        %4299 = vmatprep.subr.mxu0 0.0
        %4300 = vmatpush2.msra.mxu0 0.0
        %4301 = vmatprep.subr.mxu0 0.0
        %4302 = vmatpush2.msra.mxu0 0.0
        %4303 = vmatprep.subr.mxu0 0.0
        %4304 = vmatpush2.msra.mxu0 0.0
        %4305 = vmatprep.mubr.f32.mxu0 0.0
        %4306 = vmatmul.mubr.f32.gmra.mxu0 %v4237
        %v4307 = vpop.f32.mrf.mxu0
        %v4308 = vadd.f32 0.0, %v4307
        %v4309 = vpop.f32.mrf.mxu0
        %4310 = vmatprep.mubr.f32.mxu0 0.0
        %4311 = vmatmul.mubr.f32.gmra.mxu0 %v4239
        %v4312 = vpop.f32.mrf.mxu0
        %v4313 = vadd.f32 0.0, %v4312
        %v4314 = vpop.f32.mrf.mxu0
        %4315 = vdwg.mxu0
        %v4316 = vadd.f32 %v4222, %v4308
        %v4317 = vadd.f32 %v4223, %v4313
        %v4318 = vld [vmem:[%s2094 + $0x8] sm:$0xf]
        %v4319 = vld [vmem:[%s2094 + $0x18] sm:$0xf]
        %v4320 = vld [vmem:[%s2094 + $0x28] sm:$0xf]
        %v4321 = vld [vmem:[%s2094 + $0x38] sm:$0xf]
        %s4322 = scalar_lea.vmem %s3, 80
        %v4323 = vld [vmem:[%s4322] sm:$0xff]
        %v4324 = vld [vmem:[%s4322 + $0x8] sm:$0xff]
        %v4329 = vcombine.low %v4318, %v4319
        %v4330 = vcombine.low %v4320, %v4321
        %v4331 = vsel %vm277, %v4329, 0
        %v4333 = vsel %vm277, %v4330, 0
        %4335 = vmatprep.subr.mxu0 0.0
        %4336 = vmatpush1.msra.mxu0 0.0
        %4337 = vmatprep.subr.mxu0 0.0
        %4338 = vmatpush1.msra.mxu0 0.0
        %4339 = vmatprep.subr.mxu0 0.0
        %4340 = vmatpush1.msra.mxu0 0.0
        %4341 = vmatprep.subr.mxu0 0.0
        %4342 = vmatpush1.msra.mxu0 0.0
        %4343 = vmatprep.subr.mxu0 0.0
        %4344 = vmatpush1.msra.mxu0 0.0
        %4345 = vmatprep.subr.mxu0 0.0
        %4346 = vmatpush1.msra.mxu0 0.0
        %4347 = vmatprep.subr.mxu0 0.0
        %4348 = vmatpush1.msra.mxu0 0.0
        %4349 = vmatprep.subr.mxu0 0.0
        %4350 = vmatpush1.msra.mxu0 0.0
        %4351 = vmatprep.subr.mxu0 0.0
        %4352 = vmatpush1.msra.mxu0 0.0
        %4353 = vmatprep.subr.mxu0 0.0
        %4354 = vmatpush1.msra.mxu0 0.0
        %4355 = vmatprep.subr.mxu0 0.0
        %4356 = vmatpush1.msra.mxu0 0.0
        %4357 = vmatprep.subr.mxu0 0.0
        %4358 = vmatpush1.msra.mxu0 0.0
        %4359 = vmatprep.subr.mxu0 0.0
        %4360 = vmatpush1.msra.mxu0 0.0
        %4361 = vmatprep.subr.mxu0 0.0
        %4362 = vmatpush1.msra.mxu0 0.0
        %4363 = vmatprep.subr.mxu0 0.0
        %4364 = vmatpush1.msra.mxu0 %v4324
        %4365 = vmatprep.subr.mxu0 0.0
        %4366 = vmatpush1.msra.mxu0 %v4323
        %4367 = vmatprep.subr.mxu0 0.0
        %4368 = vmatpush2.msra.mxu0 0.0
        %4369 = vmatprep.subr.mxu0 0.0
        %4370 = vmatpush2.msra.mxu0 0.0
        %4371 = vmatprep.subr.mxu0 0.0
        %4372 = vmatpush2.msra.mxu0 0.0
        %4373 = vmatprep.subr.mxu0 0.0
        %4374 = vmatpush2.msra.mxu0 0.0
        %4375 = vmatprep.subr.mxu0 0.0
        %4376 = vmatpush2.msra.mxu0 0.0
        %4377 = vmatprep.subr.mxu0 0.0
        %4378 = vmatpush2.msra.mxu0 0.0
        %4379 = vmatprep.subr.mxu0 0.0
        %4380 = vmatpush2.msra.mxu0 0.0
        %4381 = vmatprep.subr.mxu0 0.0
        %4382 = vmatpush2.msra.mxu0 0.0
        %4383 = vmatprep.subr.mxu0 0.0
        %4384 = vmatpush2.msra.mxu0 0.0
        %4385 = vmatprep.subr.mxu0 0.0
        %4386 = vmatpush2.msra.mxu0 0.0
        %4387 = vmatprep.subr.mxu0 0.0
        %4388 = vmatpush2.msra.mxu0 0.0
        %4389 = vmatprep.subr.mxu0 0.0
        %4390 = vmatpush2.msra.mxu0 0.0
        %4391 = vmatprep.subr.mxu0 0.0
        %4392 = vmatpush2.msra.mxu0 0.0
        %4393 = vmatprep.subr.mxu0 0.0
        %4394 = vmatpush2.msra.mxu0 0.0
        %4395 = vmatprep.subr.mxu0 0.0
        %4396 = vmatpush2.msra.mxu0 0.0
        %4397 = vmatprep.subr.mxu0 0.0
        %4398 = vmatpush2.msra.mxu0 0.0
        %4399 = vmatprep.mubr.f32.mxu0 0.0
        %4400 = vmatmul.mubr.f32.gmra.mxu0 %v4331
        %v4401 = vpop.f32.mrf.mxu0
        %v4402 = vadd.f32 0.0, %v4401
        %v4403 = vpop.f32.mrf.mxu0
        %4404 = vmatprep.mubr.f32.mxu0 0.0
        %4405 = vmatmul.mubr.f32.gmra.mxu0 %v4333
        %v4406 = vpop.f32.mrf.mxu0
        %v4407 = vadd.f32 0.0, %v4406
        %v4408 = vpop.f32.mrf.mxu0
        %4409 = vdwg.mxu0
        %v4410 = vadd.f32 %v4316, %v4402
        %v4411 = vadd.f32 %v4317, %v4407
        %v4412 = vld [vmem:[%s3848 + $0x7] sm:$0xf]
        %v4413 = vld [vmem:[%s3848 + $0x17] sm:$0xf]
        %v4414 = vld [vmem:[%s3848 + $0x27] sm:$0xf]
        %v4415 = vld [vmem:[%s3848 + $0x37] sm:$0xf]
        %s4416 = scalar_lea.vmem %s3, 96
        %v4417 = vld [vmem:[%s4416] sm:$0xff]
        %v4418 = vld [vmem:[%s4416 + $0x8] sm:$0xff]
        %v4423 = vcombine.low %v4412, %v4413
        %v4424 = vcombine.low %v4414, %v4415
        %v4425 = vsel %vm277, %v4423, 0
        %v4427 = vsel %vm277, %v4424, 0
        %4429 = vmatprep.subr.mxu0 0.0
        %4430 = vmatpush1.msra.mxu0 0.0
        %4431 = vmatprep.subr.mxu0 0.0
        %4432 = vmatpush1.msra.mxu0 0.0
        %4433 = vmatprep.subr.mxu0 0.0
        %4434 = vmatpush1.msra.mxu0 0.0
        %4435 = vmatprep.subr.mxu0 0.0
        %4436 = vmatpush1.msra.mxu0 0.0
        %4437 = vmatprep.subr.mxu0 0.0
        %4438 = vmatpush1.msra.mxu0 0.0
        %4439 = vmatprep.subr.mxu0 0.0
        %4440 = vmatpush1.msra.mxu0 0.0
        %4441 = vmatprep.subr.mxu0 0.0
        %4442 = vmatpush1.msra.mxu0 0.0
        %4443 = vmatprep.subr.mxu0 0.0
        %4444 = vmatpush1.msra.mxu0 0.0
        %4445 = vmatprep.subr.mxu0 0.0
        %4446 = vmatpush1.msra.mxu0 0.0
        %4447 = vmatprep.subr.mxu0 0.0
        %4448 = vmatpush1.msra.mxu0 0.0
        %4449 = vmatprep.subr.mxu0 0.0
        %4450 = vmatpush1.msra.mxu0 0.0
        %4451 = vmatprep.subr.mxu0 0.0
        %4452 = vmatpush1.msra.mxu0 0.0
        %4453 = vmatprep.subr.mxu0 0.0
        %4454 = vmatpush1.msra.mxu0 0.0
        %4455 = vmatprep.subr.mxu0 0.0
        %4456 = vmatpush1.msra.mxu0 0.0
        %4457 = vmatprep.subr.mxu0 0.0
        %4458 = vmatpush1.msra.mxu0 %v4418
        %4459 = vmatprep.subr.mxu0 0.0
        %4460 = vmatpush1.msra.mxu0 %v4417
        %4461 = vmatprep.subr.mxu0 0.0
        %4462 = vmatpush2.msra.mxu0 0.0
        %4463 = vmatprep.subr.mxu0 0.0
        %4464 = vmatpush2.msra.mxu0 0.0
        %4465 = vmatprep.subr.mxu0 0.0
        %4466 = vmatpush2.msra.mxu0 0.0
        %4467 = vmatprep.subr.mxu0 0.0
        %4468 = vmatpush2.msra.mxu0 0.0
        %4469 = vmatprep.subr.mxu0 0.0
        %4470 = vmatpush2.msra.mxu0 0.0
        %4471 = vmatprep.subr.mxu0 0.0
        %4472 = vmatpush2.msra.mxu0 0.0
        %4473 = vmatprep.subr.mxu0 0.0
        %4474 = vmatpush2.msra.mxu0 0.0
        %4475 = vmatprep.subr.mxu0 0.0
        %4476 = vmatpush2.msra.mxu0 0.0
        %4477 = vmatprep.subr.mxu0 0.0
        %4478 = vmatpush2.msra.mxu0 0.0
        %4479 = vmatprep.subr.mxu0 0.0
        %4480 = vmatpush2.msra.mxu0 0.0
        %4481 = vmatprep.subr.mxu0 0.0
        %4482 = vmatpush2.msra.mxu0 0.0
        %4483 = vmatprep.subr.mxu0 0.0
        %4484 = vmatpush2.msra.mxu0 0.0
        %4485 = vmatprep.subr.mxu0 0.0
        %4486 = vmatpush2.msra.mxu0 0.0
        %4487 = vmatprep.subr.mxu0 0.0
        %4488 = vmatpush2.msra.mxu0 0.0
        %4489 = vmatprep.subr.mxu0 0.0
        %4490 = vmatpush2.msra.mxu0 0.0
        %4491 = vmatprep.subr.mxu0 0.0
        %4492 = vmatpush2.msra.mxu0 0.0
        %4493 = vmatprep.mubr.f32.mxu0 0.0
        %4494 = vmatmul.mubr.f32.gmra.mxu0 %v4425
        %v4495 = vpop.f32.mrf.mxu0
        %v4496 = vadd.f32 0.0, %v4495
        %v4497 = vpop.f32.mrf.mxu0
        %4498 = vmatprep.mubr.f32.mxu0 0.0
        %4499 = vmatmul.mubr.f32.gmra.mxu0 %v4427
        %v4500 = vpop.f32.mrf.mxu0
        %v4501 = vadd.f32 0.0, %v4500
        %v4502 = vpop.f32.mrf.mxu0
        %4503 = vdwg.mxu0
        %v4504 = vadd.f32 %v4410, %v4496
        %v4505 = vadd.f32 %v4411, %v4501
        %v4506 = vld [vmem:[%s2973 + $0x8] sm:$0xf]
        %v4507 = vld [vmem:[%s2973 + $0x18] sm:$0xf]
        %v4508 = vld [vmem:[%s2973 + $0x28] sm:$0xf]
        %v4509 = vld [vmem:[%s2973 + $0x38] sm:$0xf]
        %s4510 = scalar_lea.vmem %s3, 112
        %v4511 = vld [vmem:[%s4510] sm:$0xff]
        %v4512 = vld [vmem:[%s4510 + $0x8] sm:$0xff]
        %v4517 = vcombine.low %v4506, %v4507
        %v4518 = vcombine.low %v4508, %v4509
        %v4519 = vsel %vm277, %v4517, 0
        %v4521 = vsel %vm277, %v4518, 0
        %4523 = vmatprep.subr.mxu0 0.0
        %4524 = vmatpush1.msra.mxu0 0.0
        %4525 = vmatprep.subr.mxu0 0.0
        %4526 = vmatpush1.msra.mxu0 0.0
        %4527 = vmatprep.subr.mxu0 0.0
        %4528 = vmatpush1.msra.mxu0 0.0
        %4529 = vmatprep.subr.mxu0 0.0
        %4530 = vmatpush1.msra.mxu0 0.0
        %4531 = vmatprep.subr.mxu0 0.0
        %4532 = vmatpush1.msra.mxu0 0.0
        %4533 = vmatprep.subr.mxu0 0.0
        %4534 = vmatpush1.msra.mxu0 0.0
        %4535 = vmatprep.subr.mxu0 0.0
        %4536 = vmatpush1.msra.mxu0 0.0
        %4537 = vmatprep.subr.mxu0 0.0
        %4538 = vmatpush1.msra.mxu0 0.0
        %4539 = vmatprep.subr.mxu0 0.0
        %4540 = vmatpush1.msra.mxu0 0.0
        %4541 = vmatprep.subr.mxu0 0.0
        %4542 = vmatpush1.msra.mxu0 0.0
        %4543 = vmatprep.subr.mxu0 0.0
        %4544 = vmatpush1.msra.mxu0 0.0
        %4545 = vmatprep.subr.mxu0 0.0
        %4546 = vmatpush1.msra.mxu0 0.0
        %4547 = vmatprep.subr.mxu0 0.0
        %4548 = vmatpush1.msra.mxu0 0.0
        %4549 = vmatprep.subr.mxu0 0.0
        %4550 = vmatpush1.msra.mxu0 0.0
        %4551 = vmatprep.subr.mxu0 0.0
        %4552 = vmatpush1.msra.mxu0 %v4512
        %4553 = vmatprep.subr.mxu0 0.0
        %4554 = vmatpush1.msra.mxu0 %v4511
        %4555 = vmatprep.subr.mxu0 0.0
        %4556 = vmatpush2.msra.mxu0 0.0
        %4557 = vmatprep.subr.mxu0 0.0
        %4558 = vmatpush2.msra.mxu0 0.0
        %4559 = vmatprep.subr.mxu0 0.0
        %4560 = vmatpush2.msra.mxu0 0.0
        %4561 = vmatprep.subr.mxu0 0.0
        %4562 = vmatpush2.msra.mxu0 0.0
        %4563 = vmatprep.subr.mxu0 0.0
        %4564 = vmatpush2.msra.mxu0 0.0
        %4565 = vmatprep.subr.mxu0 0.0
        %4566 = vmatpush2.msra.mxu0 0.0
        %4567 = vmatprep.subr.mxu0 0.0
        %4568 = vmatpush2.msra.mxu0 0.0
        %4569 = vmatprep.subr.mxu0 0.0
        %4570 = vmatpush2.msra.mxu0 0.0
        %4571 = vmatprep.subr.mxu0 0.0
        %4572 = vmatpush2.msra.mxu0 0.0
        %4573 = vmatprep.subr.mxu0 0.0
        %4574 = vmatpush2.msra.mxu0 0.0
        %4575 = vmatprep.subr.mxu0 0.0
        %4576 = vmatpush2.msra.mxu0 0.0
        %4577 = vmatprep.subr.mxu0 0.0
        %4578 = vmatpush2.msra.mxu0 0.0
        %4579 = vmatprep.subr.mxu0 0.0
        %4580 = vmatpush2.msra.mxu0 0.0
        %4581 = vmatprep.subr.mxu0 0.0
        %4582 = vmatpush2.msra.mxu0 0.0
        %4583 = vmatprep.subr.mxu0 0.0
        %4584 = vmatpush2.msra.mxu0 0.0
        %4585 = vmatprep.subr.mxu0 0.0
        %4586 = vmatpush2.msra.mxu0 0.0
        %4587 = vmatprep.mubr.f32.mxu0 0.0
        %4588 = vmatmul.mubr.f32.gmra.mxu0 %v4519
        %v4589 = vpop.f32.mrf.mxu0
        %v4590 = vadd.f32 0.0, %v4589
        %v4591 = vpop.f32.mrf.mxu0
        %4592 = vmatprep.mubr.f32.mxu0 0.0
        %4593 = vmatmul.mubr.f32.gmra.mxu0 %v4521
        %v4594 = vpop.f32.mrf.mxu0
        %v4595 = vadd.f32 0.0, %v4594
        %v4596 = vpop.f32.mrf.mxu0
        %4597 = vdwg.mxu0
        %v4598 = vadd.f32 %v4504, %v4590
        %v4599 = vadd.f32 %v4505, %v4595
        %v4600 = vld [vmem:[%s3848 + $0x8] sm:$0xf]
        %v4601 = vld [vmem:[%s3848 + $0x18] sm:$0xf]
        %v4602 = vld [vmem:[%s3848 + $0x28] sm:$0xf]
        %v4603 = vld [vmem:[%s3848 + $0x38] sm:$0xf]
        %s4604 = scalar_lea.vmem %s3, 128
        %v4605 = vld [vmem:[%s4604] sm:$0xff]
        %v4606 = vld [vmem:[%s4604 + $0x8] sm:$0xff]
        %v4611 = vcombine.low %v4600, %v4601
        %v4612 = vcombine.low %v4602, %v4603
        %v4613 = vsel %vm277, %v4611, 0
        %v4615 = vsel %vm277, %v4612, 0
        %4617 = vmatprep.subr.mxu0 0.0
        %4618 = vmatpush1.msra.mxu0 0.0
        %4619 = vmatprep.subr.mxu0 0.0
        %4620 = vmatpush1.msra.mxu0 0.0
        %4621 = vmatprep.subr.mxu0 0.0
        %4622 = vmatpush1.msra.mxu0 0.0
        %4623 = vmatprep.subr.mxu0 0.0
        %4624 = vmatpush1.msra.mxu0 0.0
        %4625 = vmatprep.subr.mxu0 0.0
        %4626 = vmatpush1.msra.mxu0 0.0
        %4627 = vmatprep.subr.mxu0 0.0
        %4628 = vmatpush1.msra.mxu0 0.0
        %4629 = vmatprep.subr.mxu0 0.0
        %4630 = vmatpush1.msra.mxu0 0.0
        %4631 = vmatprep.subr.mxu0 0.0
        %4632 = vmatpush1.msra.mxu0 0.0
        %4633 = vmatprep.subr.mxu0 0.0
        %4634 = vmatpush1.msra.mxu0 0.0
        %4635 = vmatprep.subr.mxu0 0.0
        %4636 = vmatpush1.msra.mxu0 0.0
        %4637 = vmatprep.subr.mxu0 0.0
        %4638 = vmatpush1.msra.mxu0 0.0
        %4639 = vmatprep.subr.mxu0 0.0
        %4640 = vmatpush1.msra.mxu0 0.0
        %4641 = vmatprep.subr.mxu0 0.0
        %4642 = vmatpush1.msra.mxu0 0.0
        %4643 = vmatprep.subr.mxu0 0.0
        %4644 = vmatpush1.msra.mxu0 0.0
        %4645 = vmatprep.subr.mxu0 0.0
        %4646 = vmatpush1.msra.mxu0 %v4606
        %4647 = vmatprep.subr.mxu0 0.0
        %4648 = vmatpush1.msra.mxu0 %v4605
        %4649 = vmatprep.subr.mxu0 0.0
        %4650 = vmatpush2.msra.mxu0 0.0
        %4651 = vmatprep.subr.mxu0 0.0
        %4652 = vmatpush2.msra.mxu0 0.0
        %4653 = vmatprep.subr.mxu0 0.0
        %4654 = vmatpush2.msra.mxu0 0.0
        %4655 = vmatprep.subr.mxu0 0.0
        %4656 = vmatpush2.msra.mxu0 0.0
        %4657 = vmatprep.subr.mxu0 0.0
        %4658 = vmatpush2.msra.mxu0 0.0
        %4659 = vmatprep.subr.mxu0 0.0
        %4660 = vmatpush2.msra.mxu0 0.0
        %4661 = vmatprep.subr.mxu0 0.0
        %4662 = vmatpush2.msra.mxu0 0.0
        %4663 = vmatprep.subr.mxu0 0.0
        %4664 = vmatpush2.msra.mxu0 0.0
        %4665 = vmatprep.subr.mxu0 0.0
        %4666 = vmatpush2.msra.mxu0 0.0
        %4667 = vmatprep.subr.mxu0 0.0
        %4668 = vmatpush2.msra.mxu0 0.0
        %4669 = vmatprep.subr.mxu0 0.0
        %4670 = vmatpush2.msra.mxu0 0.0
        %4671 = vmatprep.subr.mxu0 0.0
        %4672 = vmatpush2.msra.mxu0 0.0
        %4673 = vmatprep.subr.mxu0 0.0
        %4674 = vmatpush2.msra.mxu0 0.0
        %4675 = vmatprep.subr.mxu0 0.0
        %4676 = vmatpush2.msra.mxu0 0.0
        %4677 = vmatprep.subr.mxu0 0.0
        %4678 = vmatpush2.msra.mxu0 0.0
        %4679 = vmatprep.subr.mxu0 0.0
        %4680 = vmatpush2.msra.mxu0 0.0
        %4681 = vmatprep.mubr.f32.mxu0 0.0
        %4682 = vmatmul.mubr.f32.gmra.mxu0 %v4613
        %v4683 = vpop.f32.mrf.mxu0
        %v4684 = vadd.f32 0.0, %v4683
        %v4685 = vpop.f32.mrf.mxu0
        %4686 = vmatprep.mubr.f32.mxu0 0.0
        %4687 = vmatmul.mubr.f32.gmra.mxu0 %v4615
        %v4688 = vpop.f32.mrf.mxu0
        %v4689 = vadd.f32 0.0, %v4688
        %v4690 = vpop.f32.mrf.mxu0
        %4691 = vdwg.mxu0
        %v4692 = vadd.f32 %v4598, %v4684
        %v4693 = vadd.f32 %v4599, %v4689
        %v4694 = vld [vmem:[%s4] sm:$0x1]
        %v4696 = vlaneseq
        %v4697 = vshrl.u32 %v4696, 7
        %v4698 = vsub.s32 0, %v4697
        %v4699 = vrot.slane %v4694, %v4698
        %v4701 = vadd.f32 %v4692, %v4699
        %v4702 = vadd.f32 %v4693, %v4699
        %v4703 = vmax.f32 %v4701, 0.0
        %v4704 = vmax.f32 %v4702, 0.0
        %v4707 = vcombine.high %v4703, %v4703
        %v4708 = vcombine.high %v4704, %v4704
        %s4711 = scalar_lea.vmem [#allocation3], 16
        %vm4712 = vcmask 257024
        %4713 = vst.msk [vmem:[%s4711 + $0x8] sm:$0xf] %vm4712, %v4703
        %4714 = vst.msk [vmem:[%s4711 + $0x18] sm:$0xf] %vm4712, %v4707
        %4715 = vst.msk [vmem:[%s4711 + $0x28] sm:$0xf] %vm4712, %v4704
        %4716 = vst.msk [vmem:[%s4711 + $0x38] sm:$0xf] %vm4712, %v4708
        %v4717 = vld [vmem:[#allocation3 + $0x7] sm:$0xf]
        %v4718 = vld [vmem:[#allocation3 + $0x17] sm:$0xf]
        %v4719 = vld [vmem:[#allocation3 + $0x27] sm:$0xf]
        %v4720 = vld [vmem:[#allocation3 + $0x37] sm:$0xf]
        %v4721 = vld [vmem:[%s5] sm:$0xff]
        %v4722 = vld [vmem:[%s5 + $0x8] sm:$0xff]
        %v4723 = vld [vmem:[%s5 + $0x10] sm:$0xff]
        %v4724 = vld [vmem:[%s5 + $0x18] sm:$0xff]
        %v4725 = vld [vmem:[#allocation3 + $0x8] sm:$0xf]
        %v4726 = vld [vmem:[#allocation3 + $0x18] sm:$0xf]
        %v4727 = vld [vmem:[#allocation3 + $0x28] sm:$0xf]
        %v4728 = vld [vmem:[#allocation3 + $0x38] sm:$0xf]
        %s4729 = scalar_lea.vmem %s5, 32
        %v4730 = vld [vmem:[%s4729] sm:$0xff]
        %v4731 = vld [vmem:[%s4729 + $0x8] sm:$0xff]
        %v4732 = vld [vmem:[%s4729 + $0x10] sm:$0xff]
        %v4733 = vld [vmem:[%s4729 + $0x18] sm:$0xff]
        %v4738 = vcombine.low %v4725, %v4726
        %v4739 = vcombine.low %v4727, %v4728
        %v4740 = vsel %vm311, %v4738, 0
        %v4742 = vsel %vm311, %v4739, 0
        %4744 = vmatprep.subr.mxu0 0.0
        %4745 = vmatpush1.msra.mxu0 0.0
        %4746 = vmatprep.subr.mxu0 0.0
        %4747 = vmatpush1.msra.mxu0 0.0
        %4748 = vmatprep.subr.mxu0 0.0
        %4749 = vmatpush1.msra.mxu0 0.0
        %4750 = vmatprep.subr.mxu0 0.0
        %4751 = vmatpush1.msra.mxu0 0.0
        %4752 = vmatprep.subr.mxu0 0.0
        %4753 = vmatpush1.msra.mxu0 0.0
        %4754 = vmatprep.subr.mxu0 0.0
        %4755 = vmatpush1.msra.mxu0 0.0
        %4756 = vmatprep.subr.mxu0 0.0
        %4757 = vmatpush1.msra.mxu0 0.0
        %4758 = vmatprep.subr.mxu0 0.0
        %4759 = vmatpush1.msra.mxu0 0.0
        %4760 = vmatprep.subr.mxu0 0.0
        %4761 = vmatpush1.msra.mxu0 0.0
        %4762 = vmatprep.subr.mxu0 0.0
        %4763 = vmatpush1.msra.mxu0 0.0
        %4764 = vmatprep.subr.mxu0 0.0
        %4765 = vmatpush1.msra.mxu0 0.0
        %4766 = vmatprep.subr.mxu0 0.0
        %4767 = vmatpush1.msra.mxu0 0.0
        %4768 = vmatprep.subr.mxu0 0.0
        %4769 = vmatpush1.msra.mxu0 %v4733
        %4770 = vmatprep.subr.mxu0 0.0
        %4771 = vmatpush1.msra.mxu0 %v4732
        %4772 = vmatprep.subr.mxu0 0.0
        %4773 = vmatpush1.msra.mxu0 %v4731
        %4774 = vmatprep.subr.mxu0 0.0
        %4775 = vmatpush1.msra.mxu0 %v4730
        %4776 = vmatprep.subr.mxu0 0.0
        %4777 = vmatpush2.msra.mxu0 0.0
        %4778 = vmatprep.subr.mxu0 0.0
        %4779 = vmatpush2.msra.mxu0 0.0
        %4780 = vmatprep.subr.mxu0 0.0
        %4781 = vmatpush2.msra.mxu0 0.0
        %4782 = vmatprep.subr.mxu0 0.0
        %4783 = vmatpush2.msra.mxu0 0.0
        %4784 = vmatprep.subr.mxu0 0.0
        %4785 = vmatpush2.msra.mxu0 0.0
        %4786 = vmatprep.subr.mxu0 0.0
        %4787 = vmatpush2.msra.mxu0 0.0
        %4788 = vmatprep.subr.mxu0 0.0
        %4789 = vmatpush2.msra.mxu0 0.0
        %4790 = vmatprep.subr.mxu0 0.0
        %4791 = vmatpush2.msra.mxu0 0.0
        %4792 = vmatprep.subr.mxu0 0.0
        %4793 = vmatpush2.msra.mxu0 0.0
        %4794 = vmatprep.subr.mxu0 0.0
        %4795 = vmatpush2.msra.mxu0 0.0
        %4796 = vmatprep.subr.mxu0 0.0
        %4797 = vmatpush2.msra.mxu0 0.0
        %4798 = vmatprep.subr.mxu0 0.0
        %4799 = vmatpush2.msra.mxu0 0.0
        %4800 = vmatprep.subr.mxu0 0.0
        %4801 = vmatpush2.msra.mxu0 0.0
        %4802 = vmatprep.subr.mxu0 0.0
        %4803 = vmatpush2.msra.mxu0 0.0
        %4804 = vmatprep.subr.mxu0 0.0
        %4805 = vmatpush2.msra.mxu0 0.0
        %4806 = vmatprep.subr.mxu0 0.0
        %4807 = vmatpush2.msra.mxu0 0.0
        %4808 = vmatprep.mubr.f32.mxu0 0.0
        %4809 = vmatmul.mubr.f32.gmra.mxu0 %v4740
        %v4810 = vpop.f32.mrf.mxu0
        %v4811 = vadd.f32 0.0, %v4810
        %v4812 = vpop.f32.mrf.mxu0
        %4813 = vmatprep.mubr.f32.mxu0 0.0
        %4814 = vmatmul.mubr.f32.gmra.mxu0 %v4742
        %v4815 = vpop.f32.mrf.mxu0
        %v4816 = vadd.f32 0.0, %v4815
        %v4817 = vpop.f32.mrf.mxu0
        %4818 = vdwg.mxu0
        %v4823 = vcombine.low %v4717, %v4718
        %v4824 = vcombine.low %v4719, %v4720
        %v4825 = vsel %vm311, %v4823, 0
        %v4827 = vsel %vm311, %v4824, 0
        %4829 = vmatprep.subr.mxu0 0.0
        %4830 = vmatpush1.msra.mxu0 0.0
        %4831 = vmatprep.subr.mxu0 0.0
        %4832 = vmatpush1.msra.mxu0 0.0
        %4833 = vmatprep.subr.mxu0 0.0
        %4834 = vmatpush1.msra.mxu0 0.0
        %4835 = vmatprep.subr.mxu0 0.0
        %4836 = vmatpush1.msra.mxu0 0.0
        %4837 = vmatprep.subr.mxu0 0.0
        %4838 = vmatpush1.msra.mxu0 0.0
        %4839 = vmatprep.subr.mxu0 0.0
        %4840 = vmatpush1.msra.mxu0 0.0
        %4841 = vmatprep.subr.mxu0 0.0
        %4842 = vmatpush1.msra.mxu0 0.0
        %4843 = vmatprep.subr.mxu0 0.0
        %4844 = vmatpush1.msra.mxu0 0.0
        %4845 = vmatprep.subr.mxu0 0.0
        %4846 = vmatpush1.msra.mxu0 0.0
        %4847 = vmatprep.subr.mxu0 0.0
        %4848 = vmatpush1.msra.mxu0 0.0
        %4849 = vmatprep.subr.mxu0 0.0
        %4850 = vmatpush1.msra.mxu0 0.0
        %4851 = vmatprep.subr.mxu0 0.0
        %4852 = vmatpush1.msra.mxu0 0.0
        %4853 = vmatprep.subr.mxu0 0.0
        %4854 = vmatpush1.msra.mxu0 %v4724
        %4855 = vmatprep.subr.mxu0 0.0
        %4856 = vmatpush1.msra.mxu0 %v4723
        %4857 = vmatprep.subr.mxu0 0.0
        %4858 = vmatpush1.msra.mxu0 %v4722
        %4859 = vmatprep.subr.mxu0 0.0
        %4860 = vmatpush1.msra.mxu0 %v4721
        %4861 = vmatprep.subr.mxu0 0.0
        %4862 = vmatpush2.msra.mxu0 0.0
        %4863 = vmatprep.subr.mxu0 0.0
        %4864 = vmatpush2.msra.mxu0 0.0
        %4865 = vmatprep.subr.mxu0 0.0
        %4866 = vmatpush2.msra.mxu0 0.0
        %4867 = vmatprep.subr.mxu0 0.0
        %4868 = vmatpush2.msra.mxu0 0.0
        %4869 = vmatprep.subr.mxu0 0.0
        %4870 = vmatpush2.msra.mxu0 0.0
        %4871 = vmatprep.subr.mxu0 0.0
        %4872 = vmatpush2.msra.mxu0 0.0
        %4873 = vmatprep.subr.mxu0 0.0
        %4874 = vmatpush2.msra.mxu0 0.0
        %4875 = vmatprep.subr.mxu0 0.0
        %4876 = vmatpush2.msra.mxu0 0.0
        %4877 = vmatprep.subr.mxu0 0.0
        %4878 = vmatpush2.msra.mxu0 0.0
        %4879 = vmatprep.subr.mxu0 0.0
        %4880 = vmatpush2.msra.mxu0 0.0
        %4881 = vmatprep.subr.mxu0 0.0
        %4882 = vmatpush2.msra.mxu0 0.0
        %4883 = vmatprep.subr.mxu0 0.0
        %4884 = vmatpush2.msra.mxu0 0.0
        %4885 = vmatprep.subr.mxu0 0.0
        %4886 = vmatpush2.msra.mxu0 0.0
        %4887 = vmatprep.subr.mxu0 0.0
        %4888 = vmatpush2.msra.mxu0 0.0
        %4889 = vmatprep.subr.mxu0 0.0
        %4890 = vmatpush2.msra.mxu0 0.0
        %4891 = vmatprep.subr.mxu0 0.0
        %4892 = vmatpush2.msra.mxu0 0.0
        %4893 = vmatprep.mubr.f32.mxu0 0.0
        %4894 = vmatmul.mubr.f32.gmra.mxu0 %v4825
        %v4895 = vpop.f32.mrf.mxu0
        %v4896 = vadd.f32 %v4811, %v4895
        %v4897 = vpop.f32.mrf.mxu0
        %4898 = vmatprep.mubr.f32.mxu0 0.0
        %4899 = vmatmul.mubr.f32.gmra.mxu0 %v4827
        %v4900 = vpop.f32.mrf.mxu0
        %v4901 = vadd.f32 %v4816, %v4900
        %v4902 = vpop.f32.mrf.mxu0
        %4903 = vdwg.mxu0
        %v4904 = vld [vmem:[#allocation3 + $0x9] sm:$0xf]
        %v4905 = vld [vmem:[#allocation3 + $0x19] sm:$0xf]
        %v4906 = vld [vmem:[#allocation3 + $0x29] sm:$0xf]
        %v4907 = vld [vmem:[#allocation3 + $0x39] sm:$0xf]
        %s4908 = scalar_lea.vmem %s5, 64
        %v4909 = vld [vmem:[%s4908] sm:$0xff]
        %v4910 = vld [vmem:[%s4908 + $0x8] sm:$0xff]
        %v4911 = vld [vmem:[%s4908 + $0x10] sm:$0xff]
        %v4912 = vld [vmem:[%s4908 + $0x18] sm:$0xff]
        %v4917 = vcombine.low %v4904, %v4905
        %v4918 = vcombine.low %v4906, %v4907
        %v4919 = vsel %vm311, %v4917, 0
        %v4921 = vsel %vm311, %v4918, 0
        %4923 = vmatprep.subr.mxu0 0.0
        %4924 = vmatpush1.msra.mxu0 0.0
        %4925 = vmatprep.subr.mxu0 0.0
        %4926 = vmatpush1.msra.mxu0 0.0
        %4927 = vmatprep.subr.mxu0 0.0
        %4928 = vmatpush1.msra.mxu0 0.0
        %4929 = vmatprep.subr.mxu0 0.0
        %4930 = vmatpush1.msra.mxu0 0.0
        %4931 = vmatprep.subr.mxu0 0.0
        %4932 = vmatpush1.msra.mxu0 0.0
        %4933 = vmatprep.subr.mxu0 0.0
        %4934 = vmatpush1.msra.mxu0 0.0
        %4935 = vmatprep.subr.mxu0 0.0
        %4936 = vmatpush1.msra.mxu0 0.0
        %4937 = vmatprep.subr.mxu0 0.0
        %4938 = vmatpush1.msra.mxu0 0.0
        %4939 = vmatprep.subr.mxu0 0.0
        %4940 = vmatpush1.msra.mxu0 0.0
        %4941 = vmatprep.subr.mxu0 0.0
        %4942 = vmatpush1.msra.mxu0 0.0
        %4943 = vmatprep.subr.mxu0 0.0
        %4944 = vmatpush1.msra.mxu0 0.0
        %4945 = vmatprep.subr.mxu0 0.0
        %4946 = vmatpush1.msra.mxu0 0.0
        %4947 = vmatprep.subr.mxu0 0.0
        %4948 = vmatpush1.msra.mxu0 %v4912
        %4949 = vmatprep.subr.mxu0 0.0
        %4950 = vmatpush1.msra.mxu0 %v4911
        %4951 = vmatprep.subr.mxu0 0.0
        %4952 = vmatpush1.msra.mxu0 %v4910
        %4953 = vmatprep.subr.mxu0 0.0
        %4954 = vmatpush1.msra.mxu0 %v4909
        %4955 = vmatprep.subr.mxu0 0.0
        %4956 = vmatpush2.msra.mxu0 0.0
        %4957 = vmatprep.subr.mxu0 0.0
        %4958 = vmatpush2.msra.mxu0 0.0
        %4959 = vmatprep.subr.mxu0 0.0
        %4960 = vmatpush2.msra.mxu0 0.0
        %4961 = vmatprep.subr.mxu0 0.0
        %4962 = vmatpush2.msra.mxu0 0.0
        %4963 = vmatprep.subr.mxu0 0.0
        %4964 = vmatpush2.msra.mxu0 0.0
        %4965 = vmatprep.subr.mxu0 0.0
        %4966 = vmatpush2.msra.mxu0 0.0
        %4967 = vmatprep.subr.mxu0 0.0
        %4968 = vmatpush2.msra.mxu0 0.0
        %4969 = vmatprep.subr.mxu0 0.0
        %4970 = vmatpush2.msra.mxu0 0.0
        %4971 = vmatprep.subr.mxu0 0.0
        %4972 = vmatpush2.msra.mxu0 0.0
        %4973 = vmatprep.subr.mxu0 0.0
        %4974 = vmatpush2.msra.mxu0 0.0
        %4975 = vmatprep.subr.mxu0 0.0
        %4976 = vmatpush2.msra.mxu0 0.0
        %4977 = vmatprep.subr.mxu0 0.0
        %4978 = vmatpush2.msra.mxu0 0.0
        %4979 = vmatprep.subr.mxu0 0.0
        %4980 = vmatpush2.msra.mxu0 0.0
        %4981 = vmatprep.subr.mxu0 0.0
        %4982 = vmatpush2.msra.mxu0 0.0
        %4983 = vmatprep.subr.mxu0 0.0
        %4984 = vmatpush2.msra.mxu0 0.0
        %4985 = vmatprep.subr.mxu0 0.0
        %4986 = vmatpush2.msra.mxu0 0.0
        %4987 = vmatprep.mubr.f32.mxu0 0.0
        %4988 = vmatmul.mubr.f32.gmra.mxu0 %v4919
        %v4989 = vpop.f32.mrf.mxu0
        %v4990 = vadd.f32 0.0, %v4989
        %v4991 = vpop.f32.mrf.mxu0
        %4992 = vmatprep.mubr.f32.mxu0 0.0
        %4993 = vmatmul.mubr.f32.gmra.mxu0 %v4921
        %v4994 = vpop.f32.mrf.mxu0
        %v4995 = vadd.f32 0.0, %v4994
        %v4996 = vpop.f32.mrf.mxu0
        %4997 = vdwg.mxu0
        %v4998 = vadd.f32 %v4896, %v4990
        %v4999 = vadd.f32 %v4901, %v4995
        %v5000 = vld [vmem:[%s4711 + $0x7] sm:$0xf]
        %v5001 = vld [vmem:[%s4711 + $0x17] sm:$0xf]
        %v5002 = vld [vmem:[%s4711 + $0x27] sm:$0xf]
        %v5003 = vld [vmem:[%s4711 + $0x37] sm:$0xf]
        %s5004 = scalar_lea.vmem %s5, 96
        %v5005 = vld [vmem:[%s5004] sm:$0xff]
        %v5006 = vld [vmem:[%s5004 + $0x8] sm:$0xff]
        %v5007 = vld [vmem:[%s5004 + $0x10] sm:$0xff]
        %v5008 = vld [vmem:[%s5004 + $0x18] sm:$0xff]
        %v5013 = vcombine.low %v5000, %v5001
        %v5014 = vcombine.low %v5002, %v5003
        %v5015 = vsel %vm311, %v5013, 0
        %v5017 = vsel %vm311, %v5014, 0
        %5019 = vmatprep.subr.mxu0 0.0
        %5020 = vmatpush1.msra.mxu0 0.0
        %5021 = vmatprep.subr.mxu0 0.0
        %5022 = vmatpush1.msra.mxu0 0.0
        %5023 = vmatprep.subr.mxu0 0.0
        %5024 = vmatpush1.msra.mxu0 0.0
        %5025 = vmatprep.subr.mxu0 0.0
        %5026 = vmatpush1.msra.mxu0 0.0
        %5027 = vmatprep.subr.mxu0 0.0
        %5028 = vmatpush1.msra.mxu0 0.0
        %5029 = vmatprep.subr.mxu0 0.0
        %5030 = vmatpush1.msra.mxu0 0.0
        %5031 = vmatprep.subr.mxu0 0.0
        %5032 = vmatpush1.msra.mxu0 0.0
        %5033 = vmatprep.subr.mxu0 0.0
        %5034 = vmatpush1.msra.mxu0 0.0
        %5035 = vmatprep.subr.mxu0 0.0
        %5036 = vmatpush1.msra.mxu0 0.0
        %5037 = vmatprep.subr.mxu0 0.0
        %5038 = vmatpush1.msra.mxu0 0.0
        %5039 = vmatprep.subr.mxu0 0.0
        %5040 = vmatpush1.msra.mxu0 0.0
        %5041 = vmatprep.subr.mxu0 0.0
        %5042 = vmatpush1.msra.mxu0 0.0
        %5043 = vmatprep.subr.mxu0 0.0
        %5044 = vmatpush1.msra.mxu0 %v5008
        %5045 = vmatprep.subr.mxu0 0.0
        %5046 = vmatpush1.msra.mxu0 %v5007
        %5047 = vmatprep.subr.mxu0 0.0
        %5048 = vmatpush1.msra.mxu0 %v5006
        %5049 = vmatprep.subr.mxu0 0.0
        %5050 = vmatpush1.msra.mxu0 %v5005
        %5051 = vmatprep.subr.mxu0 0.0
        %5052 = vmatpush2.msra.mxu0 0.0
        %5053 = vmatprep.subr.mxu0 0.0
        %5054 = vmatpush2.msra.mxu0 0.0
        %5055 = vmatprep.subr.mxu0 0.0
        %5056 = vmatpush2.msra.mxu0 0.0
        %5057 = vmatprep.subr.mxu0 0.0
        %5058 = vmatpush2.msra.mxu0 0.0
        %5059 = vmatprep.subr.mxu0 0.0
        %5060 = vmatpush2.msra.mxu0 0.0
        %5061 = vmatprep.subr.mxu0 0.0
        %5062 = vmatpush2.msra.mxu0 0.0
        %5063 = vmatprep.subr.mxu0 0.0
        %5064 = vmatpush2.msra.mxu0 0.0
        %5065 = vmatprep.subr.mxu0 0.0
        %5066 = vmatpush2.msra.mxu0 0.0
        %5067 = vmatprep.subr.mxu0 0.0
        %5068 = vmatpush2.msra.mxu0 0.0
        %5069 = vmatprep.subr.mxu0 0.0
        %5070 = vmatpush2.msra.mxu0 0.0
        %5071 = vmatprep.subr.mxu0 0.0
        %5072 = vmatpush2.msra.mxu0 0.0
        %5073 = vmatprep.subr.mxu0 0.0
        %5074 = vmatpush2.msra.mxu0 0.0
        %5075 = vmatprep.subr.mxu0 0.0
        %5076 = vmatpush2.msra.mxu0 0.0
        %5077 = vmatprep.subr.mxu0 0.0
        %5078 = vmatpush2.msra.mxu0 0.0
        %5079 = vmatprep.subr.mxu0 0.0
        %5080 = vmatpush2.msra.mxu0 0.0
        %5081 = vmatprep.subr.mxu0 0.0
        %5082 = vmatpush2.msra.mxu0 0.0
        %5083 = vmatprep.mubr.f32.mxu0 0.0
        %5084 = vmatmul.mubr.f32.gmra.mxu0 %v5015
        %v5085 = vpop.f32.mrf.mxu0
        %v5086 = vadd.f32 0.0, %v5085
        %v5087 = vpop.f32.mrf.mxu0
        %5088 = vmatprep.mubr.f32.mxu0 0.0
        %5089 = vmatmul.mubr.f32.gmra.mxu0 %v5017
        %v5090 = vpop.f32.mrf.mxu0
        %v5091 = vadd.f32 0.0, %v5090
        %v5092 = vpop.f32.mrf.mxu0
        %5093 = vdwg.mxu0
        %v5094 = vadd.f32 %v4998, %v5086
        %v5095 = vadd.f32 %v4999, %v5091
        %v5096 = vld [vmem:[%s4711 + $0x8] sm:$0xf]
        %v5097 = vld [vmem:[%s4711 + $0x18] sm:$0xf]
        %v5098 = vld [vmem:[%s4711 + $0x28] sm:$0xf]
        %v5099 = vld [vmem:[%s4711 + $0x38] sm:$0xf]
        %s5100 = scalar_lea.vmem %s5, 128
        %v5101 = vld [vmem:[%s5100] sm:$0xff]
        %v5102 = vld [vmem:[%s5100 + $0x8] sm:$0xff]
        %v5103 = vld [vmem:[%s5100 + $0x10] sm:$0xff]
        %v5104 = vld [vmem:[%s5100 + $0x18] sm:$0xff]
        %v5109 = vcombine.low %v5096, %v5097
        %v5110 = vcombine.low %v5098, %v5099
        %v5111 = vsel %vm311, %v5109, 0
        %v5113 = vsel %vm311, %v5110, 0
        %5115 = vmatprep.subr.mxu0 0.0
        %5116 = vmatpush1.msra.mxu0 0.0
        %5117 = vmatprep.subr.mxu0 0.0
        %5118 = vmatpush1.msra.mxu0 0.0
        %5119 = vmatprep.subr.mxu0 0.0
        %5120 = vmatpush1.msra.mxu0 0.0
        %5121 = vmatprep.subr.mxu0 0.0
        %5122 = vmatpush1.msra.mxu0 0.0
        %5123 = vmatprep.subr.mxu0 0.0
        %5124 = vmatpush1.msra.mxu0 0.0
        %5125 = vmatprep.subr.mxu0 0.0
        %5126 = vmatpush1.msra.mxu0 0.0
        %5127 = vmatprep.subr.mxu0 0.0
        %5128 = vmatpush1.msra.mxu0 0.0
        %5129 = vmatprep.subr.mxu0 0.0
        %5130 = vmatpush1.msra.mxu0 0.0
        %5131 = vmatprep.subr.mxu0 0.0
        %5132 = vmatpush1.msra.mxu0 0.0
        %5133 = vmatprep.subr.mxu0 0.0
        %5134 = vmatpush1.msra.mxu0 0.0
        %5135 = vmatprep.subr.mxu0 0.0
        %5136 = vmatpush1.msra.mxu0 0.0
        %5137 = vmatprep.subr.mxu0 0.0
        %5138 = vmatpush1.msra.mxu0 0.0
        %5139 = vmatprep.subr.mxu0 0.0
        %5140 = vmatpush1.msra.mxu0 %v5104
        %5141 = vmatprep.subr.mxu0 0.0
        %5142 = vmatpush1.msra.mxu0 %v5103
        %5143 = vmatprep.subr.mxu0 0.0
        %5144 = vmatpush1.msra.mxu0 %v5102
        %5145 = vmatprep.subr.mxu0 0.0
        %5146 = vmatpush1.msra.mxu0 %v5101
        %5147 = vmatprep.subr.mxu0 0.0
        %5148 = vmatpush2.msra.mxu0 0.0
        %5149 = vmatprep.subr.mxu0 0.0
        %5150 = vmatpush2.msra.mxu0 0.0
        %5151 = vmatprep.subr.mxu0 0.0
        %5152 = vmatpush2.msra.mxu0 0.0
        %5153 = vmatprep.subr.mxu0 0.0
        %5154 = vmatpush2.msra.mxu0 0.0
        %5155 = vmatprep.subr.mxu0 0.0
        %5156 = vmatpush2.msra.mxu0 0.0
        %5157 = vmatprep.subr.mxu0 0.0
        %5158 = vmatpush2.msra.mxu0 0.0
        %5159 = vmatprep.subr.mxu0 0.0
        %5160 = vmatpush2.msra.mxu0 0.0
        %5161 = vmatprep.subr.mxu0 0.0
        %5162 = vmatpush2.msra.mxu0 0.0
        %5163 = vmatprep.subr.mxu0 0.0
        %5164 = vmatpush2.msra.mxu0 0.0
        %5165 = vmatprep.subr.mxu0 0.0
        %5166 = vmatpush2.msra.mxu0 0.0
        %5167 = vmatprep.subr.mxu0 0.0
        %5168 = vmatpush2.msra.mxu0 0.0
        %5169 = vmatprep.subr.mxu0 0.0
        %5170 = vmatpush2.msra.mxu0 0.0
        %5171 = vmatprep.subr.mxu0 0.0
        %5172 = vmatpush2.msra.mxu0 0.0
        %5173 = vmatprep.subr.mxu0 0.0
        %5174 = vmatpush2.msra.mxu0 0.0
        %5175 = vmatprep.subr.mxu0 0.0
        %5176 = vmatpush2.msra.mxu0 0.0
        %5177 = vmatprep.subr.mxu0 0.0
        %5178 = vmatpush2.msra.mxu0 0.0
        %5179 = vmatprep.mubr.f32.mxu0 0.0
        %5180 = vmatmul.mubr.f32.gmra.mxu0 %v5111
        %v5181 = vpop.f32.mrf.mxu0
        %v5182 = vadd.f32 0.0, %v5181
        %v5183 = vpop.f32.mrf.mxu0
        %5184 = vmatprep.mubr.f32.mxu0 0.0
        %5185 = vmatmul.mubr.f32.gmra.mxu0 %v5113
        %v5186 = vpop.f32.mrf.mxu0
        %v5187 = vadd.f32 0.0, %v5186
        %v5188 = vpop.f32.mrf.mxu0
        %5189 = vdwg.mxu0
        %v5190 = vadd.f32 %v5094, %v5182
        %v5191 = vadd.f32 %v5095, %v5187
        %v5192 = vld [vmem:[%s4711 + $0x9] sm:$0xf]
        %v5193 = vld [vmem:[%s4711 + $0x19] sm:$0xf]
        %v5194 = vld [vmem:[%s4711 + $0x29] sm:$0xf]
        %v5195 = vld [vmem:[%s4711 + $0x39] sm:$0xf]
        %s5196 = scalar_lea.vmem %s5, 160
        %v5197 = vld [vmem:[%s5196] sm:$0xff]
        %v5198 = vld [vmem:[%s5196 + $0x8] sm:$0xff]
        %v5199 = vld [vmem:[%s5196 + $0x10] sm:$0xff]
        %v5200 = vld [vmem:[%s5196 + $0x18] sm:$0xff]
        %v5205 = vcombine.low %v5192, %v5193
        %v5206 = vcombine.low %v5194, %v5195
        %v5207 = vsel %vm311, %v5205, 0
        %v5209 = vsel %vm311, %v5206, 0
        %5211 = vmatprep.subr.mxu0 0.0
        %5212 = vmatpush1.msra.mxu0 0.0
        %5213 = vmatprep.subr.mxu0 0.0
        %5214 = vmatpush1.msra.mxu0 0.0
        %5215 = vmatprep.subr.mxu0 0.0
        %5216 = vmatpush1.msra.mxu0 0.0
        %5217 = vmatprep.subr.mxu0 0.0
        %5218 = vmatpush1.msra.mxu0 0.0
        %5219 = vmatprep.subr.mxu0 0.0
        %5220 = vmatpush1.msra.mxu0 0.0
        %5221 = vmatprep.subr.mxu0 0.0
        %5222 = vmatpush1.msra.mxu0 0.0
        %5223 = vmatprep.subr.mxu0 0.0
        %5224 = vmatpush1.msra.mxu0 0.0
        %5225 = vmatprep.subr.mxu0 0.0
        %5226 = vmatpush1.msra.mxu0 0.0
        %5227 = vmatprep.subr.mxu0 0.0
        %5228 = vmatpush1.msra.mxu0 0.0
        %5229 = vmatprep.subr.mxu0 0.0
        %5230 = vmatpush1.msra.mxu0 0.0
        %5231 = vmatprep.subr.mxu0 0.0
        %5232 = vmatpush1.msra.mxu0 0.0
        %5233 = vmatprep.subr.mxu0 0.0
        %5234 = vmatpush1.msra.mxu0 0.0
        %5235 = vmatprep.subr.mxu0 0.0
        %5236 = vmatpush1.msra.mxu0 %v5200
        %5237 = vmatprep.subr.mxu0 0.0
        %5238 = vmatpush1.msra.mxu0 %v5199
        %5239 = vmatprep.subr.mxu0 0.0
        %5240 = vmatpush1.msra.mxu0 %v5198
        %5241 = vmatprep.subr.mxu0 0.0
        %5242 = vmatpush1.msra.mxu0 %v5197
        %5243 = vmatprep.subr.mxu0 0.0
        %5244 = vmatpush2.msra.mxu0 0.0
        %5245 = vmatprep.subr.mxu0 0.0
        %5246 = vmatpush2.msra.mxu0 0.0
        %5247 = vmatprep.subr.mxu0 0.0
        %5248 = vmatpush2.msra.mxu0 0.0
        %5249 = vmatprep.subr.mxu0 0.0
        %5250 = vmatpush2.msra.mxu0 0.0
        %5251 = vmatprep.subr.mxu0 0.0
        %5252 = vmatpush2.msra.mxu0 0.0
        %5253 = vmatprep.subr.mxu0 0.0
        %5254 = vmatpush2.msra.mxu0 0.0
        %5255 = vmatprep.subr.mxu0 0.0
        %5256 = vmatpush2.msra.mxu0 0.0
        %5257 = vmatprep.subr.mxu0 0.0
        %5258 = vmatpush2.msra.mxu0 0.0
        %5259 = vmatprep.subr.mxu0 0.0
        %5260 = vmatpush2.msra.mxu0 0.0
        %5261 = vmatprep.subr.mxu0 0.0
        %5262 = vmatpush2.msra.mxu0 0.0
        %5263 = vmatprep.subr.mxu0 0.0
        %5264 = vmatpush2.msra.mxu0 0.0
        %5265 = vmatprep.subr.mxu0 0.0
        %5266 = vmatpush2.msra.mxu0 0.0
        %5267 = vmatprep.subr.mxu0 0.0
        %5268 = vmatpush2.msra.mxu0 0.0
        %5269 = vmatprep.subr.mxu0 0.0
        %5270 = vmatpush2.msra.mxu0 0.0
        %5271 = vmatprep.subr.mxu0 0.0
        %5272 = vmatpush2.msra.mxu0 0.0
        %5273 = vmatprep.subr.mxu0 0.0
        %5274 = vmatpush2.msra.mxu0 0.0
        %5275 = vmatprep.mubr.f32.mxu0 0.0
        %5276 = vmatmul.mubr.f32.gmra.mxu0 %v5207
        %v5277 = vpop.f32.mrf.mxu0
        %v5278 = vadd.f32 0.0, %v5277
        %v5279 = vpop.f32.mrf.mxu0
        %5280 = vmatprep.mubr.f32.mxu0 0.0
        %5281 = vmatmul.mubr.f32.gmra.mxu0 %v5209
        %v5282 = vpop.f32.mrf.mxu0
        %v5283 = vadd.f32 0.0, %v5282
        %v5284 = vpop.f32.mrf.mxu0
        %5285 = vdwg.mxu0
        %v5286 = vadd.f32 %v5190, %v5278
        %v5287 = vadd.f32 %v5191, %v5283
        %s5288 = scalar_lea.vmem [#allocation3], 32
        %v5289 = vld [vmem:[%s5288 + $0x7] sm:$0xf]
        %v5290 = vld [vmem:[%s5288 + $0x17] sm:$0xf]
        %v5291 = vld [vmem:[%s5288 + $0x27] sm:$0xf]
        %v5292 = vld [vmem:[%s5288 + $0x37] sm:$0xf]
        %s5293 = scalar_lea.vmem %s5, 192
        %v5294 = vld [vmem:[%s5293] sm:$0xff]
        %v5295 = vld [vmem:[%s5293 + $0x8] sm:$0xff]
        %v5296 = vld [vmem:[%s5293 + $0x10] sm:$0xff]
        %v5297 = vld [vmem:[%s5293 + $0x18] sm:$0xff]
        %v5302 = vcombine.low %v5289, %v5290
        %v5303 = vcombine.low %v5291, %v5292
        %v5304 = vsel %vm311, %v5302, 0
        %v5306 = vsel %vm311, %v5303, 0
        %5308 = vmatprep.subr.mxu0 0.0
        %5309 = vmatpush1.msra.mxu0 0.0
        %5310 = vmatprep.subr.mxu0 0.0
        %5311 = vmatpush1.msra.mxu0 0.0
        %5312 = vmatprep.subr.mxu0 0.0
        %5313 = vmatpush1.msra.mxu0 0.0
        %5314 = vmatprep.subr.mxu0 0.0
        %5315 = vmatpush1.msra.mxu0 0.0
        %5316 = vmatprep.subr.mxu0 0.0
        %5317 = vmatpush1.msra.mxu0 0.0
        %5318 = vmatprep.subr.mxu0 0.0
        %5319 = vmatpush1.msra.mxu0 0.0
        %5320 = vmatprep.subr.mxu0 0.0
        %5321 = vmatpush1.msra.mxu0 0.0
        %5322 = vmatprep.subr.mxu0 0.0
        %5323 = vmatpush1.msra.mxu0 0.0
        %5324 = vmatprep.subr.mxu0 0.0
        %5325 = vmatpush1.msra.mxu0 0.0
        %5326 = vmatprep.subr.mxu0 0.0
        %5327 = vmatpush1.msra.mxu0 0.0
        %5328 = vmatprep.subr.mxu0 0.0
        %5329 = vmatpush1.msra.mxu0 0.0
        %5330 = vmatprep.subr.mxu0 0.0
        %5331 = vmatpush1.msra.mxu0 0.0
        %5332 = vmatprep.subr.mxu0 0.0
        %5333 = vmatpush1.msra.mxu0 %v5297
        %5334 = vmatprep.subr.mxu0 0.0
        %5335 = vmatpush1.msra.mxu0 %v5296
        %5336 = vmatprep.subr.mxu0 0.0
        %5337 = vmatpush1.msra.mxu0 %v5295
        %5338 = vmatprep.subr.mxu0 0.0
        %5339 = vmatpush1.msra.mxu0 %v5294
        %5340 = vmatprep.subr.mxu0 0.0
        %5341 = vmatpush2.msra.mxu0 0.0
        %5342 = vmatprep.subr.mxu0 0.0
        %5343 = vmatpush2.msra.mxu0 0.0
        %5344 = vmatprep.subr.mxu0 0.0
        %5345 = vmatpush2.msra.mxu0 0.0
        %5346 = vmatprep.subr.mxu0 0.0
        %5347 = vmatpush2.msra.mxu0 0.0
        %5348 = vmatprep.subr.mxu0 0.0
        %5349 = vmatpush2.msra.mxu0 0.0
        %5350 = vmatprep.subr.mxu0 0.0
        %5351 = vmatpush2.msra.mxu0 0.0
        %5352 = vmatprep.subr.mxu0 0.0
        %5353 = vmatpush2.msra.mxu0 0.0
        %5354 = vmatprep.subr.mxu0 0.0
        %5355 = vmatpush2.msra.mxu0 0.0
        %5356 = vmatprep.subr.mxu0 0.0
        %5357 = vmatpush2.msra.mxu0 0.0
        %5358 = vmatprep.subr.mxu0 0.0
        %5359 = vmatpush2.msra.mxu0 0.0
        %5360 = vmatprep.subr.mxu0 0.0
        %5361 = vmatpush2.msra.mxu0 0.0
        %5362 = vmatprep.subr.mxu0 0.0
        %5363 = vmatpush2.msra.mxu0 0.0
        %5364 = vmatprep.subr.mxu0 0.0
        %5365 = vmatpush2.msra.mxu0 0.0
        %5366 = vmatprep.subr.mxu0 0.0
        %5367 = vmatpush2.msra.mxu0 0.0
        %5368 = vmatprep.subr.mxu0 0.0
        %5369 = vmatpush2.msra.mxu0 0.0
        %5370 = vmatprep.subr.mxu0 0.0
        %5371 = vmatpush2.msra.mxu0 0.0
        %5372 = vmatprep.mubr.f32.mxu0 0.0
        %5373 = vmatmul.mubr.f32.gmra.mxu0 %v5304
        %v5374 = vpop.f32.mrf.mxu0
        %v5375 = vadd.f32 0.0, %v5374
        %v5376 = vpop.f32.mrf.mxu0
        %5377 = vmatprep.mubr.f32.mxu0 0.0
        %5378 = vmatmul.mubr.f32.gmra.mxu0 %v5306
        %v5379 = vpop.f32.mrf.mxu0
        %v5380 = vadd.f32 0.0, %v5379
        %v5381 = vpop.f32.mrf.mxu0
        %5382 = vdwg.mxu0
        %v5383 = vadd.f32 %v5286, %v5375
        %v5384 = vadd.f32 %v5287, %v5380
        %v5385 = vld [vmem:[%s5288 + $0x8] sm:$0xf]
        %v5386 = vld [vmem:[%s5288 + $0x18] sm:$0xf]
        %v5387 = vld [vmem:[%s5288 + $0x28] sm:$0xf]
        %v5388 = vld [vmem:[%s5288 + $0x38] sm:$0xf]
        %s5389 = scalar_lea.vmem %s5, 224
        %v5390 = vld [vmem:[%s5389] sm:$0xff]
        %v5391 = vld [vmem:[%s5389 + $0x8] sm:$0xff]
        %v5392 = vld [vmem:[%s5389 + $0x10] sm:$0xff]
        %v5393 = vld [vmem:[%s5389 + $0x18] sm:$0xff]
        %v5398 = vcombine.low %v5385, %v5386
        %v5399 = vcombine.low %v5387, %v5388
        %v5400 = vsel %vm311, %v5398, 0
        %v5402 = vsel %vm311, %v5399, 0
        %5404 = vmatprep.subr.mxu0 0.0
        %5405 = vmatpush1.msra.mxu0 0.0
        %5406 = vmatprep.subr.mxu0 0.0
        %5407 = vmatpush1.msra.mxu0 0.0
        %5408 = vmatprep.subr.mxu0 0.0
        %5409 = vmatpush1.msra.mxu0 0.0
        %5410 = vmatprep.subr.mxu0 0.0
        %5411 = vmatpush1.msra.mxu0 0.0
        %5412 = vmatprep.subr.mxu0 0.0
        %5413 = vmatpush1.msra.mxu0 0.0
        %5414 = vmatprep.subr.mxu0 0.0
        %5415 = vmatpush1.msra.mxu0 0.0
        %5416 = vmatprep.subr.mxu0 0.0
        %5417 = vmatpush1.msra.mxu0 0.0
        %5418 = vmatprep.subr.mxu0 0.0
        %5419 = vmatpush1.msra.mxu0 0.0
        %5420 = vmatprep.subr.mxu0 0.0
        %5421 = vmatpush1.msra.mxu0 0.0
        %5422 = vmatprep.subr.mxu0 0.0
        %5423 = vmatpush1.msra.mxu0 0.0
        %5424 = vmatprep.subr.mxu0 0.0
        %5425 = vmatpush1.msra.mxu0 0.0
        %5426 = vmatprep.subr.mxu0 0.0
        %5427 = vmatpush1.msra.mxu0 0.0
        %5428 = vmatprep.subr.mxu0 0.0
        %5429 = vmatpush1.msra.mxu0 %v5393
        %5430 = vmatprep.subr.mxu0 0.0
        %5431 = vmatpush1.msra.mxu0 %v5392
        %5432 = vmatprep.subr.mxu0 0.0
        %5433 = vmatpush1.msra.mxu0 %v5391
        %5434 = vmatprep.subr.mxu0 0.0
        %5435 = vmatpush1.msra.mxu0 %v5390
        %5436 = vmatprep.subr.mxu0 0.0
        %5437 = vmatpush2.msra.mxu0 0.0
        %5438 = vmatprep.subr.mxu0 0.0
        %5439 = vmatpush2.msra.mxu0 0.0
        %5440 = vmatprep.subr.mxu0 0.0
        %5441 = vmatpush2.msra.mxu0 0.0
        %5442 = vmatprep.subr.mxu0 0.0
        %5443 = vmatpush2.msra.mxu0 0.0
        %5444 = vmatprep.subr.mxu0 0.0
        %5445 = vmatpush2.msra.mxu0 0.0
        %5446 = vmatprep.subr.mxu0 0.0
        %5447 = vmatpush2.msra.mxu0 0.0
        %5448 = vmatprep.subr.mxu0 0.0
        %5449 = vmatpush2.msra.mxu0 0.0
        %5450 = vmatprep.subr.mxu0 0.0
        %5451 = vmatpush2.msra.mxu0 0.0
        %5452 = vmatprep.subr.mxu0 0.0
        %5453 = vmatpush2.msra.mxu0 0.0
        %5454 = vmatprep.subr.mxu0 0.0
        %5455 = vmatpush2.msra.mxu0 0.0
        %5456 = vmatprep.subr.mxu0 0.0
        %5457 = vmatpush2.msra.mxu0 0.0
        %5458 = vmatprep.subr.mxu0 0.0
        %5459 = vmatpush2.msra.mxu0 0.0
        %5460 = vmatprep.subr.mxu0 0.0
        %5461 = vmatpush2.msra.mxu0 0.0
        %5462 = vmatprep.subr.mxu0 0.0
        %5463 = vmatpush2.msra.mxu0 0.0
        %5464 = vmatprep.subr.mxu0 0.0
        %5465 = vmatpush2.msra.mxu0 0.0
        %5466 = vmatprep.subr.mxu0 0.0
        %5467 = vmatpush2.msra.mxu0 0.0
        %5468 = vmatprep.mubr.f32.mxu0 0.0
        %5469 = vmatmul.mubr.f32.gmra.mxu0 %v5400
        %v5470 = vpop.f32.mrf.mxu0
        %v5471 = vadd.f32 0.0, %v5470
        %v5472 = vpop.f32.mrf.mxu0
        %5473 = vmatprep.mubr.f32.mxu0 0.0
        %5474 = vmatmul.mubr.f32.gmra.mxu0 %v5402
        %v5475 = vpop.f32.mrf.mxu0
        %v5476 = vadd.f32 0.0, %v5475
        %v5477 = vpop.f32.mrf.mxu0
        %5478 = vdwg.mxu0
        %v5479 = vadd.f32 %v5383, %v5471
        %v5480 = vadd.f32 %v5384, %v5476
        %v5481 = vld [vmem:[%s5288 + $0x9] sm:$0xf]
        %v5482 = vld [vmem:[%s5288 + $0x19] sm:$0xf]
        %v5483 = vld [vmem:[%s5288 + $0x29] sm:$0xf]
        %v5484 = vld [vmem:[%s5288 + $0x39] sm:$0xf]
        %s5485 = scalar_lea.vmem %s5, 256
        %v5486 = vld [vmem:[%s5485] sm:$0xff]
        %v5487 = vld [vmem:[%s5485 + $0x8] sm:$0xff]
        %v5488 = vld [vmem:[%s5485 + $0x10] sm:$0xff]
        %v5489 = vld [vmem:[%s5485 + $0x18] sm:$0xff]
        %v5494 = vcombine.low %v5481, %v5482
        %v5495 = vcombine.low %v5483, %v5484
        %v5496 = vsel %vm311, %v5494, 0
        %v5498 = vsel %vm311, %v5495, 0
        %5500 = vmatprep.subr.mxu0 0.0
        %5501 = vmatpush1.msra.mxu0 0.0
        %5502 = vmatprep.subr.mxu0 0.0
        %5503 = vmatpush1.msra.mxu0 0.0
        %5504 = vmatprep.subr.mxu0 0.0
        %5505 = vmatpush1.msra.mxu0 0.0
        %5506 = vmatprep.subr.mxu0 0.0
        %5507 = vmatpush1.msra.mxu0 0.0
        %5508 = vmatprep.subr.mxu0 0.0
        %5509 = vmatpush1.msra.mxu0 0.0
        %5510 = vmatprep.subr.mxu0 0.0
        %5511 = vmatpush1.msra.mxu0 0.0
        %5512 = vmatprep.subr.mxu0 0.0
        %5513 = vmatpush1.msra.mxu0 0.0
        %5514 = vmatprep.subr.mxu0 0.0
        %5515 = vmatpush1.msra.mxu0 0.0
        %5516 = vmatprep.subr.mxu0 0.0
        %5517 = vmatpush1.msra.mxu0 0.0
        %5518 = vmatprep.subr.mxu0 0.0
        %5519 = vmatpush1.msra.mxu0 0.0
        %5520 = vmatprep.subr.mxu0 0.0
        %5521 = vmatpush1.msra.mxu0 0.0
        %5522 = vmatprep.subr.mxu0 0.0
        %5523 = vmatpush1.msra.mxu0 0.0
        %5524 = vmatprep.subr.mxu0 0.0
        %5525 = vmatpush1.msra.mxu0 %v5489
        %5526 = vmatprep.subr.mxu0 0.0
        %5527 = vmatpush1.msra.mxu0 %v5488
        %5528 = vmatprep.subr.mxu0 0.0
        %5529 = vmatpush1.msra.mxu0 %v5487
        %5530 = vmatprep.subr.mxu0 0.0
        %5531 = vmatpush1.msra.mxu0 %v5486
        %5532 = vmatprep.subr.mxu0 0.0
        %5533 = vmatpush2.msra.mxu0 0.0
        %5534 = vmatprep.subr.mxu0 0.0
        %5535 = vmatpush2.msra.mxu0 0.0
        %5536 = vmatprep.subr.mxu0 0.0
        %5537 = vmatpush2.msra.mxu0 0.0
        %5538 = vmatprep.subr.mxu0 0.0
        %5539 = vmatpush2.msra.mxu0 0.0
        %5540 = vmatprep.subr.mxu0 0.0
        %5541 = vmatpush2.msra.mxu0 0.0
        %5542 = vmatprep.subr.mxu0 0.0
        %5543 = vmatpush2.msra.mxu0 0.0
        %5544 = vmatprep.subr.mxu0 0.0
        %5545 = vmatpush2.msra.mxu0 0.0
        %5546 = vmatprep.subr.mxu0 0.0
        %5547 = vmatpush2.msra.mxu0 0.0
        %5548 = vmatprep.subr.mxu0 0.0
        %5549 = vmatpush2.msra.mxu0 0.0
        %5550 = vmatprep.subr.mxu0 0.0
        %5551 = vmatpush2.msra.mxu0 0.0
        %5552 = vmatprep.subr.mxu0 0.0
        %5553 = vmatpush2.msra.mxu0 0.0
        %5554 = vmatprep.subr.mxu0 0.0
        %5555 = vmatpush2.msra.mxu0 0.0
        %5556 = vmatprep.subr.mxu0 0.0
        %5557 = vmatpush2.msra.mxu0 0.0
        %5558 = vmatprep.subr.mxu0 0.0
        %5559 = vmatpush2.msra.mxu0 0.0
        %5560 = vmatprep.subr.mxu0 0.0
        %5561 = vmatpush2.msra.mxu0 0.0
        %5562 = vmatprep.subr.mxu0 0.0
        %5563 = vmatpush2.msra.mxu0 0.0
        %5564 = vmatprep.mubr.f32.mxu0 0.0
        %5565 = vmatmul.mubr.f32.gmra.mxu0 %v5496
        %v5566 = vpop.f32.mrf.mxu0
        %v5567 = vadd.f32 0.0, %v5566
        %v5568 = vpop.f32.mrf.mxu0
        %5569 = vmatprep.mubr.f32.mxu0 0.0
        %5570 = vmatmul.mubr.f32.gmra.mxu0 %v5498
        %v5571 = vpop.f32.mrf.mxu0
        %v5572 = vadd.f32 0.0, %v5571
        %v5573 = vpop.f32.mrf.mxu0
        %5574 = vdwg.mxu0
        %v5575 = vadd.f32 %v5479, %v5567
        %v5576 = vadd.f32 %v5480, %v5572
        %v5577 = vld [vmem:[%s6] sm:$0x1]
        %v5579 = vlaneseq
        %v5580 = vshrl.u32 %v5579, 7
        %v5581 = vsub.s32 0, %v5580
        %v5582 = vrot.slane %v5577, %v5581
        %v5584 = vadd.f32 %v5575, %v5582
        %v5585 = vadd.f32 %v5576, %v5582
        %5586 = vst.msk [vmem:[%s271] sm:$0xff] %vm311, %v5584
        %5587 = vst.msk [vmem:[%s271 + $0x8] sm:$0xff] %vm311, %v5585
        %s5588 = sand.u32 %s181, 1
        %s5589 = scalar_lea.sflag [#allocation5], %s5588
        %s5590 = sand.u32 %s181, 1
        %s5591 = smul.addr %s5590, 16
        %s5592 = scalar_lea.vmem [#allocation4], %s5591
        // Predicated region
        $region49: #{tpu_custom_call.1} parent=47 // pred_check
          %p5593 = pneg %p191
        $region50: #{tpu_custom_call.1} parent=47 // pred_check_branch
          %5595 = sbr.rel (%p5593) target = $region52
        $region51: #{tpu_custom_call.1} parent=47 // pred_region
          %s5597 = ssub.s32 256, 256
          %5598 = vsyncadd %s5589, %s5597
          %s5599 = smul.addr %s21, 2
          %s5600 = smul.addr %s5599, 128
          %s5601 = scalar_lea.hbm %s7, %s5600
          %s5602 = sshll.u32 %s5592, 4
          %s5603 = int_to_ptr.vmem [resolvable:$true] %s5602
          %5608 = dma.vmem_to_hbm [thread:$0]  %s5603, 256, %s5601, %s5589, 128, 128, 8
        $region52: #{tpu_custom_call.1} parent=47 // pred_fallthru
          _
      $region48: #{tpu_custom_call.1} parent=5 // pred_fallthru
        _
      %p5609 = scmp.le.s32.totalorder 2, %s16
      // Predicated region
      $region53: #{tpu_custom_call.1} parent=5 // pred_check
        %p5610 = pneg %p5609
      $region54: #{tpu_custom_call.1} parent=5 // pred_check_branch
        %5612 = sbr.rel (%p5610) target = $region56
      $region55: #{tpu_custom_call.1} parent=5 // pred_region
        %s5613 = ssub.s32 %s16, 2
        // Predicated region
        $region57: #{tpu_custom_call.1} parent=55 // pred_check
          %p5614 = pneg %p197
        $region58: #{tpu_custom_call.1} parent=55 // pred_check_branch
          %5616 = sbr.rel (%p5614) target = $region60
        $region59: #{tpu_custom_call.1} parent=55 // pred_region
          %s5617 = sand.u32 %s182, 1
          %s5618 = scalar_lea.sflag [#allocation5], %s5617
          %s5619 = sand.u32 %s182, 1
          %s5620 = smul.addr %s5619, 16
          %s5621 = scalar_lea.vmem [#allocation4], %s5620
          %5622 = dma.done %s5618, 256
        $region60: #{tpu_custom_call.1} parent=55 // pred_fallthru
          _
      $region56: #{tpu_custom_call.1} parent=5 // pred_fallthru
        _
    $region6: #{tpu_custom_call.1} parent=1 // loop_footer
      %s20 = sadd.s32 1, %s16
    $region7: #{tpu_custom_call.1} parent=1 // loop_footer_branch
      %15 = sbr.rel target = $region3
    $region8: #{tpu_custom_call.1} parent=1 // loop_exit
      _
    %5623 = vsyncpa [#allocation5], 1
    %s5624 = scalar_lea.sflag [#allocation5], 1
    %5625 = vsyncpa %s5624, 1

</llo_original>
